<compile_context>
chip_gen: v7x
topology: tpu7x:2x2x1
jax: 0.10.0
libtpu: 0.0.40
codegen_flags: <defaults>
</compile_context>

<pallas_src>
import jax
import jax.numpy as jnp
from jax import lax
from jax.experimental import pallas as pl
from jax.experimental.pallas import tpu as pltpu

BN_EPS = 1e-5


def image_feature_extractor(x_nchw, p):
    N, Cin, H, W = x_nchw.shape
    assert H % 4 == 0 and W % 4 == 0
    C1, C2, C3 = 64, 128, 256
    F = p["fw"].shape[1]

    H1, W1 = H, W
    H2, W2 = H // 2, W // 2
    H3, W3 = H // 4, W // 4
    Wp2, Wp3 = W2 + 2, W3 + 2
    P2, P3 = (H2 + 2) * Wp2, (H3 + 2) * Wp3
    M1 = N * H1 * W1            # stage-1 rows (unpadded NHW layout)
    M2, M3 = N * P2, N * P3     # stage-2/3 rows (zero-padded plane layout)
    G2, G3 = 17, 9              # guard rows (>= Wp+1); odd so interior stores land even
    assert G2 >= Wp2 + 1 and G3 >= Wp3 + 1
    cnt1 = float(N * H1 * W1)
    cnt2 = float(N * H2 * W2)
    cnt3 = float(N * H3 * W3)
    inv_hw3 = 1.0 / float(H3 * W3)

    # ------------------- host-side prep (tiny XLA ops) ----------------------
    # conv1 im2col slab: pack all 9 taps along K so conv1 is ONE matmul.
    xh = jnp.transpose(x_nchw, (0, 2, 3, 1))                       # NHWC
    xp = jnp.pad(xh, ((0, 0), (1, 1), (1, 1), (0, 0)))
    slab1 = jnp.concatenate(
        [xp[:, dy:dy + H1, dx:dx + W1, :] for dy in range(3) for dx in range(3)],
        axis=-1).reshape(M1, 9 * Cin).astype(jnp.bfloat16)
    # weights laid out (dy, dx, cin) along K to match the im2col tap order.
    # TODO(synk): real PyTorch Conv2d weights are (Cout,Cin,3,3) and would need
    # a transpose to (3,3,Cin,Cout) before this reshape.
    w1 = p["w1"].reshape(9 * Cin, C1).astype(jnp.bfloat16)
    w2 = p["w2"].reshape(9 * C1, C2).astype(jnp.bfloat16)
    w3 = p["w3"].reshape(9 * C2, C3).astype(jnp.bfloat16)
    fw = p["fw"].astype(jnp.float32)
    g1, be1 = p["g1"].reshape(1, C1), p["be1"].reshape(1, C1)
    g2, be2 = p["g2"].reshape(1, C2), p["be2"].reshape(1, C2)
    g3, be3 = p["g3"].reshape(1, C3), p["be3"].reshape(1, C3)
    g4, be4 = p["g4"].reshape(1, F), p["be4"].reshape(1, F)

    # ---------------------- in-kernel helper functions ----------------------
    def interior_mask_row(m_total, plane, wp, h, w):
        """(1, m_total) f32 interior mask of the flat padded layout, built from
        a lane iota + unrolled range compares (no int div/mod, no extra input)."""
        j = lax.broadcasted_iota(jnp.int32, (1, m_total), 1)
        ok = None
        for n in range(N):
            for r in range(1, h + 1):
                lo = n * plane + r * wp + 1
                t = (j >= lo) & (j <= lo + w - 1)
                ok = t if ok is None else (ok | t)
        return ok.astype(jnp.float32)

    def bn_relu(z, mask_row, count, g_ref, b_ref):
        """Training-mode BN (one-pass, optionally masked batch stats) + ReLU."""
        if mask_row is None:
            s1 = jnp.sum(z, axis=0, keepdims=True)
            s2 = jnp.sum(z * z, axis=0, keepdims=True)
        else:
            # masked per-channel sums as tiny (1, M) @ (M, C) MXU dots
            s1 = jnp.dot(mask_row, z, preferred_element_type=jnp.float32)
            s2 = jnp.dot(mask_row, z * z, preferred_element_type=jnp.float32)
        mean = s1 * (1.0 / count)
        var = jnp.maximum(s2 * (1.0 / count) - mean * mean, 0.0)
        y = (z - mean) * lax.rsqrt(var + BN_EPS) * g_ref[...] + b_ref[...]
        return jnp.maximum(y, 0.0)

    # ------------------------------- kernel ---------------------------------
    def kernel(x1_ref, w1_ref, w2_ref, w3_ref, fw_ref,
               g1_ref, be1_ref, g2_ref, be2_ref, g3_ref, be3_ref,
               g4_ref, be4_ref, o_ref,
               post1, ptmp1, buf2, im2, post2, ptmp2, buf3, im3):
        f32 = jnp.float32

        # --- stage 1: conv1 as a single K=9*Cin dot, BN (no mask needed), ReLU
        z1 = jnp.dot(x1_ref[...], w1_ref[...], preferred_element_type=f32)
        post1[...] = bn_relu(z1, None, cnt1, g1_ref, be1_ref)          # (M1, C1)

        # 2x2 maxpool: bulk 4-way shifted max, then strided row downsample
        L1 = M1 - W1 - 1
        ptmp1[pl.ds(0, L1), :] = jnp.maximum(
            jnp.maximum(post1[pl.ds(0, L1), :], post1[pl.ds(1, L1), :]),
            jnp.maximum(post1[pl.ds(W1, L1), :], post1[pl.ds(W1 + 1, L1), :]))
        buf2[...] = jnp.zeros_like(buf2)              # pad ring / guards must be 0
        for n in range(N):
            for yo in range(H2):
                src = (n * H1 + 2 * yo) * W1
                dst = G2 + n * P2 + (yo + 1) * Wp2 + 1
                buf2[pl.ds(dst, W2), :] = \
                    ptmp1[pl.ds(src, W2, 2), :].astype(jnp.bfloat16)

        # --- stage 2: conv2 via in-kernel im2col (one K=9*C1 dot) + BN + ReLU
        t = 0
        for dy in range(3):
            for dx in range(3):
                off = G2 + (dy - 1) * Wp2 + (dx - 1)
                im2[pl.ds(0, M2), pl.ds(t * C1, C1)] = buf2[pl.ds(off, M2), :]
                t += 1
        z2 = jnp.dot(im2[...], w2_ref[...], preferred_element_type=f32)  # (M2,C2)
        mrow2 = interior_mask_row(M2, P2, Wp2, H2, W2)
        post2[...] = bn_relu(z2, mrow2, cnt2, g2_ref, be2_ref)
        # (pad rows of post2 hold junk-but-finite values; the pooling below only
        #  reads interior windows, so no extra masking pass is needed.)

        L2 = M2 - Wp2 - 1
        ptmp2[pl.ds(0, L2), :] = jnp.maximum(
            jnp.maximum(post2[pl.ds(0, L2), :], post2[pl.ds(1, L2), :]),
            jnp.maximum(post2[pl.ds(Wp2, L2), :], post2[pl.ds(Wp2 + 1, L2), :]))
        buf3[...] = jnp.zeros_like(buf3)
        for n in range(N):
            for yo in range(H3):
                src = n * P2 + (2 * yo + 1) * Wp2 + 1
                dst = G3 + n * P3 + (yo + 1) * Wp3 + 1
                buf3[pl.ds(dst, W3), :] = \
                    ptmp2[pl.ds(src, W3, 2), :].astype(jnp.bfloat16)

        # --- stage 3: conv3 via in-kernel im2col (one K=9*C2 dot) + BN + ReLU
        t = 0
        for dy in range(3):
            for dx in range(3):
                off = G3 + (dy - 1) * Wp3 + (dx - 1)
                im3[pl.ds(0, M3), pl.ds(t * C2, C2)] = buf3[pl.ds(off, M3), :]
                t += 1
        z3 = jnp.dot(im3[...], w3_ref[...], preferred_element_type=f32)  # (M3,C3)
        mrow3 = interior_mask_row(M3, P3, Wp3, H3, W3)
        a3 = bn_relu(z3, mrow3, cnt3, g3_ref, be3_ref)                   # (M3,C3)

        # --- global average pool: ONE dot with an interior-selection matrix
        jj = lax.broadcasted_iota(jnp.int32, (N, M3), 1)
        nn = lax.broadcasted_iota(jnp.int32, (N, M3), 0)
        base = nn * P3
        ok = None
        for r in range(1, H3 + 1):
            lo = base + r * Wp3 + 1
            tt = (jj >= lo) & (jj <= lo + W3 - 1)
            ok = tt if ok is None else (ok | tt)
        sel = ok.astype(f32) * inv_hw3                                   # (N, M3)
        feat = jnp.dot(sel, a3, preferred_element_type=f32)              # (N, C3)

        # --- head: Linear (bias cancels in training-mode BN1d) + BN1d + ReLU
        z = jnp.dot(feat, fw_ref[...], preferred_element_type=f32)       # (N, F)
        mean = jnp.mean(z, axis=0, keepdims=True)
        var = jnp.maximum(jnp.mean(z * z, axis=0, keepdims=True) - mean * mean, 0.0)
        y = (z - mean) * lax.rsqrt(var + BN_EPS) * g4_ref[...] + be4_ref[...]
        o_ref[...] = jnp.maximum(y, 0.0).astype(o_ref.dtype)

    return pl.pallas_call(
        kernel,
        out_shape=jax.ShapeDtypeStruct((N, F), jnp.float32),
        grid=(1,),
        in_specs=[
            pl.BlockSpec((M1, 9 * Cin), lambda i: (0, 0)),   # conv1 im2col slab
            pl.BlockSpec((9 * Cin, C1), lambda i: (0, 0)),
            pl.BlockSpec((9 * C1, C2), lambda i: (0, 0)),
            pl.BlockSpec((9 * C2, C3), lambda i: (0, 0)),
            pl.BlockSpec((C3, F), lambda i: (0, 0)),
            pl.BlockSpec((1, C1), lambda i: (0, 0)),
            pl.BlockSpec((1, C1), lambda i: (0, 0)),
            pl.BlockSpec((1, C2), lambda i: (0, 0)),
            pl.BlockSpec((1, C2), lambda i: (0, 0)),
            pl.BlockSpec((1, C3), lambda i: (0, 0)),
            pl.BlockSpec((1, C3), lambda i: (0, 0)),
            pl.BlockSpec((1, F), lambda i: (0, 0)),
            pl.BlockSpec((1, F), lambda i: (0, 0)),
        ],
        out_specs=pl.BlockSpec((N, F), lambda i: (0, 0)),
        scratch_shapes=[
            pltpu.VMEM((M1, C1), jnp.float32),             # post1 (conv1+BN+ReLU)
            pltpu.VMEM((M1, C1), jnp.float32),             # ptmp1 (pool window max)
            pltpu.VMEM((2 * G2 + M2, C1), jnp.bfloat16),   # buf2  (padded stage-2 in)
            pltpu.VMEM((M2, 9 * C1), jnp.bfloat16),        # im2   (stage-2 im2col)
            pltpu.VMEM((M2, C2), jnp.float32),             # post2
            pltpu.VMEM((M2, C2), jnp.float32),             # ptmp2
            pltpu.VMEM((2 * G3 + M3, C2), jnp.bfloat16),   # buf3  (padded stage-3 in)
            pltpu.VMEM((M3, 9 * C2), jnp.bfloat16),        # im3   (stage-3 im2col)
        ],
        compiler_params=pltpu.CompilerParams(
            dimension_semantics=("arbitrary",),
            # explicit VMEM budget (fits all generations incl. v7x's 64 MiB);
            # total residency here is ~3 MiB, so plenty of headroom.
            vmem_limit_bytes=32 * 1024 * 1024),
    )(slab1, w1, w2, w3, fw, g1, be1, g2, be2, g3, be3, g4, be4)


# ---------------------------------------------------------------------------
# deterministic synthetic parameters
# ---------------------------------------------------------------------------
def init_params(key, in_channels, out_features):
    ks = jax.random.split(key, 4)

    def conv_init(k, cin, cout):
        std = (2.0 / (9 * cin)) ** 0.5
        return jax.random.normal(k, (3, 3, cin, cout), jnp.float32) * std

    # Conv/Linear biases are omitted on purpose: the training-mode BatchNorm
    # that follows each of them subtracts the batch mean, so any per-channel
    # constant bias cancels exactly in the forward output.
    return {
        "w1": conv_init(ks[0], in_channels, 64),
        "g1": jnp.ones((64,), jnp.float32), "be1": jnp.zeros((64,), jnp.float32),
        "w2": conv_init(ks[1], 64, 128),
        "g2": jnp.ones((128,), jnp.float32), "be2": jnp.zeros((128,), jnp.float32),
        "w3": conv_init(ks[2], 128, 256),
        "g3": jnp.ones((256,), jnp.float32), "be3": jnp.zeros((256,), jnp.float32),
        "fw": jax.random.normal(ks[3], (256, out_features), jnp.float32) * (1.0 / 16.0),
        "g4": jnp.ones((out_features,), jnp.float32),
        "be4": jnp.zeros((out_features,), jnp.float32),
    }


if __name__ == "__main__":
    key = jax.random.PRNGKey(0)
    kx, kp = jax.random.split(key)
    in_channels, out_features = 4, 32
    x = jax.random.normal(kx, (2, in_channels, 16, 16), jnp.float32)  # NCHW like PyTorch
    params = init_params(kp, in_channels, out_features)

    out = jax.jit(image_feature_extractor)(x, params)
    jax.block_until_ready(out)
    assert out.shape == (2, out_features), out.shape
    assert bool(jnp.all(jnp.isfinite(out)))
    print("KERNEL_OK")
</pallas_src>

<mosaic_0001>
module attributes {stable_mosaic.version = 11 : i64} {
  func.func @kernel(%arg0: i32, %arg1: memref<512x36xbf16, #tpu.memory_space<vmem>>, %arg2: memref<36x64xbf16, #tpu.memory_space<vmem>>, %arg3: memref<576x128xbf16, #tpu.memory_space<vmem>>, %arg4: memref<1152x256xbf16, #tpu.memory_space<vmem>>, %arg5: memref<256x32xf32, #tpu.memory_space<vmem>>, %arg6: memref<1x64xf32, #tpu.memory_space<vmem>>, %arg7: memref<1x64xf32, #tpu.memory_space<vmem>>, %arg8: memref<1x128xf32, #tpu.memory_space<vmem>>, %arg9: memref<1x128xf32, #tpu.memory_space<vmem>>, %arg10: memref<1x256xf32, #tpu.memory_space<vmem>>, %arg11: memref<1x256xf32, #tpu.memory_space<vmem>>, %arg12: memref<1x32xf32, #tpu.memory_space<vmem>>, %arg13: memref<1x32xf32, #tpu.memory_space<vmem>>, %arg14: memref<2x32xf32, #tpu.memory_space<vmem>>, %arg15: memref<512x64xf32, #tpu.memory_space<vmem>>, %arg16: memref<512x64xf32, #tpu.memory_space<vmem>>, %arg17: memref<234x64xbf16, #tpu.memory_space<vmem>>, %arg18: memref<200x576xbf16, #tpu.memory_space<vmem>>, %arg19: memref<200x128xf32, #tpu.memory_space<vmem>>, %arg20: memref<200x128xf32, #tpu.memory_space<vmem>>, %arg21: memref<90x128xbf16, #tpu.memory_space<vmem>>, %arg22: memref<72x1152xbf16, #tpu.memory_space<vmem>>) attributes {dimension_semantics = [#tpu.dimension_semantics<arbitrary>], iteration_bounds = array<i64: 1>, scalar_prefetch = 0 : i64, scratch_operands = 8 : i64, tpu.core_type = #tpu.core_type<tc>, window_params = [{pipeline_mode = #tpu.pipeline_mode<synchronous>, transform_indices = @transform_0, window_bounds = array<i64: 512, 36>}, {pipeline_mode = #tpu.pipeline_mode<synchronous>, transform_indices = @transform_1, window_bounds = array<i64: 36, 64>}, {pipeline_mode = #tpu.pipeline_mode<synchronous>, transform_indices = @transform_2, window_bounds = array<i64: 576, 128>}, {pipeline_mode = #tpu.pipeline_mode<synchronous>, transform_indices = @transform_3, window_bounds = array<i64: 1152, 256>}, {pipeline_mode = #tpu.pipeline_mode<synchronous>, transform_indices = @transform_4, window_bounds = array<i64: 256, 32>}, {pipeline_mode = #tpu.pipeline_mode<synchronous>, transform_indices = @transform_5, window_bounds = array<i64: 1, 64>}, {pipeline_mode = #tpu.pipeline_mode<synchronous>, transform_indices = @transform_6, window_bounds = array<i64: 1, 64>}, {pipeline_mode = #tpu.pipeline_mode<synchronous>, transform_indices = @transform_7, window_bounds = array<i64: 1, 128>}, {pipeline_mode = #tpu.pipeline_mode<synchronous>, transform_indices = @transform_8, window_bounds = array<i64: 1, 128>}, {pipeline_mode = #tpu.pipeline_mode<synchronous>, transform_indices = @transform_9, window_bounds = array<i64: 1, 256>}, {pipeline_mode = #tpu.pipeline_mode<synchronous>, transform_indices = @transform_10, window_bounds = array<i64: 1, 256>}, {pipeline_mode = #tpu.pipeline_mode<synchronous>, transform_indices = @transform_11, window_bounds = array<i64: 1, 32>}, {pipeline_mode = #tpu.pipeline_mode<synchronous>, transform_indices = @transform_12, window_bounds = array<i64: 1, 32>}, {pipeline_mode = #tpu.pipeline_mode<synchronous>, transform_indices = @transform_13, window_bounds = array<i64: 2, 32>}]} {
    %c0 = arith.constant 0 : index
    %c0_0 = arith.constant 0 : index
    %0 = vector.load %arg1[%c0, %c0_0] : memref<512x36xbf16, #tpu.memory_space<vmem>>, vector<512x36xbf16>
    %c0_1 = arith.constant 0 : index
    %c0_2 = arith.constant 0 : index
    %1 = vector.load %arg2[%c0_1, %c0_2] : memref<36x64xbf16, #tpu.memory_space<vmem>>, vector<36x64xbf16>
    %cst = arith.constant dense<0.000000e+00> : vector<512x64xf32>
    %2 = tpu.matmul %0, %1, %cst {dimension_numbers = #tpu.dot_dimension_numbers<[1], [0], [0], [1], [0, 0, 1, 1], [], []>} : vector<512x36xbf16>, vector<36x64xbf16>, vector<512x64xf32> -> vector<512x64xf32>
    %cst_3 = arith.constant dense<0.000000e+00> : vector<64xf32>
    %3 = vector.multi_reduction <add>, %2, %cst_3 [0] : vector<512x64xf32> to vector<64xf32>
    %4 = vector.shape_cast %3 : vector<64xf32> to vector<1x64xf32>
    %5 = arith.mulf %2, %2 : vector<512x64xf32>
    %cst_4 = arith.constant dense<0.000000e+00> : vector<64xf32>
    %6 = vector.multi_reduction <add>, %5, %cst_4 [0] : vector<512x64xf32> to vector<64xf32>
    %7 = vector.shape_cast %6 : vector<64xf32> to vector<1x64xf32>
    %cst_5 = arith.constant 0.001953125 : f32
    %8 = vector.broadcast %cst_5 : f32 to vector<1x64xf32>
    %9 = arith.mulf %4, %8 : vector<1x64xf32>
    %cst_6 = arith.constant 0.001953125 : f32
    %10 = vector.broadcast %cst_6 : f32 to vector<1x64xf32>
    %11 = arith.mulf %7, %10 : vector<1x64xf32>
    %12 = arith.mulf %9, %9 : vector<1x64xf32>
    %13 = arith.subf %11, %12 : vector<1x64xf32>
    %cst_7 = arith.constant 0.000000e+00 : f32
    %14 = vector.broadcast %cst_7 : f32 to vector<1x64xf32>
    %15 = arith.maximumf %13, %14 : vector<1x64xf32>
    %16 = vector.broadcast %9 : vector<1x64xf32> to vector<512x64xf32>
    %17 = arith.subf %2, %16 : vector<512x64xf32>
    %cst_8 = arith.constant 9.99999974E-6 : f32
    %18 = vector.broadcast %cst_8 : f32 to vector<1x64xf32>
    %19 = arith.addf %15, %18 : vector<1x64xf32>
    %20 = math.rsqrt %19 : vector<1x64xf32>
    %21 = vector.broadcast %20 : vector<1x64xf32> to vector<512x64xf32>
    %22 = arith.mulf %17, %21 : vector<512x64xf32>
    %c0_9 = arith.constant 0 : index
    %c0_10 = arith.constant 0 : index
    %23 = vector.load %arg6[%c0_9, %c0_10] : memref<1x64xf32, #tpu.memory_space<vmem>>, vector<1x64xf32>
    %24 = vector.broadcast %23 : vector<1x64xf32> to vector<512x64xf32>
    %25 = arith.mulf %22, %24 : vector<512x64xf32>
    %c0_11 = arith.constant 0 : index
    %c0_12 = arith.constant 0 : index
    %26 = vector.load %arg7[%c0_11, %c0_12] : memref<1x64xf32, #tpu.memory_space<vmem>>, vector<1x64xf32>
    %27 = vector.broadcast %26 : vector<1x64xf32> to vector<512x64xf32>
    %28 = arith.addf %25, %27 : vector<512x64xf32>
    %cst_13 = arith.constant 0.000000e+00 : f32
    %29 = vector.broadcast %cst_13 : f32 to vector<512x64xf32>
    %30 = arith.maximumf %28, %29 : vector<512x64xf32>
    %c0_14 = arith.constant 0 : index
    %c0_15 = arith.constant 0 : index
    %31 = vector.load %arg15[%c0_14, %c0_15] : memref<512x64xf32, #tpu.memory_space<vmem>>, vector<512x64xf32>
    tpu.vector_store %arg15[%c0_14, %c0_15], %30 {strides = array<i32>} : memref<512x64xf32, #tpu.memory_space<vmem>>, vector<512x64xf32>,
    %c0_16 = arith.constant 0 : index
    %c0_17 = arith.constant 0 : index
    %32 = vector.load %arg15[%c0_16, %c0_17] : memref<512x64xf32, #tpu.memory_space<vmem>>, vector<495x64xf32>
    %c1 = arith.constant 1 : index
    %c0_18 = arith.constant 0 : index
    %33 = vector.load %arg15[%c1, %c0_18] : memref<512x64xf32, #tpu.memory_space<vmem>>, vector<495x64xf32>
    %34 = arith.maximumf %32, %33 : vector<495x64xf32>
    %c16 = arith.constant 16 : index
    %c0_19 = arith.constant 0 : index
    %35 = vector.load %arg15[%c16, %c0_19] : memref<512x64xf32, #tpu.memory_space<vmem>>, vector<495x64xf32>
    %c17 = arith.constant 17 : index
    %c0_20 = arith.constant 0 : index
    %36 = vector.load %arg15[%c17, %c0_20] : memref<512x64xf32, #tpu.memory_space<vmem>>, vector<495x64xf32>
    %37 = arith.maximumf %35, %36 : vector<495x64xf32>
    %38 = arith.maximumf %34, %37 : vector<495x64xf32>
    %c0_21 = arith.constant 0 : index
    %c0_22 = arith.constant 0 : index
    %39 = vector.load %arg16[%c0_21, %c0_22] : memref<512x64xf32, #tpu.memory_space<vmem>>, vector<495x64xf32>
    tpu.vector_store %arg16[%c0_21, %c0_22], %38 {strides = array<i32>} : memref<512x64xf32, #tpu.memory_space<vmem>>, vector<495x64xf32>,
    %cst_23 = arith.constant 0.000000e+00 : bf16
    %40 = vector.broadcast %cst_23 : bf16 to vector<234x64xbf16>
    %c0_24 = arith.constant 0 : index
    %c0_25 = arith.constant 0 : index
    %41 = vector.load %arg17[%c0_24, %c0_25] : memref<234x64xbf16, #tpu.memory_space<vmem>>, vector<234x64xbf16>
    tpu.vector_store %arg17[%c0_24, %c0_25], %40 {strides = array<i32>} : memref<234x64xbf16, #tpu.memory_space<vmem>>, vector<234x64xbf16>,
    %c0_26 = arith.constant 0 : index
    %c0_27 = arith.constant 0 : index
    %42 = tpu.strided_load %arg16[%c0_26, %c0_27] {strides = array<i32: 2, 1>} : memref<512x64xf32, #tpu.memory_space<vmem>>, vector<8x64xf32>
    %43 = arith.truncf %42 : vector<8x64xf32> to vector<8x64xbf16>
    %c28 = arith.constant 28 : index
    %c0_28 = arith.constant 0 : index
    %44 = vector.load %arg17[%c28, %c0_28] : memref<234x64xbf16, #tpu.memory_space<vmem>>, vector<8x64xbf16>
    tpu.vector_store %arg17[%c28, %c0_28], %43 {strides = array<i32>} : memref<234x64xbf16, #tpu.memory_space<vmem>>, vector<8x64xbf16>,
    %c32 = arith.constant 32 : index
    %c0_29 = arith.constant 0 : index
    %45 = tpu.strided_load %arg16[%c32, %c0_29] {strides = array<i32: 2, 1>} : memref<512x64xf32, #tpu.memory_space<vmem>>, vector<8x64xf32>
    %46 = arith.truncf %45 : vector<8x64xf32> to vector<8x64xbf16>
    %c38 = arith.constant 38 : index
    %c0_30 = arith.constant 0 : index
    %47 = vector.load %arg17[%c38, %c0_30] : memref<234x64xbf16, #tpu.memory_space<vmem>>, vector<8x64xbf16>
    tpu.vector_store %arg17[%c38, %c0_30], %46 {strides = array<i32>} : memref<234x64xbf16, #tpu.memory_space<vmem>>, vector<8x64xbf16>,
    %c64 = arith.constant 64 : index
    %c0_31 = arith.constant 0 : index
    %48 = tpu.strided_load %arg16[%c64, %c0_31] {strides = array<i32: 2, 1>} : memref<512x64xf32, #tpu.memory_space<vmem>>, vector<8x64xf32>
    %49 = arith.truncf %48 : vector<8x64xf32> to vector<8x64xbf16>
    %c48 = arith.constant 48 : index
    %c0_32 = arith.constant 0 : index
    %50 = vector.load %arg17[%c48, %c0_32] : memref<234x64xbf16, #tpu.memory_space<vmem>>, vector<8x64xbf16>
    tpu.vector_store %arg17[%c48, %c0_32], %49 {strides = array<i32>} : memref<234x64xbf16, #tpu.memory_space<vmem>>, vector<8x64xbf16>,
    %c96 = arith.constant 96 : index
    %c0_33 = arith.constant 0 : index
    %51 = tpu.strided_load %arg16[%c96, %c0_33] {strides = array<i32: 2, 1>} : memref<512x64xf32, #tpu.memory_space<vmem>>, vector<8x64xf32>
    %52 = arith.truncf %51 : vector<8x64xf32> to vector<8x64xbf16>
    %c58 = arith.constant 58 : index
    %c0_34 = arith.constant 0 : index
    %53 = vector.load %arg17[%c58, %c0_34] : memref<234x64xbf16, #tpu.memory_space<vmem>>, vector<8x64xbf16>
    tpu.vector_store %arg17[%c58, %c0_34], %52 {strides = array<i32>} : memref<234x64xbf16, #tpu.memory_space<vmem>>, vector<8x64xbf16>,
    %c128 = arith.constant 128 : index
    %c0_35 = arith.constant 0 : index
    %54 = tpu.strided_load %arg16[%c128, %c0_35] {strides = array<i32: 2, 1>} : memref<512x64xf32, #tpu.memory_space<vmem>>, vector<8x64xf32>
    %55 = arith.truncf %54 : vector<8x64xf32> to vector<8x64xbf16>
    %c68 = arith.constant 68 : index
    %c0_36 = arith.constant 0 : index
    %56 = vector.load %arg17[%c68, %c0_36] : memref<234x64xbf16, #tpu.memory_space<vmem>>, vector<8x64xbf16>
    tpu.vector_store %arg17[%c68, %c0_36], %55 {strides = array<i32>} : memref<234x64xbf16, #tpu.memory_space<vmem>>, vector<8x64xbf16>,
    %c160 = arith.constant 160 : index
    %c0_37 = arith.constant 0 : index
    %57 = tpu.strided_load %arg16[%c160, %c0_37] {strides = array<i32: 2, 1>} : memref<512x64xf32, #tpu.memory_space<vmem>>, vector<8x64xf32>
    %58 = arith.truncf %57 : vector<8x64xf32> to vector<8x64xbf16>
    %c78 = arith.constant 78 : index
    %c0_38 = arith.constant 0 : index
    %59 = vector.load %arg17[%c78, %c0_38] : memref<234x64xbf16, #tpu.memory_space<vmem>>, vector<8x64xbf16>
    tpu.vector_store %arg17[%c78, %c0_38], %58 {strides = array<i32>} : memref<234x64xbf16, #tpu.memory_space<vmem>>, vector<8x64xbf16>,
    %c192 = arith.constant 192 : index
    %c0_39 = arith.constant 0 : index
    %60 = tpu.strided_load %arg16[%c192, %c0_39] {strides = array<i32: 2, 1>} : memref<512x64xf32, #tpu.memory_space<vmem>>, vector<8x64xf32>
    %61 = arith.truncf %60 : vector<8x64xf32> to vector<8x64xbf16>
    %c88 = arith.constant 88 : index
    %c0_40 = arith.constant 0 : index
    %62 = vector.load %arg17[%c88, %c0_40] : memref<234x64xbf16, #tpu.memory_space<vmem>>, vector<8x64xbf16>
    tpu.vector_store %arg17[%c88, %c0_40], %61 {strides = array<i32>} : memref<234x64xbf16, #tpu.memory_space<vmem>>, vector<8x64xbf16>,
    %c224 = arith.constant 224 : index
    %c0_41 = arith.constant 0 : index
    %63 = tpu.strided_load %arg16[%c224, %c0_41] {strides = array<i32: 2, 1>} : memref<512x64xf32, #tpu.memory_space<vmem>>, vector<8x64xf32>
    %64 = arith.truncf %63 : vector<8x64xf32> to vector<8x64xbf16>
    %c98 = arith.constant 98 : index
    %c0_42 = arith.constant 0 : index
    %65 = vector.load %arg17[%c98, %c0_42] : memref<234x64xbf16, #tpu.memory_space<vmem>>, vector<8x64xbf16>
    tpu.vector_store %arg17[%c98, %c0_42], %64 {strides = array<i32>} : memref<234x64xbf16, #tpu.memory_space<vmem>>, vector<8x64xbf16>,
    %c256 = arith.constant 256 : index
    %c0_43 = arith.constant 0 : index
    %66 = tpu.strided_load %arg16[%c256, %c0_43] {strides = array<i32: 2, 1>} : memref<512x64xf32, #tpu.memory_space<vmem>>, vector<8x64xf32>
    %67 = arith.truncf %66 : vector<8x64xf32> to vector<8x64xbf16>
    %c128_44 = arith.constant 128 : index
    %c0_45 = arith.constant 0 : index
    %68 = vector.load %arg17[%c128_44, %c0_45] : memref<234x64xbf16, #tpu.memory_space<vmem>>, vector<8x64xbf16>
    tpu.vector_store %arg17[%c128_44, %c0_45], %67 {strides = array<i32>} : memref<234x64xbf16, #tpu.memory_space<vmem>>, vector<8x64xbf16>,
    %c288 = arith.constant 288 : index
    %c0_46 = arith.constant 0 : index
    %69 = tpu.strided_load %arg16[%c288, %c0_46] {strides = array<i32: 2, 1>} : memref<512x64xf32, #tpu.memory_space<vmem>>, vector<8x64xf32>
    %70 = arith.truncf %69 : vector<8x64xf32> to vector<8x64xbf16>
    %c138 = arith.constant 138 : index
    %c0_47 = arith.constant 0 : index
    %71 = vector.load %arg17[%c138, %c0_47] : memref<234x64xbf16, #tpu.memory_space<vmem>>, vector<8x64xbf16>
    tpu.vector_store %arg17[%c138, %c0_47], %70 {strides = array<i32>} : memref<234x64xbf16, #tpu.memory_space<vmem>>, vector<8x64xbf16>,
    %c320 = arith.constant 320 : index
    %c0_48 = arith.constant 0 : index
    %72 = tpu.strided_load %arg16[%c320, %c0_48] {strides = array<i32: 2, 1>} : memref<512x64xf32, #tpu.memory_space<vmem>>, vector<8x64xf32>
    %73 = arith.truncf %72 : vector<8x64xf32> to vector<8x64xbf16>
    %c148 = arith.constant 148 : index
    %c0_49 = arith.constant 0 : index
    %74 = vector.load %arg17[%c148, %c0_49] : memref<234x64xbf16, #tpu.memory_space<vmem>>, vector<8x64xbf16>
    tpu.vector_store %arg17[%c148, %c0_49], %73 {strides = array<i32>} : memref<234x64xbf16, #tpu.memory_space<vmem>>, vector<8x64xbf16>,
    %c352 = arith.constant 352 : index
    %c0_50 = arith.constant 0 : index
    %75 = tpu.strided_load %arg16[%c352, %c0_50] {strides = array<i32: 2, 1>} : memref<512x64xf32, #tpu.memory_space<vmem>>, vector<8x64xf32>
    %76 = arith.truncf %75 : vector<8x64xf32> to vector<8x64xbf16>
    %c158 = arith.constant 158 : index
    %c0_51 = arith.constant 0 : index
    %77 = vector.load %arg17[%c158, %c0_51] : memref<234x64xbf16, #tpu.memory_space<vmem>>, vector<8x64xbf16>
    tpu.vector_store %arg17[%c158, %c0_51], %76 {strides = array<i32>} : memref<234x64xbf16, #tpu.memory_space<vmem>>, vector<8x64xbf16>,
    %c384 = arith.constant 384 : index
    %c0_52 = arith.constant 0 : index
    %78 = tpu.strided_load %arg16[%c384, %c0_52] {strides = array<i32: 2, 1>} : memref<512x64xf32, #tpu.memory_space<vmem>>, vector<8x64xf32>
    %79 = arith.truncf %78 : vector<8x64xf32> to vector<8x64xbf16>
    %c168 = arith.constant 168 : index
    %c0_53 = arith.constant 0 : index
    %80 = vector.load %arg17[%c168, %c0_53] : memref<234x64xbf16, #tpu.memory_space<vmem>>, vector<8x64xbf16>
    tpu.vector_store %arg17[%c168, %c0_53], %79 {strides = array<i32>} : memref<234x64xbf16, #tpu.memory_space<vmem>>, vector<8x64xbf16>,
    %c416 = arith.constant 416 : index
    %c0_54 = arith.constant 0 : index
    %81 = tpu.strided_load %arg16[%c416, %c0_54] {strides = array<i32: 2, 1>} : memref<512x64xf32, #tpu.memory_space<vmem>>, vector<8x64xf32>
    %82 = arith.truncf %81 : vector<8x64xf32> to vector<8x64xbf16>
    %c178 = arith.constant 178 : index
    %c0_55 = arith.constant 0 : index
    %83 = vector.load %arg17[%c178, %c0_55] : memref<234x64xbf16, #tpu.memory_space<vmem>>, vector<8x64xbf16>
    tpu.vector_store %arg17[%c178, %c0_55], %82 {strides = array<i32>} : memref<234x64xbf16, #tpu.memory_space<vmem>>, vector<8x64xbf16>,
    %c448 = arith.constant 448 : index
    %c0_56 = arith.constant 0 : index
    %84 = tpu.strided_load %arg16[%c448, %c0_56] {strides = array<i32: 2, 1>} : memref<512x64xf32, #tpu.memory_space<vmem>>, vector<8x64xf32>
    %85 = arith.truncf %84 : vector<8x64xf32> to vector<8x64xbf16>
    %c188 = arith.constant 188 : index
    %c0_57 = arith.constant 0 : index
    %86 = vector.load %arg17[%c188, %c0_57] : memref<234x64xbf16, #tpu.memory_space<vmem>>, vector<8x64xbf16>
    tpu.vector_store %arg17[%c188, %c0_57], %85 {strides = array<i32>} : memref<234x64xbf16, #tpu.memory_space<vmem>>, vector<8x64xbf16>,
    %c480 = arith.constant 480 : index
    %c0_58 = arith.constant 0 : index
    %87 = tpu.strided_load %arg16[%c480, %c0_58] {strides = array<i32: 2, 1>} : memref<512x64xf32, #tpu.memory_space<vmem>>, vector<8x64xf32>
    %88 = arith.truncf %87 : vector<8x64xf32> to vector<8x64xbf16>
    %c198 = arith.constant 198 : index
    %c0_59 = arith.constant 0 : index
    %89 = vector.load %arg17[%c198, %c0_59] : memref<234x64xbf16, #tpu.memory_space<vmem>>, vector<8x64xbf16>
    tpu.vector_store %arg17[%c198, %c0_59], %88 {strides = array<i32>} : memref<234x64xbf16, #tpu.memory_space<vmem>>, vector<8x64xbf16>,
    %c6 = arith.constant 6 : index
    %c0_60 = arith.constant 0 : index
    %90 = vector.load %arg17[%c6, %c0_60] : memref<234x64xbf16, #tpu.memory_space<vmem>>, vector<200x64xbf16>
    %c0_61 = arith.constant 0 : index
    %c0_62 = arith.constant 0 : index
    %91 = vector.load %arg18[%c0_61, %c0_62] : memref<200x576xbf16, #tpu.memory_space<vmem>>, vector<200x64xbf16>
    tpu.vector_store %arg18[%c0_61, %c0_62], %90 {strides = array<i32>} : memref<200x576xbf16, #tpu.memory_space<vmem>>, vector<200x64xbf16>,
    %c7 = arith.constant 7 : index
    %c0_63 = arith.constant 0 : index
    %92 = vector.load %arg17[%c7, %c0_63] : memref<234x64xbf16, #tpu.memory_space<vmem>>, vector<200x64xbf16>
    %c0_64 = arith.constant 0 : index
    %c64_65 = arith.constant 64 : index
    %93 = vector.load %arg18[%c0_64, %c64_65] : memref<200x576xbf16, #tpu.memory_space<vmem>>, vector<200x64xbf16>
    tpu.vector_store %arg18[%c0_64, %c64_65], %92 {strides = array<i32>} : memref<200x576xbf16, #tpu.memory_space<vmem>>, vector<200x64xbf16>,
    %c8 = arith.constant 8 : index
    %c0_66 = arith.constant 0 : index
    %94 = vector.load %arg17[%c8, %c0_66] : memref<234x64xbf16, #tpu.memory_space<vmem>>, vector<200x64xbf16>
    %c0_67 = arith.constant 0 : index
    %c128_68 = arith.constant 128 : index
    %95 = vector.load %arg18[%c0_67, %c128_68] : memref<200x576xbf16, #tpu.memory_space<vmem>>, vector<200x64xbf16>
    tpu.vector_store %arg18[%c0_67, %c128_68], %94 {strides = array<i32>} : memref<200x576xbf16, #tpu.memory_space<vmem>>, vector<200x64xbf16>,
    %c16_69 = arith.constant 16 : index
    %c0_70 = arith.constant 0 : index
    %96 = vector.load %arg17[%c16_69, %c0_70] : memref<234x64xbf16, #tpu.memory_space<vmem>>, vector<200x64xbf16>
    %c0_71 = arith.constant 0 : index
    %c192_72 = arith.constant 192 : index
    %97 = vector.load %arg18[%c0_71, %c192_72] : memref<200x576xbf16, #tpu.memory_space<vmem>>, vector<200x64xbf16>
    tpu.vector_store %arg18[%c0_71, %c192_72], %96 {strides = array<i32>} : memref<200x576xbf16, #tpu.memory_space<vmem>>, vector<200x64xbf16>,
    %c17_73 = arith.constant 17 : index
    %c0_74 = arith.constant 0 : index
    %98 = vector.load %arg17[%c17_73, %c0_74] : memref<234x64xbf16, #tpu.memory_space<vmem>>, vector<200x64xbf16>
    %c0_75 = arith.constant 0 : index
    %c256_76 = arith.constant 256 : index
    %99 = vector.load %arg18[%c0_75, %c256_76] : memref<200x576xbf16, #tpu.memory_space<vmem>>, vector<200x64xbf16>
    tpu.vector_store %arg18[%c0_75, %c256_76], %98 {strides = array<i32>} : memref<200x576xbf16, #tpu.memory_space<vmem>>, vector<200x64xbf16>,
    %c18 = arith.constant 18 : index
    %c0_77 = arith.constant 0 : index
    %100 = vector.load %arg17[%c18, %c0_77] : memref<234x64xbf16, #tpu.memory_space<vmem>>, vector<200x64xbf16>
    %c0_78 = arith.constant 0 : index
    %c320_79 = arith.constant 320 : index
    %101 = vector.load %arg18[%c0_78, %c320_79] : memref<200x576xbf16, #tpu.memory_space<vmem>>, vector<200x64xbf16>
    tpu.vector_store %arg18[%c0_78, %c320_79], %100 {strides = array<i32>} : memref<200x576xbf16, #tpu.memory_space<vmem>>, vector<200x64xbf16>,
    %c26 = arith.constant 26 : index
    %c0_80 = arith.constant 0 : index
    %102 = vector.load %arg17[%c26, %c0_80] : memref<234x64xbf16, #tpu.memory_space<vmem>>, vector<200x64xbf16>
    %c0_81 = arith.constant 0 : index
    %c384_82 = arith.constant 384 : index
    %103 = vector.load %arg18[%c0_81, %c384_82] : memref<200x576xbf16, #tpu.memory_space<vmem>>, vector<200x64xbf16>
    tpu.vector_store %arg18[%c0_81, %c384_82], %102 {strides = array<i32>} : memref<200x576xbf16, #tpu.memory_space<vmem>>, vector<200x64xbf16>,
    %c27 = arith.constant 27 : index
    %c0_83 = arith.constant 0 : index
    %104 = vector.load %arg17[%c27, %c0_83] : memref<234x64xbf16, #tpu.memory_space<vmem>>, vector<200x64xbf16>
    %c0_84 = arith.constant 0 : index
    %c448_85 = arith.constant 448 : index
    %105 = vector.load %arg18[%c0_84, %c448_85] : memref<200x576xbf16, #tpu.memory_space<vmem>>, vector<200x64xbf16>
    tpu.vector_store %arg18[%c0_84, %c448_85], %104 {strides = array<i32>} : memref<200x576xbf16, #tpu.memory_space<vmem>>, vector<200x64xbf16>,
    %c28_86 = arith.constant 28 : index
    %c0_87 = arith.constant 0 : index
    %106 = vector.load %arg17[%c28_86, %c0_87] : memref<234x64xbf16, #tpu.memory_space<vmem>>, vector<200x64xbf16>
    %c0_88 = arith.constant 0 : index
    %c512 = arith.constant 512 : index
    %107 = vector.load %arg18[%c0_88, %c512] : memref<200x576xbf16, #tpu.memory_space<vmem>>, vector<200x64xbf16>
    tpu.vector_store %arg18[%c0_88, %c512], %106 {strides = array<i32>} : memref<200x576xbf16, #tpu.memory_space<vmem>>, vector<200x64xbf16>,
    %c0_89 = arith.constant 0 : index
    %c0_90 = arith.constant 0 : index
    %108 = vector.load %arg18[%c0_89, %c0_90] : memref<200x576xbf16, #tpu.memory_space<vmem>>, vector<200x576xbf16>
    %c0_91 = arith.constant 0 : index
    %c0_92 = arith.constant 0 : index
    %109 = vector.load %arg3[%c0_91, %c0_92] : memref<576x128xbf16, #tpu.memory_space<vmem>>, vector<576x128xbf16>
    %cst_93 = arith.constant dense<0.000000e+00> : vector<200x128xf32>
    %110 = tpu.matmul %108, %109, %cst_93 {dimension_numbers = #tpu.dot_dimension_numbers<[1], [0], [0], [1], [0, 0, 1, 1], [], []>} : vector<200x576xbf16>, vector<576x128xbf16>, vector<200x128xf32> -> vector<200x128xf32>
    %111 = tpu.iota {dimensions = array<i32: 1>} : vector<1x200xi32>
    %c11_i32 = arith.constant 11 : i32
    %112 = vector.broadcast %c11_i32 : i32 to vector<1x200xi32>
    %113 = arith.cmpi sge, %111, %112 : vector<1x200xi32>
    %c18_i32 = arith.constant 18 : i32
    %114 = vector.broadcast %c18_i32 : i32 to vector<1x200xi32>
    %115 = arith.cmpi sle, %111, %114 : vector<1x200xi32>
    %116 = arith.andi %113, %115 : vector<1x200xi1>
    %c21_i32 = arith.constant 21 : i32
    %117 = vector.broadcast %c21_i32 : i32 to vector<1x200xi32>
    %118 = arith.cmpi sge, %111, %117 : vector<1x200xi32>
    %c28_i32 = arith.constant 28 : i32
    %119 = vector.broadcast %c28_i32 : i32 to vector<1x200xi32>
    %120 = arith.cmpi sle, %111, %119 : vector<1x200xi32>
    %121 = arith.andi %118, %120 : vector<1x200xi1>
    %122 = arith.ori %116, %121 : vector<1x200xi1>
    %c31_i32 = arith.constant 31 : i32
    %123 = vector.broadcast %c31_i32 : i32 to vector<1x200xi32>
    %124 = arith.cmpi sge, %111, %123 : vector<1x200xi32>
    %c38_i32 = arith.constant 38 : i32
    %125 = vector.broadcast %c38_i32 : i32 to vector<1x200xi32>
    %126 = arith.cmpi sle, %111, %125 : vector<1x200xi32>
    %127 = arith.andi %124, %126 : vector<1x200xi1>
    %128 = arith.ori %122, %127 : vector<1x200xi1>
    %c41_i32 = arith.constant 41 : i32
    %129 = vector.broadcast %c41_i32 : i32 to vector<1x200xi32>
    %130 = arith.cmpi sge, %111, %129 : vector<1x200xi32>
    %c48_i32 = arith.constant 48 : i32
    %131 = vector.broadcast %c48_i32 : i32 to vector<1x200xi32>
    %132 = arith.cmpi sle, %111, %131 : vector<1x200xi32>
    %133 = arith.andi %130, %132 : vector<1x200xi1>
    %134 = arith.ori %128, %133 : vector<1x200xi1>
    %c51_i32 = arith.constant 51 : i32
    %135 = vector.broadcast %c51_i32 : i32 to vector<1x200xi32>
    %136 = arith.cmpi sge, %111, %135 : vector<1x200xi32>
    %c58_i32 = arith.constant 58 : i32
    %137 = vector.broadcast %c58_i32 : i32 to vector<1x200xi32>
    %138 = arith.cmpi sle, %111, %137 : vector<1x200xi32>
    %139 = arith.andi %136, %138 : vector<1x200xi1>
    %140 = arith.ori %134, %139 : vector<1x200xi1>
    %c61_i32 = arith.constant 61 : i32
    %141 = vector.broadcast %c61_i32 : i32 to vector<1x200xi32>
    %142 = arith.cmpi sge, %111, %141 : vector<1x200xi32>
    %c68_i32 = arith.constant 68 : i32
    %143 = vector.broadcast %c68_i32 : i32 to vector<1x200xi32>
    %144 = arith.cmpi sle, %111, %143 : vector<1x200xi32>
    %145 = arith.andi %142, %144 : vector<1x200xi1>
    %146 = arith.ori %140, %145 : vector<1x200xi1>
    %c71_i32 = arith.constant 71 : i32
    %147 = vector.broadcast %c71_i32 : i32 to vector<1x200xi32>
    %148 = arith.cmpi sge, %111, %147 : vector<1x200xi32>
    %c78_i32 = arith.constant 78 : i32
    %149 = vector.broadcast %c78_i32 : i32 to vector<1x200xi32>
    %150 = arith.cmpi sle, %111, %149 : vector<1x200xi32>
    %151 = arith.andi %148, %150 : vector<1x200xi1>
    %152 = arith.ori %146, %151 : vector<1x200xi1>
    %c81_i32 = arith.constant 81 : i32
    %153 = vector.broadcast %c81_i32 : i32 to vector<1x200xi32>
    %154 = arith.cmpi sge, %111, %153 : vector<1x200xi32>
    %c88_i32 = arith.constant 88 : i32
    %155 = vector.broadcast %c88_i32 : i32 to vector<1x200xi32>
    %156 = arith.cmpi sle, %111, %155 : vector<1x200xi32>
    %157 = arith.andi %154, %156 : vector<1x200xi1>
    %158 = arith.ori %152, %157 : vector<1x200xi1>
    %c111_i32 = arith.constant 111 : i32
    %159 = vector.broadcast %c111_i32 : i32 to vector<1x200xi32>
    %160 = arith.cmpi sge, %111, %159 : vector<1x200xi32>
    %c118_i32 = arith.constant 118 : i32
    %161 = vector.broadcast %c118_i32 : i32 to vector<1x200xi32>
    %162 = arith.cmpi sle, %111, %161 : vector<1x200xi32>
    %163 = arith.andi %160, %162 : vector<1x200xi1>
    %164 = arith.ori %158, %163 : vector<1x200xi1>
    %c121_i32 = arith.constant 121 : i32
    %165 = vector.broadcast %c121_i32 : i32 to vector<1x200xi32>
    %166 = arith.cmpi sge, %111, %165 : vector<1x200xi32>
    %c128_i32 = arith.constant 128 : i32
    %167 = vector.broadcast %c128_i32 : i32 to vector<1x200xi32>
    %168 = arith.cmpi sle, %111, %167 : vector<1x200xi32>
    %169 = arith.andi %166, %168 : vector<1x200xi1>
    %170 = arith.ori %164, %169 : vector<1x200xi1>
    %c131_i32 = arith.constant 131 : i32
    %171 = vector.broadcast %c131_i32 : i32 to vector<1x200xi32>
    %172 = arith.cmpi sge, %111, %171 : vector<1x200xi32>
    %c138_i32 = arith.constant 138 : i32
    %173 = vector.broadcast %c138_i32 : i32 to vector<1x200xi32>
    %174 = arith.cmpi sle, %111, %173 : vector<1x200xi32>
    %175 = arith.andi %172, %174 : vector<1x200xi1>
    %176 = arith.ori %170, %175 : vector<1x200xi1>
    %c141_i32 = arith.constant 141 : i32
    %177 = vector.broadcast %c141_i32 : i32 to vector<1x200xi32>
    %178 = arith.cmpi sge, %111, %177 : vector<1x200xi32>
    %c148_i32 = arith.constant 148 : i32
    %179 = vector.broadcast %c148_i32 : i32 to vector<1x200xi32>
    %180 = arith.cmpi sle, %111, %179 : vector<1x200xi32>
    %181 = arith.andi %178, %180 : vector<1x200xi1>
    %182 = arith.ori %176, %181 : vector<1x200xi1>
    %c151_i32 = arith.constant 151 : i32
    %183 = vector.broadcast %c151_i32 : i32 to vector<1x200xi32>
    %184 = arith.cmpi sge, %111, %183 : vector<1x200xi32>
    %c158_i32 = arith.constant 158 : i32
    %185 = vector.broadcast %c158_i32 : i32 to vector<1x200xi32>
    %186 = arith.cmpi sle, %111, %185 : vector<1x200xi32>
    %187 = arith.andi %184, %186 : vector<1x200xi1>
    %188 = arith.ori %182, %187 : vector<1x200xi1>
    %c161_i32 = arith.constant 161 : i32
    %189 = vector.broadcast %c161_i32 : i32 to vector<1x200xi32>
    %190 = arith.cmpi sge, %111, %189 : vector<1x200xi32>
    %c168_i32 = arith.constant 168 : i32
    %191 = vector.broadcast %c168_i32 : i32 to vector<1x200xi32>
    %192 = arith.cmpi sle, %111, %191 : vector<1x200xi32>
    %193 = arith.andi %190, %192 : vector<1x200xi1>
    %194 = arith.ori %188, %193 : vector<1x200xi1>
    %c171_i32 = arith.constant 171 : i32
    %195 = vector.broadcast %c171_i32 : i32 to vector<1x200xi32>
    %196 = arith.cmpi sge, %111, %195 : vector<1x200xi32>
    %c178_i32 = arith.constant 178 : i32
    %197 = vector.broadcast %c178_i32 : i32 to vector<1x200xi32>
    %198 = arith.cmpi sle, %111, %197 : vector<1x200xi32>
    %199 = arith.andi %196, %198 : vector<1x200xi1>
    %200 = arith.ori %194, %199 : vector<1x200xi1>
    %c181_i32 = arith.constant 181 : i32
    %201 = vector.broadcast %c181_i32 : i32 to vector<1x200xi32>
    %202 = arith.cmpi sge, %111, %201 : vector<1x200xi32>
    %c188_i32 = arith.constant 188 : i32
    %203 = vector.broadcast %c188_i32 : i32 to vector<1x200xi32>
    %204 = arith.cmpi sle, %111, %203 : vector<1x200xi32>
    %205 = arith.andi %202, %204 : vector<1x200xi1>
    %206 = arith.ori %200, %205 : vector<1x200xi1>
    %207 = arith.extui %206 : vector<1x200xi1> to vector<1x200xi32>
    %208 = arith.sitofp %207 : vector<1x200xi32> to vector<1x200xf32>
    %cst_94 = arith.constant dense<0.000000e+00> : vector<1x128xf32>
    %209 = tpu.matmul %208, %110, %cst_94 {dimension_numbers = #tpu.dot_dimension_numbers<[1], [0], [0], [1], [0, 0, 1, 1], [], []>} : vector<1x200xf32>, vector<200x128xf32>, vector<1x128xf32> -> vector<1x128xf32>
    %210 = arith.mulf %110, %110 : vector<200x128xf32>
    %cst_95 = arith.constant dense<0.000000e+00> : vector<1x128xf32>
    %211 = tpu.matmul %208, %210, %cst_95 {dimension_numbers = #tpu.dot_dimension_numbers<[1], [0], [0], [1], [0, 0, 1, 1], [], []>} : vector<1x200xf32>, vector<200x128xf32>, vector<1x128xf32> -> vector<1x128xf32>
    %cst_96 = arith.constant 7.812500e-03 : f32
    %212 = vector.broadcast %cst_96 : f32 to vector<1x128xf32>
    %213 = arith.mulf %209, %212 : vector<1x128xf32>
    %cst_97 = arith.constant 7.812500e-03 : f32
    %214 = vector.broadcast %cst_97 : f32 to vector<1x128xf32>
    %215 = arith.mulf %211, %214 : vector<1x128xf32>
    %216 = arith.mulf %213, %213 : vector<1x128xf32>
    %217 = arith.subf %215, %216 : vector<1x128xf32>
    %cst_98 = arith.constant 0.000000e+00 : f32
    %218 = vector.broadcast %cst_98 : f32 to vector<1x128xf32>
    %219 = arith.maximumf %217, %218 : vector<1x128xf32>
    %220 = vector.broadcast %213 : vector<1x128xf32> to vector<200x128xf32>
    %221 = arith.subf %110, %220 : vector<200x128xf32>
    %cst_99 = arith.constant 9.99999974E-6 : f32
    %222 = vector.broadcast %cst_99 : f32 to vector<1x128xf32>
    %223 = arith.addf %219, %222 : vector<1x128xf32>
    %224 = math.rsqrt %223 : vector<1x128xf32>
    %225 = vector.broadcast %224 : vector<1x128xf32> to vector<200x128xf32>
    %226 = arith.mulf %221, %225 : vector<200x128xf32>
    %c0_100 = arith.constant 0 : index
    %c0_101 = arith.constant 0 : index
    %227 = vector.load %arg8[%c0_100, %c0_101] : memref<1x128xf32, #tpu.memory_space<vmem>>, vector<1x128xf32>
    %228 = vector.broadcast %227 : vector<1x128xf32> to vector<200x128xf32>
    %229 = arith.mulf %226, %228 : vector<200x128xf32>
    %c0_102 = arith.constant 0 : index
    %c0_103 = arith.constant 0 : index
    %230 = vector.load %arg9[%c0_102, %c0_103] : memref<1x128xf32, #tpu.memory_space<vmem>>, vector<1x128xf32>
    %231 = vector.broadcast %230 : vector<1x128xf32> to vector<200x128xf32>
    %232 = arith.addf %229, %231 : vector<200x128xf32>
    %cst_104 = arith.constant 0.000000e+00 : f32
    %233 = vector.broadcast %cst_104 : f32 to vector<200x128xf32>
    %234 = arith.maximumf %232, %233 : vector<200x128xf32>
    %c0_105 = arith.constant 0 : index
    %c0_106 = arith.constant 0 : index
    %235 = vector.load %arg19[%c0_105, %c0_106] : memref<200x128xf32, #tpu.memory_space<vmem>>, vector<200x128xf32>
    tpu.vector_store %arg19[%c0_105, %c0_106], %234 {strides = array<i32>} : memref<200x128xf32, #tpu.memory_space<vmem>>, vector<200x128xf32>,
    %c0_107 = arith.constant 0 : index
    %c0_108 = arith.constant 0 : index
    %236 = vector.load %arg19[%c0_107, %c0_108] : memref<200x128xf32, #tpu.memory_space<vmem>>, vector<189x128xf32>
    %c1_109 = arith.constant 1 : index
    %c0_110 = arith.constant 0 : index
    %237 = vector.load %arg19[%c1_109, %c0_110] : memref<200x128xf32, #tpu.memory_space<vmem>>, vector<189x128xf32>
    %238 = arith.maximumf %236, %237 : vector<189x128xf32>
    %c10 = arith.constant 10 : index
    %c0_111 = arith.constant 0 : index
    %239 = vector.load %arg19[%c10, %c0_111] : memref<200x128xf32, #tpu.memory_space<vmem>>, vector<189x128xf32>
    %c11 = arith.constant 11 : index
    %c0_112 = arith.constant 0 : index
    %240 = vector.load %arg19[%c11, %c0_112] : memref<200x128xf32, #tpu.memory_space<vmem>>, vector<189x128xf32>
    %241 = arith.maximumf %239, %240 : vector<189x128xf32>
    %242 = arith.maximumf %238, %241 : vector<189x128xf32>
    %c0_113 = arith.constant 0 : index
    %c0_114 = arith.constant 0 : index
    %243 = vector.load %arg20[%c0_113, %c0_114] : memref<200x128xf32, #tpu.memory_space<vmem>>, vector<189x128xf32>
    tpu.vector_store %arg20[%c0_113, %c0_114], %242 {strides = array<i32>} : memref<200x128xf32, #tpu.memory_space<vmem>>, vector<189x128xf32>,
    %cst_115 = arith.constant 0.000000e+00 : bf16
    %244 = vector.broadcast %cst_115 : bf16 to vector<90x128xbf16>
    %c0_116 = arith.constant 0 : index
    %c0_117 = arith.constant 0 : index
    %245 = vector.load %arg21[%c0_116, %c0_117] : memref<90x128xbf16, #tpu.memory_space<vmem>>, vector<90x128xbf16>
    tpu.vector_store %arg21[%c0_116, %c0_117], %244 {strides = array<i32>} : memref<90x128xbf16, #tpu.memory_space<vmem>>, vector<90x128xbf16>,
    %c11_118 = arith.constant 11 : index
    %c0_119 = arith.constant 0 : index
    %246 = tpu.strided_load %arg20[%c11_118, %c0_119] {strides = array<i32: 2, 1>} : memref<200x128xf32, #tpu.memory_space<vmem>>, vector<4x128xf32>
    %247 = arith.truncf %246 : vector<4x128xf32> to vector<4x128xbf16>
    %c16_120 = arith.constant 16 : index
    %c0_121 = arith.constant 0 : index
    %248 = vector.load %arg21[%c16_120, %c0_121] : memref<90x128xbf16, #tpu.memory_space<vmem>>, vector<4x128xbf16>
    tpu.vector_store %arg21[%c16_120, %c0_121], %247 {strides = array<i32>} : memref<90x128xbf16, #tpu.memory_space<vmem>>, vector<4x128xbf16>,
    %c31 = arith.constant 31 : index
    %c0_122 = arith.constant 0 : index
    %249 = tpu.strided_load %arg20[%c31, %c0_122] {strides = array<i32: 2, 1>} : memref<200x128xf32, #tpu.memory_space<vmem>>, vector<4x128xf32>
    %250 = arith.truncf %249 : vector<4x128xf32> to vector<4x128xbf16>
    %c22 = arith.constant 22 : index
    %c0_123 = arith.constant 0 : index
    %251 = vector.load %arg21[%c22, %c0_123] : memref<90x128xbf16, #tpu.memory_space<vmem>>, vector<4x128xbf16>
    tpu.vector_store %arg21[%c22, %c0_123], %250 {strides = array<i32>} : memref<90x128xbf16, #tpu.memory_space<vmem>>, vector<4x128xbf16>,
    %c51 = arith.constant 51 : index
    %c0_124 = arith.constant 0 : index
    %252 = tpu.strided_load %arg20[%c51, %c0_124] {strides = array<i32: 2, 1>} : memref<200x128xf32, #tpu.memory_space<vmem>>, vector<4x128xf32>
    %253 = arith.truncf %252 : vector<4x128xf32> to vector<4x128xbf16>
    %c28_125 = arith.constant 28 : index
    %c0_126 = arith.constant 0 : index
    %254 = vector.load %arg21[%c28_125, %c0_126] : memref<90x128xbf16, #tpu.memory_space<vmem>>, vector<4x128xbf16>
    tpu.vector_store %arg21[%c28_125, %c0_126], %253 {strides = array<i32>} : memref<90x128xbf16, #tpu.memory_space<vmem>>, vector<4x128xbf16>,
    %c71 = arith.constant 71 : index
    %c0_127 = arith.constant 0 : index
    %255 = tpu.strided_load %arg20[%c71, %c0_127] {strides = array<i32: 2, 1>} : memref<200x128xf32, #tpu.memory_space<vmem>>, vector<4x128xf32>
    %256 = arith.truncf %255 : vector<4x128xf32> to vector<4x128xbf16>
    %c34 = arith.constant 34 : index
    %c0_128 = arith.constant 0 : index
    %257 = vector.load %arg21[%c34, %c0_128] : memref<90x128xbf16, #tpu.memory_space<vmem>>, vector<4x128xbf16>
    tpu.vector_store %arg21[%c34, %c0_128], %256 {strides = array<i32>} : memref<90x128xbf16, #tpu.memory_space<vmem>>, vector<4x128xbf16>,
    %c111 = arith.constant 111 : index
    %c0_129 = arith.constant 0 : index
    %258 = tpu.strided_load %arg20[%c111, %c0_129] {strides = array<i32: 2, 1>} : memref<200x128xf32, #tpu.memory_space<vmem>>, vector<4x128xf32>
    %259 = arith.truncf %258 : vector<4x128xf32> to vector<4x128xbf16>
    %c52 = arith.constant 52 : index
    %c0_130 = arith.constant 0 : index
    %260 = vector.load %arg21[%c52, %c0_130] : memref<90x128xbf16, #tpu.memory_space<vmem>>, vector<4x128xbf16>
    tpu.vector_store %arg21[%c52, %c0_130], %259 {strides = array<i32>} : memref<90x128xbf16, #tpu.memory_space<vmem>>, vector<4x128xbf16>,
    %c131 = arith.constant 131 : index
    %c0_131 = arith.constant 0 : index
    %261 = tpu.strided_load %arg20[%c131, %c0_131] {strides = array<i32: 2, 1>} : memref<200x128xf32, #tpu.memory_space<vmem>>, vector<4x128xf32>
    %262 = arith.truncf %261 : vector<4x128xf32> to vector<4x128xbf16>
    %c58_132 = arith.constant 58 : index
    %c0_133 = arith.constant 0 : index
    %263 = vector.load %arg21[%c58_132, %c0_133] : memref<90x128xbf16, #tpu.memory_space<vmem>>, vector<4x128xbf16>
    tpu.vector_store %arg21[%c58_132, %c0_133], %262 {strides = array<i32>} : memref<90x128xbf16, #tpu.memory_space<vmem>>, vector<4x128xbf16>,
    %c151 = arith.constant 151 : index
    %c0_134 = arith.constant 0 : index
    %264 = tpu.strided_load %arg20[%c151, %c0_134] {strides = array<i32: 2, 1>} : memref<200x128xf32, #tpu.memory_space<vmem>>, vector<4x128xf32>
    %265 = arith.truncf %264 : vector<4x128xf32> to vector<4x128xbf16>
    %c64_135 = arith.constant 64 : index
    %c0_136 = arith.constant 0 : index
    %266 = vector.load %arg21[%c64_135, %c0_136] : memref<90x128xbf16, #tpu.memory_space<vmem>>, vector<4x128xbf16>
    tpu.vector_store %arg21[%c64_135, %c0_136], %265 {strides = array<i32>} : memref<90x128xbf16, #tpu.memory_space<vmem>>, vector<4x128xbf16>,
    %c171 = arith.constant 171 : index
    %c0_137 = arith.constant 0 : index
    %267 = tpu.strided_load %arg20[%c171, %c0_137] {strides = array<i32: 2, 1>} : memref<200x128xf32, #tpu.memory_space<vmem>>, vector<4x128xf32>
    %268 = arith.truncf %267 : vector<4x128xf32> to vector<4x128xbf16>
    %c70 = arith.constant 70 : index
    %c0_138 = arith.constant 0 : index
    %269 = vector.load %arg21[%c70, %c0_138] : memref<90x128xbf16, #tpu.memory_space<vmem>>, vector<4x128xbf16>
    tpu.vector_store %arg21[%c70, %c0_138], %268 {strides = array<i32>} : memref<90x128xbf16, #tpu.memory_space<vmem>>, vector<4x128xbf16>,
    %c2 = arith.constant 2 : index
    %c0_139 = arith.constant 0 : index
    %270 = vector.load %arg21[%c2, %c0_139] : memref<90x128xbf16, #tpu.memory_space<vmem>>, vector<72x128xbf16>
    %c0_140 = arith.constant 0 : index
    %c0_141 = arith.constant 0 : index
    %271 = vector.load %arg22[%c0_140, %c0_141] : memref<72x1152xbf16, #tpu.memory_space<vmem>>, vector<72x128xbf16>
    tpu.vector_store %arg22[%c0_140, %c0_141], %270 {strides = array<i32>} : memref<72x1152xbf16, #tpu.memory_space<vmem>>, vector<72x128xbf16>,
    %c3 = arith.constant 3 : index
    %c0_142 = arith.constant 0 : index
    %272 = vector.load %arg21[%c3, %c0_142] : memref<90x128xbf16, #tpu.memory_space<vmem>>, vector<72x128xbf16>
    %c0_143 = arith.constant 0 : index
    %c128_144 = arith.constant 128 : index
    %273 = vector.load %arg22[%c0_143, %c128_144] : memref<72x1152xbf16, #tpu.memory_space<vmem>>, vector<72x128xbf16>
    tpu.vector_store %arg22[%c0_143, %c128_144], %272 {strides = array<i32>} : memref<72x1152xbf16, #tpu.memory_space<vmem>>, vector<72x128xbf16>,
    %c4 = arith.constant 4 : index
    %c0_145 = arith.constant 0 : index
    %274 = vector.load %arg21[%c4, %c0_145] : memref<90x128xbf16, #tpu.memory_space<vmem>>, vector<72x128xbf16>
    %c0_146 = arith.constant 0 : index
    %c256_147 = arith.constant 256 : index
    %275 = vector.load %arg22[%c0_146, %c256_147] : memref<72x1152xbf16, #tpu.memory_space<vmem>>, vector<72x128xbf16>
    tpu.vector_store %arg22[%c0_146, %c256_147], %274 {strides = array<i32>} : memref<72x1152xbf16, #tpu.memory_space<vmem>>, vector<72x128xbf16>,
    %c8_148 = arith.constant 8 : index
    %c0_149 = arith.constant 0 : index
    %276 = vector.load %arg21[%c8_148, %c0_149] : memref<90x128xbf16, #tpu.memory_space<vmem>>, vector<72x128xbf16>
    %c0_150 = arith.constant 0 : index
    %c384_151 = arith.constant 384 : index
    %277 = vector.load %arg22[%c0_150, %c384_151] : memref<72x1152xbf16, #tpu.memory_space<vmem>>, vector<72x128xbf16>
    tpu.vector_store %arg22[%c0_150, %c384_151], %276 {strides = array<i32>} : memref<72x1152xbf16, #tpu.memory_space<vmem>>, vector<72x128xbf16>,
    %c9 = arith.constant 9 : index
    %c0_152 = arith.constant 0 : index
    %278 = vector.load %arg21[%c9, %c0_152] : memref<90x128xbf16, #tpu.memory_space<vmem>>, vector<72x128xbf16>
    %c0_153 = arith.constant 0 : index
    %c512_154 = arith.constant 512 : index
    %279 = vector.load %arg22[%c0_153, %c512_154] : memref<72x1152xbf16, #tpu.memory_space<vmem>>, vector<72x128xbf16>
    tpu.vector_store %arg22[%c0_153, %c512_154], %278 {strides = array<i32>} : memref<72x1152xbf16, #tpu.memory_space<vmem>>, vector<72x128xbf16>,
    %c10_155 = arith.constant 10 : index
    %c0_156 = arith.constant 0 : index
    %280 = vector.load %arg21[%c10_155, %c0_156] : memref<90x128xbf16, #tpu.memory_space<vmem>>, vector<72x128xbf16>
    %c0_157 = arith.constant 0 : index
    %c640 = arith.constant 640 : index
    %281 = vector.load %arg22[%c0_157, %c640] : memref<72x1152xbf16, #tpu.memory_space<vmem>>, vector<72x128xbf16>
    tpu.vector_store %arg22[%c0_157, %c640], %280 {strides = array<i32>} : memref<72x1152xbf16, #tpu.memory_space<vmem>>, vector<72x128xbf16>,
    %c14 = arith.constant 14 : index
    %c0_158 = arith.constant 0 : index
    %282 = vector.load %arg21[%c14, %c0_158] : memref<90x128xbf16, #tpu.memory_space<vmem>>, vector<72x128xbf16>
    %c0_159 = arith.constant 0 : index
    %c768 = arith.constant 768 : index
    %283 = vector.load %arg22[%c0_159, %c768] : memref<72x1152xbf16, #tpu.memory_space<vmem>>, vector<72x128xbf16>
    tpu.vector_store %arg22[%c0_159, %c768], %282 {strides = array<i32>} : memref<72x1152xbf16, #tpu.memory_space<vmem>>, vector<72x128xbf16>,
    %c15 = arith.constant 15 : index
    %c0_160 = arith.constant 0 : index
    %284 = vector.load %arg21[%c15, %c0_160] : memref<90x128xbf16, #tpu.memory_space<vmem>>, vector<72x128xbf16>
    %c0_161 = arith.constant 0 : index
    %c896 = arith.constant 896 : index
    %285 = vector.load %arg22[%c0_161, %c896] : memref<72x1152xbf16, #tpu.memory_space<vmem>>, vector<72x128xbf16>
    tpu.vector_store %arg22[%c0_161, %c896], %284 {strides = array<i32>} : memref<72x1152xbf16, #tpu.memory_space<vmem>>, vector<72x128xbf16>,
    %c16_162 = arith.constant 16 : index
    %c0_163 = arith.constant 0 : index
    %286 = vector.load %arg21[%c16_162, %c0_163] : memref<90x128xbf16, #tpu.memory_space<vmem>>, vector<72x128xbf16>
    %c0_164 = arith.constant 0 : index
    %c1024 = arith.constant 1024 : index
    %287 = vector.load %arg22[%c0_164, %c1024] : memref<72x1152xbf16, #tpu.memory_space<vmem>>, vector<72x128xbf16>
    tpu.vector_store %arg22[%c0_164, %c1024], %286 {strides = array<i32>} : memref<72x1152xbf16, #tpu.memory_space<vmem>>, vector<72x128xbf16>,
    %c0_165 = arith.constant 0 : index
    %c0_166 = arith.constant 0 : index
    %288 = vector.load %arg22[%c0_165, %c0_166] : memref<72x1152xbf16, #tpu.memory_space<vmem>>, vector<72x1152xbf16>
    %c0_167 = arith.constant 0 : index
    %c0_168 = arith.constant 0 : index
    %289 = vector.load %arg4[%c0_167, %c0_168] : memref<1152x256xbf16, #tpu.memory_space<vmem>>, vector<1152x256xbf16>
    %cst_169 = arith.constant dense<0.000000e+00> : vector<72x256xf32>
    %290 = tpu.matmul %288, %289, %cst_169 {dimension_numbers = #tpu.dot_dimension_numbers<[1], [0], [0], [1], [0, 0, 1, 1], [], []>} : vector<72x1152xbf16>, vector<1152x256xbf16>, vector<72x256xf32> -> vector<72x256xf32>
    %291 = tpu.iota {dimensions = array<i32: 1>} : vector<1x72xi32>
    %c7_i32 = arith.constant 7 : i32
    %292 = vector.broadcast %c7_i32 : i32 to vector<1x72xi32>
    %293 = arith.cmpi sge, %291, %292 : vector<1x72xi32>
    %c10_i32 = arith.constant 10 : i32
    %294 = vector.broadcast %c10_i32 : i32 to vector<1x72xi32>
    %295 = arith.cmpi sle, %291, %294 : vector<1x72xi32>
    %296 = arith.andi %293, %295 : vector<1x72xi1>
    %c13_i32 = arith.constant 13 : i32
    %297 = vector.broadcast %c13_i32 : i32 to vector<1x72xi32>
    %298 = arith.cmpi sge, %291, %297 : vector<1x72xi32>
    %c16_i32 = arith.constant 16 : i32
    %299 = vector.broadcast %c16_i32 : i32 to vector<1x72xi32>
    %300 = arith.cmpi sle, %291, %299 : vector<1x72xi32>
    %301 = arith.andi %298, %300 : vector<1x72xi1>
    %302 = arith.ori %296, %301 : vector<1x72xi1>
    %c19_i32 = arith.constant 19 : i32
    %303 = vector.broadcast %c19_i32 : i32 to vector<1x72xi32>
    %304 = arith.cmpi sge, %291, %303 : vector<1x72xi32>
    %c22_i32 = arith.constant 22 : i32
    %305 = vector.broadcast %c22_i32 : i32 to vector<1x72xi32>
    %306 = arith.cmpi sle, %291, %305 : vector<1x72xi32>
    %307 = arith.andi %304, %306 : vector<1x72xi1>
    %308 = arith.ori %302, %307 : vector<1x72xi1>
    %c25_i32 = arith.constant 25 : i32
    %309 = vector.broadcast %c25_i32 : i32 to vector<1x72xi32>
    %310 = arith.cmpi sge, %291, %309 : vector<1x72xi32>
    %c28_i32_170 = arith.constant 28 : i32
    %311 = vector.broadcast %c28_i32_170 : i32 to vector<1x72xi32>
    %312 = arith.cmpi sle, %291, %311 : vector<1x72xi32>
    %313 = arith.andi %310, %312 : vector<1x72xi1>
    %314 = arith.ori %308, %313 : vector<1x72xi1>
    %c43_i32 = arith.constant 43 : i32
    %315 = vector.broadcast %c43_i32 : i32 to vector<1x72xi32>
    %316 = arith.cmpi sge, %291, %315 : vector<1x72xi32>
    %c46_i32 = arith.constant 46 : i32
    %317 = vector.broadcast %c46_i32 : i32 to vector<1x72xi32>
    %318 = arith.cmpi sle, %291, %317 : vector<1x72xi32>
    %319 = arith.andi %316, %318 : vector<1x72xi1>
    %320 = arith.ori %314, %319 : vector<1x72xi1>
    %c49_i32 = arith.constant 49 : i32
    %321 = vector.broadcast %c49_i32 : i32 to vector<1x72xi32>
    %322 = arith.cmpi sge, %291, %321 : vector<1x72xi32>
    %c52_i32 = arith.constant 52 : i32
    %323 = vector.broadcast %c52_i32 : i32 to vector<1x72xi32>
    %324 = arith.cmpi sle, %291, %323 : vector<1x72xi32>
    %325 = arith.andi %322, %324 : vector<1x72xi1>
    %326 = arith.ori %320, %325 : vector<1x72xi1>
    %c55_i32 = arith.constant 55 : i32
    %327 = vector.broadcast %c55_i32 : i32 to vector<1x72xi32>
    %328 = arith.cmpi sge, %291, %327 : vector<1x72xi32>
    %c58_i32_171 = arith.constant 58 : i32
    %329 = vector.broadcast %c58_i32_171 : i32 to vector<1x72xi32>
    %330 = arith.cmpi sle, %291, %329 : vector<1x72xi32>
    %331 = arith.andi %328, %330 : vector<1x72xi1>
    %332 = arith.ori %326, %331 : vector<1x72xi1>
    %c61_i32_172 = arith.constant 61 : i32
    %333 = vector.broadcast %c61_i32_172 : i32 to vector<1x72xi32>
    %334 = arith.cmpi sge, %291, %333 : vector<1x72xi32>
    %c64_i32 = arith.constant 64 : i32
    %335 = vector.broadcast %c64_i32 : i32 to vector<1x72xi32>
    %336 = arith.cmpi sle, %291, %335 : vector<1x72xi32>
    %337 = arith.andi %334, %336 : vector<1x72xi1>
    %338 = arith.ori %332, %337 : vector<1x72xi1>
    %339 = arith.extui %338 : vector<1x72xi1> to vector<1x72xi32>
    %340 = arith.sitofp %339 : vector<1x72xi32> to vector<1x72xf32>
    %cst_173 = arith.constant dense<0.000000e+00> : vector<1x256xf32>
    %341 = tpu.matmul %340, %290, %cst_173 {dimension_numbers = #tpu.dot_dimension_numbers<[1], [0], [0], [1], [0, 0, 1, 1], [], []>} : vector<1x72xf32>, vector<72x256xf32>, vector<1x256xf32> -> vector<1x256xf32>
    %342 = arith.mulf %290, %290 : vector<72x256xf32>
    %cst_174 = arith.constant dense<0.000000e+00> : vector<1x256xf32>
    %343 = tpu.matmul %340, %342, %cst_174 {dimension_numbers = #tpu.dot_dimension_numbers<[1], [0], [0], [1], [0, 0, 1, 1], [], []>} : vector<1x72xf32>, vector<72x256xf32>, vector<1x256xf32> -> vector<1x256xf32>
    %cst_175 = arith.constant 3.125000e-02 : f32
    %344 = vector.broadcast %cst_175 : f32 to vector<1x256xf32>
    %345 = arith.mulf %341, %344 : vector<1x256xf32>
    %cst_176 = arith.constant 3.125000e-02 : f32
    %346 = vector.broadcast %cst_176 : f32 to vector<1x256xf32>
    %347 = arith.mulf %343, %346 : vector<1x256xf32>
    %348 = arith.mulf %345, %345 : vector<1x256xf32>
    %349 = arith.subf %347, %348 : vector<1x256xf32>
    %cst_177 = arith.constant 0.000000e+00 : f32
    %350 = vector.broadcast %cst_177 : f32 to vector<1x256xf32>
    %351 = arith.maximumf %349, %350 : vector<1x256xf32>
    %352 = vector.broadcast %345 : vector<1x256xf32> to vector<72x256xf32>
    %353 = arith.subf %290, %352 : vector<72x256xf32>
    %cst_178 = arith.constant 9.99999974E-6 : f32
    %354 = vector.broadcast %cst_178 : f32 to vector<1x256xf32>
    %355 = arith.addf %351, %354 : vector<1x256xf32>
    %356 = math.rsqrt %355 : vector<1x256xf32>
    %357 = vector.broadcast %356 : vector<1x256xf32> to vector<72x256xf32>
    %358 = arith.mulf %353, %357 : vector<72x256xf32>
    %c0_179 = arith.constant 0 : index
    %c0_180 = arith.constant 0 : index
    %359 = vector.load %arg10[%c0_179, %c0_180] : memref<1x256xf32, #tpu.memory_space<vmem>>, vector<1x256xf32>
    %360 = vector.broadcast %359 : vector<1x256xf32> to vector<72x256xf32>
    %361 = arith.mulf %358, %360 : vector<72x256xf32>
    %c0_181 = arith.constant 0 : index
    %c0_182 = arith.constant 0 : index
    %362 = vector.load %arg11[%c0_181, %c0_182] : memref<1x256xf32, #tpu.memory_space<vmem>>, vector<1x256xf32>
    %363 = vector.broadcast %362 : vector<1x256xf32> to vector<72x256xf32>
    %364 = arith.addf %361, %363 : vector<72x256xf32>
    %cst_183 = arith.constant 0.000000e+00 : f32
    %365 = vector.broadcast %cst_183 : f32 to vector<72x256xf32>
    %366 = arith.maximumf %364, %365 : vector<72x256xf32>
    %367 = tpu.iota {dimensions = array<i32: 1>} : vector<2x72xi32>
    %368 = tpu.iota {dimensions = array<i32: 0>} : vector<2x72xi32>
    %c36_i32 = arith.constant 36 : i32
    %369 = vector.broadcast %c36_i32 : i32 to vector<2x72xi32>
    %370 = arith.muli %368, %369 : vector<2x72xi32>
    %c6_i32 = arith.constant 6 : i32
    %371 = vector.broadcast %c6_i32 : i32 to vector<2x72xi32>
    %372 = arith.addi %370, %371 : vector<2x72xi32>
    %c1_i32 = arith.constant 1 : i32
    %373 = vector.broadcast %c1_i32 : i32 to vector<2x72xi32>
    %374 = arith.addi %372, %373 : vector<2x72xi32>
    %375 = arith.cmpi sge, %367, %374 : vector<2x72xi32>
    %c4_i32 = arith.constant 4 : i32
    %376 = vector.broadcast %c4_i32 : i32 to vector<2x72xi32>
    %377 = arith.addi %374, %376 : vector<2x72xi32>
    %c1_i32_184 = arith.constant 1 : i32
    %378 = vector.broadcast %c1_i32_184 : i32 to vector<2x72xi32>
    %379 = arith.subi %377, %378 : vector<2x72xi32>
    %380 = arith.cmpi sle, %367, %379 : vector<2x72xi32>
    %381 = arith.andi %375, %380 : vector<2x72xi1>
    %c12_i32 = arith.constant 12 : i32
    %382 = vector.broadcast %c12_i32 : i32 to vector<2x72xi32>
    %383 = arith.addi %370, %382 : vector<2x72xi32>
    %c1_i32_185 = arith.constant 1 : i32
    %384 = vector.broadcast %c1_i32_185 : i32 to vector<2x72xi32>
    %385 = arith.addi %383, %384 : vector<2x72xi32>
    %386 = arith.cmpi sge, %367, %385 : vector<2x72xi32>
    %c4_i32_186 = arith.constant 4 : i32
    %387 = vector.broadcast %c4_i32_186 : i32 to vector<2x72xi32>
    %388 = arith.addi %385, %387 : vector<2x72xi32>
    %c1_i32_187 = arith.constant 1 : i32
    %389 = vector.broadcast %c1_i32_187 : i32 to vector<2x72xi32>
    %390 = arith.subi %388, %389 : vector<2x72xi32>
    %391 = arith.cmpi sle, %367, %390 : vector<2x72xi32>
    %392 = arith.andi %386, %391 : vector<2x72xi1>
    %393 = arith.ori %381, %392 : vector<2x72xi1>
    %c18_i32_188 = arith.constant 18 : i32
    %394 = vector.broadcast %c18_i32_188 : i32 to vector<2x72xi32>
    %395 = arith.addi %370, %394 : vector<2x72xi32>
    %c1_i32_189 = arith.constant 1 : i32
    %396 = vector.broadcast %c1_i32_189 : i32 to vector<2x72xi32>
    %397 = arith.addi %395, %396 : vector<2x72xi32>
    %398 = arith.cmpi sge, %367, %397 : vector<2x72xi32>
    %c4_i32_190 = arith.constant 4 : i32
    %399 = vector.broadcast %c4_i32_190 : i32 to vector<2x72xi32>
    %400 = arith.addi %397, %399 : vector<2x72xi32>
    %c1_i32_191 = arith.constant 1 : i32
    %401 = vector.broadcast %c1_i32_191 : i32 to vector<2x72xi32>
    %402 = arith.subi %400, %401 : vector<2x72xi32>
    %403 = arith.cmpi sle, %367, %402 : vector<2x72xi32>
    %404 = arith.andi %398, %403 : vector<2x72xi1>
    %405 = arith.ori %393, %404 : vector<2x72xi1>
    %c24_i32 = arith.constant 24 : i32
    %406 = vector.broadcast %c24_i32 : i32 to vector<2x72xi32>
    %407 = arith.addi %370, %406 : vector<2x72xi32>
    %c1_i32_192 = arith.constant 1 : i32
    %408 = vector.broadcast %c1_i32_192 : i32 to vector<2x72xi32>
    %409 = arith.addi %407, %408 : vector<2x72xi32>
    %410 = arith.cmpi sge, %367, %409 : vector<2x72xi32>
    %c4_i32_193 = arith.constant 4 : i32
    %411 = vector.broadcast %c4_i32_193 : i32 to vector<2x72xi32>
    %412 = arith.addi %409, %411 : vector<2x72xi32>
    %c1_i32_194 = arith.constant 1 : i32
    %413 = vector.broadcast %c1_i32_194 : i32 to vector<2x72xi32>
    %414 = arith.subi %412, %413 : vector<2x72xi32>
    %415 = arith.cmpi sle, %367, %414 : vector<2x72xi32>
    %416 = arith.andi %410, %415 : vector<2x72xi1>
    %417 = arith.ori %405, %416 : vector<2x72xi1>
    %418 = arith.extui %417 : vector<2x72xi1> to vector<2x72xi32>
    %419 = arith.sitofp %418 : vector<2x72xi32> to vector<2x72xf32>
    %cst_195 = arith.constant 6.250000e-02 : f32
    %420 = vector.broadcast %cst_195 : f32 to vector<2x72xf32>
    %421 = arith.mulf %419, %420 : vector<2x72xf32>
    %cst_196 = arith.constant dense<0.000000e+00> : vector<2x256xf32>
    %422 = tpu.matmul %421, %366, %cst_196 {dimension_numbers = #tpu.dot_dimension_numbers<[1], [0], [0], [1], [0, 0, 1, 1], [], []>} : vector<2x72xf32>, vector<72x256xf32>, vector<2x256xf32> -> vector<2x256xf32>
    %c0_197 = arith.constant 0 : index
    %c0_198 = arith.constant 0 : index
    %423 = vector.load %arg5[%c0_197, %c0_198] : memref<256x32xf32, #tpu.memory_space<vmem>>, vector<256x32xf32>
    %cst_199 = arith.constant dense<0.000000e+00> : vector<2x32xf32>
    %424 = tpu.matmul %422, %423, %cst_199 {dimension_numbers = #tpu.dot_dimension_numbers<[1], [0], [0], [1], [0, 0, 1, 1], [], []>} : vector<2x256xf32>, vector<256x32xf32>, vector<2x32xf32> -> vector<2x32xf32>
    %cst_200 = arith.constant dense<0.000000e+00> : vector<32xf32>
    %425 = vector.multi_reduction <add>, %424, %cst_200 [0] : vector<2x32xf32> to vector<32xf32>
    %426 = vector.shape_cast %425 : vector<32xf32> to vector<1x32xf32>
    %cst_201 = arith.constant 2.000000e+00 : f32
    %427 = vector.broadcast %cst_201 : f32 to vector<1x32xf32>
    %428 = arith.divf %426, %427 : vector<1x32xf32>
    %429 = arith.mulf %424, %424 : vector<2x32xf32>
    %cst_202 = arith.constant dense<0.000000e+00> : vector<32xf32>
    %430 = vector.multi_reduction <add>, %429, %cst_202 [0] : vector<2x32xf32> to vector<32xf32>
    %431 = vector.shape_cast %430 : vector<32xf32> to vector<1x32xf32>
    %cst_203 = arith.constant 2.000000e+00 : f32
    %432 = vector.broadcast %cst_203 : f32 to vector<1x32xf32>
    %433 = arith.divf %431, %432 : vector<1x32xf32>
    %434 = arith.mulf %428, %428 : vector<1x32xf32>
    %435 = arith.subf %433, %434 : vector<1x32xf32>
    %cst_204 = arith.constant 0.000000e+00 : f32
    %436 = vector.broadcast %cst_204 : f32 to vector<1x32xf32>
    %437 = arith.maximumf %435, %436 : vector<1x32xf32>
    %438 = vector.broadcast %428 : vector<1x32xf32> to vector<2x32xf32>
    %439 = arith.subf %424, %438 : vector<2x32xf32>
    %cst_205 = arith.constant 9.99999974E-6 : f32
    %440 = vector.broadcast %cst_205 : f32 to vector<1x32xf32>
    %441 = arith.addf %437, %440 : vector<1x32xf32>
    %442 = math.rsqrt %441 : vector<1x32xf32>
    %443 = vector.broadcast %442 : vector<1x32xf32> to vector<2x32xf32>
    %444 = arith.mulf %439, %443 : vector<2x32xf32>
    %c0_206 = arith.constant 0 : index
    %c0_207 = arith.constant 0 : index
    %445 = vector.load %arg12[%c0_206, %c0_207] : memref<1x32xf32, #tpu.memory_space<vmem>>, vector<1x32xf32>
    %446 = vector.broadcast %445 : vector<1x32xf32> to vector<2x32xf32>
    %447 = arith.mulf %444, %446 : vector<2x32xf32>
    %c0_208 = arith.constant 0 : index
    %c0_209 = arith.constant 0 : index
    %448 = vector.load %arg13[%c0_208, %c0_209] : memref<1x32xf32, #tpu.memory_space<vmem>>, vector<1x32xf32>
    %449 = vector.broadcast %448 : vector<1x32xf32> to vector<2x32xf32>
    %450 = arith.addf %447, %449 : vector<2x32xf32>
    %cst_210 = arith.constant 0.000000e+00 : f32
    %451 = vector.broadcast %cst_210 : f32 to vector<2x32xf32>
    %452 = arith.maximumf %450, %451 : vector<2x32xf32>
    %c0_211 = arith.constant 0 : index
    %c0_212 = arith.constant 0 : index
    %453 = vector.load %arg14[%c0_211, %c0_212] : memref<2x32xf32, #tpu.memory_space<vmem>>, vector<2x32xf32>
    tpu.vector_store %arg14[%c0_211, %c0_212], %452 {strides = array<i32>} : memref<2x32xf32, #tpu.memory_space<vmem>>, vector<2x32xf32>,
    return
  }
  func.func @transform_0(%arg0: i32) -> (i32, i32) {
    %c0_i32 = arith.constant 0 : i32
    %c0_i32_0 = arith.constant 0 : i32
    %c0_i32_1 = arith.constant 0 : i32
    return %c0_i32, %c0_i32_0 : i32, i32
  }
  func.func @transform_1(%arg0: i32) -> (i32, i32) {
    %c0_i32 = arith.constant 0 : i32
    %c0_i32_0 = arith.constant 0 : i32
    %c0_i32_1 = arith.constant 0 : i32
    return %c0_i32, %c0_i32_0 : i32, i32
  }
  func.func @transform_2(%arg0: i32) -> (i32, i32) {
    %c0_i32 = arith.constant 0 : i32
    %c0_i32_0 = arith.constant 0 : i32
    %c0_i32_1 = arith.constant 0 : i32
    return %c0_i32, %c0_i32_0 : i32, i32
  }
  func.func @transform_3(%arg0: i32) -> (i32, i32) {
    %c0_i32 = arith.constant 0 : i32
    %c0_i32_0 = arith.constant 0 : i32
    %c0_i32_1 = arith.constant 0 : i32
    return %c0_i32, %c0_i32_0 : i32, i32
  }
  func.func @transform_4(%arg0: i32) -> (i32, i32) {
    %c0_i32 = arith.constant 0 : i32
    %c0_i32_0 = arith.constant 0 : i32
    %c0_i32_1 = arith.constant 0 : i32
    return %c0_i32, %c0_i32_0 : i32, i32
  }
  func.func @transform_5(%arg0: i32) -> (i32, i32) {
    %c0_i32 = arith.constant 0 : i32
    %c0_i32_0 = arith.constant 0 : i32
    %c0_i32_1 = arith.constant 0 : i32
    return %c0_i32, %c0_i32_0 : i32, i32
  }
  func.func @transform_6(%arg0: i32) -> (i32, i32) {
    %c0_i32 = arith.constant 0 : i32
    %c0_i32_0 = arith.constant 0 : i32
    %c0_i32_1 = arith.constant 0 : i32
    return %c0_i32, %c0_i32_0 : i32, i32
  }
  func.func @transform_7(%arg0: i32) -> (i32, i32) {
    %c0_i32 = arith.constant 0 : i32
    %c0_i32_0 = arith.constant 0 : i32
    %c0_i32_1 = arith.constant 0 : i32
    return %c0_i32, %c0_i32_0 : i32, i32
  }
  func.func @transform_8(%arg0: i32) -> (i32, i32) {
    %c0_i32 = arith.constant 0 : i32
    %c0_i32_0 = arith.constant 0 : i32
    %c0_i32_1 = arith.constant 0 : i32
    return %c0_i32, %c0_i32_0 : i32, i32
  }
  func.func @transform_9(%arg0: i32) -> (i32, i32) {
    %c0_i32 = arith.constant 0 : i32
    %c0_i32_0 = arith.constant 0 : i32
    %c0_i32_1 = arith.constant 0 : i32
    return %c0_i32, %c0_i32_0 : i32, i32
  }
  func.func @transform_10(%arg0: i32) -> (i32, i32) {
    %c0_i32 = arith.constant 0 : i32
    %c0_i32_0 = arith.constant 0 : i32
    %c0_i32_1 = arith.constant 0 : i32
    return %c0_i32, %c0_i32_0 : i32, i32
  }
  func.func @transform_11(%arg0: i32) -> (i32, i32) {
    %c0_i32 = arith.constant 0 : i32
    %c0_i32_0 = arith.constant 0 : i32
    %c0_i32_1 = arith.constant 0 : i32
    return %c0_i32, %c0_i32_0 : i32, i32
  }
  func.func @transform_12(%arg0: i32) -> (i32, i32) {
    %c0_i32 = arith.constant 0 : i32
    %c0_i32_0 = arith.constant 0 : i32
    %c0_i32_1 = arith.constant 0 : i32
    return %c0_i32, %c0_i32_0 : i32, i32
  }
  func.func @transform_13(%arg0: i32) -> (i32, i32) {
    %c0_i32 = arith.constant 0 : i32
    %c0_i32_0 = arith.constant 0 : i32
    %c0_i32_1 = arith.constant 0 : i32
    return %c0_i32, %c0_i32_0 : i32, i32
  }
}

</mosaic_0001>

<llo_original>
// kernel: image_feature_extractor.1
$region0: #{image_feature_extractor.1}
  #allocation0 [shape = 'u32[]', space=smem, size = 0x4, offset = 0x4, fixed_abs, tag = 'smem constant byte address 0x4 - core index']
  #allocation1 [shape = 'u32[144,128]{1,0:T(1,128)}', space=vmem, size = 0x12000, scoped, tag = 'internal scratch']
  #allocation2 [shape = 'f32[512,64]{1,0:T(8,128)}', space=vmem, size = 0x40000, scoped, tag = 'scratch operand']
  #allocation3 [shape = 'f32[512,64]{1,0:T(8,128)}', space=vmem, size = 0x40000, scoped, tag = 'scratch operand']
  #allocation4 [shape = 'bf16[234,64]{1,0:T(8,128)(2,1)}', space=vmem, size = 0xf000, scoped, tag = 'scratch operand']
  #allocation5 [shape = 'bf16[200,576]{1,0:T(8,128)(2,1)}', space=vmem, size = 0x3e800, scoped, tag = 'scratch operand']
  #allocation6 [shape = 'f32[200,128]{1,0:T(8,128)}', space=vmem, size = 0x19000, scoped, tag = 'scratch operand']
  #allocation7 [shape = 'f32[200,128]{1,0:T(8,128)}', space=vmem, size = 0x19000, scoped, tag = 'scratch operand']
  #allocation8 [shape = 'bf16[90,128]{1,0:T(8,128)(2,1)}', space=vmem, size = 0x6000, scoped, tag = 'scratch operand']
  #allocation9 [shape = 'bf16[72,1152]{1,0:T(8,128)(2,1)}', space=vmem, size = 0x28800, scoped, tag = 'scratch operand']
  %s0 = inlined_call_operand.vmem [shape: bf16[512,36], index: 0, kind: input, shape index: {}]
  %s1 = inlined_call_operand.vmem [shape: bf16[36,64], index: 1, kind: input, shape index: {}]
  %s2 = inlined_call_operand.vmem [shape: bf16[576,128], index: 2, kind: input, shape index: {}]
  %s3 = inlined_call_operand.vmem [shape: bf16[1152,256], index: 3, kind: input, shape index: {}]
  %s4 = inlined_call_operand.vmem [shape: f32[256,32], index: 4, kind: input, shape index: {}]
  %s5 = inlined_call_operand.vmem [shape: f32[1,64], index: 5, kind: input, shape index: {}]
  %s6 = inlined_call_operand.vmem [shape: f32[1,64], index: 6, kind: input, shape index: {}]
  %s7 = inlined_call_operand.vmem [shape: f32[1,128], index: 7, kind: input, shape index: {}]
  %s8 = inlined_call_operand.vmem [shape: f32[1,128], index: 8, kind: input, shape index: {}]
  %s9 = inlined_call_operand.vmem [shape: f32[1,256], index: 9, kind: input, shape index: {}]
  %s10 = inlined_call_operand.vmem [shape: f32[1,256], index: 10, kind: input, shape index: {}]
  %s11 = inlined_call_operand.vmem [shape: f32[1,32], index: 11, kind: input, shape index: {}]
  %s12 = inlined_call_operand.vmem [shape: f32[1,32], index: 12, kind: input, shape index: {}]
  %s13 = inlined_call_operand.hbm [shape: f32[2,32], index: 13, kind: output, shape index: {}]
  %s14 = sld [smem:[#allocation0]]
  $region62: #{image_feature_extractor.1} parent=0
    _
  %s16 = ssub.s32 1, %s14
  %s17 = scalar_select 0, %s16, %s14
  $region1: #{image_feature_extractor.1} parent=0
    #allocation10 [shape = 'u8[1024]{0}', space=vmem, size = 0x400, scoped, tag = 'output window, operand 0, single buffered']
    #allocation11 [shape = 's32[1]{0}', space=sflag, size = 0x4, scoped, tag = 'scoped memory for image_feature_extractor.1']
    %18 = vsyncpa [#allocation11], 0
    // Predicated region
    $region2: #{image_feature_extractor.1} parent=1 // pred_check
      _
    $region3: #{image_feature_extractor.1} parent=1 // pred_check_branch
      %20 = sbr.rel (0) target = $region5
    $region4: #{image_feature_extractor.1} parent=1 // pred_region
      _
    $region5: #{image_feature_extractor.1} parent=1 // pred_fallthru
      _
    // Predicated region
    $region6: #{image_feature_extractor.1} parent=1 // pred_check
      _
    $region7: #{image_feature_extractor.1} parent=1 // pred_check_branch
      %22 = sbr.rel (0) target = $region9
    $region8: #{image_feature_extractor.1} parent=1 // pred_region
      _
    $region9: #{image_feature_extractor.1} parent=1 // pred_fallthru
      _
    // Predicated region
    $region10: #{image_feature_extractor.1} parent=1 // pred_check
      _
    $region11: #{image_feature_extractor.1} parent=1 // pred_check_branch
      %24 = sbr.rel (0) target = $region13
    $region12: #{image_feature_extractor.1} parent=1 // pred_region
      _
    $region13: #{image_feature_extractor.1} parent=1 // pred_fallthru
      _
    // Predicated region
    $region14: #{image_feature_extractor.1} parent=1 // pred_check
      _
    $region15: #{image_feature_extractor.1} parent=1 // pred_check_branch
      %26 = sbr.rel (0) target = $region17
    $region16: #{image_feature_extractor.1} parent=1 // pred_region
      _
    $region17: #{image_feature_extractor.1} parent=1 // pred_fallthru
      _
    // Predicated region
    $region18: #{image_feature_extractor.1} parent=1 // pred_check
      _
    $region19: #{image_feature_extractor.1} parent=1 // pred_check_branch
      %28 = sbr.rel (0) target = $region21
    $region20: #{image_feature_extractor.1} parent=1 // pred_region
      _
    $region21: #{image_feature_extractor.1} parent=1 // pred_fallthru
      _
    // Predicated region
    $region22: #{image_feature_extractor.1} parent=1 // pred_check
      _
    $region23: #{image_feature_extractor.1} parent=1 // pred_check_branch
      %30 = sbr.rel (0) target = $region25
    $region24: #{image_feature_extractor.1} parent=1 // pred_region
      _
    $region25: #{image_feature_extractor.1} parent=1 // pred_fallthru
      _
    // Predicated region
    $region26: #{image_feature_extractor.1} parent=1 // pred_check
      _
    $region27: #{image_feature_extractor.1} parent=1 // pred_check_branch
      %32 = sbr.rel (0) target = $region29
    $region28: #{image_feature_extractor.1} parent=1 // pred_region
      _
    $region29: #{image_feature_extractor.1} parent=1 // pred_fallthru
      _
    // Predicated region
    $region30: #{image_feature_extractor.1} parent=1 // pred_check
      _
    $region31: #{image_feature_extractor.1} parent=1 // pred_check_branch
      %34 = sbr.rel (0) target = $region33
    $region32: #{image_feature_extractor.1} parent=1 // pred_region
      _
    $region33: #{image_feature_extractor.1} parent=1 // pred_fallthru
      _
    // Predicated region
    $region34: #{image_feature_extractor.1} parent=1 // pred_check
      _
    $region35: #{image_feature_extractor.1} parent=1 // pred_check_branch
      %36 = sbr.rel (0) target = $region37
    $region36: #{image_feature_extractor.1} parent=1 // pred_region
      _
    $region37: #{image_feature_extractor.1} parent=1 // pred_fallthru
      _
    // Predicated region
    $region38: #{image_feature_extractor.1} parent=1 // pred_check
      _
    $region39: #{image_feature_extractor.1} parent=1 // pred_check_branch
      %38 = sbr.rel (0) target = $region41
    $region40: #{image_feature_extractor.1} parent=1 // pred_region
      _
    $region41: #{image_feature_extractor.1} parent=1 // pred_fallthru
      _
    // Predicated region
    $region42: #{image_feature_extractor.1} parent=1 // pred_check
      _
    $region43: #{image_feature_extractor.1} parent=1 // pred_check_branch
      %40 = sbr.rel (0) target = $region45
    $region44: #{image_feature_extractor.1} parent=1 // pred_region
      _
    $region45: #{image_feature_extractor.1} parent=1 // pred_fallthru
      _
    // Predicated region
    $region46: #{image_feature_extractor.1} parent=1 // pred_check
      _
    $region47: #{image_feature_extractor.1} parent=1 // pred_check_branch
      %42 = sbr.rel (0) target = $region49
    $region48: #{image_feature_extractor.1} parent=1 // pred_region
      _
    $region49: #{image_feature_extractor.1} parent=1 // pred_fallthru
      _
    // Predicated region
    $region50: #{image_feature_extractor.1} parent=1 // pred_check
      _
    $region51: #{image_feature_extractor.1} parent=1 // pred_check_branch
      %44 = sbr.rel (0) target = $region53
    $region52: #{image_feature_extractor.1} parent=1 // pred_region
      _
    $region53: #{image_feature_extractor.1} parent=1 // pred_fallthru
      _
    %v46 = vld [vmem:[%s0] sm:$0xf]
    %v47 = vld [vmem:[%s0 + $0x4] sm:$0xf]
    %v48 = vld [vmem:[%s0 + $0x8] sm:$0xf]
    %v49 = vld [vmem:[%s0 + $0xc] sm:$0xf]
    %v50 = vld [vmem:[%s0 + $0x10] sm:$0xf]
    %v51 = vld [vmem:[%s0 + $0x14] sm:$0xf]
    %v52 = vld [vmem:[%s0 + $0x18] sm:$0xf]
    %v53 = vld [vmem:[%s0 + $0x1c] sm:$0xf]
    %v54 = vld [vmem:[%s0 + $0x20] sm:$0xf]
    %v55 = vld [vmem:[%s0 + $0x24] sm:$0xf]
    %v56 = vld [vmem:[%s0 + $0x28] sm:$0xf]
    %v57 = vld [vmem:[%s0 + $0x2c] sm:$0xf]
    %v58 = vld [vmem:[%s0 + $0x30] sm:$0xf]
    %v59 = vld [vmem:[%s0 + $0x34] sm:$0xf]
    %v60 = vld [vmem:[%s0 + $0x38] sm:$0xf]
    %v61 = vld [vmem:[%s0 + $0x3c] sm:$0xf]
    %v62 = vld [vmem:[%s0 + $0x40] sm:$0xf]
    %v63 = vld [vmem:[%s0 + $0x44] sm:$0xf]
    %v64 = vld [vmem:[%s0 + $0x48] sm:$0xf]
    %v65 = vld [vmem:[%s0 + $0x4c] sm:$0xf]
    %v66 = vld [vmem:[%s0 + $0x50] sm:$0xf]
    %v67 = vld [vmem:[%s0 + $0x54] sm:$0xf]
    %v68 = vld [vmem:[%s0 + $0x58] sm:$0xf]
    %v69 = vld [vmem:[%s0 + $0x5c] sm:$0xf]
    %v70 = vld [vmem:[%s0 + $0x60] sm:$0xf]
    %v71 = vld [vmem:[%s0 + $0x64] sm:$0xf]
    %v72 = vld [vmem:[%s0 + $0x68] sm:$0xf]
    %v73 = vld [vmem:[%s0 + $0x6c] sm:$0xf]
    %v74 = vld [vmem:[%s0 + $0x70] sm:$0xf]
    %v75 = vld [vmem:[%s0 + $0x74] sm:$0xf]
    %v76 = vld [vmem:[%s0 + $0x78] sm:$0xf]
    %v77 = vld [vmem:[%s0 + $0x7c] sm:$0xf]
    %v78 = vld [vmem:[%s0 + $0x80] sm:$0xf]
    %v79 = vld [vmem:[%s0 + $0x84] sm:$0xf]
    %v80 = vld [vmem:[%s0 + $0x88] sm:$0xf]
    %v81 = vld [vmem:[%s0 + $0x8c] sm:$0xf]
    %v82 = vld [vmem:[%s0 + $0x90] sm:$0xf]
    %v83 = vld [vmem:[%s0 + $0x94] sm:$0xf]
    %v84 = vld [vmem:[%s0 + $0x98] sm:$0xf]
    %v85 = vld [vmem:[%s0 + $0x9c] sm:$0xf]
    %v86 = vld [vmem:[%s0 + $0xa0] sm:$0xf]
    %v87 = vld [vmem:[%s0 + $0xa4] sm:$0xf]
    %v88 = vld [vmem:[%s0 + $0xa8] sm:$0xf]
    %v89 = vld [vmem:[%s0 + $0xac] sm:$0xf]
    %v90 = vld [vmem:[%s0 + $0xb0] sm:$0xf]
    %v91 = vld [vmem:[%s0 + $0xb4] sm:$0xf]
    %v92 = vld [vmem:[%s0 + $0xb8] sm:$0xf]
    %v93 = vld [vmem:[%s0 + $0xbc] sm:$0xf]
    %v94 = vld [vmem:[%s0 + $0xc0] sm:$0xf]
    %v95 = vld [vmem:[%s0 + $0xc4] sm:$0xf]
    %v96 = vld [vmem:[%s0 + $0xc8] sm:$0xf]
    %v97 = vld [vmem:[%s0 + $0xcc] sm:$0xf]
    %v98 = vld [vmem:[%s0 + $0xd0] sm:$0xf]
    %v99 = vld [vmem:[%s0 + $0xd4] sm:$0xf]
    %v100 = vld [vmem:[%s0 + $0xd8] sm:$0xf]
    %v101 = vld [vmem:[%s0 + $0xdc] sm:$0xf]
    %v102 = vld [vmem:[%s0 + $0xe0] sm:$0xf]
    %v103 = vld [vmem:[%s0 + $0xe4] sm:$0xf]
    %v104 = vld [vmem:[%s0 + $0xe8] sm:$0xf]
    %v105 = vld [vmem:[%s0 + $0xec] sm:$0xf]
    %v106 = vld [vmem:[%s0 + $0xf0] sm:$0xf]
    %v107 = vld [vmem:[%s0 + $0xf4] sm:$0xf]
    %v108 = vld [vmem:[%s0 + $0xf8] sm:$0xf]
    %v109 = vld [vmem:[%s0 + $0xfc] sm:$0xf]
    %v110 = vld [vmem:[%s1] sm:$0xf]
    %v111 = vld [vmem:[%s1 + $0x4] sm:$0xf]
    %v112 = vld [vmem:[%s1 + $0x8] sm:$0xf]
    %v113 = vld [vmem:[%s1 + $0xc] sm:$0xf]
    %v114 = vld [vmem:[%s1 + $0x10] sm:$0x3]
    %v179 = vunpack.c.l.b16 %v46
    %v180 = vunpack.c.l.b16 %v47
    %v181 = vunpack.c.l.b16 %v48
    %v182 = vunpack.c.l.b16 %v49
    %v183 = vunpack.c.l.b16 %v50
    %v184 = vunpack.c.l.b16 %v51
    %v185 = vunpack.c.l.b16 %v52
    %v186 = vunpack.c.l.b16 %v53
    %v187 = vunpack.c.l.b16 %v54
    %v188 = vunpack.c.l.b16 %v55
    %v189 = vunpack.c.l.b16 %v56
    %v190 = vunpack.c.l.b16 %v57
    %v191 = vunpack.c.l.b16 %v58
    %v192 = vunpack.c.l.b16 %v59
    %v193 = vunpack.c.l.b16 %v60
    %v194 = vunpack.c.l.b16 %v61
    %v195 = vunpack.c.l.b16 %v62
    %v196 = vunpack.c.l.b16 %v63
    %v197 = vunpack.c.l.b16 %v64
    %v198 = vunpack.c.l.b16 %v65
    %v199 = vunpack.c.l.b16 %v66
    %v200 = vunpack.c.l.b16 %v67
    %v201 = vunpack.c.l.b16 %v68
    %v202 = vunpack.c.l.b16 %v69
    %v203 = vunpack.c.l.b16 %v70
    %v204 = vunpack.c.l.b16 %v71
    %v205 = vunpack.c.l.b16 %v72
    %v206 = vunpack.c.l.b16 %v73
    %v207 = vunpack.c.l.b16 %v74
    %v208 = vunpack.c.l.b16 %v75
    %v209 = vunpack.c.l.b16 %v76
    %v210 = vunpack.c.l.b16 %v77
    %v211 = vunpack.c.l.b16 %v78
    %v212 = vunpack.c.l.b16 %v79
    %v213 = vunpack.c.l.b16 %v80
    %v214 = vunpack.c.l.b16 %v81
    %v215 = vunpack.c.l.b16 %v82
    %v216 = vunpack.c.l.b16 %v83
    %v217 = vunpack.c.l.b16 %v84
    %v218 = vunpack.c.l.b16 %v85
    %v219 = vunpack.c.l.b16 %v86
    %v220 = vunpack.c.l.b16 %v87
    %v221 = vunpack.c.l.b16 %v88
    %v222 = vunpack.c.l.b16 %v89
    %v223 = vunpack.c.l.b16 %v90
    %v224 = vunpack.c.l.b16 %v91
    %v225 = vunpack.c.l.b16 %v92
    %v226 = vunpack.c.l.b16 %v93
    %v227 = vunpack.c.l.b16 %v94
    %v228 = vunpack.c.l.b16 %v95
    %v229 = vunpack.c.l.b16 %v96
    %v230 = vunpack.c.l.b16 %v97
    %v231 = vunpack.c.l.b16 %v98
    %v232 = vunpack.c.l.b16 %v99
    %v233 = vunpack.c.l.b16 %v100
    %v234 = vunpack.c.l.b16 %v101
    %v235 = vunpack.c.l.b16 %v102
    %v236 = vunpack.c.l.b16 %v103
    %v237 = vunpack.c.l.b16 %v104
    %v238 = vunpack.c.l.b16 %v105
    %v239 = vunpack.c.l.b16 %v106
    %v240 = vunpack.c.l.b16 %v107
    %v241 = vunpack.c.l.b16 %v108
    %v242 = vunpack.c.l.b16 %v109
    %v243 = vpack.c.b16 %v180, %v179
    %v244 = vpack.c.b16 %v182, %v181
    %v245 = vpack.c.b16 %v184, %v183
    %v246 = vpack.c.b16 %v186, %v185
    %v247 = vpack.c.b16 %v188, %v187
    %v248 = vpack.c.b16 %v190, %v189
    %v249 = vpack.c.b16 %v192, %v191
    %v250 = vpack.c.b16 %v194, %v193
    %v251 = vpack.c.b16 %v196, %v195
    %v252 = vpack.c.b16 %v198, %v197
    %v253 = vpack.c.b16 %v200, %v199
    %v254 = vpack.c.b16 %v202, %v201
    %v255 = vpack.c.b16 %v204, %v203
    %v256 = vpack.c.b16 %v206, %v205
    %v257 = vpack.c.b16 %v208, %v207
    %v258 = vpack.c.b16 %v210, %v209
    %v259 = vpack.c.b16 %v212, %v211
    %v260 = vpack.c.b16 %v214, %v213
    %v261 = vpack.c.b16 %v216, %v215
    %v262 = vpack.c.b16 %v218, %v217
    %v263 = vpack.c.b16 %v220, %v219
    %v264 = vpack.c.b16 %v222, %v221
    %v265 = vpack.c.b16 %v224, %v223
    %v266 = vpack.c.b16 %v226, %v225
    %v267 = vpack.c.b16 %v228, %v227
    %v268 = vpack.c.b16 %v230, %v229
    %v269 = vpack.c.b16 %v232, %v231
    %v270 = vpack.c.b16 %v234, %v233
    %v271 = vpack.c.b16 %v236, %v235
    %v272 = vpack.c.b16 %v238, %v237
    %v273 = vpack.c.b16 %v240, %v239
    %v274 = vpack.c.b16 %v242, %v241
    %v280 = vunpack.c.l.b16 %v110
    %v281 = vunpack.c.l.b16 %v111
    %v282 = vunpack.c.l.b16 %v112
    %v283 = vunpack.c.l.b16 %v113
    %v284 = vunpack.c.l.b16 %v114
    %v285 = vpack.c.b16 %v281, %v280
    %v286 = vpack.c.b16 %v283, %v282
    %v287 = vpack.c.b16 %v284, %v284
    %vm290 = vcmask 293888
    %v292 = vsel %vm290, %v243, 0
    %v295 = vsel %vm290, %v244, 0
    %v298 = vsel %vm290, %v245, 0
    %v301 = vsel %vm290, %v246, 0
    %v304 = vsel %vm290, %v247, 0
    %v307 = vsel %vm290, %v248, 0
    %v310 = vsel %vm290, %v249, 0
    %v313 = vsel %vm290, %v250, 0
    %v316 = vsel %vm290, %v251, 0
    %v319 = vsel %vm290, %v252, 0
    %v322 = vsel %vm290, %v253, 0
    %v325 = vsel %vm290, %v254, 0
    %v328 = vsel %vm290, %v255, 0
    %v331 = vsel %vm290, %v256, 0
    %v334 = vsel %vm290, %v257, 0
    %v337 = vsel %vm290, %v258, 0
    %v340 = vsel %vm290, %v259, 0
    %v343 = vsel %vm290, %v260, 0
    %v346 = vsel %vm290, %v261, 0
    %v349 = vsel %vm290, %v262, 0
    %v352 = vsel %vm290, %v263, 0
    %v355 = vsel %vm290, %v264, 0
    %v358 = vsel %vm290, %v265, 0
    %v361 = vsel %vm290, %v266, 0
    %v364 = vsel %vm290, %v267, 0
    %v367 = vsel %vm290, %v268, 0
    %v370 = vsel %vm290, %v269, 0
    %v373 = vsel %vm290, %v270, 0
    %v376 = vsel %vm290, %v271, 0
    %v379 = vsel %vm290, %v272, 0
    %v382 = vsel %vm290, %v273, 0
    %v385 = vsel %vm290, %v274, 0
    %vm387 = vcmask 1041408
    %v389 = vsel %vm387, %v287, 0
    %391 = vmatprep.subr.bf16.mxu0 0
    %392 = vmatpush1.bf16.msra.mxu0 %v285
    %393 = vmatprep.subr.bf16.mxu0 0
    %394 = vmatpush1.bf16.msra.mxu0 %v286
    %395 = vmatprep.subr.bf16.mxu0 0
    %396 = vmatpush1.bf16.msra.mxu0 %v389
    %397 = vmatprep.subr.bf16.mxu0 0
    %398 = vmatpush1.bf16.msra.mxu0 0
    %399 = vmatprep.subr.bf16.mxu0 0
    %400 = vmatpush1.bf16.msra.mxu0 0
    %401 = vmatprep.subr.bf16.mxu0 0
    %402 = vmatpush1.bf16.msra.mxu0 0
    %403 = vmatprep.subr.bf16.mxu0 0
    %404 = vmatpush1.bf16.msra.mxu0 0
    %405 = vmatprep.subr.bf16.mxu0 0
    %406 = vmatpush1.bf16.msra.mxu0 0
    %407 = vmatprep.subr.bf16.mxu0 0
    %408 = vmatpush1.bf16.msra.mxu0 0
    %409 = vmatprep.subr.bf16.mxu0 0
    %410 = vmatpush1.bf16.msra.mxu0 0
    %411 = vmatprep.subr.bf16.mxu0 0
    %412 = vmatpush1.bf16.msra.mxu0 0
    %413 = vmatprep.subr.bf16.mxu0 0
    %414 = vmatpush1.bf16.msra.mxu0 0
    %415 = vmatprep.subr.bf16.mxu0 0
    %416 = vmatpush1.bf16.msra.mxu0 0
    %417 = vmatprep.subr.bf16.mxu0 0
    %418 = vmatpush1.bf16.msra.mxu0 0
    %419 = vmatprep.subr.bf16.mxu0 0
    %420 = vmatpush1.bf16.msra.mxu0 0
    %421 = vmatprep.subr.bf16.mxu0 0
    %422 = vmatpush1.bf16.msra.mxu0 0
    %423 = vmatprep.mubr.bf16.mxu0 0
    %424 = vmatmul.mubr.bf16.gmra.mrb[0].mxu0 %v292
    %v425 = vpop.f32.mrb[0].mxu0
    %v426 = vadd.f32 0.0, %v425
    %v427 = vpop.f32.mrb[0].mxu0
    %v428 = vpop.f32.mrb[0].mxu0
    %v429 = vadd.f32 0.0, %v428
    %v430 = vpop.f32.mrb[0].mxu0
    %431 = vmatprep.mubr.bf16.mxu0 0
    %432 = vmatmul.mubr.bf16.gmra.mrb[0].mxu0 %v295
    %v433 = vpop.f32.mrb[0].mxu0
    %v434 = vadd.f32 0.0, %v433
    %v435 = vpop.f32.mrb[0].mxu0
    %v436 = vpop.f32.mrb[0].mxu0
    %v437 = vadd.f32 0.0, %v436
    %v438 = vpop.f32.mrb[0].mxu0
    %439 = vmatprep.mubr.bf16.mxu0 0
    %440 = vmatmul.mubr.bf16.gmra.mrb[0].mxu0 %v298
    %v441 = vpop.f32.mrb[0].mxu0
    %v442 = vadd.f32 0.0, %v441
    %v443 = vpop.f32.mrb[0].mxu0
    %v444 = vpop.f32.mrb[0].mxu0
    %v445 = vadd.f32 0.0, %v444
    %v446 = vpop.f32.mrb[0].mxu0
    %447 = vmatprep.mubr.bf16.mxu0 0
    %448 = vmatmul.mubr.bf16.gmra.mrb[0].mxu0 %v301
    %v449 = vpop.f32.mrb[0].mxu0
    %v450 = vadd.f32 0.0, %v449
    %v451 = vpop.f32.mrb[0].mxu0
    %v452 = vpop.f32.mrb[0].mxu0
    %v453 = vadd.f32 0.0, %v452
    %v454 = vpop.f32.mrb[0].mxu0
    %455 = vmatprep.mubr.bf16.mxu0 0
    %456 = vmatmul.mubr.bf16.gmra.mrb[0].mxu0 %v304
    %v457 = vpop.f32.mrb[0].mxu0
    %v458 = vadd.f32 0.0, %v457
    %v459 = vpop.f32.mrb[0].mxu0
    %v460 = vpop.f32.mrb[0].mxu0
    %v461 = vadd.f32 0.0, %v460
    %v462 = vpop.f32.mrb[0].mxu0
    %463 = vmatprep.mubr.bf16.mxu0 0
    %464 = vmatmul.mubr.bf16.gmra.mrb[0].mxu0 %v307
    %v465 = vpop.f32.mrb[0].mxu0
    %v466 = vadd.f32 0.0, %v465
    %v467 = vpop.f32.mrb[0].mxu0
    %v468 = vpop.f32.mrb[0].mxu0
    %v469 = vadd.f32 0.0, %v468
    %v470 = vpop.f32.mrb[0].mxu0
    %471 = vmatprep.mubr.bf16.mxu0 0
    %472 = vmatmul.mubr.bf16.gmra.mrb[0].mxu0 %v310
    %v473 = vpop.f32.mrb[0].mxu0
    %v474 = vadd.f32 0.0, %v473
    %v475 = vpop.f32.mrb[0].mxu0
    %v476 = vpop.f32.mrb[0].mxu0
    %v477 = vadd.f32 0.0, %v476
    %v478 = vpop.f32.mrb[0].mxu0
    %479 = vmatprep.mubr.bf16.mxu0 0
    %480 = vmatmul.mubr.bf16.gmra.mrb[0].mxu0 %v313
    %v481 = vpop.f32.mrb[0].mxu0
    %v482 = vadd.f32 0.0, %v481
    %v483 = vpop.f32.mrb[0].mxu0
    %v484 = vpop.f32.mrb[0].mxu0
    %v485 = vadd.f32 0.0, %v484
    %v486 = vpop.f32.mrb[0].mxu0
    %487 = vmatprep.mubr.bf16.mxu0 0
    %488 = vmatmul.mubr.bf16.gmra.mrb[0].mxu0 %v316
    %v489 = vpop.f32.mrb[0].mxu0
    %v490 = vadd.f32 0.0, %v489
    %v491 = vpop.f32.mrb[0].mxu0
    %v492 = vpop.f32.mrb[0].mxu0
    %v493 = vadd.f32 0.0, %v492
    %v494 = vpop.f32.mrb[0].mxu0
    %495 = vmatprep.mubr.bf16.mxu0 0
    %496 = vmatmul.mubr.bf16.gmra.mrb[0].mxu0 %v319
    %v497 = vpop.f32.mrb[0].mxu0
    %v498 = vadd.f32 0.0, %v497
    %v499 = vpop.f32.mrb[0].mxu0
    %v500 = vpop.f32.mrb[0].mxu0
    %v501 = vadd.f32 0.0, %v500
    %v502 = vpop.f32.mrb[0].mxu0
    %503 = vmatprep.mubr.bf16.mxu0 0
    %504 = vmatmul.mubr.bf16.gmra.mrb[0].mxu0 %v322
    %v505 = vpop.f32.mrb[0].mxu0
    %v506 = vadd.f32 0.0, %v505
    %v507 = vpop.f32.mrb[0].mxu0
    %v508 = vpop.f32.mrb[0].mxu0
    %v509 = vadd.f32 0.0, %v508
    %v510 = vpop.f32.mrb[0].mxu0
    %511 = vmatprep.mubr.bf16.mxu0 0
    %512 = vmatmul.mubr.bf16.gmra.mrb[0].mxu0 %v325
    %v513 = vpop.f32.mrb[0].mxu0
    %v514 = vadd.f32 0.0, %v513
    %v515 = vpop.f32.mrb[0].mxu0
    %v516 = vpop.f32.mrb[0].mxu0
    %v517 = vadd.f32 0.0, %v516
    %v518 = vpop.f32.mrb[0].mxu0
    %519 = vmatprep.mubr.bf16.mxu0 0
    %520 = vmatmul.mubr.bf16.gmra.mrb[0].mxu0 %v328
    %v521 = vpop.f32.mrb[0].mxu0
    %v522 = vadd.f32 0.0, %v521
    %v523 = vpop.f32.mrb[0].mxu0
    %v524 = vpop.f32.mrb[0].mxu0
    %v525 = vadd.f32 0.0, %v524
    %v526 = vpop.f32.mrb[0].mxu0
    %527 = vmatprep.mubr.bf16.mxu0 0
    %528 = vmatmul.mubr.bf16.gmra.mrb[0].mxu0 %v331
    %v529 = vpop.f32.mrb[0].mxu0
    %v530 = vadd.f32 0.0, %v529
    %v531 = vpop.f32.mrb[0].mxu0
    %v532 = vpop.f32.mrb[0].mxu0
    %v533 = vadd.f32 0.0, %v532
    %v534 = vpop.f32.mrb[0].mxu0
    %535 = vmatprep.mubr.bf16.mxu0 0
    %536 = vmatmul.mubr.bf16.gmra.mrb[0].mxu0 %v334
    %v537 = vpop.f32.mrb[0].mxu0
    %v538 = vadd.f32 0.0, %v537
    %v539 = vpop.f32.mrb[0].mxu0
    %v540 = vpop.f32.mrb[0].mxu0
    %v541 = vadd.f32 0.0, %v540
    %v542 = vpop.f32.mrb[0].mxu0
    %543 = vmatprep.mubr.bf16.mxu0 0
    %544 = vmatmul.mubr.bf16.gmra.mrb[0].mxu0 %v337
    %v545 = vpop.f32.mrb[0].mxu0
    %v546 = vadd.f32 0.0, %v545
    %v547 = vpop.f32.mrb[0].mxu0
    %v548 = vpop.f32.mrb[0].mxu0
    %v549 = vadd.f32 0.0, %v548
    %v550 = vpop.f32.mrb[0].mxu0
    %551 = vmatprep.mubr.bf16.mxu0 0
    %552 = vmatmul.mubr.bf16.gmra.mrb[0].mxu0 %v340
    %v553 = vpop.f32.mrb[0].mxu0
    %v554 = vadd.f32 0.0, %v553
    %v555 = vpop.f32.mrb[0].mxu0
    %v556 = vpop.f32.mrb[0].mxu0
    %v557 = vadd.f32 0.0, %v556
    %v558 = vpop.f32.mrb[0].mxu0
    %559 = vmatprep.mubr.bf16.mxu0 0
    %560 = vmatmul.mubr.bf16.gmra.mrb[0].mxu0 %v343
    %v561 = vpop.f32.mrb[0].mxu0
    %v562 = vadd.f32 0.0, %v561
    %v563 = vpop.f32.mrb[0].mxu0
    %v564 = vpop.f32.mrb[0].mxu0
    %v565 = vadd.f32 0.0, %v564
    %v566 = vpop.f32.mrb[0].mxu0
    %567 = vmatprep.mubr.bf16.mxu0 0
    %568 = vmatmul.mubr.bf16.gmra.mrb[0].mxu0 %v346
    %v569 = vpop.f32.mrb[0].mxu0
    %v570 = vadd.f32 0.0, %v569
    %v571 = vpop.f32.mrb[0].mxu0
    %v572 = vpop.f32.mrb[0].mxu0
    %v573 = vadd.f32 0.0, %v572
    %v574 = vpop.f32.mrb[0].mxu0
    %575 = vmatprep.mubr.bf16.mxu0 0
    %576 = vmatmul.mubr.bf16.gmra.mrb[0].mxu0 %v349
    %v577 = vpop.f32.mrb[0].mxu0
    %v578 = vadd.f32 0.0, %v577
    %v579 = vpop.f32.mrb[0].mxu0
    %v580 = vpop.f32.mrb[0].mxu0
    %v581 = vadd.f32 0.0, %v580
    %v582 = vpop.f32.mrb[0].mxu0
    %583 = vmatprep.mubr.bf16.mxu0 0
    %584 = vmatmul.mubr.bf16.gmra.mrb[0].mxu0 %v352
    %v585 = vpop.f32.mrb[0].mxu0
    %v586 = vadd.f32 0.0, %v585
    %v587 = vpop.f32.mrb[0].mxu0
    %v588 = vpop.f32.mrb[0].mxu0
    %v589 = vadd.f32 0.0, %v588
    %v590 = vpop.f32.mrb[0].mxu0
    %591 = vmatprep.mubr.bf16.mxu0 0
    %592 = vmatmul.mubr.bf16.gmra.mrb[0].mxu0 %v355
    %v593 = vpop.f32.mrb[0].mxu0
    %v594 = vadd.f32 0.0, %v593
    %v595 = vpop.f32.mrb[0].mxu0
    %v596 = vpop.f32.mrb[0].mxu0
    %v597 = vadd.f32 0.0, %v596
    %v598 = vpop.f32.mrb[0].mxu0
    %599 = vmatprep.mubr.bf16.mxu0 0
    %600 = vmatmul.mubr.bf16.gmra.mrb[0].mxu0 %v358
    %v601 = vpop.f32.mrb[0].mxu0
    %v602 = vadd.f32 0.0, %v601
    %v603 = vpop.f32.mrb[0].mxu0
    %v604 = vpop.f32.mrb[0].mxu0
    %v605 = vadd.f32 0.0, %v604
    %v606 = vpop.f32.mrb[0].mxu0
    %607 = vmatprep.mubr.bf16.mxu0 0
    %608 = vmatmul.mubr.bf16.gmra.mrb[0].mxu0 %v361
    %v609 = vpop.f32.mrb[0].mxu0
    %v610 = vadd.f32 0.0, %v609
    %v611 = vpop.f32.mrb[0].mxu0
    %v612 = vpop.f32.mrb[0].mxu0
    %v613 = vadd.f32 0.0, %v612
    %v614 = vpop.f32.mrb[0].mxu0
    %615 = vmatprep.mubr.bf16.mxu0 0
    %616 = vmatmul.mubr.bf16.gmra.mrb[0].mxu0 %v364
    %v617 = vpop.f32.mrb[0].mxu0
    %v618 = vadd.f32 0.0, %v617
    %v619 = vpop.f32.mrb[0].mxu0
    %v620 = vpop.f32.mrb[0].mxu0
    %v621 = vadd.f32 0.0, %v620
    %v622 = vpop.f32.mrb[0].mxu0
    %623 = vmatprep.mubr.bf16.mxu0 0
    %624 = vmatmul.mubr.bf16.gmra.mrb[0].mxu0 %v367
    %v625 = vpop.f32.mrb[0].mxu0
    %v626 = vadd.f32 0.0, %v625
    %v627 = vpop.f32.mrb[0].mxu0
    %v628 = vpop.f32.mrb[0].mxu0
    %v629 = vadd.f32 0.0, %v628
    %v630 = vpop.f32.mrb[0].mxu0
    %631 = vmatprep.mubr.bf16.mxu0 0
    %632 = vmatmul.mubr.bf16.gmra.mrb[0].mxu0 %v370
    %v633 = vpop.f32.mrb[0].mxu0
    %v634 = vadd.f32 0.0, %v633
    %v635 = vpop.f32.mrb[0].mxu0
    %v636 = vpop.f32.mrb[0].mxu0
    %v637 = vadd.f32 0.0, %v636
    %v638 = vpop.f32.mrb[0].mxu0
    %639 = vmatprep.mubr.bf16.mxu0 0
    %640 = vmatmul.mubr.bf16.gmra.mrb[0].mxu0 %v373
    %v641 = vpop.f32.mrb[0].mxu0
    %v642 = vadd.f32 0.0, %v641
    %v643 = vpop.f32.mrb[0].mxu0
    %v644 = vpop.f32.mrb[0].mxu0
    %v645 = vadd.f32 0.0, %v644
    %v646 = vpop.f32.mrb[0].mxu0
    %647 = vmatprep.mubr.bf16.mxu0 0
    %648 = vmatmul.mubr.bf16.gmra.mrb[0].mxu0 %v376
    %v649 = vpop.f32.mrb[0].mxu0
    %v650 = vadd.f32 0.0, %v649
    %v651 = vpop.f32.mrb[0].mxu0
    %v652 = vpop.f32.mrb[0].mxu0
    %v653 = vadd.f32 0.0, %v652
    %v654 = vpop.f32.mrb[0].mxu0
    %655 = vmatprep.mubr.bf16.mxu0 0
    %656 = vmatmul.mubr.bf16.gmra.mrb[0].mxu0 %v379
    %v657 = vpop.f32.mrb[0].mxu0
    %v658 = vadd.f32 0.0, %v657
    %v659 = vpop.f32.mrb[0].mxu0
    %v660 = vpop.f32.mrb[0].mxu0
    %v661 = vadd.f32 0.0, %v660
    %v662 = vpop.f32.mrb[0].mxu0
    %663 = vmatprep.mubr.bf16.mxu0 0
    %664 = vmatmul.mubr.bf16.gmra.mrb[0].mxu0 %v382
    %v665 = vpop.f32.mrb[0].mxu0
    %v666 = vadd.f32 0.0, %v665
    %v667 = vpop.f32.mrb[0].mxu0
    %v668 = vpop.f32.mrb[0].mxu0
    %v669 = vadd.f32 0.0, %v668
    %v670 = vpop.f32.mrb[0].mxu0
    %671 = vmatprep.mubr.bf16.mxu0 0
    %672 = vmatmul.mubr.bf16.gmra.mrb[0].mxu0 %v385
    %v673 = vpop.f32.mrb[0].mxu0
    %v674 = vadd.f32 0.0, %v673
    %v675 = vpop.f32.mrb[0].mxu0
    %v676 = vpop.f32.mrb[0].mxu0
    %v677 = vadd.f32 0.0, %v676
    %v678 = vpop.f32.mrb[0].mxu0
    %679 = vdwg.mxu0
    %vm680 = vcmask 523264
    %v681 = vsel %vm680, %v426, 0.0
    %v682 = vsel %vm680, %v429, 0.0
    %v683 = vadd.f32 %v681, %v682
    %v684 = vsel %vm680, %v434, 0.0
    %v685 = vadd.f32 %v683, %v684
    %v686 = vsel %vm680, %v437, 0.0
    %v687 = vadd.f32 %v685, %v686
    %v688 = vsel %vm680, %v442, 0.0
    %v689 = vadd.f32 %v687, %v688
    %v690 = vsel %vm680, %v445, 0.0
    %v691 = vadd.f32 %v689, %v690
    %v692 = vsel %vm680, %v450, 0.0
    %v693 = vadd.f32 %v691, %v692
    %v694 = vsel %vm680, %v453, 0.0
    %v695 = vadd.f32 %v693, %v694
    %v696 = vsel %vm680, %v458, 0.0
    %v697 = vadd.f32 %v695, %v696
    %v698 = vsel %vm680, %v461, 0.0
    %v699 = vadd.f32 %v697, %v698
    %v700 = vsel %vm680, %v466, 0.0
    %v701 = vadd.f32 %v699, %v700
    %v702 = vsel %vm680, %v469, 0.0
    %v703 = vadd.f32 %v701, %v702
    %v704 = vsel %vm680, %v474, 0.0
    %v705 = vadd.f32 %v703, %v704
    %v706 = vsel %vm680, %v477, 0.0
    %v707 = vadd.f32 %v705, %v706
    %v708 = vsel %vm680, %v482, 0.0
    %v709 = vadd.f32 %v707, %v708
    %v710 = vsel %vm680, %v485, 0.0
    %v711 = vadd.f32 %v709, %v710
    %v712 = vsel %vm680, %v490, 0.0
    %v713 = vadd.f32 %v711, %v712
    %v714 = vsel %vm680, %v493, 0.0
    %v715 = vadd.f32 %v713, %v714
    %v716 = vsel %vm680, %v498, 0.0
    %v717 = vadd.f32 %v715, %v716
    %v718 = vsel %vm680, %v501, 0.0
    %v719 = vadd.f32 %v717, %v718
    %v720 = vsel %vm680, %v506, 0.0
    %v721 = vadd.f32 %v719, %v720
    %v722 = vsel %vm680, %v509, 0.0
    %v723 = vadd.f32 %v721, %v722
    %v724 = vsel %vm680, %v514, 0.0
    %v725 = vadd.f32 %v723, %v724
    %v726 = vsel %vm680, %v517, 0.0
    %v727 = vadd.f32 %v725, %v726
    %v728 = vsel %vm680, %v522, 0.0
    %v729 = vadd.f32 %v727, %v728
    %v730 = vsel %vm680, %v525, 0.0
    %v731 = vadd.f32 %v729, %v730
    %v732 = vsel %vm680, %v530, 0.0
    %v733 = vadd.f32 %v731, %v732
    %v734 = vsel %vm680, %v533, 0.0
    %v735 = vadd.f32 %v733, %v734
    %v736 = vsel %vm680, %v538, 0.0
    %v737 = vadd.f32 %v735, %v736
    %v738 = vsel %vm680, %v541, 0.0
    %v739 = vadd.f32 %v737, %v738
    %v740 = vsel %vm680, %v546, 0.0
    %v741 = vadd.f32 %v739, %v740
    %v742 = vsel %vm680, %v549, 0.0
    %v743 = vadd.f32 %v741, %v742
    %v744 = vsel %vm680, %v554, 0.0
    %v745 = vadd.f32 %v743, %v744
    %v746 = vsel %vm680, %v557, 0.0
    %v747 = vadd.f32 %v745, %v746
    %v748 = vsel %vm680, %v562, 0.0
    %v749 = vadd.f32 %v747, %v748
    %v750 = vsel %vm680, %v565, 0.0
    %v751 = vadd.f32 %v749, %v750
    %v752 = vsel %vm680, %v570, 0.0
    %v753 = vadd.f32 %v751, %v752
    %v754 = vsel %vm680, %v573, 0.0
    %v755 = vadd.f32 %v753, %v754
    %v756 = vsel %vm680, %v578, 0.0
    %v757 = vadd.f32 %v755, %v756
    %v758 = vsel %vm680, %v581, 0.0
    %v759 = vadd.f32 %v757, %v758
    %v760 = vsel %vm680, %v586, 0.0
    %v761 = vadd.f32 %v759, %v760
    %v762 = vsel %vm680, %v589, 0.0
    %v763 = vadd.f32 %v761, %v762
    %v764 = vsel %vm680, %v594, 0.0
    %v765 = vadd.f32 %v763, %v764
    %v766 = vsel %vm680, %v597, 0.0
    %v767 = vadd.f32 %v765, %v766
    %v768 = vsel %vm680, %v602, 0.0
    %v769 = vadd.f32 %v767, %v768
    %v770 = vsel %vm680, %v605, 0.0
    %v771 = vadd.f32 %v769, %v770
    %v772 = vsel %vm680, %v610, 0.0
    %v773 = vadd.f32 %v771, %v772
    %v774 = vsel %vm680, %v613, 0.0
    %v775 = vadd.f32 %v773, %v774
    %v776 = vsel %vm680, %v618, 0.0
    %v777 = vadd.f32 %v775, %v776
    %v778 = vsel %vm680, %v621, 0.0
    %v779 = vadd.f32 %v777, %v778
    %v780 = vsel %vm680, %v626, 0.0
    %v781 = vadd.f32 %v779, %v780
    %v782 = vsel %vm680, %v629, 0.0
    %v783 = vadd.f32 %v781, %v782
    %v784 = vsel %vm680, %v634, 0.0
    %v785 = vadd.f32 %v783, %v784
    %v786 = vsel %vm680, %v637, 0.0
    %v787 = vadd.f32 %v785, %v786
    %v788 = vsel %vm680, %v642, 0.0
    %v789 = vadd.f32 %v787, %v788
    %v790 = vsel %vm680, %v645, 0.0
    %v791 = vadd.f32 %v789, %v790
    %v792 = vsel %vm680, %v650, 0.0
    %v793 = vadd.f32 %v791, %v792
    %v794 = vsel %vm680, %v653, 0.0
    %v795 = vadd.f32 %v793, %v794
    %v796 = vsel %vm680, %v658, 0.0
    %v797 = vadd.f32 %v795, %v796
    %v798 = vsel %vm680, %v661, 0.0
    %v799 = vadd.f32 %v797, %v798
    %v800 = vsel %vm680, %v666, 0.0
    %v801 = vadd.f32 %v799, %v800
    %v802 = vsel %vm680, %v669, 0.0
    %v803 = vadd.f32 %v801, %v802
    %v804 = vsel %vm680, %v674, 0.0
    %v805 = vadd.f32 %v803, %v804
    %v806 = vsel %vm680, %v677, 0.0
    %v807 = vadd.f32 %v805, %v806
    %v808 = vrot.slane %v807, 4
    %v809 = vadd.f32 %v807, %v808
    %v810 = vrot.slane %v809, 2
    %v811 = vadd.f32 %v809, %v810
    %v812 = vrot.slane %v811, 1
    %v813 = vadd.f32 %v811, %v812
    %v814 = vmul.f32 %v426, %v426
    %v815 = vmul.f32 %v429, %v429
    %v816 = vmul.f32 %v434, %v434
    %v817 = vmul.f32 %v437, %v437
    %v818 = vmul.f32 %v442, %v442
    %v819 = vmul.f32 %v445, %v445
    %v820 = vmul.f32 %v450, %v450
    %v821 = vmul.f32 %v453, %v453
    %v822 = vmul.f32 %v458, %v458
    %v823 = vmul.f32 %v461, %v461
    %v824 = vmul.f32 %v466, %v466
    %v825 = vmul.f32 %v469, %v469
    %v826 = vmul.f32 %v474, %v474
    %v827 = vmul.f32 %v477, %v477
    %v828 = vmul.f32 %v482, %v482
    %v829 = vmul.f32 %v485, %v485
    %v830 = vmul.f32 %v490, %v490
    %v831 = vmul.f32 %v493, %v493
    %v832 = vmul.f32 %v498, %v498
    %v833 = vmul.f32 %v501, %v501
    %v834 = vmul.f32 %v506, %v506
    %v835 = vmul.f32 %v509, %v509
    %v836 = vmul.f32 %v514, %v514
    %v837 = vmul.f32 %v517, %v517
    %v838 = vmul.f32 %v522, %v522
    %v839 = vmul.f32 %v525, %v525
    %v840 = vmul.f32 %v530, %v530
    %v841 = vmul.f32 %v533, %v533
    %v842 = vmul.f32 %v538, %v538
    %v843 = vmul.f32 %v541, %v541
    %v844 = vmul.f32 %v546, %v546
    %v845 = vmul.f32 %v549, %v549
    %v846 = vmul.f32 %v554, %v554
    %v847 = vmul.f32 %v557, %v557
    %v848 = vmul.f32 %v562, %v562
    %v849 = vmul.f32 %v565, %v565
    %v850 = vmul.f32 %v570, %v570
    %v851 = vmul.f32 %v573, %v573
    %v852 = vmul.f32 %v578, %v578
    %v853 = vmul.f32 %v581, %v581
    %v854 = vmul.f32 %v586, %v586
    %v855 = vmul.f32 %v589, %v589
    %v856 = vmul.f32 %v594, %v594
    %v857 = vmul.f32 %v597, %v597
    %v858 = vmul.f32 %v602, %v602
    %v859 = vmul.f32 %v605, %v605
    %v860 = vmul.f32 %v610, %v610
    %v861 = vmul.f32 %v613, %v613
    %v862 = vmul.f32 %v618, %v618
    %v863 = vmul.f32 %v621, %v621
    %v864 = vmul.f32 %v626, %v626
    %v865 = vmul.f32 %v629, %v629
    %v866 = vmul.f32 %v634, %v634
    %v867 = vmul.f32 %v637, %v637
    %v868 = vmul.f32 %v642, %v642
    %v869 = vmul.f32 %v645, %v645
    %v870 = vmul.f32 %v650, %v650
    %v871 = vmul.f32 %v653, %v653
    %v872 = vmul.f32 %v658, %v658
    %v873 = vmul.f32 %v661, %v661
    %v874 = vmul.f32 %v666, %v666
    %v875 = vmul.f32 %v669, %v669
    %v876 = vmul.f32 %v674, %v674
    %v877 = vmul.f32 %v677, %v677
    %v878 = vsel %vm680, %v814, 0.0
    %v879 = vsel %vm680, %v815, 0.0
    %v880 = vadd.f32 %v878, %v879
    %v881 = vsel %vm680, %v816, 0.0
    %v882 = vadd.f32 %v880, %v881
    %v883 = vsel %vm680, %v817, 0.0
    %v884 = vadd.f32 %v882, %v883
    %v885 = vsel %vm680, %v818, 0.0
    %v886 = vadd.f32 %v884, %v885
    %v887 = vsel %vm680, %v819, 0.0
    %v888 = vadd.f32 %v886, %v887
    %v889 = vsel %vm680, %v820, 0.0
    %v890 = vadd.f32 %v888, %v889
    %v891 = vsel %vm680, %v821, 0.0
    %v892 = vadd.f32 %v890, %v891
    %v893 = vsel %vm680, %v822, 0.0
    %v894 = vadd.f32 %v892, %v893
    %v895 = vsel %vm680, %v823, 0.0
    %v896 = vadd.f32 %v894, %v895
    %v897 = vsel %vm680, %v824, 0.0
    %v898 = vadd.f32 %v896, %v897
    %v899 = vsel %vm680, %v825, 0.0
    %v900 = vadd.f32 %v898, %v899
    %v901 = vsel %vm680, %v826, 0.0
    %v902 = vadd.f32 %v900, %v901
    %v903 = vsel %vm680, %v827, 0.0
    %v904 = vadd.f32 %v902, %v903
    %v905 = vsel %vm680, %v828, 0.0
    %v906 = vadd.f32 %v904, %v905
    %v907 = vsel %vm680, %v829, 0.0
    %v908 = vadd.f32 %v906, %v907
    %v909 = vsel %vm680, %v830, 0.0
    %v910 = vadd.f32 %v908, %v909
    %v911 = vsel %vm680, %v831, 0.0
    %v912 = vadd.f32 %v910, %v911
    %v913 = vsel %vm680, %v832, 0.0
    %v914 = vadd.f32 %v912, %v913
    %v915 = vsel %vm680, %v833, 0.0
    %v916 = vadd.f32 %v914, %v915
    %v917 = vsel %vm680, %v834, 0.0
    %v918 = vadd.f32 %v916, %v917
    %v919 = vsel %vm680, %v835, 0.0
    %v920 = vadd.f32 %v918, %v919
    %v921 = vsel %vm680, %v836, 0.0
    %v922 = vadd.f32 %v920, %v921
    %v923 = vsel %vm680, %v837, 0.0
    %v924 = vadd.f32 %v922, %v923
    %v925 = vsel %vm680, %v838, 0.0
    %v926 = vadd.f32 %v924, %v925
    %v927 = vsel %vm680, %v839, 0.0
    %v928 = vadd.f32 %v926, %v927
    %v929 = vsel %vm680, %v840, 0.0
    %v930 = vadd.f32 %v928, %v929
    %v931 = vsel %vm680, %v841, 0.0
    %v932 = vadd.f32 %v930, %v931
    %v933 = vsel %vm680, %v842, 0.0
    %v934 = vadd.f32 %v932, %v933
    %v935 = vsel %vm680, %v843, 0.0
    %v936 = vadd.f32 %v934, %v935
    %v937 = vsel %vm680, %v844, 0.0
    %v938 = vadd.f32 %v936, %v937
    %v939 = vsel %vm680, %v845, 0.0
    %v940 = vadd.f32 %v938, %v939
    %v941 = vsel %vm680, %v846, 0.0
    %v942 = vadd.f32 %v940, %v941
    %v943 = vsel %vm680, %v847, 0.0
    %v944 = vadd.f32 %v942, %v943
    %v945 = vsel %vm680, %v848, 0.0
    %v946 = vadd.f32 %v944, %v945
    %v947 = vsel %vm680, %v849, 0.0
    %v948 = vadd.f32 %v946, %v947
    %v949 = vsel %vm680, %v850, 0.0
    %v950 = vadd.f32 %v948, %v949
    %v951 = vsel %vm680, %v851, 0.0
    %v952 = vadd.f32 %v950, %v951
    %v953 = vsel %vm680, %v852, 0.0
    %v954 = vadd.f32 %v952, %v953
    %v955 = vsel %vm680, %v853, 0.0
    %v956 = vadd.f32 %v954, %v955
    %v957 = vsel %vm680, %v854, 0.0
    %v958 = vadd.f32 %v956, %v957
    %v959 = vsel %vm680, %v855, 0.0
    %v960 = vadd.f32 %v958, %v959
    %v961 = vsel %vm680, %v856, 0.0
    %v962 = vadd.f32 %v960, %v961
    %v963 = vsel %vm680, %v857, 0.0
    %v964 = vadd.f32 %v962, %v963
    %v965 = vsel %vm680, %v858, 0.0
    %v966 = vadd.f32 %v964, %v965
    %v967 = vsel %vm680, %v859, 0.0
    %v968 = vadd.f32 %v966, %v967
    %v969 = vsel %vm680, %v860, 0.0
    %v970 = vadd.f32 %v968, %v969
    %v971 = vsel %vm680, %v861, 0.0
    %v972 = vadd.f32 %v970, %v971
    %v973 = vsel %vm680, %v862, 0.0
    %v974 = vadd.f32 %v972, %v973
    %v975 = vsel %vm680, %v863, 0.0
    %v976 = vadd.f32 %v974, %v975
    %v977 = vsel %vm680, %v864, 0.0
    %v978 = vadd.f32 %v976, %v977
    %v979 = vsel %vm680, %v865, 0.0
    %v980 = vadd.f32 %v978, %v979
    %v981 = vsel %vm680, %v866, 0.0
    %v982 = vadd.f32 %v980, %v981
    %v983 = vsel %vm680, %v867, 0.0
    %v984 = vadd.f32 %v982, %v983
    %v985 = vsel %vm680, %v868, 0.0
    %v986 = vadd.f32 %v984, %v985
    %v987 = vsel %vm680, %v869, 0.0
    %v988 = vadd.f32 %v986, %v987
    %v989 = vsel %vm680, %v870, 0.0
    %v990 = vadd.f32 %v988, %v989
    %v991 = vsel %vm680, %v871, 0.0
    %v992 = vadd.f32 %v990, %v991
    %v993 = vsel %vm680, %v872, 0.0
    %v994 = vadd.f32 %v992, %v993
    %v995 = vsel %vm680, %v873, 0.0
    %v996 = vadd.f32 %v994, %v995
    %v997 = vsel %vm680, %v874, 0.0
    %v998 = vadd.f32 %v996, %v997
    %v999 = vsel %vm680, %v875, 0.0
    %v1000 = vadd.f32 %v998, %v999
    %v1001 = vsel %vm680, %v876, 0.0
    %v1002 = vadd.f32 %v1000, %v1001
    %v1003 = vsel %vm680, %v877, 0.0
    %v1004 = vadd.f32 %v1002, %v1003
    %v1005 = vrot.slane %v1004, 4
    %v1006 = vadd.f32 %v1004, %v1005
    %v1007 = vrot.slane %v1006, 2
    %v1008 = vadd.f32 %v1006, %v1007
    %v1009 = vrot.slane %v1008, 1
    %v1010 = vadd.f32 %v1008, %v1009
    %v1011 = vmul.f32 %v813, 0.001953125
    %v1012 = vmul.f32 %v1010, 0.001953125
    %v1013 = vmul.f32 %v1011, %v1011
    %v1014 = vsub.f32 %v1012, %v1013
    %v1015 = vmax.f32 %v1014, 0.0
    %v1016 = vsub.f32 %v426, %v1011
    %v1017 = vsub.f32 %v429, %v1011
    %v1018 = vsub.f32 %v434, %v1011
    %v1019 = vsub.f32 %v437, %v1011
    %v1020 = vsub.f32 %v442, %v1011
    %v1021 = vsub.f32 %v445, %v1011
    %v1022 = vsub.f32 %v450, %v1011
    %v1023 = vsub.f32 %v453, %v1011
    %v1024 = vsub.f32 %v458, %v1011
    %v1025 = vsub.f32 %v461, %v1011
    %v1026 = vsub.f32 %v466, %v1011
    %v1027 = vsub.f32 %v469, %v1011
    %v1028 = vsub.f32 %v474, %v1011
    %v1029 = vsub.f32 %v477, %v1011
    %v1030 = vsub.f32 %v482, %v1011
    %v1031 = vsub.f32 %v485, %v1011
    %v1032 = vsub.f32 %v490, %v1011
    %v1033 = vsub.f32 %v493, %v1011
    %v1034 = vsub.f32 %v498, %v1011
    %v1035 = vsub.f32 %v501, %v1011
    %v1036 = vsub.f32 %v506, %v1011
    %v1037 = vsub.f32 %v509, %v1011
    %v1038 = vsub.f32 %v514, %v1011
    %v1039 = vsub.f32 %v517, %v1011
    %v1040 = vsub.f32 %v522, %v1011
    %v1041 = vsub.f32 %v525, %v1011
    %v1042 = vsub.f32 %v530, %v1011
    %v1043 = vsub.f32 %v533, %v1011
    %v1044 = vsub.f32 %v538, %v1011
    %v1045 = vsub.f32 %v541, %v1011
    %v1046 = vsub.f32 %v546, %v1011
    %v1047 = vsub.f32 %v549, %v1011
    %v1048 = vsub.f32 %v554, %v1011
    %v1049 = vsub.f32 %v557, %v1011
    %v1050 = vsub.f32 %v562, %v1011
    %v1051 = vsub.f32 %v565, %v1011
    %v1052 = vsub.f32 %v570, %v1011
    %v1053 = vsub.f32 %v573, %v1011
    %v1054 = vsub.f32 %v578, %v1011
    %v1055 = vsub.f32 %v581, %v1011
    %v1056 = vsub.f32 %v586, %v1011
    %v1057 = vsub.f32 %v589, %v1011
    %v1058 = vsub.f32 %v594, %v1011
    %v1059 = vsub.f32 %v597, %v1011
    %v1060 = vsub.f32 %v602, %v1011
    %v1061 = vsub.f32 %v605, %v1011
    %v1062 = vsub.f32 %v610, %v1011
    %v1063 = vsub.f32 %v613, %v1011
    %v1064 = vsub.f32 %v618, %v1011
    %v1065 = vsub.f32 %v621, %v1011
    %v1066 = vsub.f32 %v626, %v1011
    %v1067 = vsub.f32 %v629, %v1011
    %v1068 = vsub.f32 %v634, %v1011
    %v1069 = vsub.f32 %v637, %v1011
    %v1070 = vsub.f32 %v642, %v1011
    %v1071 = vsub.f32 %v645, %v1011
    %v1072 = vsub.f32 %v650, %v1011
    %v1073 = vsub.f32 %v653, %v1011
    %v1074 = vsub.f32 %v658, %v1011
    %v1075 = vsub.f32 %v661, %v1011
    %v1076 = vsub.f32 %v666, %v1011
    %v1077 = vsub.f32 %v669, %v1011
    %v1078 = vsub.f32 %v674, %v1011
    %v1079 = vsub.f32 %v677, %v1011
    %v1080 = vadd.f32 %v1015, 1e-05
    %v1081 = vrsqrt.pop %v1080
    %v1082 = vmul.f32 %v1016, %v1081
    %v1083 = vmul.f32 %v1017, %v1081
    %v1084 = vmul.f32 %v1018, %v1081
    %v1085 = vmul.f32 %v1019, %v1081
    %v1086 = vmul.f32 %v1020, %v1081
    %v1087 = vmul.f32 %v1021, %v1081
    %v1088 = vmul.f32 %v1022, %v1081
    %v1089 = vmul.f32 %v1023, %v1081
    %v1090 = vmul.f32 %v1024, %v1081
    %v1091 = vmul.f32 %v1025, %v1081
    %v1092 = vmul.f32 %v1026, %v1081
    %v1093 = vmul.f32 %v1027, %v1081
    %v1094 = vmul.f32 %v1028, %v1081
    %v1095 = vmul.f32 %v1029, %v1081
    %v1096 = vmul.f32 %v1030, %v1081
    %v1097 = vmul.f32 %v1031, %v1081
    %v1098 = vmul.f32 %v1032, %v1081
    %v1099 = vmul.f32 %v1033, %v1081
    %v1100 = vmul.f32 %v1034, %v1081
    %v1101 = vmul.f32 %v1035, %v1081
    %v1102 = vmul.f32 %v1036, %v1081
    %v1103 = vmul.f32 %v1037, %v1081
    %v1104 = vmul.f32 %v1038, %v1081
    %v1105 = vmul.f32 %v1039, %v1081
    %v1106 = vmul.f32 %v1040, %v1081
    %v1107 = vmul.f32 %v1041, %v1081
    %v1108 = vmul.f32 %v1042, %v1081
    %v1109 = vmul.f32 %v1043, %v1081
    %v1110 = vmul.f32 %v1044, %v1081
    %v1111 = vmul.f32 %v1045, %v1081
    %v1112 = vmul.f32 %v1046, %v1081
    %v1113 = vmul.f32 %v1047, %v1081
    %v1114 = vmul.f32 %v1048, %v1081
    %v1115 = vmul.f32 %v1049, %v1081
    %v1116 = vmul.f32 %v1050, %v1081
    %v1117 = vmul.f32 %v1051, %v1081
    %v1118 = vmul.f32 %v1052, %v1081
    %v1119 = vmul.f32 %v1053, %v1081
    %v1120 = vmul.f32 %v1054, %v1081
    %v1121 = vmul.f32 %v1055, %v1081
    %v1122 = vmul.f32 %v1056, %v1081
    %v1123 = vmul.f32 %v1057, %v1081
    %v1124 = vmul.f32 %v1058, %v1081
    %v1125 = vmul.f32 %v1059, %v1081
    %v1126 = vmul.f32 %v1060, %v1081
    %v1127 = vmul.f32 %v1061, %v1081
    %v1128 = vmul.f32 %v1062, %v1081
    %v1129 = vmul.f32 %v1063, %v1081
    %v1130 = vmul.f32 %v1064, %v1081
    %v1131 = vmul.f32 %v1065, %v1081
    %v1132 = vmul.f32 %v1066, %v1081
    %v1133 = vmul.f32 %v1067, %v1081
    %v1134 = vmul.f32 %v1068, %v1081
    %v1135 = vmul.f32 %v1069, %v1081
    %v1136 = vmul.f32 %v1070, %v1081
    %v1137 = vmul.f32 %v1071, %v1081
    %v1138 = vmul.f32 %v1072, %v1081
    %v1139 = vmul.f32 %v1073, %v1081
    %v1140 = vmul.f32 %v1074, %v1081
    %v1141 = vmul.f32 %v1075, %v1081
    %v1142 = vmul.f32 %v1076, %v1081
    %v1143 = vmul.f32 %v1077, %v1081
    %v1144 = vmul.f32 %v1078, %v1081
    %v1145 = vmul.f32 %v1079, %v1081
    %v1146 = vld [vmem:[%s5] sm:$0x1]
    %v1148 = vlaneseq
    %v1149 = vshrl.u32 %v1148, 7
    %v1150 = vsub.s32 0, %v1149
    %v1151 = vrot.slane %v1146, %v1150
    %v1153 = vmul.f32 %v1082, %v1151
    %v1154 = vmul.f32 %v1083, %v1151
    %v1155 = vmul.f32 %v1084, %v1151
    %v1156 = vmul.f32 %v1085, %v1151
    %v1157 = vmul.f32 %v1086, %v1151
    %v1158 = vmul.f32 %v1087, %v1151
    %v1159 = vmul.f32 %v1088, %v1151
    %v1160 = vmul.f32 %v1089, %v1151
    %v1161 = vmul.f32 %v1090, %v1151
    %v1162 = vmul.f32 %v1091, %v1151
    %v1163 = vmul.f32 %v1092, %v1151
    %v1164 = vmul.f32 %v1093, %v1151
    %v1165 = vmul.f32 %v1094, %v1151
    %v1166 = vmul.f32 %v1095, %v1151
    %v1167 = vmul.f32 %v1096, %v1151
    %v1168 = vmul.f32 %v1097, %v1151
    %v1169 = vmul.f32 %v1098, %v1151
    %v1170 = vmul.f32 %v1099, %v1151
    %v1171 = vmul.f32 %v1100, %v1151
    %v1172 = vmul.f32 %v1101, %v1151
    %v1173 = vmul.f32 %v1102, %v1151
    %v1174 = vmul.f32 %v1103, %v1151
    %v1175 = vmul.f32 %v1104, %v1151
    %v1176 = vmul.f32 %v1105, %v1151
    %v1177 = vmul.f32 %v1106, %v1151
    %v1178 = vmul.f32 %v1107, %v1151
    %v1179 = vmul.f32 %v1108, %v1151
    %v1180 = vmul.f32 %v1109, %v1151
    %v1181 = vmul.f32 %v1110, %v1151
    %v1182 = vmul.f32 %v1111, %v1151
    %v1183 = vmul.f32 %v1112, %v1151
    %v1184 = vmul.f32 %v1113, %v1151
    %v1185 = vmul.f32 %v1114, %v1151
    %v1186 = vmul.f32 %v1115, %v1151
    %v1187 = vmul.f32 %v1116, %v1151
    %v1188 = vmul.f32 %v1117, %v1151
    %v1189 = vmul.f32 %v1118, %v1151
    %v1190 = vmul.f32 %v1119, %v1151
    %v1191 = vmul.f32 %v1120, %v1151
    %v1192 = vmul.f32 %v1121, %v1151
    %v1193 = vmul.f32 %v1122, %v1151
    %v1194 = vmul.f32 %v1123, %v1151
    %v1195 = vmul.f32 %v1124, %v1151
    %v1196 = vmul.f32 %v1125, %v1151
    %v1197 = vmul.f32 %v1126, %v1151
    %v1198 = vmul.f32 %v1127, %v1151
    %v1199 = vmul.f32 %v1128, %v1151
    %v1200 = vmul.f32 %v1129, %v1151
    %v1201 = vmul.f32 %v1130, %v1151
    %v1202 = vmul.f32 %v1131, %v1151
    %v1203 = vmul.f32 %v1132, %v1151
    %v1204 = vmul.f32 %v1133, %v1151
    %v1205 = vmul.f32 %v1134, %v1151
    %v1206 = vmul.f32 %v1135, %v1151
    %v1207 = vmul.f32 %v1136, %v1151
    %v1208 = vmul.f32 %v1137, %v1151
    %v1209 = vmul.f32 %v1138, %v1151
    %v1210 = vmul.f32 %v1139, %v1151
    %v1211 = vmul.f32 %v1140, %v1151
    %v1212 = vmul.f32 %v1141, %v1151
    %v1213 = vmul.f32 %v1142, %v1151
    %v1214 = vmul.f32 %v1143, %v1151
    %v1215 = vmul.f32 %v1144, %v1151
    %v1216 = vmul.f32 %v1145, %v1151
    %v1217 = vld [vmem:[%s6] sm:$0x1]
    %v1219 = vlaneseq
    %v1220 = vshrl.u32 %v1219, 7
    %v1221 = vsub.s32 0, %v1220
    %v1222 = vrot.slane %v1217, %v1221
    %v1224 = vadd.f32 %v1153, %v1222
    %v1225 = vadd.f32 %v1154, %v1222
    %v1226 = vadd.f32 %v1155, %v1222
    %v1227 = vadd.f32 %v1156, %v1222
    %v1228 = vadd.f32 %v1157, %v1222
    %v1229 = vadd.f32 %v1158, %v1222
    %v1230 = vadd.f32 %v1159, %v1222
    %v1231 = vadd.f32 %v1160, %v1222
    %v1232 = vadd.f32 %v1161, %v1222
    %v1233 = vadd.f32 %v1162, %v1222
    %v1234 = vadd.f32 %v1163, %v1222
    %v1235 = vadd.f32 %v1164, %v1222
    %v1236 = vadd.f32 %v1165, %v1222
    %v1237 = vadd.f32 %v1166, %v1222
    %v1238 = vadd.f32 %v1167, %v1222
    %v1239 = vadd.f32 %v1168, %v1222
    %v1240 = vadd.f32 %v1169, %v1222
    %v1241 = vadd.f32 %v1170, %v1222
    %v1242 = vadd.f32 %v1171, %v1222
    %v1243 = vadd.f32 %v1172, %v1222
    %v1244 = vadd.f32 %v1173, %v1222
    %v1245 = vadd.f32 %v1174, %v1222
    %v1246 = vadd.f32 %v1175, %v1222
    %v1247 = vadd.f32 %v1176, %v1222
    %v1248 = vadd.f32 %v1177, %v1222
    %v1249 = vadd.f32 %v1178, %v1222
    %v1250 = vadd.f32 %v1179, %v1222
    %v1251 = vadd.f32 %v1180, %v1222
    %v1252 = vadd.f32 %v1181, %v1222
    %v1253 = vadd.f32 %v1182, %v1222
    %v1254 = vadd.f32 %v1183, %v1222
    %v1255 = vadd.f32 %v1184, %v1222
    %v1256 = vadd.f32 %v1185, %v1222
    %v1257 = vadd.f32 %v1186, %v1222
    %v1258 = vadd.f32 %v1187, %v1222
    %v1259 = vadd.f32 %v1188, %v1222
    %v1260 = vadd.f32 %v1189, %v1222
    %v1261 = vadd.f32 %v1190, %v1222
    %v1262 = vadd.f32 %v1191, %v1222
    %v1263 = vadd.f32 %v1192, %v1222
    %v1264 = vadd.f32 %v1193, %v1222
    %v1265 = vadd.f32 %v1194, %v1222
    %v1266 = vadd.f32 %v1195, %v1222
    %v1267 = vadd.f32 %v1196, %v1222
    %v1268 = vadd.f32 %v1197, %v1222
    %v1269 = vadd.f32 %v1198, %v1222
    %v1270 = vadd.f32 %v1199, %v1222
    %v1271 = vadd.f32 %v1200, %v1222
    %v1272 = vadd.f32 %v1201, %v1222
    %v1273 = vadd.f32 %v1202, %v1222
    %v1274 = vadd.f32 %v1203, %v1222
    %v1275 = vadd.f32 %v1204, %v1222
    %v1276 = vadd.f32 %v1205, %v1222
    %v1277 = vadd.f32 %v1206, %v1222
    %v1278 = vadd.f32 %v1207, %v1222
    %v1279 = vadd.f32 %v1208, %v1222
    %v1280 = vadd.f32 %v1209, %v1222
    %v1281 = vadd.f32 %v1210, %v1222
    %v1282 = vadd.f32 %v1211, %v1222
    %v1283 = vadd.f32 %v1212, %v1222
    %v1284 = vadd.f32 %v1213, %v1222
    %v1285 = vadd.f32 %v1214, %v1222
    %v1286 = vadd.f32 %v1215, %v1222
    %v1287 = vadd.f32 %v1216, %v1222
    %v1288 = vmax.f32 %v1224, 0.0
    %v1289 = vmax.f32 %v1225, 0.0
    %v1290 = vmax.f32 %v1226, 0.0
    %v1291 = vmax.f32 %v1227, 0.0
    %v1292 = vmax.f32 %v1228, 0.0
    %v1293 = vmax.f32 %v1229, 0.0
    %v1294 = vmax.f32 %v1230, 0.0
    %v1295 = vmax.f32 %v1231, 0.0
    %v1296 = vmax.f32 %v1232, 0.0
    %v1297 = vmax.f32 %v1233, 0.0
    %v1298 = vmax.f32 %v1234, 0.0
    %v1299 = vmax.f32 %v1235, 0.0
    %v1300 = vmax.f32 %v1236, 0.0
    %v1301 = vmax.f32 %v1237, 0.0
    %v1302 = vmax.f32 %v1238, 0.0
    %v1303 = vmax.f32 %v1239, 0.0
    %v1304 = vmax.f32 %v1240, 0.0
    %v1305 = vmax.f32 %v1241, 0.0
    %v1306 = vmax.f32 %v1242, 0.0
    %v1307 = vmax.f32 %v1243, 0.0
    %v1308 = vmax.f32 %v1244, 0.0
    %v1309 = vmax.f32 %v1245, 0.0
    %v1310 = vmax.f32 %v1246, 0.0
    %v1311 = vmax.f32 %v1247, 0.0
    %v1312 = vmax.f32 %v1248, 0.0
    %v1313 = vmax.f32 %v1249, 0.0
    %v1314 = vmax.f32 %v1250, 0.0
    %v1315 = vmax.f32 %v1251, 0.0
    %v1316 = vmax.f32 %v1252, 0.0
    %v1317 = vmax.f32 %v1253, 0.0
    %v1318 = vmax.f32 %v1254, 0.0
    %v1319 = vmax.f32 %v1255, 0.0
    %v1320 = vmax.f32 %v1256, 0.0
    %v1321 = vmax.f32 %v1257, 0.0
    %v1322 = vmax.f32 %v1258, 0.0
    %v1323 = vmax.f32 %v1259, 0.0
    %v1324 = vmax.f32 %v1260, 0.0
    %v1325 = vmax.f32 %v1261, 0.0
    %v1326 = vmax.f32 %v1262, 0.0
    %v1327 = vmax.f32 %v1263, 0.0
    %v1328 = vmax.f32 %v1264, 0.0
    %v1329 = vmax.f32 %v1265, 0.0
    %v1330 = vmax.f32 %v1266, 0.0
    %v1331 = vmax.f32 %v1267, 0.0
    %v1332 = vmax.f32 %v1268, 0.0
    %v1333 = vmax.f32 %v1269, 0.0
    %v1334 = vmax.f32 %v1270, 0.0
    %v1335 = vmax.f32 %v1271, 0.0
    %v1336 = vmax.f32 %v1272, 0.0
    %v1337 = vmax.f32 %v1273, 0.0
    %v1338 = vmax.f32 %v1274, 0.0
    %v1339 = vmax.f32 %v1275, 0.0
    %v1340 = vmax.f32 %v1276, 0.0
    %v1341 = vmax.f32 %v1277, 0.0
    %v1342 = vmax.f32 %v1278, 0.0
    %v1343 = vmax.f32 %v1279, 0.0
    %v1344 = vmax.f32 %v1280, 0.0
    %v1345 = vmax.f32 %v1281, 0.0
    %v1346 = vmax.f32 %v1282, 0.0
    %v1347 = vmax.f32 %v1283, 0.0
    %v1348 = vmax.f32 %v1284, 0.0
    %v1349 = vmax.f32 %v1285, 0.0
    %v1350 = vmax.f32 %v1286, 0.0
    %v1351 = vmax.f32 %v1287, 0.0
    %1352 = vst.msk [vmem:[#allocation2] sm:$0xff] %vm680, %v1288
    %1353 = vst.msk [vmem:[#allocation2 + $0x8] sm:$0xff] %vm680, %v1289
    %1354 = vst.msk [vmem:[#allocation2 + $0x10] sm:$0xff] %vm680, %v1290
    %1355 = vst.msk [vmem:[#allocation2 + $0x18] sm:$0xff] %vm680, %v1291
    %1356 = vst.msk [vmem:[#allocation2 + $0x20] sm:$0xff] %vm680, %v1292
    %1357 = vst.msk [vmem:[#allocation2 + $0x28] sm:$0xff] %vm680, %v1293
    %1358 = vst.msk [vmem:[#allocation2 + $0x30] sm:$0xff] %vm680, %v1294
    %1359 = vst.msk [vmem:[#allocation2 + $0x38] sm:$0xff] %vm680, %v1295
    %1360 = vst.msk [vmem:[#allocation2 + $0x40] sm:$0xff] %vm680, %v1296
    %1361 = vst.msk [vmem:[#allocation2 + $0x48] sm:$0xff] %vm680, %v1297
    %1362 = vst.msk [vmem:[#allocation2 + $0x50] sm:$0xff] %vm680, %v1298
    %1363 = vst.msk [vmem:[#allocation2 + $0x58] sm:$0xff] %vm680, %v1299
    %1364 = vst.msk [vmem:[#allocation2 + $0x60] sm:$0xff] %vm680, %v1300
    %1365 = vst.msk [vmem:[#allocation2 + $0x68] sm:$0xff] %vm680, %v1301
    %1366 = vst.msk [vmem:[#allocation2 + $0x70] sm:$0xff] %vm680, %v1302
    %1367 = vst.msk [vmem:[#allocation2 + $0x78] sm:$0xff] %vm680, %v1303
    %1368 = vst.msk [vmem:[#allocation2 + $0x80] sm:$0xff] %vm680, %v1304
    %1369 = vst.msk [vmem:[#allocation2 + $0x88] sm:$0xff] %vm680, %v1305
    %1370 = vst.msk [vmem:[#allocation2 + $0x90] sm:$0xff] %vm680, %v1306
    %1371 = vst.msk [vmem:[#allocation2 + $0x98] sm:$0xff] %vm680, %v1307
    %1372 = vst.msk [vmem:[#allocation2 + $0xa0] sm:$0xff] %vm680, %v1308
    %1373 = vst.msk [vmem:[#allocation2 + $0xa8] sm:$0xff] %vm680, %v1309
    %1374 = vst.msk [vmem:[#allocation2 + $0xb0] sm:$0xff] %vm680, %v1310
    %1375 = vst.msk [vmem:[#allocation2 + $0xb8] sm:$0xff] %vm680, %v1311
    %1376 = vst.msk [vmem:[#allocation2 + $0xc0] sm:$0xff] %vm680, %v1312
    %1377 = vst.msk [vmem:[#allocation2 + $0xc8] sm:$0xff] %vm680, %v1313
    %1378 = vst.msk [vmem:[#allocation2 + $0xd0] sm:$0xff] %vm680, %v1314
    %1379 = vst.msk [vmem:[#allocation2 + $0xd8] sm:$0xff] %vm680, %v1315
    %1380 = vst.msk [vmem:[#allocation2 + $0xe0] sm:$0xff] %vm680, %v1316
    %1381 = vst.msk [vmem:[#allocation2 + $0xe8] sm:$0xff] %vm680, %v1317
    %1382 = vst.msk [vmem:[#allocation2 + $0xf0] sm:$0xff] %vm680, %v1318
    %1383 = vst.msk [vmem:[#allocation2 + $0xf8] sm:$0xff] %vm680, %v1319
    %1384 = vst.msk [vmem:[#allocation2 + $0x100] sm:$0xff] %vm680, %v1320
    %1385 = vst.msk [vmem:[#allocation2 + $0x108] sm:$0xff] %vm680, %v1321
    %1386 = vst.msk [vmem:[#allocation2 + $0x110] sm:$0xff] %vm680, %v1322
    %1387 = vst.msk [vmem:[#allocation2 + $0x118] sm:$0xff] %vm680, %v1323
    %1388 = vst.msk [vmem:[#allocation2 + $0x120] sm:$0xff] %vm680, %v1324
    %1389 = vst.msk [vmem:[#allocation2 + $0x128] sm:$0xff] %vm680, %v1325
    %1390 = vst.msk [vmem:[#allocation2 + $0x130] sm:$0xff] %vm680, %v1326
    %1391 = vst.msk [vmem:[#allocation2 + $0x138] sm:$0xff] %vm680, %v1327
    %1392 = vst.msk [vmem:[#allocation2 + $0x140] sm:$0xff] %vm680, %v1328
    %1393 = vst.msk [vmem:[#allocation2 + $0x148] sm:$0xff] %vm680, %v1329
    %1394 = vst.msk [vmem:[#allocation2 + $0x150] sm:$0xff] %vm680, %v1330
    %1395 = vst.msk [vmem:[#allocation2 + $0x158] sm:$0xff] %vm680, %v1331
    %1396 = vst.msk [vmem:[#allocation2 + $0x160] sm:$0xff] %vm680, %v1332
    %1397 = vst.msk [vmem:[#allocation2 + $0x168] sm:$0xff] %vm680, %v1333
    %1398 = vst.msk [vmem:[#allocation2 + $0x170] sm:$0xff] %vm680, %v1334
    %1399 = vst.msk [vmem:[#allocation2 + $0x178] sm:$0xff] %vm680, %v1335
    %1400 = vst.msk [vmem:[#allocation2 + $0x180] sm:$0xff] %vm680, %v1336
    %1401 = vst.msk [vmem:[#allocation2 + $0x188] sm:$0xff] %vm680, %v1337
    %1402 = vst.msk [vmem:[#allocation2 + $0x190] sm:$0xff] %vm680, %v1338
    %1403 = vst.msk [vmem:[#allocation2 + $0x198] sm:$0xff] %vm680, %v1339
    %1404 = vst.msk [vmem:[#allocation2 + $0x1a0] sm:$0xff] %vm680, %v1340
    %1405 = vst.msk [vmem:[#allocation2 + $0x1a8] sm:$0xff] %vm680, %v1341
    %1406 = vst.msk [vmem:[#allocation2 + $0x1b0] sm:$0xff] %vm680, %v1342
    %1407 = vst.msk [vmem:[#allocation2 + $0x1b8] sm:$0xff] %vm680, %v1343
    %1408 = vst.msk [vmem:[#allocation2 + $0x1c0] sm:$0xff] %vm680, %v1344
    %1409 = vst.msk [vmem:[#allocation2 + $0x1c8] sm:$0xff] %vm680, %v1345
    %1410 = vst.msk [vmem:[#allocation2 + $0x1d0] sm:$0xff] %vm680, %v1346
    %1411 = vst.msk [vmem:[#allocation2 + $0x1d8] sm:$0xff] %vm680, %v1347
    %1412 = vst.msk [vmem:[#allocation2 + $0x1e0] sm:$0xff] %vm680, %v1348
    %1413 = vst.msk [vmem:[#allocation2 + $0x1e8] sm:$0xff] %vm680, %v1349
    %1414 = vst.msk [vmem:[#allocation2 + $0x1f0] sm:$0xff] %vm680, %v1350
    %1415 = vst.msk [vmem:[#allocation2 + $0x1f8] sm:$0xff] %vm680, %v1351
    %v1416 = vld [vmem:[#allocation2] sm:$0xff]
    %v1417 = vld [vmem:[#allocation2 + $0x8] sm:$0xff]
    %v1418 = vld [vmem:[#allocation2 + $0x10] sm:$0xff]
    %v1419 = vld [vmem:[#allocation2 + $0x18] sm:$0xff]
    %v1420 = vld [vmem:[#allocation2 + $0x20] sm:$0xff]
    %v1421 = vld [vmem:[#allocation2 + $0x28] sm:$0xff]
    %v1422 = vld [vmem:[#allocation2 + $0x30] sm:$0xff]
    %v1423 = vld [vmem:[#allocation2 + $0x38] sm:$0xff]
    %v1424 = vld [vmem:[#allocation2 + $0x40] sm:$0xff]
    %v1425 = vld [vmem:[#allocation2 + $0x48] sm:$0xff]
    %v1426 = vld [vmem:[#allocation2 + $0x50] sm:$0xff]
    %v1427 = vld [vmem:[#allocation2 + $0x58] sm:$0xff]
    %v1428 = vld [vmem:[#allocation2 + $0x60] sm:$0xff]
    %v1429 = vld [vmem:[#allocation2 + $0x68] sm:$0xff]
    %v1430 = vld [vmem:[#allocation2 + $0x70] sm:$0xff]
    %v1431 = vld [vmem:[#allocation2 + $0x78] sm:$0xff]
    %v1432 = vld [vmem:[#allocation2 + $0x80] sm:$0xff]
    %v1433 = vld [vmem:[#allocation2 + $0x88] sm:$0xff]
    %v1434 = vld [vmem:[#allocation2 + $0x90] sm:$0xff]
    %v1435 = vld [vmem:[#allocation2 + $0x98] sm:$0xff]
    %v1436 = vld [vmem:[#allocation2 + $0xa0] sm:$0xff]
    %v1437 = vld [vmem:[#allocation2 + $0xa8] sm:$0xff]
    %v1438 = vld [vmem:[#allocation2 + $0xb0] sm:$0xff]
    %v1439 = vld [vmem:[#allocation2 + $0xb8] sm:$0xff]
    %v1440 = vld [vmem:[#allocation2 + $0xc0] sm:$0xff]
    %v1441 = vld [vmem:[#allocation2 + $0xc8] sm:$0xff]
    %v1442 = vld [vmem:[#allocation2 + $0xd0] sm:$0xff]
    %v1443 = vld [vmem:[#allocation2 + $0xd8] sm:$0xff]
    %v1444 = vld [vmem:[#allocation2 + $0xe0] sm:$0xff]
    %v1445 = vld [vmem:[#allocation2 + $0xe8] sm:$0xff]
    %v1446 = vld [vmem:[#allocation2 + $0xf0] sm:$0xff]
    %v1447 = vld [vmem:[#allocation2 + $0xf8] sm:$0xff]
    %v1448 = vld [vmem:[#allocation2 + $0x100] sm:$0xff]
    %v1449 = vld [vmem:[#allocation2 + $0x108] sm:$0xff]
    %v1450 = vld [vmem:[#allocation2 + $0x110] sm:$0xff]
    %v1451 = vld [vmem:[#allocation2 + $0x118] sm:$0xff]
    %v1452 = vld [vmem:[#allocation2 + $0x120] sm:$0xff]
    %v1453 = vld [vmem:[#allocation2 + $0x128] sm:$0xff]
    %v1454 = vld [vmem:[#allocation2 + $0x130] sm:$0xff]
    %v1455 = vld [vmem:[#allocation2 + $0x138] sm:$0xff]
    %v1456 = vld [vmem:[#allocation2 + $0x140] sm:$0xff]
    %v1457 = vld [vmem:[#allocation2 + $0x148] sm:$0xff]
    %v1458 = vld [vmem:[#allocation2 + $0x150] sm:$0xff]
    %v1459 = vld [vmem:[#allocation2 + $0x158] sm:$0xff]
    %v1460 = vld [vmem:[#allocation2 + $0x160] sm:$0xff]
    %v1461 = vld [vmem:[#allocation2 + $0x168] sm:$0xff]
    %v1462 = vld [vmem:[#allocation2 + $0x170] sm:$0xff]
    %v1463 = vld [vmem:[#allocation2 + $0x178] sm:$0xff]
    %v1464 = vld [vmem:[#allocation2 + $0x180] sm:$0xff]
    %v1465 = vld [vmem:[#allocation2 + $0x188] sm:$0xff]
    %v1466 = vld [vmem:[#allocation2 + $0x190] sm:$0xff]
    %v1467 = vld [vmem:[#allocation2 + $0x198] sm:$0xff]
    %v1468 = vld [vmem:[#allocation2 + $0x1a0] sm:$0xff]
    %v1469 = vld [vmem:[#allocation2 + $0x1a8] sm:$0xff]
    %v1470 = vld [vmem:[#allocation2 + $0x1b0] sm:$0xff]
    %v1471 = vld [vmem:[#allocation2 + $0x1b8] sm:$0xff]
    %v1472 = vld [vmem:[#allocation2 + $0x1c0] sm:$0xff]
    %v1473 = vld [vmem:[#allocation2 + $0x1c8] sm:$0xff]
    %v1474 = vld [vmem:[#allocation2 + $0x1d0] sm:$0xff]
    %v1475 = vld [vmem:[#allocation2 + $0x1d8] sm:$0xff]
    %v1476 = vld [vmem:[#allocation2 + $0x1e0] sm:$0xff]
    %v1477 = vld [vmem:[#allocation2 + $0x1e8] sm:$0x7f]
    %v1478 = vld [vmem:[#allocation2 + $0x1] sm:$0xff]
    %v1479 = vld [vmem:[#allocation2 + $0x9] sm:$0xff]
    %v1480 = vld [vmem:[#allocation2 + $0x11] sm:$0xff]
    %v1481 = vld [vmem:[#allocation2 + $0x19] sm:$0xff]
    %v1482 = vld [vmem:[#allocation2 + $0x21] sm:$0xff]
    %v1483 = vld [vmem:[#allocation2 + $0x29] sm:$0xff]
    %v1484 = vld [vmem:[#allocation2 + $0x31] sm:$0xff]
    %v1485 = vld [vmem:[#allocation2 + $0x39] sm:$0xff]
    %v1486 = vld [vmem:[#allocation2 + $0x41] sm:$0xff]
    %v1487 = vld [vmem:[#allocation2 + $0x49] sm:$0xff]
    %v1488 = vld [vmem:[#allocation2 + $0x51] sm:$0xff]
    %v1489 = vld [vmem:[#allocation2 + $0x59] sm:$0xff]
    %v1490 = vld [vmem:[#allocation2 + $0x61] sm:$0xff]
    %v1491 = vld [vmem:[#allocation2 + $0x69] sm:$0xff]
    %v1492 = vld [vmem:[#allocation2 + $0x71] sm:$0xff]
    %v1493 = vld [vmem:[#allocation2 + $0x79] sm:$0xff]
    %v1494 = vld [vmem:[#allocation2 + $0x81] sm:$0xff]
    %v1495 = vld [vmem:[#allocation2 + $0x89] sm:$0xff]
    %v1496 = vld [vmem:[#allocation2 + $0x91] sm:$0xff]
    %v1497 = vld [vmem:[#allocation2 + $0x99] sm:$0xff]
    %v1498 = vld [vmem:[#allocation2 + $0xa1] sm:$0xff]
    %v1499 = vld [vmem:[#allocation2 + $0xa9] sm:$0xff]
    %v1500 = vld [vmem:[#allocation2 + $0xb1] sm:$0xff]
    %v1501 = vld [vmem:[#allocation2 + $0xb9] sm:$0xff]
    %v1502 = vld [vmem:[#allocation2 + $0xc1] sm:$0xff]
    %v1503 = vld [vmem:[#allocation2 + $0xc9] sm:$0xff]
    %v1504 = vld [vmem:[#allocation2 + $0xd1] sm:$0xff]
    %v1505 = vld [vmem:[#allocation2 + $0xd9] sm:$0xff]
    %v1506 = vld [vmem:[#allocation2 + $0xe1] sm:$0xff]
    %v1507 = vld [vmem:[#allocation2 + $0xe9] sm:$0xff]
    %v1508 = vld [vmem:[#allocation2 + $0xf1] sm:$0xff]
    %v1509 = vld [vmem:[#allocation2 + $0xf9] sm:$0xff]
    %v1510 = vld [vmem:[#allocation2 + $0x101] sm:$0xff]
    %v1511 = vld [vmem:[#allocation2 + $0x109] sm:$0xff]
    %v1512 = vld [vmem:[#allocation2 + $0x111] sm:$0xff]
    %v1513 = vld [vmem:[#allocation2 + $0x119] sm:$0xff]
    %v1514 = vld [vmem:[#allocation2 + $0x121] sm:$0xff]
    %v1515 = vld [vmem:[#allocation2 + $0x129] sm:$0xff]
    %v1516 = vld [vmem:[#allocation2 + $0x131] sm:$0xff]
    %v1517 = vld [vmem:[#allocation2 + $0x139] sm:$0xff]
    %v1518 = vld [vmem:[#allocation2 + $0x141] sm:$0xff]
    %v1519 = vld [vmem:[#allocation2 + $0x149] sm:$0xff]
    %v1520 = vld [vmem:[#allocation2 + $0x151] sm:$0xff]
    %v1521 = vld [vmem:[#allocation2 + $0x159] sm:$0xff]
    %v1522 = vld [vmem:[#allocation2 + $0x161] sm:$0xff]
    %v1523 = vld [vmem:[#allocation2 + $0x169] sm:$0xff]
    %v1524 = vld [vmem:[#allocation2 + $0x171] sm:$0xff]
    %v1525 = vld [vmem:[#allocation2 + $0x179] sm:$0xff]
    %v1526 = vld [vmem:[#allocation2 + $0x181] sm:$0xff]
    %v1527 = vld [vmem:[#allocation2 + $0x189] sm:$0xff]
    %v1528 = vld [vmem:[#allocation2 + $0x191] sm:$0xff]
    %v1529 = vld [vmem:[#allocation2 + $0x199] sm:$0xff]
    %v1530 = vld [vmem:[#allocation2 + $0x1a1] sm:$0xff]
    %v1531 = vld [vmem:[#allocation2 + $0x1a9] sm:$0xff]
    %v1532 = vld [vmem:[#allocation2 + $0x1b1] sm:$0xff]
    %v1533 = vld [vmem:[#allocation2 + $0x1b9] sm:$0xff]
    %v1534 = vld [vmem:[#allocation2 + $0x1c1] sm:$0xff]
    %v1535 = vld [vmem:[#allocation2 + $0x1c9] sm:$0xff]
    %v1536 = vld [vmem:[#allocation2 + $0x1d1] sm:$0xff]
    %v1537 = vld [vmem:[#allocation2 + $0x1d9] sm:$0xff]
    %v1538 = vld [vmem:[#allocation2 + $0x1e1] sm:$0xff]
    %v1539 = vld [vmem:[#allocation2 + $0x1e9] sm:$0x7f]
    %v1540 = vmax.f32 %v1416, %v1478
    %v1541 = vmax.f32 %v1417, %v1479
    %v1542 = vmax.f32 %v1418, %v1480
    %v1543 = vmax.f32 %v1419, %v1481
    %v1544 = vmax.f32 %v1420, %v1482
    %v1545 = vmax.f32 %v1421, %v1483
    %v1546 = vmax.f32 %v1422, %v1484
    %v1547 = vmax.f32 %v1423, %v1485
    %v1548 = vmax.f32 %v1424, %v1486
    %v1549 = vmax.f32 %v1425, %v1487
    %v1550 = vmax.f32 %v1426, %v1488
    %v1551 = vmax.f32 %v1427, %v1489
    %v1552 = vmax.f32 %v1428, %v1490
    %v1553 = vmax.f32 %v1429, %v1491
    %v1554 = vmax.f32 %v1430, %v1492
    %v1555 = vmax.f32 %v1431, %v1493
    %v1556 = vmax.f32 %v1432, %v1494
    %v1557 = vmax.f32 %v1433, %v1495
    %v1558 = vmax.f32 %v1434, %v1496
    %v1559 = vmax.f32 %v1435, %v1497
    %v1560 = vmax.f32 %v1436, %v1498
    %v1561 = vmax.f32 %v1437, %v1499
    %v1562 = vmax.f32 %v1438, %v1500
    %v1563 = vmax.f32 %v1439, %v1501
    %v1564 = vmax.f32 %v1440, %v1502
    %v1565 = vmax.f32 %v1441, %v1503
    %v1566 = vmax.f32 %v1442, %v1504
    %v1567 = vmax.f32 %v1443, %v1505
    %v1568 = vmax.f32 %v1444, %v1506
    %v1569 = vmax.f32 %v1445, %v1507
    %v1570 = vmax.f32 %v1446, %v1508
    %v1571 = vmax.f32 %v1447, %v1509
    %v1572 = vmax.f32 %v1448, %v1510
    %v1573 = vmax.f32 %v1449, %v1511
    %v1574 = vmax.f32 %v1450, %v1512
    %v1575 = vmax.f32 %v1451, %v1513
    %v1576 = vmax.f32 %v1452, %v1514
    %v1577 = vmax.f32 %v1453, %v1515
    %v1578 = vmax.f32 %v1454, %v1516
    %v1579 = vmax.f32 %v1455, %v1517
    %v1580 = vmax.f32 %v1456, %v1518
    %v1581 = vmax.f32 %v1457, %v1519
    %v1582 = vmax.f32 %v1458, %v1520
    %v1583 = vmax.f32 %v1459, %v1521
    %v1584 = vmax.f32 %v1460, %v1522
    %v1585 = vmax.f32 %v1461, %v1523
    %v1586 = vmax.f32 %v1462, %v1524
    %v1587 = vmax.f32 %v1463, %v1525
    %v1588 = vmax.f32 %v1464, %v1526
    %v1589 = vmax.f32 %v1465, %v1527
    %v1590 = vmax.f32 %v1466, %v1528
    %v1591 = vmax.f32 %v1467, %v1529
    %v1592 = vmax.f32 %v1468, %v1530
    %v1593 = vmax.f32 %v1469, %v1531
    %v1594 = vmax.f32 %v1470, %v1532
    %v1595 = vmax.f32 %v1471, %v1533
    %v1596 = vmax.f32 %v1472, %v1534
    %v1597 = vmax.f32 %v1473, %v1535
    %v1598 = vmax.f32 %v1474, %v1536
    %v1599 = vmax.f32 %v1475, %v1537
    %v1600 = vmax.f32 %v1476, %v1538
    %v1601 = vmax.f32 %v1477, %v1539
    %v1602 = vld [vmem:[#allocation2 + $0x1e8] sm:$0xff]
    %v1603 = vld [vmem:[#allocation2 + $0x1f0] sm:$0xff]
    %v1604 = vld [vmem:[#allocation2 + $0x1f8] sm:$0x7f]
    %v1605 = vld [vmem:[#allocation2 + $0x1e9] sm:$0xff]
    %v1606 = vld [vmem:[#allocation2 + $0x1f1] sm:$0xff]
    %v1607 = vld [vmem:[#allocation2 + $0x1f9] sm:$0x7f]
    %v1608 = vmax.f32 %v1602, %v1605
    %v1609 = vmax.f32 %v1603, %v1606
    %v1610 = vmax.f32 %v1604, %v1607
    %v1611 = vmax.f32 %v1540, %v1542
    %v1612 = vmax.f32 %v1541, %v1543
    %v1613 = vmax.f32 %v1542, %v1544
    %v1614 = vmax.f32 %v1543, %v1545
    %v1615 = vmax.f32 %v1544, %v1546
    %v1616 = vmax.f32 %v1545, %v1547
    %v1617 = vmax.f32 %v1546, %v1548
    %v1618 = vmax.f32 %v1547, %v1549
    %v1619 = vmax.f32 %v1548, %v1550
    %v1620 = vmax.f32 %v1549, %v1551
    %v1621 = vmax.f32 %v1550, %v1552
    %v1622 = vmax.f32 %v1551, %v1553
    %v1623 = vmax.f32 %v1552, %v1554
    %v1624 = vmax.f32 %v1553, %v1555
    %v1625 = vmax.f32 %v1554, %v1556
    %v1626 = vmax.f32 %v1555, %v1557
    %v1627 = vmax.f32 %v1556, %v1558
    %v1628 = vmax.f32 %v1557, %v1559
    %v1629 = vmax.f32 %v1558, %v1560
    %v1630 = vmax.f32 %v1559, %v1561
    %v1631 = vmax.f32 %v1560, %v1562
    %v1632 = vmax.f32 %v1561, %v1563
    %v1633 = vmax.f32 %v1562, %v1564
    %v1634 = vmax.f32 %v1563, %v1565
    %v1635 = vmax.f32 %v1564, %v1566
    %v1636 = vmax.f32 %v1565, %v1567
    %v1637 = vmax.f32 %v1566, %v1568
    %v1638 = vmax.f32 %v1567, %v1569
    %v1639 = vmax.f32 %v1568, %v1570
    %v1640 = vmax.f32 %v1569, %v1571
    %v1641 = vmax.f32 %v1570, %v1572
    %v1642 = vmax.f32 %v1571, %v1573
    %v1643 = vmax.f32 %v1572, %v1574
    %v1644 = vmax.f32 %v1573, %v1575
    %v1645 = vmax.f32 %v1574, %v1576
    %v1646 = vmax.f32 %v1575, %v1577
    %v1647 = vmax.f32 %v1576, %v1578
    %v1648 = vmax.f32 %v1577, %v1579
    %v1649 = vmax.f32 %v1578, %v1580
    %v1650 = vmax.f32 %v1579, %v1581
    %v1651 = vmax.f32 %v1580, %v1582
    %v1652 = vmax.f32 %v1581, %v1583
    %v1653 = vmax.f32 %v1582, %v1584
    %v1654 = vmax.f32 %v1583, %v1585
    %v1655 = vmax.f32 %v1584, %v1586
    %v1656 = vmax.f32 %v1585, %v1587
    %v1657 = vmax.f32 %v1586, %v1588
    %v1658 = vmax.f32 %v1587, %v1589
    %v1659 = vmax.f32 %v1588, %v1590
    %v1660 = vmax.f32 %v1589, %v1591
    %v1661 = vmax.f32 %v1590, %v1592
    %v1662 = vmax.f32 %v1591, %v1593
    %v1663 = vmax.f32 %v1592, %v1594
    %v1664 = vmax.f32 %v1593, %v1595
    %v1665 = vmax.f32 %v1594, %v1596
    %v1666 = vmax.f32 %v1595, %v1597
    %v1667 = vmax.f32 %v1596, %v1598
    %v1668 = vmax.f32 %v1597, %v1599
    %v1669 = vmax.f32 %v1598, %v1600
    %v1670 = vmax.f32 %v1599, %v1608
    %v1671 = vmax.f32 %v1600, %v1609
    %v1672 = vmax.f32 %v1601, %v1610
    %1673 = vst.msk [vmem:[#allocation3] sm:$0xff] %vm680, %v1611
    %1674 = vst.msk [vmem:[#allocation3 + $0x8] sm:$0xff] %vm680, %v1612
    %1675 = vst.msk [vmem:[#allocation3 + $0x10] sm:$0xff] %vm680, %v1613
    %1676 = vst.msk [vmem:[#allocation3 + $0x18] sm:$0xff] %vm680, %v1614
    %1677 = vst.msk [vmem:[#allocation3 + $0x20] sm:$0xff] %vm680, %v1615
    %1678 = vst.msk [vmem:[#allocation3 + $0x28] sm:$0xff] %vm680, %v1616
    %1679 = vst.msk [vmem:[#allocation3 + $0x30] sm:$0xff] %vm680, %v1617
    %1680 = vst.msk [vmem:[#allocation3 + $0x38] sm:$0xff] %vm680, %v1618
    %1681 = vst.msk [vmem:[#allocation3 + $0x40] sm:$0xff] %vm680, %v1619
    %1682 = vst.msk [vmem:[#allocation3 + $0x48] sm:$0xff] %vm680, %v1620
    %1683 = vst.msk [vmem:[#allocation3 + $0x50] sm:$0xff] %vm680, %v1621
    %1684 = vst.msk [vmem:[#allocation3 + $0x58] sm:$0xff] %vm680, %v1622
    %1685 = vst.msk [vmem:[#allocation3 + $0x60] sm:$0xff] %vm680, %v1623
    %1686 = vst.msk [vmem:[#allocation3 + $0x68] sm:$0xff] %vm680, %v1624
    %1687 = vst.msk [vmem:[#allocation3 + $0x70] sm:$0xff] %vm680, %v1625
    %1688 = vst.msk [vmem:[#allocation3 + $0x78] sm:$0xff] %vm680, %v1626
    %1689 = vst.msk [vmem:[#allocation3 + $0x80] sm:$0xff] %vm680, %v1627
    %1690 = vst.msk [vmem:[#allocation3 + $0x88] sm:$0xff] %vm680, %v1628
    %1691 = vst.msk [vmem:[#allocation3 + $0x90] sm:$0xff] %vm680, %v1629
    %1692 = vst.msk [vmem:[#allocation3 + $0x98] sm:$0xff] %vm680, %v1630
    %1693 = vst.msk [vmem:[#allocation3 + $0xa0] sm:$0xff] %vm680, %v1631
    %1694 = vst.msk [vmem:[#allocation3 + $0xa8] sm:$0xff] %vm680, %v1632
    %1695 = vst.msk [vmem:[#allocation3 + $0xb0] sm:$0xff] %vm680, %v1633
    %1696 = vst.msk [vmem:[#allocation3 + $0xb8] sm:$0xff] %vm680, %v1634
    %1697 = vst.msk [vmem:[#allocation3 + $0xc0] sm:$0xff] %vm680, %v1635
    %1698 = vst.msk [vmem:[#allocation3 + $0xc8] sm:$0xff] %vm680, %v1636
    %1699 = vst.msk [vmem:[#allocation3 + $0xd0] sm:$0xff] %vm680, %v1637
    %1700 = vst.msk [vmem:[#allocation3 + $0xd8] sm:$0xff] %vm680, %v1638
    %1701 = vst.msk [vmem:[#allocation3 + $0xe0] sm:$0xff] %vm680, %v1639
    %1702 = vst.msk [vmem:[#allocation3 + $0xe8] sm:$0xff] %vm680, %v1640
    %1703 = vst.msk [vmem:[#allocation3 + $0xf0] sm:$0xff] %vm680, %v1641
    %1704 = vst.msk [vmem:[#allocation3 + $0xf8] sm:$0xff] %vm680, %v1642
    %1705 = vst.msk [vmem:[#allocation3 + $0x100] sm:$0xff] %vm680, %v1643
    %1706 = vst.msk [vmem:[#allocation3 + $0x108] sm:$0xff] %vm680, %v1644
    %1707 = vst.msk [vmem:[#allocation3 + $0x110] sm:$0xff] %vm680, %v1645
    %1708 = vst.msk [vmem:[#allocation3 + $0x118] sm:$0xff] %vm680, %v1646
    %1709 = vst.msk [vmem:[#allocation3 + $0x120] sm:$0xff] %vm680, %v1647
    %1710 = vst.msk [vmem:[#allocation3 + $0x128] sm:$0xff] %vm680, %v1648
    %1711 = vst.msk [vmem:[#allocation3 + $0x130] sm:$0xff] %vm680, %v1649
    %1712 = vst.msk [vmem:[#allocation3 + $0x138] sm:$0xff] %vm680, %v1650
    %1713 = vst.msk [vmem:[#allocation3 + $0x140] sm:$0xff] %vm680, %v1651
    %1714 = vst.msk [vmem:[#allocation3 + $0x148] sm:$0xff] %vm680, %v1652
    %1715 = vst.msk [vmem:[#allocation3 + $0x150] sm:$0xff] %vm680, %v1653
    %1716 = vst.msk [vmem:[#allocation3 + $0x158] sm:$0xff] %vm680, %v1654
    %1717 = vst.msk [vmem:[#allocation3 + $0x160] sm:$0xff] %vm680, %v1655
    %1718 = vst.msk [vmem:[#allocation3 + $0x168] sm:$0xff] %vm680, %v1656
    %1719 = vst.msk [vmem:[#allocation3 + $0x170] sm:$0xff] %vm680, %v1657
    %1720 = vst.msk [vmem:[#allocation3 + $0x178] sm:$0xff] %vm680, %v1658
    %1721 = vst.msk [vmem:[#allocation3 + $0x180] sm:$0xff] %vm680, %v1659
    %1722 = vst.msk [vmem:[#allocation3 + $0x188] sm:$0xff] %vm680, %v1660
    %1723 = vst.msk [vmem:[#allocation3 + $0x190] sm:$0xff] %vm680, %v1661
    %1724 = vst.msk [vmem:[#allocation3 + $0x198] sm:$0xff] %vm680, %v1662
    %1725 = vst.msk [vmem:[#allocation3 + $0x1a0] sm:$0xff] %vm680, %v1663
    %1726 = vst.msk [vmem:[#allocation3 + $0x1a8] sm:$0xff] %vm680, %v1664
    %1727 = vst.msk [vmem:[#allocation3 + $0x1b0] sm:$0xff] %vm680, %v1665
    %1728 = vst.msk [vmem:[#allocation3 + $0x1b8] sm:$0xff] %vm680, %v1666
    %1729 = vst.msk [vmem:[#allocation3 + $0x1c0] sm:$0xff] %vm680, %v1667
    %1730 = vst.msk [vmem:[#allocation3 + $0x1c8] sm:$0xff] %vm680, %v1668
    %1731 = vst.msk [vmem:[#allocation3 + $0x1d0] sm:$0xff] %vm680, %v1669
    %1732 = vst.msk [vmem:[#allocation3 + $0x1d8] sm:$0xff] %vm680, %v1670
    %1733 = vst.msk [vmem:[#allocation3 + $0x1e0] sm:$0xff] %vm680, %v1671
    %vm1734 = vcmask 522240
    %1735 = vst.msk [vmem:[#allocation3 + $0x1e8] sm:$0x7f] %vm1734, %v1672
    %vm1736 = vcmask 519168
    %1737 = vst.msk [vmem:[#allocation4] sm:$0xf] %vm1736, 0
    %1738 = vst.msk [vmem:[#allocation4 + $0x4] sm:$0xf] %vm1736, 0
    %1739 = vst.msk [vmem:[#allocation4 + $0x8] sm:$0xf] %vm1736, 0
    %1740 = vst.msk [vmem:[#allocation4 + $0xc] sm:$0xf] %vm1736, 0
    %1741 = vst.msk [vmem:[#allocation4 + $0x10] sm:$0xf] %vm1736, 0
    %1742 = vst.msk [vmem:[#allocation4 + $0x14] sm:$0xf] %vm1736, 0
    %1743 = vst.msk [vmem:[#allocation4 + $0x18] sm:$0xf] %vm1736, 0
    %1744 = vst.msk [vmem:[#allocation4 + $0x1c] sm:$0xf] %vm1736, 0
    %1745 = vst.msk [vmem:[#allocation4 + $0x20] sm:$0xf] %vm1736, 0
    %1746 = vst.msk [vmem:[#allocation4 + $0x24] sm:$0xf] %vm1736, 0
    %1747 = vst.msk [vmem:[#allocation4 + $0x28] sm:$0xf] %vm1736, 0
    %1748 = vst.msk [vmem:[#allocation4 + $0x2c] sm:$0xf] %vm1736, 0
    %1749 = vst.msk [vmem:[#allocation4 + $0x30] sm:$0xf] %vm1736, 0
    %1750 = vst.msk [vmem:[#allocation4 + $0x34] sm:$0xf] %vm1736, 0
    %1751 = vst.msk [vmem:[#allocation4 + $0x38] sm:$0xf] %vm1736, 0
    %1752 = vst.msk [vmem:[#allocation4 + $0x3c] sm:$0xf] %vm1736, 0
    %1753 = vst.msk [vmem:[#allocation4 + $0x40] sm:$0xf] %vm1736, 0
    %1754 = vst.msk [vmem:[#allocation4 + $0x44] sm:$0xf] %vm1736, 0
    %1755 = vst.msk [vmem:[#allocation4 + $0x48] sm:$0xf] %vm1736, 0
    %1756 = vst.msk [vmem:[#allocation4 + $0x4c] sm:$0xf] %vm1736, 0
    %1757 = vst.msk [vmem:[#allocation4 + $0x50] sm:$0xf] %vm1736, 0
    %1758 = vst.msk [vmem:[#allocation4 + $0x54] sm:$0xf] %vm1736, 0
    %1759 = vst.msk [vmem:[#allocation4 + $0x58] sm:$0xf] %vm1736, 0
    %1760 = vst.msk [vmem:[#allocation4 + $0x5c] sm:$0xf] %vm1736, 0
    %1761 = vst.msk [vmem:[#allocation4 + $0x60] sm:$0xf] %vm1736, 0
    %1762 = vst.msk [vmem:[#allocation4 + $0x64] sm:$0xf] %vm1736, 0
    %1763 = vst.msk [vmem:[#allocation4 + $0x68] sm:$0xf] %vm1736, 0
    %1764 = vst.msk [vmem:[#allocation4 + $0x6c] sm:$0xf] %vm1736, 0
    %1765 = vst.msk [vmem:[#allocation4 + $0x70] sm:$0xf] %vm1736, 0
    %vm1766 = vcmask 516096
    %1767 = vst.msk [vmem:[#allocation4 + $0x74] sm:$0x1] %vm1766, 0
    %v1768 = vld [vmem:[#allocation3] ss:$2 sm:$0xff]
    %v1769 = vpack.c.bf16 %v1768, %v1768
    %v1771 = vunpack.c.l.b16 %v1769
    %v1772 = vpack.c.b16 %v1771, %v1771
    %v1773 = vrot.slane %v1772, 6
    %v1774 = vrot.slane %v1773, 4
    %vm1777 = vcmask 519170
    %1778 = vst.msk [vmem:[#allocation4 + $0xc] sm:$0xc] %vm1777, %v1773
    %vm1779 = vcmask 517120
    %1780 = vst.msk [vmem:[#allocation4 + $0x10] sm:$0x3] %vm1779, %v1774
    %s1781 = scalar_lea.vmem [#allocation3], 32
    %v1782 = vld [vmem:[%s1781] ss:$2 sm:$0xff]
    %v1783 = vpack.c.bf16 %v1782, %v1782
    %v1785 = vunpack.c.l.b16 %v1783
    %v1786 = vpack.c.b16 %v1785, %v1785
    %v1787 = vrot.slane %v1786, 5
    %v1788 = vrot.slane %v1787, 4
    %vm1791 = vcmask 519171
    %1792 = vst.msk [vmem:[#allocation4 + $0x10] sm:$0x8] %vm1791, %v1787
    %vm1793 = vcmask 518144
    %1794 = vst.msk [vmem:[#allocation4 + $0x14] sm:$0x7] %vm1793, %v1788
    %s1795 = scalar_lea.vmem [#allocation3], 64
    %v1796 = vld [vmem:[%s1795] ss:$2 sm:$0xff]
    %v1797 = vpack.c.bf16 %v1796, %v1796
    %1798 = vst.msk [vmem:[#allocation4 + $0x18] sm:$0xf] %vm1736, %v1797
    %s1799 = scalar_lea.vmem [#allocation3], 96
    %v1800 = vld [vmem:[%s1799] ss:$2 sm:$0xff]
    %v1801 = vpack.c.bf16 %v1800, %v1800
    %v1803 = vunpack.c.l.b16 %v1801
    %v1804 = vpack.c.b16 %v1803, %v1803
    %v1805 = vrot.slane %v1804, 7
    %v1806 = vrot.slane %v1805, 4
    %vm1809 = vcmask 519169
    %1810 = vst.msk [vmem:[#allocation4 + $0x1c] sm:$0xe] %vm1809, %v1805
    %1811 = vst.msk [vmem:[#allocation4 + $0x20] sm:$0x1] %vm1766, %v1806
    %s1812 = scalar_lea.vmem [#allocation3], 128
    %v1813 = vld [vmem:[%s1812] ss:$2 sm:$0xff]
    %v1814 = vpack.c.bf16 %v1813, %v1813
    %v1816 = vunpack.c.l.b16 %v1814
    %v1817 = vpack.c.b16 %v1816, %v1816
    %v1818 = vrot.slane %v1817, 6
    %v1819 = vrot.slane %v1818, 4
    %1822 = vst.msk [vmem:[#allocation4 + $0x20] sm:$0xc] %vm1777, %v1818
    %1823 = vst.msk [vmem:[#allocation4 + $0x24] sm:$0x3] %vm1779, %v1819
    %s1824 = scalar_lea.vmem [#allocation3], 160
    %v1825 = vld [vmem:[%s1824] ss:$2 sm:$0xff]
    %v1826 = vpack.c.bf16 %v1825, %v1825
    %v1828 = vunpack.c.l.b16 %v1826
    %v1829 = vpack.c.b16 %v1828, %v1828
    %v1830 = vrot.slane %v1829, 5
    %v1831 = vrot.slane %v1830, 4
    %1834 = vst.msk [vmem:[#allocation4 + $0x24] sm:$0x8] %vm1791, %v1830
    %1835 = vst.msk [vmem:[#allocation4 + $0x28] sm:$0x7] %vm1793, %v1831
    %s1836 = scalar_lea.vmem [#allocation3], 192
    %v1837 = vld [vmem:[%s1836] ss:$2 sm:$0xff]
    %v1838 = vpack.c.bf16 %v1837, %v1837
    %1839 = vst.msk [vmem:[#allocation4 + $0x2c] sm:$0xf] %vm1736, %v1838
    %s1840 = scalar_lea.vmem [#allocation3], 224
    %v1841 = vld [vmem:[%s1840] ss:$2 sm:$0xff]
    %v1842 = vpack.c.bf16 %v1841, %v1841
    %v1844 = vunpack.c.l.b16 %v1842
    %v1845 = vpack.c.b16 %v1844, %v1844
    %v1846 = vrot.slane %v1845, 7
    %v1847 = vrot.slane %v1846, 4
    %1850 = vst.msk [vmem:[#allocation4 + $0x30] sm:$0xe] %vm1809, %v1846
    %1851 = vst.msk [vmem:[#allocation4 + $0x34] sm:$0x1] %vm1766, %v1847
    %s1852 = scalar_lea.vmem [#allocation3], 256
    %v1853 = vld [vmem:[%s1852] ss:$2 sm:$0xff]
    %v1854 = vpack.c.bf16 %v1853, %v1853
    %1855 = vst.msk [vmem:[#allocation4 + $0x40] sm:$0xf] %vm1736, %v1854
    %s1856 = scalar_lea.vmem [#allocation3], 288
    %v1857 = vld [vmem:[%s1856] ss:$2 sm:$0xff]
    %v1858 = vpack.c.bf16 %v1857, %v1857
    %v1860 = vunpack.c.l.b16 %v1858
    %v1861 = vpack.c.b16 %v1860, %v1860
    %v1862 = vrot.slane %v1861, 7
    %v1863 = vrot.slane %v1862, 4
    %1866 = vst.msk [vmem:[#allocation4 + $0x44] sm:$0xe] %vm1809, %v1862
    %1867 = vst.msk [vmem:[#allocation4 + $0x48] sm:$0x1] %vm1766, %v1863
    %s1868 = scalar_lea.vmem [#allocation3], 320
    %v1869 = vld [vmem:[%s1868] ss:$2 sm:$0xff]
    %v1870 = vpack.c.bf16 %v1869, %v1869
    %v1872 = vunpack.c.l.b16 %v1870
    %v1873 = vpack.c.b16 %v1872, %v1872
    %v1874 = vrot.slane %v1873, 6
    %v1875 = vrot.slane %v1874, 4
    %1878 = vst.msk [vmem:[#allocation4 + $0x48] sm:$0xc] %vm1777, %v1874
    %1879 = vst.msk [vmem:[#allocation4 + $0x4c] sm:$0x3] %vm1779, %v1875
    %s1880 = scalar_lea.vmem [#allocation3], 352
    %v1881 = vld [vmem:[%s1880] ss:$2 sm:$0xff]
    %v1882 = vpack.c.bf16 %v1881, %v1881
    %v1884 = vunpack.c.l.b16 %v1882
    %v1885 = vpack.c.b16 %v1884, %v1884
    %v1886 = vrot.slane %v1885, 5
    %v1887 = vrot.slane %v1886, 4
    %1890 = vst.msk [vmem:[#allocation4 + $0x4c] sm:$0x8] %vm1791, %v1886
    %1891 = vst.msk [vmem:[#allocation4 + $0x50] sm:$0x7] %vm1793, %v1887
    %s1892 = scalar_lea.vmem [#allocation3], 384
    %v1893 = vld [vmem:[%s1892] ss:$2 sm:$0xff]
    %v1894 = vpack.c.bf16 %v1893, %v1893
    %1895 = vst.msk [vmem:[#allocation4 + $0x54] sm:$0xf] %vm1736, %v1894
    %s1896 = scalar_lea.vmem [#allocation3], 416
    %v1897 = vld [vmem:[%s1896] ss:$2 sm:$0xff]
    %v1898 = vpack.c.bf16 %v1897, %v1897
    %v1900 = vunpack.c.l.b16 %v1898
    %v1901 = vpack.c.b16 %v1900, %v1900
    %v1902 = vrot.slane %v1901, 7
    %v1903 = vrot.slane %v1902, 4
    %1906 = vst.msk [vmem:[#allocation4 + $0x58] sm:$0xe] %vm1809, %v1902
    %1907 = vst.msk [vmem:[#allocation4 + $0x5c] sm:$0x1] %vm1766, %v1903
    %s1908 = scalar_lea.vmem [#allocation3], 448
    %v1909 = vld [vmem:[%s1908] ss:$2 sm:$0xff]
    %v1910 = vpack.c.bf16 %v1909, %v1909
    %v1912 = vunpack.c.l.b16 %v1910
    %v1913 = vpack.c.b16 %v1912, %v1912
    %v1914 = vrot.slane %v1913, 6
    %v1915 = vrot.slane %v1914, 4
    %1918 = vst.msk [vmem:[#allocation4 + $0x5c] sm:$0xc] %vm1777, %v1914
    %1919 = vst.msk [vmem:[#allocation4 + $0x60] sm:$0x3] %vm1779, %v1915
    %s1920 = scalar_lea.vmem [#allocation3], 480
    %v1921 = vld [vmem:[%s1920] ss:$2 sm:$0xff]
    %v1922 = vpack.c.bf16 %v1921, %v1921
    %v1924 = vunpack.c.l.b16 %v1922
    %v1925 = vpack.c.b16 %v1924, %v1924
    %v1926 = vrot.slane %v1925, 5
    %v1927 = vrot.slane %v1926, 4
    %1930 = vst.msk [vmem:[#allocation4 + $0x60] sm:$0x8] %vm1791, %v1926
    %1931 = vst.msk [vmem:[#allocation4 + $0x64] sm:$0x7] %vm1793, %v1927
    %v1932 = vld [vmem:[#allocation4] sm:$0x8]
    %v1933 = vld [vmem:[#allocation4 + $0x4] sm:$0xf]
    %v1934 = vld [vmem:[#allocation4 + $0x8] sm:$0xf]
    %v1935 = vld [vmem:[#allocation4 + $0xc] sm:$0xf]
    %v1936 = vld [vmem:[#allocation4 + $0x10] sm:$0xf]
    %v1937 = vld [vmem:[#allocation4 + $0x14] sm:$0xf]
    %v1938 = vld [vmem:[#allocation4 + $0x18] sm:$0xf]
    %v1939 = vld [vmem:[#allocation4 + $0x1c] sm:$0xf]
    %v1940 = vld [vmem:[#allocation4 + $0x20] sm:$0xf]
    %v1941 = vld [vmem:[#allocation4 + $0x24] sm:$0xf]
    %v1942 = vld [vmem:[#allocation4 + $0x28] sm:$0xf]
    %v1943 = vld [vmem:[#allocation4 + $0x2c] sm:$0xf]
    %v1944 = vld [vmem:[#allocation4 + $0x30] sm:$0xf]
    %v1945 = vld [vmem:[#allocation4 + $0x34] sm:$0xf]
    %v1946 = vld [vmem:[#allocation4 + $0x38] sm:$0xf]
    %v1947 = vld [vmem:[#allocation4 + $0x3c] sm:$0xf]
    %v1948 = vld [vmem:[#allocation4 + $0x40] sm:$0xf]
    %v1949 = vld [vmem:[#allocation4 + $0x44] sm:$0xf]
    %v1950 = vld [vmem:[#allocation4 + $0x48] sm:$0xf]
    %v1951 = vld [vmem:[#allocation4 + $0x4c] sm:$0xf]
    %v1952 = vld [vmem:[#allocation4 + $0x50] sm:$0xf]
    %v1953 = vld [vmem:[#allocation4 + $0x54] sm:$0xf]
    %v1954 = vld [vmem:[#allocation4 + $0x58] sm:$0xf]
    %v1955 = vld [vmem:[#allocation4 + $0x5c] sm:$0xf]
    %v1956 = vld [vmem:[#allocation4 + $0x60] sm:$0xf]
    %v1957 = vld [vmem:[#allocation4 + $0x64] sm:$0x7]
    %vm1984 = vcmask 1040384
    %vm1985 = vcmask 1044484
    %vm1986 = vmor %vm1984, %vm1985
    %v1987 = vrot.slane %v1932, 7
    %v1988 = vrot.slane %v1987, 4
    %v1989 = vrot.slane %v1933, 7
    %v1990 = vsel %vm1986, %v1988, %v1989
    %v1991 = vrot.slane %v1989, 4
    %v1992 = vrot.slane %v1934, 7
    %v1993 = vsel %vm1986, %v1991, %v1992
    %v1994 = vrot.slane %v1992, 4
    %v1995 = vrot.slane %v1935, 7
    %v1996 = vsel %vm1986, %v1994, %v1995
    %v1997 = vrot.slane %v1995, 4
    %v1998 = vrot.slane %v1936, 7
    %v1999 = vsel %vm1986, %v1997, %v1998
    %v2000 = vrot.slane %v1998, 4
    %v2001 = vrot.slane %v1937, 7
    %v2002 = vsel %vm1986, %v2000, %v2001
    %v2003 = vrot.slane %v2001, 4
    %v2004 = vrot.slane %v1938, 7
    %v2005 = vsel %vm1986, %v2003, %v2004
    %v2006 = vrot.slane %v2004, 4
    %v2007 = vrot.slane %v1939, 7
    %v2008 = vsel %vm1986, %v2006, %v2007
    %v2009 = vrot.slane %v2007, 4
    %v2010 = vrot.slane %v1940, 7
    %v2011 = vsel %vm1986, %v2009, %v2010
    %v2012 = vrot.slane %v2010, 4
    %v2013 = vrot.slane %v1941, 7
    %v2014 = vsel %vm1986, %v2012, %v2013
    %v2015 = vrot.slane %v2013, 4
    %v2016 = vrot.slane %v1942, 7
    %v2017 = vsel %vm1986, %v2015, %v2016
    %v2018 = vrot.slane %v2016, 4
    %v2019 = vrot.slane %v1943, 7
    %v2020 = vsel %vm1986, %v2018, %v2019
    %v2021 = vrot.slane %v2019, 4
    %v2022 = vrot.slane %v1944, 7
    %v2023 = vsel %vm1986, %v2021, %v2022
    %v2024 = vrot.slane %v2022, 4
    %v2025 = vrot.slane %v1945, 7
    %v2026 = vsel %vm1986, %v2024, %v2025
    %v2027 = vrot.slane %v2025, 4
    %v2028 = vrot.slane %v1946, 7
    %v2029 = vsel %vm1986, %v2027, %v2028
    %v2030 = vrot.slane %v2028, 4
    %v2031 = vrot.slane %v1947, 7
    %v2032 = vsel %vm1986, %v2030, %v2031
    %v2033 = vrot.slane %v2031, 4
    %v2034 = vrot.slane %v1948, 7
    %v2035 = vsel %vm1986, %v2033, %v2034
    %v2036 = vrot.slane %v2034, 4
    %v2037 = vrot.slane %v1949, 7
    %v2038 = vsel %vm1986, %v2036, %v2037
    %v2039 = vrot.slane %v2037, 4
    %v2040 = vrot.slane %v1950, 7
    %v2041 = vsel %vm1986, %v2039, %v2040
    %v2042 = vrot.slane %v2040, 4
    %v2043 = vrot.slane %v1951, 7
    %v2044 = vsel %vm1986, %v2042, %v2043
    %v2045 = vrot.slane %v2043, 4
    %v2046 = vrot.slane %v1952, 7
    %v2047 = vsel %vm1986, %v2045, %v2046
    %v2048 = vrot.slane %v2046, 4
    %v2049 = vrot.slane %v1953, 7
    %v2050 = vsel %vm1986, %v2048, %v2049
    %v2051 = vrot.slane %v2049, 4
    %v2052 = vrot.slane %v1954, 7
    %v2053 = vsel %vm1986, %v2051, %v2052
    %v2054 = vrot.slane %v2052, 4
    %v2055 = vrot.slane %v1955, 7
    %v2056 = vsel %vm1986, %v2054, %v2055
    %v2057 = vrot.slane %v2055, 4
    %v2058 = vrot.slane %v1956, 7
    %v2059 = vsel %vm1986, %v2057, %v2058
    %v2060 = vrot.slane %v2058, 4
    %v2061 = vrot.slane %v1957, 7
    %v2062 = vsel %vm1986, %v2060, %v2061
    %2088 = vst.msk [vmem:[#allocation5] sm:$0xf] %vm1736, %v1990
    %2089 = vst.msk [vmem:[#allocation5 + $0x14] sm:$0xf] %vm1736, %v1993
    %2090 = vst.msk [vmem:[#allocation5 + $0x28] sm:$0xf] %vm1736, %v1996
    %2091 = vst.msk [vmem:[#allocation5 + $0x3c] sm:$0xf] %vm1736, %v1999
    %2092 = vst.msk [vmem:[#allocation5 + $0x50] sm:$0xf] %vm1736, %v2002
    %2093 = vst.msk [vmem:[#allocation5 + $0x64] sm:$0xf] %vm1736, %v2005
    %2094 = vst.msk [vmem:[#allocation5 + $0x78] sm:$0xf] %vm1736, %v2008
    %2095 = vst.msk [vmem:[#allocation5 + $0x8c] sm:$0xf] %vm1736, %v2011
    %2096 = vst.msk [vmem:[#allocation5 + $0xa0] sm:$0xf] %vm1736, %v2014
    %2097 = vst.msk [vmem:[#allocation5 + $0xb4] sm:$0xf] %vm1736, %v2017
    %2098 = vst.msk [vmem:[#allocation5 + $0xc8] sm:$0xf] %vm1736, %v2020
    %2099 = vst.msk [vmem:[#allocation5 + $0xdc] sm:$0xf] %vm1736, %v2023
    %2100 = vst.msk [vmem:[#allocation5 + $0xf0] sm:$0xf] %vm1736, %v2026
    %2101 = vst.msk [vmem:[#allocation5 + $0x104] sm:$0xf] %vm1736, %v2029
    %2102 = vst.msk [vmem:[#allocation5 + $0x118] sm:$0xf] %vm1736, %v2032
    %2103 = vst.msk [vmem:[#allocation5 + $0x12c] sm:$0xf] %vm1736, %v2035
    %2104 = vst.msk [vmem:[#allocation5 + $0x140] sm:$0xf] %vm1736, %v2038
    %2105 = vst.msk [vmem:[#allocation5 + $0x154] sm:$0xf] %vm1736, %v2041
    %2106 = vst.msk [vmem:[#allocation5 + $0x168] sm:$0xf] %vm1736, %v2044
    %2107 = vst.msk [vmem:[#allocation5 + $0x17c] sm:$0xf] %vm1736, %v2047
    %2108 = vst.msk [vmem:[#allocation5 + $0x190] sm:$0xf] %vm1736, %v2050
    %2109 = vst.msk [vmem:[#allocation5 + $0x1a4] sm:$0xf] %vm1736, %v2053
    %2110 = vst.msk [vmem:[#allocation5 + $0x1b8] sm:$0xf] %vm1736, %v2056
    %2111 = vst.msk [vmem:[#allocation5 + $0x1cc] sm:$0xf] %vm1736, %v2059
    %2112 = vst.msk [vmem:[#allocation5 + $0x1e0] sm:$0xf] %vm1736, %v2062
    %v2113 = vld [vmem:[#allocation4] sm:$0x8]
    %v2114 = vld [vmem:[#allocation4 + $0x4] sm:$0xf]
    %v2115 = vld [vmem:[#allocation4 + $0x8] sm:$0xf]
    %v2116 = vld [vmem:[#allocation4 + $0xc] sm:$0xf]
    %v2117 = vld [vmem:[#allocation4 + $0x10] sm:$0xf]
    %v2118 = vld [vmem:[#allocation4 + $0x14] sm:$0xf]
    %v2119 = vld [vmem:[#allocation4 + $0x18] sm:$0xf]
    %v2120 = vld [vmem:[#allocation4 + $0x1c] sm:$0xf]
    %v2121 = vld [vmem:[#allocation4 + $0x20] sm:$0xf]
    %v2122 = vld [vmem:[#allocation4 + $0x24] sm:$0xf]
    %v2123 = vld [vmem:[#allocation4 + $0x28] sm:$0xf]
    %v2124 = vld [vmem:[#allocation4 + $0x2c] sm:$0xf]
    %v2125 = vld [vmem:[#allocation4 + $0x30] sm:$0xf]
    %v2126 = vld [vmem:[#allocation4 + $0x34] sm:$0xf]
    %v2127 = vld [vmem:[#allocation4 + $0x38] sm:$0xf]
    %v2128 = vld [vmem:[#allocation4 + $0x3c] sm:$0xf]
    %v2129 = vld [vmem:[#allocation4 + $0x40] sm:$0xf]
    %v2130 = vld [vmem:[#allocation4 + $0x44] sm:$0xf]
    %v2131 = vld [vmem:[#allocation4 + $0x48] sm:$0xf]
    %v2132 = vld [vmem:[#allocation4 + $0x4c] sm:$0xf]
    %v2133 = vld [vmem:[#allocation4 + $0x50] sm:$0xf]
    %v2134 = vld [vmem:[#allocation4 + $0x54] sm:$0xf]
    %v2135 = vld [vmem:[#allocation4 + $0x58] sm:$0xf]
    %v2136 = vld [vmem:[#allocation4 + $0x5c] sm:$0xf]
    %v2137 = vld [vmem:[#allocation4 + $0x60] sm:$0xf]
    %v2138 = vld [vmem:[#allocation4 + $0x64] sm:$0xf]
    %vm2139 = vsmask.f32 256
    %vm2140 = vsmask.f32 4368
    %vm2141 = vmor %vm2139, %vm2140
    %v2143 = vshrl.u32 %v2113, 16
    %v2145 = vrot.slane %v2143, 7
    %v2146 = vrot.slane %v2145, 4
    %v2148 = vshrl.u32 %v2114, 16
    %v2150 = vrot.slane %v2148, 7
    %v2151 = vshll.u32 %v2114, 16
    %v2153 = vor.u32 %v2150, %v2151
    %v2154 = vsel %vm2141, %v2146, %v2153
    %v2155 = vrot.slane %v2150, 4
    %v2157 = vshrl.u32 %v2115, 16
    %v2159 = vrot.slane %v2157, 7
    %v2160 = vshll.u32 %v2115, 16
    %v2162 = vor.u32 %v2159, %v2160
    %v2163 = vsel %vm2141, %v2155, %v2162
    %v2164 = vrot.slane %v2159, 4
    %v2166 = vshrl.u32 %v2116, 16
    %v2168 = vrot.slane %v2166, 7
    %v2169 = vshll.u32 %v2116, 16
    %v2171 = vor.u32 %v2168, %v2169
    %v2172 = vsel %vm2141, %v2164, %v2171
    %v2173 = vrot.slane %v2168, 4
    %v2175 = vshrl.u32 %v2117, 16
    %v2177 = vrot.slane %v2175, 7
    %v2178 = vshll.u32 %v2117, 16
    %v2180 = vor.u32 %v2177, %v2178
    %v2181 = vsel %vm2141, %v2173, %v2180
    %v2182 = vrot.slane %v2177, 4
    %v2184 = vshrl.u32 %v2118, 16
    %v2186 = vrot.slane %v2184, 7
    %v2187 = vshll.u32 %v2118, 16
    %v2189 = vor.u32 %v2186, %v2187
    %v2190 = vsel %vm2141, %v2182, %v2189
    %v2191 = vrot.slane %v2186, 4
    %v2193 = vshrl.u32 %v2119, 16
    %v2195 = vrot.slane %v2193, 7
    %v2196 = vshll.u32 %v2119, 16
    %v2198 = vor.u32 %v2195, %v2196
    %v2199 = vsel %vm2141, %v2191, %v2198
    %v2200 = vrot.slane %v2195, 4
    %v2202 = vshrl.u32 %v2120, 16
    %v2204 = vrot.slane %v2202, 7
    %v2205 = vshll.u32 %v2120, 16
    %v2207 = vor.u32 %v2204, %v2205
    %v2208 = vsel %vm2141, %v2200, %v2207
    %v2209 = vrot.slane %v2204, 4
    %v2211 = vshrl.u32 %v2121, 16
    %v2213 = vrot.slane %v2211, 7
    %v2214 = vshll.u32 %v2121, 16
    %v2216 = vor.u32 %v2213, %v2214
    %v2217 = vsel %vm2141, %v2209, %v2216
    %v2218 = vrot.slane %v2213, 4
    %v2220 = vshrl.u32 %v2122, 16
    %v2222 = vrot.slane %v2220, 7
    %v2223 = vshll.u32 %v2122, 16
    %v2225 = vor.u32 %v2222, %v2223
    %v2226 = vsel %vm2141, %v2218, %v2225
    %v2227 = vrot.slane %v2222, 4
    %v2229 = vshrl.u32 %v2123, 16
    %v2231 = vrot.slane %v2229, 7
    %v2232 = vshll.u32 %v2123, 16
    %v2234 = vor.u32 %v2231, %v2232
    %v2235 = vsel %vm2141, %v2227, %v2234
    %v2236 = vrot.slane %v2231, 4
    %v2238 = vshrl.u32 %v2124, 16
    %v2240 = vrot.slane %v2238, 7
    %v2241 = vshll.u32 %v2124, 16
    %v2243 = vor.u32 %v2240, %v2241
    %v2244 = vsel %vm2141, %v2236, %v2243
    %v2245 = vrot.slane %v2240, 4
    %v2247 = vshrl.u32 %v2125, 16
    %v2249 = vrot.slane %v2247, 7
    %v2250 = vshll.u32 %v2125, 16
    %v2252 = vor.u32 %v2249, %v2250
    %v2253 = vsel %vm2141, %v2245, %v2252
    %v2254 = vrot.slane %v2249, 4
    %v2256 = vshrl.u32 %v2126, 16
    %v2258 = vrot.slane %v2256, 7
    %v2259 = vshll.u32 %v2126, 16
    %v2261 = vor.u32 %v2258, %v2259
    %v2262 = vsel %vm2141, %v2254, %v2261
    %v2263 = vrot.slane %v2258, 4
    %v2265 = vshrl.u32 %v2127, 16
    %v2267 = vrot.slane %v2265, 7
    %v2268 = vshll.u32 %v2127, 16
    %v2270 = vor.u32 %v2267, %v2268
    %v2271 = vsel %vm2141, %v2263, %v2270
    %v2272 = vrot.slane %v2267, 4
    %v2274 = vshrl.u32 %v2128, 16
    %v2276 = vrot.slane %v2274, 7
    %v2277 = vshll.u32 %v2128, 16
    %v2279 = vor.u32 %v2276, %v2277
    %v2280 = vsel %vm2141, %v2272, %v2279
    %v2281 = vrot.slane %v2276, 4
    %v2283 = vshrl.u32 %v2129, 16
    %v2285 = vrot.slane %v2283, 7
    %v2286 = vshll.u32 %v2129, 16
    %v2288 = vor.u32 %v2285, %v2286
    %v2289 = vsel %vm2141, %v2281, %v2288
    %v2290 = vrot.slane %v2285, 4
    %v2292 = vshrl.u32 %v2130, 16
    %v2294 = vrot.slane %v2292, 7
    %v2295 = vshll.u32 %v2130, 16
    %v2297 = vor.u32 %v2294, %v2295
    %v2298 = vsel %vm2141, %v2290, %v2297
    %v2299 = vrot.slane %v2294, 4
    %v2301 = vshrl.u32 %v2131, 16
    %v2303 = vrot.slane %v2301, 7
    %v2304 = vshll.u32 %v2131, 16
    %v2306 = vor.u32 %v2303, %v2304
    %v2307 = vsel %vm2141, %v2299, %v2306
    %v2308 = vrot.slane %v2303, 4
    %v2310 = vshrl.u32 %v2132, 16
    %v2312 = vrot.slane %v2310, 7
    %v2313 = vshll.u32 %v2132, 16
    %v2315 = vor.u32 %v2312, %v2313
    %v2316 = vsel %vm2141, %v2308, %v2315
    %v2317 = vrot.slane %v2312, 4
    %v2319 = vshrl.u32 %v2133, 16
    %v2321 = vrot.slane %v2319, 7
    %v2322 = vshll.u32 %v2133, 16
    %v2324 = vor.u32 %v2321, %v2322
    %v2325 = vsel %vm2141, %v2317, %v2324
    %v2326 = vrot.slane %v2321, 4
    %v2328 = vshrl.u32 %v2134, 16
    %v2330 = vrot.slane %v2328, 7
    %v2331 = vshll.u32 %v2134, 16
    %v2333 = vor.u32 %v2330, %v2331
    %v2334 = vsel %vm2141, %v2326, %v2333
    %v2335 = vrot.slane %v2330, 4
    %v2337 = vshrl.u32 %v2135, 16
    %v2339 = vrot.slane %v2337, 7
    %v2340 = vshll.u32 %v2135, 16
    %v2342 = vor.u32 %v2339, %v2340
    %v2343 = vsel %vm2141, %v2335, %v2342
    %v2344 = vrot.slane %v2339, 4
    %v2346 = vshrl.u32 %v2136, 16
    %v2348 = vrot.slane %v2346, 7
    %v2349 = vshll.u32 %v2136, 16
    %v2351 = vor.u32 %v2348, %v2349
    %v2352 = vsel %vm2141, %v2344, %v2351
    %v2353 = vrot.slane %v2348, 4
    %v2355 = vshrl.u32 %v2137, 16
    %v2357 = vrot.slane %v2355, 7
    %v2358 = vshll.u32 %v2137, 16
    %v2360 = vor.u32 %v2357, %v2358
    %v2361 = vsel %vm2141, %v2353, %v2360
    %v2362 = vrot.slane %v2357, 4
    %v2364 = vshrl.u32 %v2138, 16
    %v2366 = vrot.slane %v2364, 7
    %v2367 = vshll.u32 %v2138, 16
    %v2369 = vor.u32 %v2366, %v2367
    %v2370 = vsel %vm2141, %v2362, %v2369
    %2371 = vrot.lane.b32.xlu0 %v2154, 64
    %v2372 = vpop.permute.xlu0 %2371
    %2373 = vrot.lane.b32.xlu0 %v2163, 64
    %v2374 = vpop.permute.xlu0 %2373
    %2375 = vrot.lane.b32.xlu0 %v2172, 64
    %v2376 = vpop.permute.xlu0 %2375
    %2377 = vrot.lane.b32.xlu0 %v2181, 64
    %v2378 = vpop.permute.xlu0 %2377
    %2379 = vrot.lane.b32.xlu0 %v2190, 64
    %v2380 = vpop.permute.xlu0 %2379
    %2381 = vrot.lane.b32.xlu0 %v2199, 64
    %v2382 = vpop.permute.xlu0 %2381
    %2383 = vrot.lane.b32.xlu0 %v2208, 64
    %v2384 = vpop.permute.xlu0 %2383
    %2385 = vrot.lane.b32.xlu0 %v2217, 64
    %v2386 = vpop.permute.xlu0 %2385
    %2387 = vrot.lane.b32.xlu0 %v2226, 64
    %v2388 = vpop.permute.xlu0 %2387
    %2389 = vrot.lane.b32.xlu0 %v2235, 64
    %v2390 = vpop.permute.xlu0 %2389
    %2391 = vrot.lane.b32.xlu0 %v2244, 64
    %v2392 = vpop.permute.xlu0 %2391
    %2393 = vrot.lane.b32.xlu0 %v2253, 64
    %v2394 = vpop.permute.xlu0 %2393
    %2395 = vrot.lane.b32.xlu0 %v2262, 64
    %v2396 = vpop.permute.xlu0 %2395
    %2397 = vrot.lane.b32.xlu0 %v2271, 64
    %v2398 = vpop.permute.xlu0 %2397
    %2399 = vrot.lane.b32.xlu0 %v2280, 64
    %v2400 = vpop.permute.xlu0 %2399
    %2401 = vrot.lane.b32.xlu0 %v2289, 64
    %v2402 = vpop.permute.xlu0 %2401
    %2403 = vrot.lane.b32.xlu0 %v2298, 64
    %v2404 = vpop.permute.xlu0 %2403
    %2405 = vrot.lane.b32.xlu0 %v2307, 64
    %v2406 = vpop.permute.xlu0 %2405
    %2407 = vrot.lane.b32.xlu0 %v2316, 64
    %v2408 = vpop.permute.xlu0 %2407
    %2409 = vrot.lane.b32.xlu0 %v2325, 64
    %v2410 = vpop.permute.xlu0 %2409
    %2411 = vrot.lane.b32.xlu0 %v2334, 64
    %v2412 = vpop.permute.xlu0 %2411
    %2413 = vrot.lane.b32.xlu0 %v2343, 64
    %v2414 = vpop.permute.xlu0 %2413
    %2415 = vrot.lane.b32.xlu0 %v2352, 64
    %v2416 = vpop.permute.xlu0 %2415
    %2417 = vrot.lane.b32.xlu0 %v2361, 64
    %v2418 = vpop.permute.xlu0 %2417
    %2419 = vrot.lane.b32.xlu0 %v2370, 64
    %v2420 = vpop.permute.xlu0 %2419
    %vm2446 = vcmask 1043968
    %2447 = vst.msk [vmem:[#allocation5] sm:$0xf] %vm2446, %v2372
    %2448 = vst.msk [vmem:[#allocation5 + $0x14] sm:$0xf] %vm2446, %v2374
    %2449 = vst.msk [vmem:[#allocation5 + $0x28] sm:$0xf] %vm2446, %v2376
    %2450 = vst.msk [vmem:[#allocation5 + $0x3c] sm:$0xf] %vm2446, %v2378
    %2451 = vst.msk [vmem:[#allocation5 + $0x50] sm:$0xf] %vm2446, %v2380
    %2452 = vst.msk [vmem:[#allocation5 + $0x64] sm:$0xf] %vm2446, %v2382
    %2453 = vst.msk [vmem:[#allocation5 + $0x78] sm:$0xf] %vm2446, %v2384
    %2454 = vst.msk [vmem:[#allocation5 + $0x8c] sm:$0xf] %vm2446, %v2386
    %2455 = vst.msk [vmem:[#allocation5 + $0xa0] sm:$0xf] %vm2446, %v2388
    %2456 = vst.msk [vmem:[#allocation5 + $0xb4] sm:$0xf] %vm2446, %v2390
    %2457 = vst.msk [vmem:[#allocation5 + $0xc8] sm:$0xf] %vm2446, %v2392
    %2458 = vst.msk [vmem:[#allocation5 + $0xdc] sm:$0xf] %vm2446, %v2394
    %2459 = vst.msk [vmem:[#allocation5 + $0xf0] sm:$0xf] %vm2446, %v2396
    %2460 = vst.msk [vmem:[#allocation5 + $0x104] sm:$0xf] %vm2446, %v2398
    %2461 = vst.msk [vmem:[#allocation5 + $0x118] sm:$0xf] %vm2446, %v2400
    %2462 = vst.msk [vmem:[#allocation5 + $0x12c] sm:$0xf] %vm2446, %v2402
    %2463 = vst.msk [vmem:[#allocation5 + $0x140] sm:$0xf] %vm2446, %v2404
    %2464 = vst.msk [vmem:[#allocation5 + $0x154] sm:$0xf] %vm2446, %v2406
    %2465 = vst.msk [vmem:[#allocation5 + $0x168] sm:$0xf] %vm2446, %v2408
    %2466 = vst.msk [vmem:[#allocation5 + $0x17c] sm:$0xf] %vm2446, %v2410
    %2467 = vst.msk [vmem:[#allocation5 + $0x190] sm:$0xf] %vm2446, %v2412
    %2468 = vst.msk [vmem:[#allocation5 + $0x1a4] sm:$0xf] %vm2446, %v2414
    %2469 = vst.msk [vmem:[#allocation5 + $0x1b8] sm:$0xf] %vm2446, %v2416
    %2470 = vst.msk [vmem:[#allocation5 + $0x1cc] sm:$0xf] %vm2446, %v2418
    %2471 = vst.msk [vmem:[#allocation5 + $0x1e0] sm:$0xf] %vm2446, %v2420
    %v2472 = vld [vmem:[#allocation4 + $0x4] sm:$0xf]
    %v2473 = vld [vmem:[#allocation4 + $0x8] sm:$0xf]
    %v2474 = vld [vmem:[#allocation4 + $0xc] sm:$0xf]
    %v2475 = vld [vmem:[#allocation4 + $0x10] sm:$0xf]
    %v2476 = vld [vmem:[#allocation4 + $0x14] sm:$0xf]
    %v2477 = vld [vmem:[#allocation4 + $0x18] sm:$0xf]
    %v2478 = vld [vmem:[#allocation4 + $0x1c] sm:$0xf]
    %v2479 = vld [vmem:[#allocation4 + $0x20] sm:$0xf]
    %v2480 = vld [vmem:[#allocation4 + $0x24] sm:$0xf]
    %v2481 = vld [vmem:[#allocation4 + $0x28] sm:$0xf]
    %v2482 = vld [vmem:[#allocation4 + $0x2c] sm:$0xf]
    %v2483 = vld [vmem:[#allocation4 + $0x30] sm:$0xf]
    %v2484 = vld [vmem:[#allocation4 + $0x34] sm:$0xf]
    %v2485 = vld [vmem:[#allocation4 + $0x38] sm:$0xf]
    %v2486 = vld [vmem:[#allocation4 + $0x3c] sm:$0xf]
    %v2487 = vld [vmem:[#allocation4 + $0x40] sm:$0xf]
    %v2488 = vld [vmem:[#allocation4 + $0x44] sm:$0xf]
    %v2489 = vld [vmem:[#allocation4 + $0x48] sm:$0xf]
    %v2490 = vld [vmem:[#allocation4 + $0x4c] sm:$0xf]
    %v2491 = vld [vmem:[#allocation4 + $0x50] sm:$0xf]
    %v2492 = vld [vmem:[#allocation4 + $0x54] sm:$0xf]
    %v2493 = vld [vmem:[#allocation4 + $0x58] sm:$0xf]
    %v2494 = vld [vmem:[#allocation4 + $0x5c] sm:$0xf]
    %v2495 = vld [vmem:[#allocation4 + $0x60] sm:$0xf]
    %v2496 = vld [vmem:[#allocation4 + $0x64] sm:$0xf]
    %2497 = vst.msk [vmem:[#allocation5 + $0x4] sm:$0xf] %vm1736, %v2472
    %2498 = vst.msk [vmem:[#allocation5 + $0x18] sm:$0xf] %vm1736, %v2473
    %2499 = vst.msk [vmem:[#allocation5 + $0x2c] sm:$0xf] %vm1736, %v2474
    %2500 = vst.msk [vmem:[#allocation5 + $0x40] sm:$0xf] %vm1736, %v2475
    %2501 = vst.msk [vmem:[#allocation5 + $0x54] sm:$0xf] %vm1736, %v2476
    %2502 = vst.msk [vmem:[#allocation5 + $0x68] sm:$0xf] %vm1736, %v2477
    %2503 = vst.msk [vmem:[#allocation5 + $0x7c] sm:$0xf] %vm1736, %v2478
    %2504 = vst.msk [vmem:[#allocation5 + $0x90] sm:$0xf] %vm1736, %v2479
    %2505 = vst.msk [vmem:[#allocation5 + $0xa4] sm:$0xf] %vm1736, %v2480
    %2506 = vst.msk [vmem:[#allocation5 + $0xb8] sm:$0xf] %vm1736, %v2481
    %2507 = vst.msk [vmem:[#allocation5 + $0xcc] sm:$0xf] %vm1736, %v2482
    %2508 = vst.msk [vmem:[#allocation5 + $0xe0] sm:$0xf] %vm1736, %v2483
    %2509 = vst.msk [vmem:[#allocation5 + $0xf4] sm:$0xf] %vm1736, %v2484
    %2510 = vst.msk [vmem:[#allocation5 + $0x108] sm:$0xf] %vm1736, %v2485
    %2511 = vst.msk [vmem:[#allocation5 + $0x11c] sm:$0xf] %vm1736, %v2486
    %2512 = vst.msk [vmem:[#allocation5 + $0x130] sm:$0xf] %vm1736, %v2487
    %2513 = vst.msk [vmem:[#allocation5 + $0x144] sm:$0xf] %vm1736, %v2488
    %2514 = vst.msk [vmem:[#allocation5 + $0x158] sm:$0xf] %vm1736, %v2489
    %2515 = vst.msk [vmem:[#allocation5 + $0x16c] sm:$0xf] %vm1736, %v2490
    %2516 = vst.msk [vmem:[#allocation5 + $0x180] sm:$0xf] %vm1736, %v2491
    %2517 = vst.msk [vmem:[#allocation5 + $0x194] sm:$0xf] %vm1736, %v2492
    %2518 = vst.msk [vmem:[#allocation5 + $0x1a8] sm:$0xf] %vm1736, %v2493
    %2519 = vst.msk [vmem:[#allocation5 + $0x1bc] sm:$0xf] %vm1736, %v2494
    %2520 = vst.msk [vmem:[#allocation5 + $0x1d0] sm:$0xf] %vm1736, %v2495
    %2521 = vst.msk [vmem:[#allocation5 + $0x1e4] sm:$0xf] %vm1736, %v2496
    %v2522 = vld [vmem:[#allocation4 + $0x8] sm:$0xf]
    %v2523 = vld [vmem:[#allocation4 + $0xc] sm:$0xf]
    %v2524 = vld [vmem:[#allocation4 + $0x10] sm:$0xf]
    %v2525 = vld [vmem:[#allocation4 + $0x14] sm:$0xf]
    %v2526 = vld [vmem:[#allocation4 + $0x18] sm:$0xf]
    %v2527 = vld [vmem:[#allocation4 + $0x1c] sm:$0xf]
    %v2528 = vld [vmem:[#allocation4 + $0x20] sm:$0xf]
    %v2529 = vld [vmem:[#allocation4 + $0x24] sm:$0xf]
    %v2530 = vld [vmem:[#allocation4 + $0x28] sm:$0xf]
    %v2531 = vld [vmem:[#allocation4 + $0x2c] sm:$0xf]
    %v2532 = vld [vmem:[#allocation4 + $0x30] sm:$0xf]
    %v2533 = vld [vmem:[#allocation4 + $0x34] sm:$0xf]
    %v2534 = vld [vmem:[#allocation4 + $0x38] sm:$0xf]
    %v2535 = vld [vmem:[#allocation4 + $0x3c] sm:$0xf]
    %v2536 = vld [vmem:[#allocation4 + $0x40] sm:$0xf]
    %v2537 = vld [vmem:[#allocation4 + $0x44] sm:$0xf]
    %v2538 = vld [vmem:[#allocation4 + $0x48] sm:$0xf]
    %v2539 = vld [vmem:[#allocation4 + $0x4c] sm:$0xf]
    %v2540 = vld [vmem:[#allocation4 + $0x50] sm:$0xf]
    %v2541 = vld [vmem:[#allocation4 + $0x54] sm:$0xf]
    %v2542 = vld [vmem:[#allocation4 + $0x58] sm:$0xf]
    %v2543 = vld [vmem:[#allocation4 + $0x5c] sm:$0xf]
    %v2544 = vld [vmem:[#allocation4 + $0x60] sm:$0xf]
    %v2545 = vld [vmem:[#allocation4 + $0x64] sm:$0xf]
    %v2546 = vld [vmem:[#allocation4 + $0x68] sm:$0xf]
    %2572 = vrot.lane.b32.xlu0 %v2522, 64
    %v2573 = vpop.permute.xlu0 %2572
    %2574 = vrot.lane.b32.xlu0 %v2523, 64
    %v2575 = vpop.permute.xlu0 %2574
    %2576 = vrot.lane.b32.xlu0 %v2524, 64
    %v2577 = vpop.permute.xlu0 %2576
    %2578 = vrot.lane.b32.xlu0 %v2525, 64
    %v2579 = vpop.permute.xlu0 %2578
    %2580 = vrot.lane.b32.xlu0 %v2526, 64
    %v2581 = vpop.permute.xlu0 %2580
    %2582 = vrot.lane.b32.xlu0 %v2527, 64
    %v2583 = vpop.permute.xlu0 %2582
    %2584 = vrot.lane.b32.xlu0 %v2528, 64
    %v2585 = vpop.permute.xlu0 %2584
    %2586 = vrot.lane.b32.xlu0 %v2529, 64
    %v2587 = vpop.permute.xlu0 %2586
    %2588 = vrot.lane.b32.xlu0 %v2530, 64
    %v2589 = vpop.permute.xlu0 %2588
    %2590 = vrot.lane.b32.xlu0 %v2531, 64
    %v2591 = vpop.permute.xlu0 %2590
    %2592 = vrot.lane.b32.xlu0 %v2532, 64
    %v2593 = vpop.permute.xlu0 %2592
    %2594 = vrot.lane.b32.xlu0 %v2533, 64
    %v2595 = vpop.permute.xlu0 %2594
    %2596 = vrot.lane.b32.xlu0 %v2534, 64
    %v2597 = vpop.permute.xlu0 %2596
    %2598 = vrot.lane.b32.xlu0 %v2535, 64
    %v2599 = vpop.permute.xlu0 %2598
    %2600 = vrot.lane.b32.xlu0 %v2536, 64
    %v2601 = vpop.permute.xlu0 %2600
    %2602 = vrot.lane.b32.xlu0 %v2537, 64
    %v2603 = vpop.permute.xlu0 %2602
    %2604 = vrot.lane.b32.xlu0 %v2538, 64
    %v2605 = vpop.permute.xlu0 %2604
    %2606 = vrot.lane.b32.xlu0 %v2539, 64
    %v2607 = vpop.permute.xlu0 %2606
    %2608 = vrot.lane.b32.xlu0 %v2540, 64
    %v2609 = vpop.permute.xlu0 %2608
    %2610 = vrot.lane.b32.xlu0 %v2541, 64
    %v2611 = vpop.permute.xlu0 %2610
    %2612 = vrot.lane.b32.xlu0 %v2542, 64
    %v2613 = vpop.permute.xlu0 %2612
    %2614 = vrot.lane.b32.xlu0 %v2543, 64
    %v2615 = vpop.permute.xlu0 %2614
    %2616 = vrot.lane.b32.xlu0 %v2544, 64
    %v2617 = vpop.permute.xlu0 %2616
    %2618 = vrot.lane.b32.xlu0 %v2545, 64
    %v2619 = vpop.permute.xlu0 %2618
    %2620 = vrot.lane.b32.xlu0 %v2546, 64
    %v2621 = vpop.permute.xlu0 %2620
    %2647 = vst.msk [vmem:[#allocation5 + $0x4] sm:$0xf] %vm2446, %v2573
    %2648 = vst.msk [vmem:[#allocation5 + $0x18] sm:$0xf] %vm2446, %v2575
    %2649 = vst.msk [vmem:[#allocation5 + $0x2c] sm:$0xf] %vm2446, %v2577
    %2650 = vst.msk [vmem:[#allocation5 + $0x40] sm:$0xf] %vm2446, %v2579
    %2651 = vst.msk [vmem:[#allocation5 + $0x54] sm:$0xf] %vm2446, %v2581
    %2652 = vst.msk [vmem:[#allocation5 + $0x68] sm:$0xf] %vm2446, %v2583
    %2653 = vst.msk [vmem:[#allocation5 + $0x7c] sm:$0xf] %vm2446, %v2585
    %2654 = vst.msk [vmem:[#allocation5 + $0x90] sm:$0xf] %vm2446, %v2587
    %2655 = vst.msk [vmem:[#allocation5 + $0xa4] sm:$0xf] %vm2446, %v2589
    %2656 = vst.msk [vmem:[#allocation5 + $0xb8] sm:$0xf] %vm2446, %v2591
    %2657 = vst.msk [vmem:[#allocation5 + $0xcc] sm:$0xf] %vm2446, %v2593
    %2658 = vst.msk [vmem:[#allocation5 + $0xe0] sm:$0xf] %vm2446, %v2595
    %2659 = vst.msk [vmem:[#allocation5 + $0xf4] sm:$0xf] %vm2446, %v2597
    %2660 = vst.msk [vmem:[#allocation5 + $0x108] sm:$0xf] %vm2446, %v2599
    %2661 = vst.msk [vmem:[#allocation5 + $0x11c] sm:$0xf] %vm2446, %v2601
    %2662 = vst.msk [vmem:[#allocation5 + $0x130] sm:$0xf] %vm2446, %v2603
    %2663 = vst.msk [vmem:[#allocation5 + $0x144] sm:$0xf] %vm2446, %v2605
    %2664 = vst.msk [vmem:[#allocation5 + $0x158] sm:$0xf] %vm2446, %v2607
    %2665 = vst.msk [vmem:[#allocation5 + $0x16c] sm:$0xf] %vm2446, %v2609
    %2666 = vst.msk [vmem:[#allocation5 + $0x180] sm:$0xf] %vm2446, %v2611
    %2667 = vst.msk [vmem:[#allocation5 + $0x194] sm:$0xf] %vm2446, %v2613
    %2668 = vst.msk [vmem:[#allocation5 + $0x1a8] sm:$0xf] %vm2446, %v2615
    %2669 = vst.msk [vmem:[#allocation5 + $0x1bc] sm:$0xf] %vm2446, %v2617
    %2670 = vst.msk [vmem:[#allocation5 + $0x1d0] sm:$0xf] %vm2446, %v2619
    %2671 = vst.msk [vmem:[#allocation5 + $0x1e4] sm:$0xf] %vm2446, %v2621
    %v2672 = vld [vmem:[#allocation4 + $0x8] sm:$0xf]
    %v2673 = vld [vmem:[#allocation4 + $0xc] sm:$0xf]
    %v2674 = vld [vmem:[#allocation4 + $0x10] sm:$0xf]
    %v2675 = vld [vmem:[#allocation4 + $0x14] sm:$0xf]
    %v2676 = vld [vmem:[#allocation4 + $0x18] sm:$0xf]
    %v2677 = vld [vmem:[#allocation4 + $0x1c] sm:$0xf]
    %v2678 = vld [vmem:[#allocation4 + $0x20] sm:$0xf]
    %v2679 = vld [vmem:[#allocation4 + $0x24] sm:$0xf]
    %v2680 = vld [vmem:[#allocation4 + $0x28] sm:$0xf]
    %v2681 = vld [vmem:[#allocation4 + $0x2c] sm:$0xf]
    %v2682 = vld [vmem:[#allocation4 + $0x30] sm:$0xf]
    %v2683 = vld [vmem:[#allocation4 + $0x34] sm:$0xf]
    %v2684 = vld [vmem:[#allocation4 + $0x38] sm:$0xf]
    %v2685 = vld [vmem:[#allocation4 + $0x3c] sm:$0xf]
    %v2686 = vld [vmem:[#allocation4 + $0x40] sm:$0xf]
    %v2687 = vld [vmem:[#allocation4 + $0x44] sm:$0xf]
    %v2688 = vld [vmem:[#allocation4 + $0x48] sm:$0xf]
    %v2689 = vld [vmem:[#allocation4 + $0x4c] sm:$0xf]
    %v2690 = vld [vmem:[#allocation4 + $0x50] sm:$0xf]
    %v2691 = vld [vmem:[#allocation4 + $0x54] sm:$0xf]
    %v2692 = vld [vmem:[#allocation4 + $0x58] sm:$0xf]
    %v2693 = vld [vmem:[#allocation4 + $0x5c] sm:$0xf]
    %v2694 = vld [vmem:[#allocation4 + $0x60] sm:$0xf]
    %v2695 = vld [vmem:[#allocation4 + $0x64] sm:$0xf]
    %v2696 = vld [vmem:[#allocation4 + $0x68] sm:$0xf]
    %v2697 = vld [vmem:[#allocation4 + $0x6c] sm:$0x1]
    %vm2698 = vsmask.f32 3328
    %vm2699 = vsmask.f32 7440
    %vm2700 = vmor %vm2698, %vm2699
    %v2702 = vshrl.u32 %v2672, 16
    %v2704 = vrot.slane %v2702, 4
    %v2705 = vshll.u32 %v2672, 16
    %v2707 = vrot.slane %v2705, 5
    %v2708 = vor.u32 %v2704, %v2707
    %v2709 = vrot.slane %v2708, 4
    %v2711 = vshll.u32 %v2673, 16
    %v2713 = vrot.slane %v2711, 5
    %v2714 = vsel %vm2700, %v2709, %v2713
    %v2715 = vshrl.u32 %v2673, 16
    %v2717 = vrot.slane %v2715, 4
    %v2718 = vor.u32 %v2717, %v2713
    %v2719 = vrot.slane %v2718, 4
    %v2721 = vshll.u32 %v2674, 16
    %v2723 = vrot.slane %v2721, 5
    %v2724 = vsel %vm2700, %v2719, %v2723
    %v2725 = vshrl.u32 %v2674, 16
    %v2727 = vrot.slane %v2725, 4
    %v2728 = vor.u32 %v2727, %v2723
    %v2729 = vrot.slane %v2728, 4
    %v2731 = vshll.u32 %v2675, 16
    %v2733 = vrot.slane %v2731, 5
    %v2734 = vsel %vm2700, %v2729, %v2733
    %v2735 = vshrl.u32 %v2675, 16
    %v2737 = vrot.slane %v2735, 4
    %v2738 = vor.u32 %v2737, %v2733
    %v2739 = vrot.slane %v2738, 4
    %v2741 = vshll.u32 %v2676, 16
    %v2743 = vrot.slane %v2741, 5
    %v2744 = vsel %vm2700, %v2739, %v2743
    %v2745 = vshrl.u32 %v2676, 16
    %v2747 = vrot.slane %v2745, 4
    %v2748 = vor.u32 %v2747, %v2743
    %v2749 = vrot.slane %v2748, 4
    %v2751 = vshll.u32 %v2677, 16
    %v2753 = vrot.slane %v2751, 5
    %v2754 = vsel %vm2700, %v2749, %v2753
    %v2755 = vshrl.u32 %v2677, 16
    %v2757 = vrot.slane %v2755, 4
    %v2758 = vor.u32 %v2757, %v2753
    %v2759 = vrot.slane %v2758, 4
    %v2761 = vshll.u32 %v2678, 16
    %v2763 = vrot.slane %v2761, 5
    %v2764 = vsel %vm2700, %v2759, %v2763
    %v2765 = vshrl.u32 %v2678, 16
    %v2767 = vrot.slane %v2765, 4
    %v2768 = vor.u32 %v2767, %v2763
    %v2769 = vrot.slane %v2768, 4
    %v2771 = vshll.u32 %v2679, 16
    %v2773 = vrot.slane %v2771, 5
    %v2774 = vsel %vm2700, %v2769, %v2773
    %v2775 = vshrl.u32 %v2679, 16
    %v2777 = vrot.slane %v2775, 4
    %v2778 = vor.u32 %v2777, %v2773
    %v2779 = vrot.slane %v2778, 4
    %v2781 = vshll.u32 %v2680, 16
    %v2783 = vrot.slane %v2781, 5
    %v2784 = vsel %vm2700, %v2779, %v2783
    %v2785 = vshrl.u32 %v2680, 16
    %v2787 = vrot.slane %v2785, 4
    %v2788 = vor.u32 %v2787, %v2783
    %v2789 = vrot.slane %v2788, 4
    %v2791 = vshll.u32 %v2681, 16
    %v2793 = vrot.slane %v2791, 5
    %v2794 = vsel %vm2700, %v2789, %v2793
    %v2795 = vshrl.u32 %v2681, 16
    %v2797 = vrot.slane %v2795, 4
    %v2798 = vor.u32 %v2797, %v2793
    %v2799 = vrot.slane %v2798, 4
    %v2801 = vshll.u32 %v2682, 16
    %v2803 = vrot.slane %v2801, 5
    %v2804 = vsel %vm2700, %v2799, %v2803
    %v2805 = vshrl.u32 %v2682, 16
    %v2807 = vrot.slane %v2805, 4
    %v2808 = vor.u32 %v2807, %v2803
    %v2809 = vrot.slane %v2808, 4
    %v2811 = vshll.u32 %v2683, 16
    %v2813 = vrot.slane %v2811, 5
    %v2814 = vsel %vm2700, %v2809, %v2813
    %v2815 = vshrl.u32 %v2683, 16
    %v2817 = vrot.slane %v2815, 4
    %v2818 = vor.u32 %v2817, %v2813
    %v2819 = vrot.slane %v2818, 4
    %v2821 = vshll.u32 %v2684, 16
    %v2823 = vrot.slane %v2821, 5
    %v2824 = vsel %vm2700, %v2819, %v2823
    %v2825 = vshrl.u32 %v2684, 16
    %v2827 = vrot.slane %v2825, 4
    %v2828 = vor.u32 %v2827, %v2823
    %v2829 = vrot.slane %v2828, 4
    %v2831 = vshll.u32 %v2685, 16
    %v2833 = vrot.slane %v2831, 5
    %v2834 = vsel %vm2700, %v2829, %v2833
    %v2835 = vshrl.u32 %v2685, 16
    %v2837 = vrot.slane %v2835, 4
    %v2838 = vor.u32 %v2837, %v2833
    %v2839 = vrot.slane %v2838, 4
    %v2841 = vshll.u32 %v2686, 16
    %v2843 = vrot.slane %v2841, 5
    %v2844 = vsel %vm2700, %v2839, %v2843
    %v2845 = vshrl.u32 %v2686, 16
    %v2847 = vrot.slane %v2845, 4
    %v2848 = vor.u32 %v2847, %v2843
    %v2849 = vrot.slane %v2848, 4
    %v2851 = vshll.u32 %v2687, 16
    %v2853 = vrot.slane %v2851, 5
    %v2854 = vsel %vm2700, %v2849, %v2853
    %v2855 = vshrl.u32 %v2687, 16
    %v2857 = vrot.slane %v2855, 4
    %v2858 = vor.u32 %v2857, %v2853
    %v2859 = vrot.slane %v2858, 4
    %v2861 = vshll.u32 %v2688, 16
    %v2863 = vrot.slane %v2861, 5
    %v2864 = vsel %vm2700, %v2859, %v2863
    %v2865 = vshrl.u32 %v2688, 16
    %v2867 = vrot.slane %v2865, 4
    %v2868 = vor.u32 %v2867, %v2863
    %v2869 = vrot.slane %v2868, 4
    %v2871 = vshll.u32 %v2689, 16
    %v2873 = vrot.slane %v2871, 5
    %v2874 = vsel %vm2700, %v2869, %v2873
    %v2875 = vshrl.u32 %v2689, 16
    %v2877 = vrot.slane %v2875, 4
    %v2878 = vor.u32 %v2877, %v2873
    %v2879 = vrot.slane %v2878, 4
    %v2881 = vshll.u32 %v2690, 16
    %v2883 = vrot.slane %v2881, 5
    %v2884 = vsel %vm2700, %v2879, %v2883
    %v2885 = vshrl.u32 %v2690, 16
    %v2887 = vrot.slane %v2885, 4
    %v2888 = vor.u32 %v2887, %v2883
    %v2889 = vrot.slane %v2888, 4
    %v2891 = vshll.u32 %v2691, 16
    %v2893 = vrot.slane %v2891, 5
    %v2894 = vsel %vm2700, %v2889, %v2893
    %v2895 = vshrl.u32 %v2691, 16
    %v2897 = vrot.slane %v2895, 4
    %v2898 = vor.u32 %v2897, %v2893
    %v2899 = vrot.slane %v2898, 4
    %v2901 = vshll.u32 %v2692, 16
    %v2903 = vrot.slane %v2901, 5
    %v2904 = vsel %vm2700, %v2899, %v2903
    %v2905 = vshrl.u32 %v2692, 16
    %v2907 = vrot.slane %v2905, 4
    %v2908 = vor.u32 %v2907, %v2903
    %v2909 = vrot.slane %v2908, 4
    %v2911 = vshll.u32 %v2693, 16
    %v2913 = vrot.slane %v2911, 5
    %v2914 = vsel %vm2700, %v2909, %v2913
    %v2915 = vshrl.u32 %v2693, 16
    %v2917 = vrot.slane %v2915, 4
    %v2918 = vor.u32 %v2917, %v2913
    %v2919 = vrot.slane %v2918, 4
    %v2921 = vshll.u32 %v2694, 16
    %v2923 = vrot.slane %v2921, 5
    %v2924 = vsel %vm2700, %v2919, %v2923
    %v2925 = vshrl.u32 %v2694, 16
    %v2927 = vrot.slane %v2925, 4
    %v2928 = vor.u32 %v2927, %v2923
    %v2929 = vrot.slane %v2928, 4
    %v2931 = vshll.u32 %v2695, 16
    %v2933 = vrot.slane %v2931, 5
    %v2934 = vsel %vm2700, %v2929, %v2933
    %v2935 = vshrl.u32 %v2695, 16
    %v2937 = vrot.slane %v2935, 4
    %v2938 = vor.u32 %v2937, %v2933
    %v2939 = vrot.slane %v2938, 4
    %v2941 = vshll.u32 %v2696, 16
    %v2943 = vrot.slane %v2941, 5
    %v2944 = vsel %vm2700, %v2939, %v2943
    %v2945 = vshrl.u32 %v2696, 16
    %v2947 = vrot.slane %v2945, 4
    %v2948 = vor.u32 %v2947, %v2943
    %v2949 = vrot.slane %v2948, 4
    %v2951 = vshll.u32 %v2697, 16
    %v2953 = vrot.slane %v2951, 5
    %v2954 = vsel %vm2700, %v2949, %v2953
    %2980 = vst.msk [vmem:[#allocation5 + $0x8] sm:$0xf] %vm1736, %v2714
    %2981 = vst.msk [vmem:[#allocation5 + $0x1c] sm:$0xf] %vm1736, %v2724
    %2982 = vst.msk [vmem:[#allocation5 + $0x30] sm:$0xf] %vm1736, %v2734
    %2983 = vst.msk [vmem:[#allocation5 + $0x44] sm:$0xf] %vm1736, %v2744
    %2984 = vst.msk [vmem:[#allocation5 + $0x58] sm:$0xf] %vm1736, %v2754
    %2985 = vst.msk [vmem:[#allocation5 + $0x6c] sm:$0xf] %vm1736, %v2764
    %2986 = vst.msk [vmem:[#allocation5 + $0x80] sm:$0xf] %vm1736, %v2774
    %2987 = vst.msk [vmem:[#allocation5 + $0x94] sm:$0xf] %vm1736, %v2784
    %2988 = vst.msk [vmem:[#allocation5 + $0xa8] sm:$0xf] %vm1736, %v2794
    %2989 = vst.msk [vmem:[#allocation5 + $0xbc] sm:$0xf] %vm1736, %v2804
    %2990 = vst.msk [vmem:[#allocation5 + $0xd0] sm:$0xf] %vm1736, %v2814
    %2991 = vst.msk [vmem:[#allocation5 + $0xe4] sm:$0xf] %vm1736, %v2824
    %2992 = vst.msk [vmem:[#allocation5 + $0xf8] sm:$0xf] %vm1736, %v2834
    %2993 = vst.msk [vmem:[#allocation5 + $0x10c] sm:$0xf] %vm1736, %v2844
    %2994 = vst.msk [vmem:[#allocation5 + $0x120] sm:$0xf] %vm1736, %v2854
    %2995 = vst.msk [vmem:[#allocation5 + $0x134] sm:$0xf] %vm1736, %v2864
    %2996 = vst.msk [vmem:[#allocation5 + $0x148] sm:$0xf] %vm1736, %v2874
    %2997 = vst.msk [vmem:[#allocation5 + $0x15c] sm:$0xf] %vm1736, %v2884
    %2998 = vst.msk [vmem:[#allocation5 + $0x170] sm:$0xf] %vm1736, %v2894
    %2999 = vst.msk [vmem:[#allocation5 + $0x184] sm:$0xf] %vm1736, %v2904
    %3000 = vst.msk [vmem:[#allocation5 + $0x198] sm:$0xf] %vm1736, %v2914
    %3001 = vst.msk [vmem:[#allocation5 + $0x1ac] sm:$0xf] %vm1736, %v2924
    %3002 = vst.msk [vmem:[#allocation5 + $0x1c0] sm:$0xf] %vm1736, %v2934
    %3003 = vst.msk [vmem:[#allocation5 + $0x1d4] sm:$0xf] %vm1736, %v2944
    %3004 = vst.msk [vmem:[#allocation5 + $0x1e8] sm:$0xf] %vm1736, %v2954
    %v3005 = vld [vmem:[#allocation4 + $0x8] sm:$0xe]
    %v3006 = vld [vmem:[#allocation4 + $0xc] sm:$0xf]
    %v3007 = vld [vmem:[#allocation4 + $0x10] sm:$0xf]
    %v3008 = vld [vmem:[#allocation4 + $0x14] sm:$0xf]
    %v3009 = vld [vmem:[#allocation4 + $0x18] sm:$0xf]
    %v3010 = vld [vmem:[#allocation4 + $0x1c] sm:$0xf]
    %v3011 = vld [vmem:[#allocation4 + $0x20] sm:$0xf]
    %v3012 = vld [vmem:[#allocation4 + $0x24] sm:$0xf]
    %v3013 = vld [vmem:[#allocation4 + $0x28] sm:$0xf]
    %v3014 = vld [vmem:[#allocation4 + $0x2c] sm:$0xf]
    %v3015 = vld [vmem:[#allocation4 + $0x30] sm:$0xf]
    %v3016 = vld [vmem:[#allocation4 + $0x34] sm:$0xf]
    %v3017 = vld [vmem:[#allocation4 + $0x38] sm:$0xf]
    %v3018 = vld [vmem:[#allocation4 + $0x3c] sm:$0xf]
    %v3019 = vld [vmem:[#allocation4 + $0x40] sm:$0xf]
    %v3020 = vld [vmem:[#allocation4 + $0x44] sm:$0xf]
    %v3021 = vld [vmem:[#allocation4 + $0x48] sm:$0xf]
    %v3022 = vld [vmem:[#allocation4 + $0x4c] sm:$0xf]
    %v3023 = vld [vmem:[#allocation4 + $0x50] sm:$0xf]
    %v3024 = vld [vmem:[#allocation4 + $0x54] sm:$0xf]
    %v3025 = vld [vmem:[#allocation4 + $0x58] sm:$0xf]
    %v3026 = vld [vmem:[#allocation4 + $0x5c] sm:$0xf]
    %v3027 = vld [vmem:[#allocation4 + $0x60] sm:$0xf]
    %v3028 = vld [vmem:[#allocation4 + $0x64] sm:$0xf]
    %v3029 = vld [vmem:[#allocation4 + $0x68] sm:$0xf]
    %v3030 = vld [vmem:[#allocation4 + $0x6c] sm:$0x1]
    %vm3057 = vcmask 1042432
    %vm3058 = vcmask 1046532
    %vm3059 = vmor %vm3057, %vm3058
    %v3060 = vrot.slane %v3005, 5
    %v3061 = vrot.slane %v3060, 4
    %v3062 = vrot.slane %v3006, 5
    %v3063 = vsel %vm3059, %v3061, %v3062
    %v3064 = vrot.slane %v3062, 4
    %v3065 = vrot.slane %v3007, 5
    %v3066 = vsel %vm3059, %v3064, %v3065
    %v3067 = vrot.slane %v3065, 4
    %v3068 = vrot.slane %v3008, 5
    %v3069 = vsel %vm3059, %v3067, %v3068
    %v3070 = vrot.slane %v3068, 4
    %v3071 = vrot.slane %v3009, 5
    %v3072 = vsel %vm3059, %v3070, %v3071
    %v3073 = vrot.slane %v3071, 4
    %v3074 = vrot.slane %v3010, 5
    %v3075 = vsel %vm3059, %v3073, %v3074
    %v3076 = vrot.slane %v3074, 4
    %v3077 = vrot.slane %v3011, 5
    %v3078 = vsel %vm3059, %v3076, %v3077
    %v3079 = vrot.slane %v3077, 4
    %v3080 = vrot.slane %v3012, 5
    %v3081 = vsel %vm3059, %v3079, %v3080
    %v3082 = vrot.slane %v3080, 4
    %v3083 = vrot.slane %v3013, 5
    %v3084 = vsel %vm3059, %v3082, %v3083
    %v3085 = vrot.slane %v3083, 4
    %v3086 = vrot.slane %v3014, 5
    %v3087 = vsel %vm3059, %v3085, %v3086
    %v3088 = vrot.slane %v3086, 4
    %v3089 = vrot.slane %v3015, 5
    %v3090 = vsel %vm3059, %v3088, %v3089
    %v3091 = vrot.slane %v3089, 4
    %v3092 = vrot.slane %v3016, 5
    %v3093 = vsel %vm3059, %v3091, %v3092
    %v3094 = vrot.slane %v3092, 4
    %v3095 = vrot.slane %v3017, 5
    %v3096 = vsel %vm3059, %v3094, %v3095
    %v3097 = vrot.slane %v3095, 4
    %v3098 = vrot.slane %v3018, 5
    %v3099 = vsel %vm3059, %v3097, %v3098
    %v3100 = vrot.slane %v3098, 4
    %v3101 = vrot.slane %v3019, 5
    %v3102 = vsel %vm3059, %v3100, %v3101
    %v3103 = vrot.slane %v3101, 4
    %v3104 = vrot.slane %v3020, 5
    %v3105 = vsel %vm3059, %v3103, %v3104
    %v3106 = vrot.slane %v3104, 4
    %v3107 = vrot.slane %v3021, 5
    %v3108 = vsel %vm3059, %v3106, %v3107
    %v3109 = vrot.slane %v3107, 4
    %v3110 = vrot.slane %v3022, 5
    %v3111 = vsel %vm3059, %v3109, %v3110
    %v3112 = vrot.slane %v3110, 4
    %v3113 = vrot.slane %v3023, 5
    %v3114 = vsel %vm3059, %v3112, %v3113
    %v3115 = vrot.slane %v3113, 4
    %v3116 = vrot.slane %v3024, 5
    %v3117 = vsel %vm3059, %v3115, %v3116
    %v3118 = vrot.slane %v3116, 4
    %v3119 = vrot.slane %v3025, 5
    %v3120 = vsel %vm3059, %v3118, %v3119
    %v3121 = vrot.slane %v3119, 4
    %v3122 = vrot.slane %v3026, 5
    %v3123 = vsel %vm3059, %v3121, %v3122
    %v3124 = vrot.slane %v3122, 4
    %v3125 = vrot.slane %v3027, 5
    %v3126 = vsel %vm3059, %v3124, %v3125
    %v3127 = vrot.slane %v3125, 4
    %v3128 = vrot.slane %v3028, 5
    %v3129 = vsel %vm3059, %v3127, %v3128
    %v3130 = vrot.slane %v3128, 4
    %v3131 = vrot.slane %v3029, 5
    %v3132 = vsel %vm3059, %v3130, %v3131
    %v3133 = vrot.slane %v3131, 4
    %v3134 = vrot.slane %v3030, 5
    %v3135 = vsel %vm3059, %v3133, %v3134
    %3136 = vrot.lane.b32.xlu0 %v3063, 64
    %v3137 = vpop.permute.xlu0 %3136
    %3138 = vrot.lane.b32.xlu0 %v3066, 64
    %v3139 = vpop.permute.xlu0 %3138
    %3140 = vrot.lane.b32.xlu0 %v3069, 64
    %v3141 = vpop.permute.xlu0 %3140
    %3142 = vrot.lane.b32.xlu0 %v3072, 64
    %v3143 = vpop.permute.xlu0 %3142
    %3144 = vrot.lane.b32.xlu0 %v3075, 64
    %v3145 = vpop.permute.xlu0 %3144
    %3146 = vrot.lane.b32.xlu0 %v3078, 64
    %v3147 = vpop.permute.xlu0 %3146
    %3148 = vrot.lane.b32.xlu0 %v3081, 64
    %v3149 = vpop.permute.xlu0 %3148
    %3150 = vrot.lane.b32.xlu0 %v3084, 64
    %v3151 = vpop.permute.xlu0 %3150
    %3152 = vrot.lane.b32.xlu0 %v3087, 64
    %v3153 = vpop.permute.xlu0 %3152
    %3154 = vrot.lane.b32.xlu0 %v3090, 64
    %v3155 = vpop.permute.xlu0 %3154
    %3156 = vrot.lane.b32.xlu0 %v3093, 64
    %v3157 = vpop.permute.xlu0 %3156
    %3158 = vrot.lane.b32.xlu0 %v3096, 64
    %v3159 = vpop.permute.xlu0 %3158
    %3160 = vrot.lane.b32.xlu0 %v3099, 64
    %v3161 = vpop.permute.xlu0 %3160
    %3162 = vrot.lane.b32.xlu0 %v3102, 64
    %v3163 = vpop.permute.xlu0 %3162
    %3164 = vrot.lane.b32.xlu0 %v3105, 64
    %v3165 = vpop.permute.xlu0 %3164
    %3166 = vrot.lane.b32.xlu0 %v3108, 64
    %v3167 = vpop.permute.xlu0 %3166
    %3168 = vrot.lane.b32.xlu0 %v3111, 64
    %v3169 = vpop.permute.xlu0 %3168
    %3170 = vrot.lane.b32.xlu0 %v3114, 64
    %v3171 = vpop.permute.xlu0 %3170
    %3172 = vrot.lane.b32.xlu0 %v3117, 64
    %v3173 = vpop.permute.xlu0 %3172
    %3174 = vrot.lane.b32.xlu0 %v3120, 64
    %v3175 = vpop.permute.xlu0 %3174
    %3176 = vrot.lane.b32.xlu0 %v3123, 64
    %v3177 = vpop.permute.xlu0 %3176
    %3178 = vrot.lane.b32.xlu0 %v3126, 64
    %v3179 = vpop.permute.xlu0 %3178
    %3180 = vrot.lane.b32.xlu0 %v3129, 64
    %v3181 = vpop.permute.xlu0 %3180
    %3182 = vrot.lane.b32.xlu0 %v3132, 64
    %v3183 = vpop.permute.xlu0 %3182
    %3184 = vrot.lane.b32.xlu0 %v3135, 64
    %v3185 = vpop.permute.xlu0 %3184
    %3211 = vst.msk [vmem:[#allocation5 + $0x8] sm:$0xf] %vm2446, %v3137
    %3212 = vst.msk [vmem:[#allocation5 + $0x1c] sm:$0xf] %vm2446, %v3139
    %3213 = vst.msk [vmem:[#allocation5 + $0x30] sm:$0xf] %vm2446, %v3141
    %3214 = vst.msk [vmem:[#allocation5 + $0x44] sm:$0xf] %vm2446, %v3143
    %3215 = vst.msk [vmem:[#allocation5 + $0x58] sm:$0xf] %vm2446, %v3145
    %3216 = vst.msk [vmem:[#allocation5 + $0x6c] sm:$0xf] %vm2446, %v3147
    %3217 = vst.msk [vmem:[#allocation5 + $0x80] sm:$0xf] %vm2446, %v3149
    %3218 = vst.msk [vmem:[#allocation5 + $0x94] sm:$0xf] %vm2446, %v3151
    %3219 = vst.msk [vmem:[#allocation5 + $0xa8] sm:$0xf] %vm2446, %v3153
    %3220 = vst.msk [vmem:[#allocation5 + $0xbc] sm:$0xf] %vm2446, %v3155
    %3221 = vst.msk [vmem:[#allocation5 + $0xd0] sm:$0xf] %vm2446, %v3157
    %3222 = vst.msk [vmem:[#allocation5 + $0xe4] sm:$0xf] %vm2446, %v3159
    %3223 = vst.msk [vmem:[#allocation5 + $0xf8] sm:$0xf] %vm2446, %v3161
    %3224 = vst.msk [vmem:[#allocation5 + $0x10c] sm:$0xf] %vm2446, %v3163
    %3225 = vst.msk [vmem:[#allocation5 + $0x120] sm:$0xf] %vm2446, %v3165
    %3226 = vst.msk [vmem:[#allocation5 + $0x134] sm:$0xf] %vm2446, %v3167
    %3227 = vst.msk [vmem:[#allocation5 + $0x148] sm:$0xf] %vm2446, %v3169
    %3228 = vst.msk [vmem:[#allocation5 + $0x15c] sm:$0xf] %vm2446, %v3171
    %3229 = vst.msk [vmem:[#allocation5 + $0x170] sm:$0xf] %vm2446, %v3173
    %3230 = vst.msk [vmem:[#allocation5 + $0x184] sm:$0xf] %vm2446, %v3175
    %3231 = vst.msk [vmem:[#allocation5 + $0x198] sm:$0xf] %vm2446, %v3177
    %3232 = vst.msk [vmem:[#allocation5 + $0x1ac] sm:$0xf] %vm2446, %v3179
    %3233 = vst.msk [vmem:[#allocation5 + $0x1c0] sm:$0xf] %vm2446, %v3181
    %3234 = vst.msk [vmem:[#allocation5 + $0x1d4] sm:$0xf] %vm2446, %v3183
    %3235 = vst.msk [vmem:[#allocation5 + $0x1e8] sm:$0xf] %vm2446, %v3185
    %v3236 = vld [vmem:[#allocation4 + $0xc] sm:$0xe]
    %v3237 = vld [vmem:[#allocation4 + $0x10] sm:$0xf]
    %v3238 = vld [vmem:[#allocation4 + $0x14] sm:$0xf]
    %v3239 = vld [vmem:[#allocation4 + $0x18] sm:$0xf]
    %v3240 = vld [vmem:[#allocation4 + $0x1c] sm:$0xf]
    %v3241 = vld [vmem:[#allocation4 + $0x20] sm:$0xf]
    %v3242 = vld [vmem:[#allocation4 + $0x24] sm:$0xf]
    %v3243 = vld [vmem:[#allocation4 + $0x28] sm:$0xf]
    %v3244 = vld [vmem:[#allocation4 + $0x2c] sm:$0xf]
    %v3245 = vld [vmem:[#allocation4 + $0x30] sm:$0xf]
    %v3246 = vld [vmem:[#allocation4 + $0x34] sm:$0xf]
    %v3247 = vld [vmem:[#allocation4 + $0x38] sm:$0xf]
    %v3248 = vld [vmem:[#allocation4 + $0x3c] sm:$0xf]
    %v3249 = vld [vmem:[#allocation4 + $0x40] sm:$0xf]
    %v3250 = vld [vmem:[#allocation4 + $0x44] sm:$0xf]
    %v3251 = vld [vmem:[#allocation4 + $0x48] sm:$0xf]
    %v3252 = vld [vmem:[#allocation4 + $0x4c] sm:$0xf]
    %v3253 = vld [vmem:[#allocation4 + $0x50] sm:$0xf]
    %v3254 = vld [vmem:[#allocation4 + $0x54] sm:$0xf]
    %v3255 = vld [vmem:[#allocation4 + $0x58] sm:$0xf]
    %v3256 = vld [vmem:[#allocation4 + $0x5c] sm:$0xf]
    %v3257 = vld [vmem:[#allocation4 + $0x60] sm:$0xf]
    %v3258 = vld [vmem:[#allocation4 + $0x64] sm:$0xf]
    %v3259 = vld [vmem:[#allocation4 + $0x68] sm:$0xf]
    %v3260 = vld [vmem:[#allocation4 + $0x6c] sm:$0xf]
    %v3261 = vld [vmem:[#allocation4 + $0x70] sm:$0x1]
    %v3288 = vrot.slane %v3236, 5
    %v3289 = vrot.slane %v3288, 4
    %v3290 = vrot.slane %v3237, 5
    %v3291 = vsel %vm3059, %v3289, %v3290
    %v3292 = vrot.slane %v3290, 4
    %v3293 = vrot.slane %v3238, 5
    %v3294 = vsel %vm3059, %v3292, %v3293
    %v3295 = vrot.slane %v3293, 4
    %v3296 = vrot.slane %v3239, 5
    %v3297 = vsel %vm3059, %v3295, %v3296
    %v3298 = vrot.slane %v3296, 4
    %v3299 = vrot.slane %v3240, 5
    %v3300 = vsel %vm3059, %v3298, %v3299
    %v3301 = vrot.slane %v3299, 4
    %v3302 = vrot.slane %v3241, 5
    %v3303 = vsel %vm3059, %v3301, %v3302
    %v3304 = vrot.slane %v3302, 4
    %v3305 = vrot.slane %v3242, 5
    %v3306 = vsel %vm3059, %v3304, %v3305
    %v3307 = vrot.slane %v3305, 4
    %v3308 = vrot.slane %v3243, 5
    %v3309 = vsel %vm3059, %v3307, %v3308
    %v3310 = vrot.slane %v3308, 4
    %v3311 = vrot.slane %v3244, 5
    %v3312 = vsel %vm3059, %v3310, %v3311
    %v3313 = vrot.slane %v3311, 4
    %v3314 = vrot.slane %v3245, 5
    %v3315 = vsel %vm3059, %v3313, %v3314
    %v3316 = vrot.slane %v3314, 4
    %v3317 = vrot.slane %v3246, 5
    %v3318 = vsel %vm3059, %v3316, %v3317
    %v3319 = vrot.slane %v3317, 4
    %v3320 = vrot.slane %v3247, 5
    %v3321 = vsel %vm3059, %v3319, %v3320
    %v3322 = vrot.slane %v3320, 4
    %v3323 = vrot.slane %v3248, 5
    %v3324 = vsel %vm3059, %v3322, %v3323
    %v3325 = vrot.slane %v3323, 4
    %v3326 = vrot.slane %v3249, 5
    %v3327 = vsel %vm3059, %v3325, %v3326
    %v3328 = vrot.slane %v3326, 4
    %v3329 = vrot.slane %v3250, 5
    %v3330 = vsel %vm3059, %v3328, %v3329
    %v3331 = vrot.slane %v3329, 4
    %v3332 = vrot.slane %v3251, 5
    %v3333 = vsel %vm3059, %v3331, %v3332
    %v3334 = vrot.slane %v3332, 4
    %v3335 = vrot.slane %v3252, 5
    %v3336 = vsel %vm3059, %v3334, %v3335
    %v3337 = vrot.slane %v3335, 4
    %v3338 = vrot.slane %v3253, 5
    %v3339 = vsel %vm3059, %v3337, %v3338
    %v3340 = vrot.slane %v3338, 4
    %v3341 = vrot.slane %v3254, 5
    %v3342 = vsel %vm3059, %v3340, %v3341
    %v3343 = vrot.slane %v3341, 4
    %v3344 = vrot.slane %v3255, 5
    %v3345 = vsel %vm3059, %v3343, %v3344
    %v3346 = vrot.slane %v3344, 4
    %v3347 = vrot.slane %v3256, 5
    %v3348 = vsel %vm3059, %v3346, %v3347
    %v3349 = vrot.slane %v3347, 4
    %v3350 = vrot.slane %v3257, 5
    %v3351 = vsel %vm3059, %v3349, %v3350
    %v3352 = vrot.slane %v3350, 4
    %v3353 = vrot.slane %v3258, 5
    %v3354 = vsel %vm3059, %v3352, %v3353
    %v3355 = vrot.slane %v3353, 4
    %v3356 = vrot.slane %v3259, 5
    %v3357 = vsel %vm3059, %v3355, %v3356
    %v3358 = vrot.slane %v3356, 4
    %v3359 = vrot.slane %v3260, 5
    %v3360 = vsel %vm3059, %v3358, %v3359
    %v3361 = vrot.slane %v3359, 4
    %v3362 = vrot.slane %v3261, 5
    %v3363 = vsel %vm3059, %v3361, %v3362
    %3389 = vst.msk [vmem:[#allocation5 + $0xc] sm:$0xf] %vm1736, %v3291
    %3390 = vst.msk [vmem:[#allocation5 + $0x20] sm:$0xf] %vm1736, %v3294
    %3391 = vst.msk [vmem:[#allocation5 + $0x34] sm:$0xf] %vm1736, %v3297
    %3392 = vst.msk [vmem:[#allocation5 + $0x48] sm:$0xf] %vm1736, %v3300
    %3393 = vst.msk [vmem:[#allocation5 + $0x5c] sm:$0xf] %vm1736, %v3303
    %3394 = vst.msk [vmem:[#allocation5 + $0x70] sm:$0xf] %vm1736, %v3306
    %3395 = vst.msk [vmem:[#allocation5 + $0x84] sm:$0xf] %vm1736, %v3309
    %3396 = vst.msk [vmem:[#allocation5 + $0x98] sm:$0xf] %vm1736, %v3312
    %3397 = vst.msk [vmem:[#allocation5 + $0xac] sm:$0xf] %vm1736, %v3315
    %3398 = vst.msk [vmem:[#allocation5 + $0xc0] sm:$0xf] %vm1736, %v3318
    %3399 = vst.msk [vmem:[#allocation5 + $0xd4] sm:$0xf] %vm1736, %v3321
    %3400 = vst.msk [vmem:[#allocation5 + $0xe8] sm:$0xf] %vm1736, %v3324
    %3401 = vst.msk [vmem:[#allocation5 + $0xfc] sm:$0xf] %vm1736, %v3327
    %3402 = vst.msk [vmem:[#allocation5 + $0x110] sm:$0xf] %vm1736, %v3330
    %3403 = vst.msk [vmem:[#allocation5 + $0x124] sm:$0xf] %vm1736, %v3333
    %3404 = vst.msk [vmem:[#allocation5 + $0x138] sm:$0xf] %vm1736, %v3336
    %3405 = vst.msk [vmem:[#allocation5 + $0x14c] sm:$0xf] %vm1736, %v3339
    %3406 = vst.msk [vmem:[#allocation5 + $0x160] sm:$0xf] %vm1736, %v3342
    %3407 = vst.msk [vmem:[#allocation5 + $0x174] sm:$0xf] %vm1736, %v3345
    %3408 = vst.msk [vmem:[#allocation5 + $0x188] sm:$0xf] %vm1736, %v3348
    %3409 = vst.msk [vmem:[#allocation5 + $0x19c] sm:$0xf] %vm1736, %v3351
    %3410 = vst.msk [vmem:[#allocation5 + $0x1b0] sm:$0xf] %vm1736, %v3354
    %3411 = vst.msk [vmem:[#allocation5 + $0x1c4] sm:$0xf] %vm1736, %v3357
    %3412 = vst.msk [vmem:[#allocation5 + $0x1d8] sm:$0xf] %vm1736, %v3360
    %3413 = vst.msk [vmem:[#allocation5 + $0x1ec] sm:$0xf] %vm1736, %v3363
    %v3414 = vld [vmem:[#allocation4 + $0xc] sm:$0xe]
    %v3415 = vld [vmem:[#allocation4 + $0x10] sm:$0xf]
    %v3416 = vld [vmem:[#allocation4 + $0x14] sm:$0xf]
    %v3417 = vld [vmem:[#allocation4 + $0x18] sm:$0xf]
    %v3418 = vld [vmem:[#allocation4 + $0x1c] sm:$0xf]
    %v3419 = vld [vmem:[#allocation4 + $0x20] sm:$0xf]
    %v3420 = vld [vmem:[#allocation4 + $0x24] sm:$0xf]
    %v3421 = vld [vmem:[#allocation4 + $0x28] sm:$0xf]
    %v3422 = vld [vmem:[#allocation4 + $0x2c] sm:$0xf]
    %v3423 = vld [vmem:[#allocation4 + $0x30] sm:$0xf]
    %v3424 = vld [vmem:[#allocation4 + $0x34] sm:$0xf]
    %v3425 = vld [vmem:[#allocation4 + $0x38] sm:$0xf]
    %v3426 = vld [vmem:[#allocation4 + $0x3c] sm:$0xf]
    %v3427 = vld [vmem:[#allocation4 + $0x40] sm:$0xf]
    %v3428 = vld [vmem:[#allocation4 + $0x44] sm:$0xf]
    %v3429 = vld [vmem:[#allocation4 + $0x48] sm:$0xf]
    %v3430 = vld [vmem:[#allocation4 + $0x4c] sm:$0xf]
    %v3431 = vld [vmem:[#allocation4 + $0x50] sm:$0xf]
    %v3432 = vld [vmem:[#allocation4 + $0x54] sm:$0xf]
    %v3433 = vld [vmem:[#allocation4 + $0x58] sm:$0xf]
    %v3434 = vld [vmem:[#allocation4 + $0x5c] sm:$0xf]
    %v3435 = vld [vmem:[#allocation4 + $0x60] sm:$0xf]
    %v3436 = vld [vmem:[#allocation4 + $0x64] sm:$0xf]
    %v3437 = vld [vmem:[#allocation4 + $0x68] sm:$0xf]
    %v3438 = vld [vmem:[#allocation4 + $0x6c] sm:$0xf]
    %v3439 = vld [vmem:[#allocation4 + $0x70] sm:$0x3]
    %vm3440 = vsmask.f32 2304
    %vm3441 = vsmask.f32 6416
    %vm3442 = vmor %vm3440, %vm3441
    %v3444 = vshrl.u32 %v3414, 16
    %v3446 = vrot.slane %v3444, 5
    %v3447 = vshll.u32 %v3414, 16
    %v3449 = vrot.slane %v3447, 6
    %v3450 = vor.u32 %v3446, %v3449
    %v3451 = vrot.slane %v3450, 4
    %v3453 = vshrl.u32 %v3415, 16
    %v3455 = vrot.slane %v3453, 5
    %v3456 = vshll.u32 %v3415, 16
    %v3458 = vrot.slane %v3456, 6
    %v3459 = vor.u32 %v3455, %v3458
    %v3460 = vsel %vm3442, %v3451, %v3459
    %v3461 = vrot.slane %v3459, 4
    %v3463 = vshrl.u32 %v3416, 16
    %v3465 = vrot.slane %v3463, 5
    %v3466 = vshll.u32 %v3416, 16
    %v3468 = vrot.slane %v3466, 6
    %v3469 = vor.u32 %v3465, %v3468
    %v3470 = vsel %vm3442, %v3461, %v3469
    %v3471 = vrot.slane %v3469, 4
    %v3473 = vshrl.u32 %v3417, 16
    %v3475 = vrot.slane %v3473, 5
    %v3476 = vshll.u32 %v3417, 16
    %v3478 = vrot.slane %v3476, 6
    %v3479 = vor.u32 %v3475, %v3478
    %v3480 = vsel %vm3442, %v3471, %v3479
    %v3481 = vrot.slane %v3479, 4
    %v3483 = vshrl.u32 %v3418, 16
    %v3485 = vrot.slane %v3483, 5
    %v3486 = vshll.u32 %v3418, 16
    %v3488 = vrot.slane %v3486, 6
    %v3489 = vor.u32 %v3485, %v3488
    %v3490 = vsel %vm3442, %v3481, %v3489
    %v3491 = vrot.slane %v3489, 4
    %v3493 = vshrl.u32 %v3419, 16
    %v3495 = vrot.slane %v3493, 5
    %v3496 = vshll.u32 %v3419, 16
    %v3498 = vrot.slane %v3496, 6
    %v3499 = vor.u32 %v3495, %v3498
    %v3500 = vsel %vm3442, %v3491, %v3499
    %v3501 = vrot.slane %v3499, 4
    %v3503 = vshrl.u32 %v3420, 16
    %v3505 = vrot.slane %v3503, 5
    %v3506 = vshll.u32 %v3420, 16
    %v3508 = vrot.slane %v3506, 6
    %v3509 = vor.u32 %v3505, %v3508
    %v3510 = vsel %vm3442, %v3501, %v3509
    %v3511 = vrot.slane %v3509, 4
    %v3513 = vshrl.u32 %v3421, 16
    %v3515 = vrot.slane %v3513, 5
    %v3516 = vshll.u32 %v3421, 16
    %v3518 = vrot.slane %v3516, 6
    %v3519 = vor.u32 %v3515, %v3518
    %v3520 = vsel %vm3442, %v3511, %v3519
    %v3521 = vrot.slane %v3519, 4
    %v3523 = vshrl.u32 %v3422, 16
    %v3525 = vrot.slane %v3523, 5
    %v3526 = vshll.u32 %v3422, 16
    %v3528 = vrot.slane %v3526, 6
    %v3529 = vor.u32 %v3525, %v3528
    %v3530 = vsel %vm3442, %v3521, %v3529
    %v3531 = vrot.slane %v3529, 4
    %v3533 = vshrl.u32 %v3423, 16
    %v3535 = vrot.slane %v3533, 5
    %v3536 = vshll.u32 %v3423, 16
    %v3538 = vrot.slane %v3536, 6
    %v3539 = vor.u32 %v3535, %v3538
    %v3540 = vsel %vm3442, %v3531, %v3539
    %v3541 = vrot.slane %v3539, 4
    %v3543 = vshrl.u32 %v3424, 16
    %v3545 = vrot.slane %v3543, 5
    %v3546 = vshll.u32 %v3424, 16
    %v3548 = vrot.slane %v3546, 6
    %v3549 = vor.u32 %v3545, %v3548
    %v3550 = vsel %vm3442, %v3541, %v3549
    %v3551 = vrot.slane %v3549, 4
    %v3553 = vshrl.u32 %v3425, 16
    %v3555 = vrot.slane %v3553, 5
    %v3556 = vshll.u32 %v3425, 16
    %v3558 = vrot.slane %v3556, 6
    %v3559 = vor.u32 %v3555, %v3558
    %v3560 = vsel %vm3442, %v3551, %v3559
    %v3561 = vrot.slane %v3559, 4
    %v3563 = vshrl.u32 %v3426, 16
    %v3565 = vrot.slane %v3563, 5
    %v3566 = vshll.u32 %v3426, 16
    %v3568 = vrot.slane %v3566, 6
    %v3569 = vor.u32 %v3565, %v3568
    %v3570 = vsel %vm3442, %v3561, %v3569
    %v3571 = vrot.slane %v3569, 4
    %v3573 = vshrl.u32 %v3427, 16
    %v3575 = vrot.slane %v3573, 5
    %v3576 = vshll.u32 %v3427, 16
    %v3578 = vrot.slane %v3576, 6
    %v3579 = vor.u32 %v3575, %v3578
    %v3580 = vsel %vm3442, %v3571, %v3579
    %v3581 = vrot.slane %v3579, 4
    %v3583 = vshrl.u32 %v3428, 16
    %v3585 = vrot.slane %v3583, 5
    %v3586 = vshll.u32 %v3428, 16
    %v3588 = vrot.slane %v3586, 6
    %v3589 = vor.u32 %v3585, %v3588
    %v3590 = vsel %vm3442, %v3581, %v3589
    %v3591 = vrot.slane %v3589, 4
    %v3593 = vshrl.u32 %v3429, 16
    %v3595 = vrot.slane %v3593, 5
    %v3596 = vshll.u32 %v3429, 16
    %v3598 = vrot.slane %v3596, 6
    %v3599 = vor.u32 %v3595, %v3598
    %v3600 = vsel %vm3442, %v3591, %v3599
    %v3601 = vrot.slane %v3599, 4
    %v3603 = vshrl.u32 %v3430, 16
    %v3605 = vrot.slane %v3603, 5
    %v3606 = vshll.u32 %v3430, 16
    %v3608 = vrot.slane %v3606, 6
    %v3609 = vor.u32 %v3605, %v3608
    %v3610 = vsel %vm3442, %v3601, %v3609
    %v3611 = vrot.slane %v3609, 4
    %v3613 = vshrl.u32 %v3431, 16
    %v3615 = vrot.slane %v3613, 5
    %v3616 = vshll.u32 %v3431, 16
    %v3618 = vrot.slane %v3616, 6
    %v3619 = vor.u32 %v3615, %v3618
    %v3620 = vsel %vm3442, %v3611, %v3619
    %v3621 = vrot.slane %v3619, 4
    %v3623 = vshrl.u32 %v3432, 16
    %v3625 = vrot.slane %v3623, 5
    %v3626 = vshll.u32 %v3432, 16
    %v3628 = vrot.slane %v3626, 6
    %v3629 = vor.u32 %v3625, %v3628
    %v3630 = vsel %vm3442, %v3621, %v3629
    %v3631 = vrot.slane %v3629, 4
    %v3633 = vshrl.u32 %v3433, 16
    %v3635 = vrot.slane %v3633, 5
    %v3636 = vshll.u32 %v3433, 16
    %v3638 = vrot.slane %v3636, 6
    %v3639 = vor.u32 %v3635, %v3638
    %v3640 = vsel %vm3442, %v3631, %v3639
    %v3641 = vrot.slane %v3639, 4
    %v3643 = vshrl.u32 %v3434, 16
    %v3645 = vrot.slane %v3643, 5
    %v3646 = vshll.u32 %v3434, 16
    %v3648 = vrot.slane %v3646, 6
    %v3649 = vor.u32 %v3645, %v3648
    %v3650 = vsel %vm3442, %v3641, %v3649
    %v3651 = vrot.slane %v3649, 4
    %v3653 = vshrl.u32 %v3435, 16
    %v3655 = vrot.slane %v3653, 5
    %v3656 = vshll.u32 %v3435, 16
    %v3658 = vrot.slane %v3656, 6
    %v3659 = vor.u32 %v3655, %v3658
    %v3660 = vsel %vm3442, %v3651, %v3659
    %v3661 = vrot.slane %v3659, 4
    %v3663 = vshrl.u32 %v3436, 16
    %v3665 = vrot.slane %v3663, 5
    %v3666 = vshll.u32 %v3436, 16
    %v3668 = vrot.slane %v3666, 6
    %v3669 = vor.u32 %v3665, %v3668
    %v3670 = vsel %vm3442, %v3661, %v3669
    %v3671 = vrot.slane %v3669, 4
    %v3673 = vshrl.u32 %v3437, 16
    %v3675 = vrot.slane %v3673, 5
    %v3676 = vshll.u32 %v3437, 16
    %v3678 = vrot.slane %v3676, 6
    %v3679 = vor.u32 %v3675, %v3678
    %v3680 = vsel %vm3442, %v3671, %v3679
    %v3681 = vrot.slane %v3679, 4
    %v3683 = vshrl.u32 %v3438, 16
    %v3685 = vrot.slane %v3683, 5
    %v3686 = vshll.u32 %v3438, 16
    %v3688 = vrot.slane %v3686, 6
    %v3689 = vor.u32 %v3685, %v3688
    %v3690 = vsel %vm3442, %v3681, %v3689
    %v3691 = vrot.slane %v3689, 4
    %v3693 = vshrl.u32 %v3439, 16
    %v3695 = vrot.slane %v3693, 5
    %v3696 = vshll.u32 %v3439, 16
    %v3698 = vrot.slane %v3696, 6
    %v3699 = vor.u32 %v3695, %v3698
    %v3700 = vsel %vm3442, %v3691, %v3699
    %3701 = vrot.lane.b32.xlu0 %v3460, 64
    %v3702 = vpop.permute.xlu0 %3701
    %3703 = vrot.lane.b32.xlu0 %v3470, 64
    %v3704 = vpop.permute.xlu0 %3703
    %3705 = vrot.lane.b32.xlu0 %v3480, 64
    %v3706 = vpop.permute.xlu0 %3705
    %3707 = vrot.lane.b32.xlu0 %v3490, 64
    %v3708 = vpop.permute.xlu0 %3707
    %3709 = vrot.lane.b32.xlu0 %v3500, 64
    %v3710 = vpop.permute.xlu0 %3709
    %3711 = vrot.lane.b32.xlu0 %v3510, 64
    %v3712 = vpop.permute.xlu0 %3711
    %3713 = vrot.lane.b32.xlu0 %v3520, 64
    %v3714 = vpop.permute.xlu0 %3713
    %3715 = vrot.lane.b32.xlu0 %v3530, 64
    %v3716 = vpop.permute.xlu0 %3715
    %3717 = vrot.lane.b32.xlu0 %v3540, 64
    %v3718 = vpop.permute.xlu0 %3717
    %3719 = vrot.lane.b32.xlu0 %v3550, 64
    %v3720 = vpop.permute.xlu0 %3719
    %3721 = vrot.lane.b32.xlu0 %v3560, 64
    %v3722 = vpop.permute.xlu0 %3721
    %3723 = vrot.lane.b32.xlu0 %v3570, 64
    %v3724 = vpop.permute.xlu0 %3723
    %3725 = vrot.lane.b32.xlu0 %v3580, 64
    %v3726 = vpop.permute.xlu0 %3725
    %3727 = vrot.lane.b32.xlu0 %v3590, 64
    %v3728 = vpop.permute.xlu0 %3727
    %3729 = vrot.lane.b32.xlu0 %v3600, 64
    %v3730 = vpop.permute.xlu0 %3729
    %3731 = vrot.lane.b32.xlu0 %v3610, 64
    %v3732 = vpop.permute.xlu0 %3731
    %3733 = vrot.lane.b32.xlu0 %v3620, 64
    %v3734 = vpop.permute.xlu0 %3733
    %3735 = vrot.lane.b32.xlu0 %v3630, 64
    %v3736 = vpop.permute.xlu0 %3735
    %3737 = vrot.lane.b32.xlu0 %v3640, 64
    %v3738 = vpop.permute.xlu0 %3737
    %3739 = vrot.lane.b32.xlu0 %v3650, 64
    %v3740 = vpop.permute.xlu0 %3739
    %3741 = vrot.lane.b32.xlu0 %v3660, 64
    %v3742 = vpop.permute.xlu0 %3741
    %3743 = vrot.lane.b32.xlu0 %v3670, 64
    %v3744 = vpop.permute.xlu0 %3743
    %3745 = vrot.lane.b32.xlu0 %v3680, 64
    %v3746 = vpop.permute.xlu0 %3745
    %3747 = vrot.lane.b32.xlu0 %v3690, 64
    %v3748 = vpop.permute.xlu0 %3747
    %3749 = vrot.lane.b32.xlu0 %v3700, 64
    %v3750 = vpop.permute.xlu0 %3749
    %3776 = vst.msk [vmem:[#allocation5 + $0xc] sm:$0xf] %vm2446, %v3702
    %3777 = vst.msk [vmem:[#allocation5 + $0x20] sm:$0xf] %vm2446, %v3704
    %3778 = vst.msk [vmem:[#allocation5 + $0x34] sm:$0xf] %vm2446, %v3706
    %3779 = vst.msk [vmem:[#allocation5 + $0x48] sm:$0xf] %vm2446, %v3708
    %3780 = vst.msk [vmem:[#allocation5 + $0x5c] sm:$0xf] %vm2446, %v3710
    %3781 = vst.msk [vmem:[#allocation5 + $0x70] sm:$0xf] %vm2446, %v3712
    %3782 = vst.msk [vmem:[#allocation5 + $0x84] sm:$0xf] %vm2446, %v3714
    %3783 = vst.msk [vmem:[#allocation5 + $0x98] sm:$0xf] %vm2446, %v3716
    %3784 = vst.msk [vmem:[#allocation5 + $0xac] sm:$0xf] %vm2446, %v3718
    %3785 = vst.msk [vmem:[#allocation5 + $0xc0] sm:$0xf] %vm2446, %v3720
    %3786 = vst.msk [vmem:[#allocation5 + $0xd4] sm:$0xf] %vm2446, %v3722
    %3787 = vst.msk [vmem:[#allocation5 + $0xe8] sm:$0xf] %vm2446, %v3724
    %3788 = vst.msk [vmem:[#allocation5 + $0xfc] sm:$0xf] %vm2446, %v3726
    %3789 = vst.msk [vmem:[#allocation5 + $0x110] sm:$0xf] %vm2446, %v3728
    %3790 = vst.msk [vmem:[#allocation5 + $0x124] sm:$0xf] %vm2446, %v3730
    %3791 = vst.msk [vmem:[#allocation5 + $0x138] sm:$0xf] %vm2446, %v3732
    %3792 = vst.msk [vmem:[#allocation5 + $0x14c] sm:$0xf] %vm2446, %v3734
    %3793 = vst.msk [vmem:[#allocation5 + $0x160] sm:$0xf] %vm2446, %v3736
    %3794 = vst.msk [vmem:[#allocation5 + $0x174] sm:$0xf] %vm2446, %v3738
    %3795 = vst.msk [vmem:[#allocation5 + $0x188] sm:$0xf] %vm2446, %v3740
    %3796 = vst.msk [vmem:[#allocation5 + $0x19c] sm:$0xf] %vm2446, %v3742
    %3797 = vst.msk [vmem:[#allocation5 + $0x1b0] sm:$0xf] %vm2446, %v3744
    %3798 = vst.msk [vmem:[#allocation5 + $0x1c4] sm:$0xf] %vm2446, %v3746
    %3799 = vst.msk [vmem:[#allocation5 + $0x1d8] sm:$0xf] %vm2446, %v3748
    %3800 = vst.msk [vmem:[#allocation5 + $0x1ec] sm:$0xf] %vm2446, %v3750
    %v3801 = vld [vmem:[#allocation4 + $0xc] sm:$0xc]
    %v3802 = vld [vmem:[#allocation4 + $0x10] sm:$0xf]
    %v3803 = vld [vmem:[#allocation4 + $0x14] sm:$0xf]
    %v3804 = vld [vmem:[#allocation4 + $0x18] sm:$0xf]
    %v3805 = vld [vmem:[#allocation4 + $0x1c] sm:$0xf]
    %v3806 = vld [vmem:[#allocation4 + $0x20] sm:$0xf]
    %v3807 = vld [vmem:[#allocation4 + $0x24] sm:$0xf]
    %v3808 = vld [vmem:[#allocation4 + $0x28] sm:$0xf]
    %v3809 = vld [vmem:[#allocation4 + $0x2c] sm:$0xf]
    %v3810 = vld [vmem:[#allocation4 + $0x30] sm:$0xf]
    %v3811 = vld [vmem:[#allocation4 + $0x34] sm:$0xf]
    %v3812 = vld [vmem:[#allocation4 + $0x38] sm:$0xf]
    %v3813 = vld [vmem:[#allocation4 + $0x3c] sm:$0xf]
    %v3814 = vld [vmem:[#allocation4 + $0x40] sm:$0xf]
    %v3815 = vld [vmem:[#allocation4 + $0x44] sm:$0xf]
    %v3816 = vld [vmem:[#allocation4 + $0x48] sm:$0xf]
    %v3817 = vld [vmem:[#allocation4 + $0x4c] sm:$0xf]
    %v3818 = vld [vmem:[#allocation4 + $0x50] sm:$0xf]
    %v3819 = vld [vmem:[#allocation4 + $0x54] sm:$0xf]
    %v3820 = vld [vmem:[#allocation4 + $0x58] sm:$0xf]
    %v3821 = vld [vmem:[#allocation4 + $0x5c] sm:$0xf]
    %v3822 = vld [vmem:[#allocation4 + $0x60] sm:$0xf]
    %v3823 = vld [vmem:[#allocation4 + $0x64] sm:$0xf]
    %v3824 = vld [vmem:[#allocation4 + $0x68] sm:$0xf]
    %v3825 = vld [vmem:[#allocation4 + $0x6c] sm:$0xf]
    %v3826 = vld [vmem:[#allocation4 + $0x70] sm:$0x3]
    %vm3853 = vcmask 1041408
    %vm3854 = vcmask 1045508
    %vm3855 = vmor %vm3853, %vm3854
    %v3856 = vrot.slane %v3801, 6
    %v3857 = vrot.slane %v3856, 4
    %v3858 = vrot.slane %v3802, 6
    %v3859 = vsel %vm3855, %v3857, %v3858
    %v3860 = vrot.slane %v3858, 4
    %v3861 = vrot.slane %v3803, 6
    %v3862 = vsel %vm3855, %v3860, %v3861
    %v3863 = vrot.slane %v3861, 4
    %v3864 = vrot.slane %v3804, 6
    %v3865 = vsel %vm3855, %v3863, %v3864
    %v3866 = vrot.slane %v3864, 4
    %v3867 = vrot.slane %v3805, 6
    %v3868 = vsel %vm3855, %v3866, %v3867
    %v3869 = vrot.slane %v3867, 4
    %v3870 = vrot.slane %v3806, 6
    %v3871 = vsel %vm3855, %v3869, %v3870
    %v3872 = vrot.slane %v3870, 4
    %v3873 = vrot.slane %v3807, 6
    %v3874 = vsel %vm3855, %v3872, %v3873
    %v3875 = vrot.slane %v3873, 4
    %v3876 = vrot.slane %v3808, 6
    %v3877 = vsel %vm3855, %v3875, %v3876
    %v3878 = vrot.slane %v3876, 4
    %v3879 = vrot.slane %v3809, 6
    %v3880 = vsel %vm3855, %v3878, %v3879
    %v3881 = vrot.slane %v3879, 4
    %v3882 = vrot.slane %v3810, 6
    %v3883 = vsel %vm3855, %v3881, %v3882
    %v3884 = vrot.slane %v3882, 4
    %v3885 = vrot.slane %v3811, 6
    %v3886 = vsel %vm3855, %v3884, %v3885
    %v3887 = vrot.slane %v3885, 4
    %v3888 = vrot.slane %v3812, 6
    %v3889 = vsel %vm3855, %v3887, %v3888
    %v3890 = vrot.slane %v3888, 4
    %v3891 = vrot.slane %v3813, 6
    %v3892 = vsel %vm3855, %v3890, %v3891
    %v3893 = vrot.slane %v3891, 4
    %v3894 = vrot.slane %v3814, 6
    %v3895 = vsel %vm3855, %v3893, %v3894
    %v3896 = vrot.slane %v3894, 4
    %v3897 = vrot.slane %v3815, 6
    %v3898 = vsel %vm3855, %v3896, %v3897
    %v3899 = vrot.slane %v3897, 4
    %v3900 = vrot.slane %v3816, 6
    %v3901 = vsel %vm3855, %v3899, %v3900
    %v3902 = vrot.slane %v3900, 4
    %v3903 = vrot.slane %v3817, 6
    %v3904 = vsel %vm3855, %v3902, %v3903
    %v3905 = vrot.slane %v3903, 4
    %v3906 = vrot.slane %v3818, 6
    %v3907 = vsel %vm3855, %v3905, %v3906
    %v3908 = vrot.slane %v3906, 4
    %v3909 = vrot.slane %v3819, 6
    %v3910 = vsel %vm3855, %v3908, %v3909
    %v3911 = vrot.slane %v3909, 4
    %v3912 = vrot.slane %v3820, 6
    %v3913 = vsel %vm3855, %v3911, %v3912
    %v3914 = vrot.slane %v3912, 4
    %v3915 = vrot.slane %v3821, 6
    %v3916 = vsel %vm3855, %v3914, %v3915
    %v3917 = vrot.slane %v3915, 4
    %v3918 = vrot.slane %v3822, 6
    %v3919 = vsel %vm3855, %v3917, %v3918
    %v3920 = vrot.slane %v3918, 4
    %v3921 = vrot.slane %v3823, 6
    %v3922 = vsel %vm3855, %v3920, %v3921
    %v3923 = vrot.slane %v3921, 4
    %v3924 = vrot.slane %v3824, 6
    %v3925 = vsel %vm3855, %v3923, %v3924
    %v3926 = vrot.slane %v3924, 4
    %v3927 = vrot.slane %v3825, 6
    %v3928 = vsel %vm3855, %v3926, %v3927
    %v3929 = vrot.slane %v3927, 4
    %v3930 = vrot.slane %v3826, 6
    %v3931 = vsel %vm3855, %v3929, %v3930
    %3957 = vst.msk [vmem:[#allocation5 + $0x10] sm:$0xf] %vm1736, %v3859
    %3958 = vst.msk [vmem:[#allocation5 + $0x24] sm:$0xf] %vm1736, %v3862
    %3959 = vst.msk [vmem:[#allocation5 + $0x38] sm:$0xf] %vm1736, %v3865
    %3960 = vst.msk [vmem:[#allocation5 + $0x4c] sm:$0xf] %vm1736, %v3868
    %3961 = vst.msk [vmem:[#allocation5 + $0x60] sm:$0xf] %vm1736, %v3871
    %3962 = vst.msk [vmem:[#allocation5 + $0x74] sm:$0xf] %vm1736, %v3874
    %3963 = vst.msk [vmem:[#allocation5 + $0x88] sm:$0xf] %vm1736, %v3877
    %3964 = vst.msk [vmem:[#allocation5 + $0x9c] sm:$0xf] %vm1736, %v3880
    %3965 = vst.msk [vmem:[#allocation5 + $0xb0] sm:$0xf] %vm1736, %v3883
    %3966 = vst.msk [vmem:[#allocation5 + $0xc4] sm:$0xf] %vm1736, %v3886
    %3967 = vst.msk [vmem:[#allocation5 + $0xd8] sm:$0xf] %vm1736, %v3889
    %3968 = vst.msk [vmem:[#allocation5 + $0xec] sm:$0xf] %vm1736, %v3892
    %3969 = vst.msk [vmem:[#allocation5 + $0x100] sm:$0xf] %vm1736, %v3895
    %3970 = vst.msk [vmem:[#allocation5 + $0x114] sm:$0xf] %vm1736, %v3898
    %3971 = vst.msk [vmem:[#allocation5 + $0x128] sm:$0xf] %vm1736, %v3901
    %3972 = vst.msk [vmem:[#allocation5 + $0x13c] sm:$0xf] %vm1736, %v3904
    %3973 = vst.msk [vmem:[#allocation5 + $0x150] sm:$0xf] %vm1736, %v3907
    %3974 = vst.msk [vmem:[#allocation5 + $0x164] sm:$0xf] %vm1736, %v3910
    %3975 = vst.msk [vmem:[#allocation5 + $0x178] sm:$0xf] %vm1736, %v3913
    %3976 = vst.msk [vmem:[#allocation5 + $0x18c] sm:$0xf] %vm1736, %v3916
    %3977 = vst.msk [vmem:[#allocation5 + $0x1a0] sm:$0xf] %vm1736, %v3919
    %3978 = vst.msk [vmem:[#allocation5 + $0x1b4] sm:$0xf] %vm1736, %v3922
    %3979 = vst.msk [vmem:[#allocation5 + $0x1c8] sm:$0xf] %vm1736, %v3925
    %3980 = vst.msk [vmem:[#allocation5 + $0x1dc] sm:$0xf] %vm1736, %v3928
    %3981 = vst.msk [vmem:[#allocation5 + $0x1f0] sm:$0xf] %vm1736, %v3931
    %v3982 = vld [vmem:[#allocation5] sm:$0xff]
    %v3983 = vld [vmem:[#allocation5 + $0x8] sm:$0xff]
    %v3984 = vld [vmem:[#allocation5 + $0x10] sm:$0xf]
    %v3985 = vld [vmem:[#allocation5 + $0x14] sm:$0xff]
    %v3986 = vld [vmem:[#allocation5 + $0x1c] sm:$0xff]
    %v3987 = vld [vmem:[#allocation5 + $0x24] sm:$0xf]
    %v3988 = vld [vmem:[#allocation5 + $0x28] sm:$0xff]
    %v3989 = vld [vmem:[#allocation5 + $0x30] sm:$0xff]
    %v3990 = vld [vmem:[#allocation5 + $0x38] sm:$0xf]
    %v3991 = vld [vmem:[#allocation5 + $0x3c] sm:$0xff]
    %v3992 = vld [vmem:[#allocation5 + $0x44] sm:$0xff]
    %v3993 = vld [vmem:[#allocation5 + $0x4c] sm:$0xf]
    %v3994 = vld [vmem:[#allocation5 + $0x50] sm:$0xff]
    %v3995 = vld [vmem:[#allocation5 + $0x58] sm:$0xff]
    %v3996 = vld [vmem:[#allocation5 + $0x60] sm:$0xf]
    %v3997 = vld [vmem:[#allocation5 + $0x64] sm:$0xff]
    %v3998 = vld [vmem:[#allocation5 + $0x6c] sm:$0xff]
    %v3999 = vld [vmem:[#allocation5 + $0x74] sm:$0xf]
    %v4000 = vld [vmem:[#allocation5 + $0x78] sm:$0xff]
    %v4001 = vld [vmem:[#allocation5 + $0x80] sm:$0xff]
    %v4002 = vld [vmem:[#allocation5 + $0x88] sm:$0xf]
    %v4003 = vld [vmem:[#allocation5 + $0x8c] sm:$0xff]
    %v4004 = vld [vmem:[#allocation5 + $0x94] sm:$0xff]
    %v4005 = vld [vmem:[#allocation5 + $0x9c] sm:$0xf]
    %v4006 = vld [vmem:[#allocation5 + $0xa0] sm:$0xff]
    %v4007 = vld [vmem:[#allocation5 + $0xa8] sm:$0xff]
    %v4008 = vld [vmem:[#allocation5 + $0xb0] sm:$0xf]
    %v4009 = vld [vmem:[#allocation5 + $0xb4] sm:$0xff]
    %v4010 = vld [vmem:[#allocation5 + $0xbc] sm:$0xff]
    %v4011 = vld [vmem:[#allocation5 + $0xc4] sm:$0xf]
    %v4012 = vld [vmem:[#allocation5 + $0xc8] sm:$0xff]
    %v4013 = vld [vmem:[#allocation5 + $0xd0] sm:$0xff]
    %v4014 = vld [vmem:[#allocation5 + $0xd8] sm:$0xf]
    %v4015 = vld [vmem:[#allocation5 + $0xdc] sm:$0xff]
    %v4016 = vld [vmem:[#allocation5 + $0xe4] sm:$0xff]
    %v4017 = vld [vmem:[#allocation5 + $0xec] sm:$0xf]
    %v4018 = vld [vmem:[#allocation5 + $0xf0] sm:$0xff]
    %v4019 = vld [vmem:[#allocation5 + $0xf8] sm:$0xff]
    %v4020 = vld [vmem:[#allocation5 + $0x100] sm:$0xf]
    %v4021 = vld [vmem:[#allocation5 + $0x104] sm:$0xff]
    %v4022 = vld [vmem:[#allocation5 + $0x10c] sm:$0xff]
    %v4023 = vld [vmem:[#allocation5 + $0x114] sm:$0xf]
    %v4024 = vld [vmem:[#allocation5 + $0x118] sm:$0xff]
    %v4025 = vld [vmem:[#allocation5 + $0x120] sm:$0xff]
    %v4026 = vld [vmem:[#allocation5 + $0x128] sm:$0xf]
    %v4027 = vld [vmem:[#allocation5 + $0x12c] sm:$0xff]
    %v4028 = vld [vmem:[#allocation5 + $0x134] sm:$0xff]
    %v4029 = vld [vmem:[#allocation5 + $0x13c] sm:$0xf]
    %v4030 = vld [vmem:[#allocation5 + $0x140] sm:$0xff]
    %v4031 = vld [vmem:[#allocation5 + $0x148] sm:$0xff]
    %v4032 = vld [vmem:[#allocation5 + $0x150] sm:$0xf]
    %v4033 = vld [vmem:[#allocation5 + $0x154] sm:$0xff]
    %v4034 = vld [vmem:[#allocation5 + $0x15c] sm:$0xff]
    %v4035 = vld [vmem:[#allocation5 + $0x164] sm:$0xf]
    %v4036 = vld [vmem:[#allocation5 + $0x168] sm:$0xff]
    %v4037 = vld [vmem:[#allocation5 + $0x170] sm:$0xff]
    %v4038 = vld [vmem:[#allocation5 + $0x178] sm:$0xf]
    %v4039 = vld [vmem:[#allocation5 + $0x17c] sm:$0xff]
    %v4040 = vld [vmem:[#allocation5 + $0x184] sm:$0xff]
    %v4041 = vld [vmem:[#allocation5 + $0x18c] sm:$0xf]
    %v4042 = vld [vmem:[#allocation5 + $0x190] sm:$0xff]
    %v4043 = vld [vmem:[#allocation5 + $0x198] sm:$0xff]
    %v4044 = vld [vmem:[#allocation5 + $0x1a0] sm:$0xf]
    %v4045 = vld [vmem:[#allocation5 + $0x1a4] sm:$0xff]
    %v4046 = vld [vmem:[#allocation5 + $0x1ac] sm:$0xff]
    %v4047 = vld [vmem:[#allocation5 + $0x1b4] sm:$0xf]
    %v4048 = vld [vmem:[#allocation5 + $0x1b8] sm:$0xff]
    %v4049 = vld [vmem:[#allocation5 + $0x1c0] sm:$0xff]
    %v4050 = vld [vmem:[#allocation5 + $0x1c8] sm:$0xf]
    %v4051 = vld [vmem:[#allocation5 + $0x1cc] sm:$0xff]
    %v4052 = vld [vmem:[#allocation5 + $0x1d4] sm:$0xff]
    %v4053 = vld [vmem:[#allocation5 + $0x1dc] sm:$0xf]
    %v4054 = vld [vmem:[#allocation5 + $0x1e0] sm:$0xff]
    %v4055 = vld [vmem:[#allocation5 + $0x1e8] sm:$0xff]
    %v4056 = vld [vmem:[#allocation5 + $0x1f0] sm:$0xf]
    %v4057 = vld [vmem:[%s2] sm:$0xf]
    %v4058 = vld [vmem:[%s2 + $0x4] sm:$0xf]
    %v4059 = vld [vmem:[%s2 + $0x8] sm:$0xf]
    %v4060 = vld [vmem:[%s2 + $0xc] sm:$0xf]
    %v4061 = vld [vmem:[%s2 + $0x10] sm:$0xf]
    %v4062 = vld [vmem:[%s2 + $0x14] sm:$0xf]
    %v4063 = vld [vmem:[%s2 + $0x18] sm:$0xf]
    %v4064 = vld [vmem:[%s2 + $0x1c] sm:$0xf]
    %v4065 = vld [vmem:[%s2 + $0x20] sm:$0xf]
    %v4066 = vld [vmem:[%s2 + $0x24] sm:$0xf]
    %v4067 = vld [vmem:[%s2 + $0x28] sm:$0xf]
    %v4068 = vld [vmem:[%s2 + $0x2c] sm:$0xf]
    %v4069 = vld [vmem:[%s2 + $0x30] sm:$0xf]
    %v4070 = vld [vmem:[%s2 + $0x34] sm:$0xf]
    %v4071 = vld [vmem:[%s2 + $0x38] sm:$0xf]
    %v4072 = vld [vmem:[%s2 + $0x3c] sm:$0xf]
    %v4073 = vld [vmem:[%s2 + $0x40] sm:$0xf]
    %v4074 = vld [vmem:[%s2 + $0x44] sm:$0xf]
    %v4075 = vld [vmem:[%s2 + $0x48] sm:$0xf]
    %v4076 = vld [vmem:[%s2 + $0x4c] sm:$0xf]
    %v4077 = vld [vmem:[%s2 + $0x50] sm:$0xf]
    %v4078 = vld [vmem:[%s2 + $0x54] sm:$0xf]
    %v4079 = vld [vmem:[%s2 + $0x58] sm:$0xf]
    %v4080 = vld [vmem:[%s2 + $0x5c] sm:$0xf]
    %v4081 = vld [vmem:[%s2 + $0x60] sm:$0xf]
    %v4082 = vld [vmem:[%s2 + $0x64] sm:$0xf]
    %v4083 = vld [vmem:[%s2 + $0x68] sm:$0xf]
    %v4084 = vld [vmem:[%s2 + $0x6c] sm:$0xf]
    %v4085 = vld [vmem:[%s2 + $0x70] sm:$0xf]
    %v4086 = vld [vmem:[%s2 + $0x74] sm:$0xf]
    %v4087 = vld [vmem:[%s2 + $0x78] sm:$0xf]
    %v4088 = vld [vmem:[%s2 + $0x7c] sm:$0xf]
    %v4089 = vld [vmem:[%s2 + $0x80] sm:$0xf]
    %v4090 = vld [vmem:[%s2 + $0x84] sm:$0xf]
    %v4091 = vld [vmem:[%s2 + $0x88] sm:$0xf]
    %v4092 = vld [vmem:[%s2 + $0x8c] sm:$0xf]
    %v4093 = vld [vmem:[%s2 + $0x90] sm:$0xf]
    %v4094 = vld [vmem:[%s2 + $0x94] sm:$0xf]
    %v4095 = vld [vmem:[%s2 + $0x98] sm:$0xf]
    %v4096 = vld [vmem:[%s2 + $0x9c] sm:$0xf]
    %v4097 = vld [vmem:[%s2 + $0xa0] sm:$0xf]
    %v4098 = vld [vmem:[%s2 + $0xa4] sm:$0xf]
    %v4099 = vld [vmem:[%s2 + $0xa8] sm:$0xf]
    %v4100 = vld [vmem:[%s2 + $0xac] sm:$0xf]
    %v4101 = vld [vmem:[%s2 + $0xb0] sm:$0xf]
    %v4102 = vld [vmem:[%s2 + $0xb4] sm:$0xf]
    %v4103 = vld [vmem:[%s2 + $0xb8] sm:$0xf]
    %v4104 = vld [vmem:[%s2 + $0xbc] sm:$0xf]
    %v4105 = vld [vmem:[%s2 + $0xc0] sm:$0xf]
    %v4106 = vld [vmem:[%s2 + $0xc4] sm:$0xf]
    %v4107 = vld [vmem:[%s2 + $0xc8] sm:$0xf]
    %v4108 = vld [vmem:[%s2 + $0xcc] sm:$0xf]
    %v4109 = vld [vmem:[%s2 + $0xd0] sm:$0xf]
    %v4110 = vld [vmem:[%s2 + $0xd4] sm:$0xf]
    %v4111 = vld [vmem:[%s2 + $0xd8] sm:$0xf]
    %v4112 = vld [vmem:[%s2 + $0xdc] sm:$0xf]
    %v4113 = vld [vmem:[%s2 + $0xe0] sm:$0xf]
    %v4114 = vld [vmem:[%s2 + $0xe4] sm:$0xf]
    %v4115 = vld [vmem:[%s2 + $0xe8] sm:$0xf]
    %v4116 = vld [vmem:[%s2 + $0xec] sm:$0xf]
    %v4117 = vld [vmem:[%s2 + $0xf0] sm:$0xf]
    %v4118 = vld [vmem:[%s2 + $0xf4] sm:$0xf]
    %v4119 = vld [vmem:[%s2 + $0xf8] sm:$0xf]
    %v4120 = vld [vmem:[%s2 + $0xfc] sm:$0xf]
    %v4121 = vld [vmem:[%s2 + $0x100] sm:$0xf]
    %v4122 = vld [vmem:[%s2 + $0x104] sm:$0xf]
    %v4123 = vld [vmem:[%s2 + $0x108] sm:$0xf]
    %v4124 = vld [vmem:[%s2 + $0x10c] sm:$0xf]
    %v4125 = vld [vmem:[%s2 + $0x110] sm:$0xf]
    %v4126 = vld [vmem:[%s2 + $0x114] sm:$0xf]
    %v4127 = vld [vmem:[%s2 + $0x118] sm:$0xf]
    %v4128 = vld [vmem:[%s2 + $0x11c] sm:$0xf]
    %v4204 = vunpack.c.l.b16 %v3982
    %v4205 = vunpack.c.h.b16 %v3982
    %v4206 = vunpack.c.l.b16 %v3983
    %v4207 = vunpack.c.h.b16 %v3983
    %v4208 = vunpack.c.l.b16 %v3984
    %v4209 = vunpack.c.l.b16 %v3985
    %v4210 = vunpack.c.h.b16 %v3985
    %v4211 = vunpack.c.l.b16 %v3986
    %v4212 = vunpack.c.h.b16 %v3986
    %v4213 = vunpack.c.l.b16 %v3987
    %v4214 = vunpack.c.l.b16 %v3988
    %v4215 = vunpack.c.h.b16 %v3988
    %v4216 = vunpack.c.l.b16 %v3989
    %v4217 = vunpack.c.h.b16 %v3989
    %v4218 = vunpack.c.l.b16 %v3990
    %v4219 = vunpack.c.l.b16 %v3991
    %v4220 = vunpack.c.h.b16 %v3991
    %v4221 = vunpack.c.l.b16 %v3992
    %v4222 = vunpack.c.h.b16 %v3992
    %v4223 = vunpack.c.l.b16 %v3993
    %v4224 = vunpack.c.l.b16 %v3994
    %v4225 = vunpack.c.h.b16 %v3994
    %v4226 = vunpack.c.l.b16 %v3995
    %v4227 = vunpack.c.h.b16 %v3995
    %v4228 = vunpack.c.l.b16 %v3996
    %v4229 = vunpack.c.l.b16 %v3997
    %v4230 = vunpack.c.h.b16 %v3997
    %v4231 = vunpack.c.l.b16 %v3998
    %v4232 = vunpack.c.h.b16 %v3998
    %v4233 = vunpack.c.l.b16 %v3999
    %v4234 = vunpack.c.l.b16 %v4000
    %v4235 = vunpack.c.h.b16 %v4000
    %v4236 = vunpack.c.l.b16 %v4001
    %v4237 = vunpack.c.h.b16 %v4001
    %v4238 = vunpack.c.l.b16 %v4002
    %v4239 = vunpack.c.l.b16 %v4003
    %v4240 = vunpack.c.h.b16 %v4003
    %v4241 = vunpack.c.l.b16 %v4004
    %v4242 = vunpack.c.h.b16 %v4004
    %v4243 = vunpack.c.l.b16 %v4005
    %v4244 = vunpack.c.l.b16 %v4006
    %v4245 = vunpack.c.h.b16 %v4006
    %v4246 = vunpack.c.l.b16 %v4007
    %v4247 = vunpack.c.h.b16 %v4007
    %v4248 = vunpack.c.l.b16 %v4008
    %v4249 = vunpack.c.l.b16 %v4009
    %v4250 = vunpack.c.h.b16 %v4009
    %v4251 = vunpack.c.l.b16 %v4010
    %v4252 = vunpack.c.h.b16 %v4010
    %v4253 = vunpack.c.l.b16 %v4011
    %v4254 = vunpack.c.l.b16 %v4012
    %v4255 = vunpack.c.h.b16 %v4012
    %v4256 = vunpack.c.l.b16 %v4013
    %v4257 = vunpack.c.h.b16 %v4013
    %v4258 = vunpack.c.l.b16 %v4014
    %v4259 = vunpack.c.l.b16 %v4015
    %v4260 = vunpack.c.h.b16 %v4015
    %v4261 = vunpack.c.l.b16 %v4016
    %v4262 = vunpack.c.h.b16 %v4016
    %v4263 = vunpack.c.l.b16 %v4017
    %v4264 = vunpack.c.l.b16 %v4018
    %v4265 = vunpack.c.h.b16 %v4018
    %v4266 = vunpack.c.l.b16 %v4019
    %v4267 = vunpack.c.h.b16 %v4019
    %v4268 = vunpack.c.l.b16 %v4020
    %v4269 = vunpack.c.l.b16 %v4021
    %v4270 = vunpack.c.h.b16 %v4021
    %v4271 = vunpack.c.l.b16 %v4022
    %v4272 = vunpack.c.h.b16 %v4022
    %v4273 = vunpack.c.l.b16 %v4023
    %v4274 = vunpack.c.l.b16 %v4024
    %v4275 = vunpack.c.h.b16 %v4024
    %v4276 = vunpack.c.l.b16 %v4025
    %v4277 = vunpack.c.h.b16 %v4025
    %v4278 = vunpack.c.l.b16 %v4026
    %v4279 = vunpack.c.l.b16 %v4027
    %v4280 = vunpack.c.h.b16 %v4027
    %v4281 = vunpack.c.l.b16 %v4028
    %v4282 = vunpack.c.h.b16 %v4028
    %v4283 = vunpack.c.l.b16 %v4029
    %v4284 = vunpack.c.l.b16 %v4030
    %v4285 = vunpack.c.h.b16 %v4030
    %v4286 = vunpack.c.l.b16 %v4031
    %v4287 = vunpack.c.h.b16 %v4031
    %v4288 = vunpack.c.l.b16 %v4032
    %v4289 = vunpack.c.l.b16 %v4033
    %v4290 = vunpack.c.h.b16 %v4033
    %v4291 = vunpack.c.l.b16 %v4034
    %v4292 = vunpack.c.h.b16 %v4034
    %v4293 = vunpack.c.l.b16 %v4035
    %v4294 = vunpack.c.l.b16 %v4036
    %v4295 = vunpack.c.h.b16 %v4036
    %v4296 = vunpack.c.l.b16 %v4037
    %v4297 = vunpack.c.h.b16 %v4037
    %v4298 = vunpack.c.l.b16 %v4038
    %v4299 = vunpack.c.l.b16 %v4039
    %v4300 = vunpack.c.h.b16 %v4039
    %v4301 = vunpack.c.l.b16 %v4040
    %v4302 = vunpack.c.h.b16 %v4040
    %v4303 = vunpack.c.l.b16 %v4041
    %v4304 = vunpack.c.l.b16 %v4042
    %v4305 = vunpack.c.h.b16 %v4042
    %v4306 = vunpack.c.l.b16 %v4043
    %v4307 = vunpack.c.h.b16 %v4043
    %v4308 = vunpack.c.l.b16 %v4044
    %v4309 = vunpack.c.l.b16 %v4045
    %v4310 = vunpack.c.h.b16 %v4045
    %v4311 = vunpack.c.l.b16 %v4046
    %v4312 = vunpack.c.h.b16 %v4046
    %v4313 = vunpack.c.l.b16 %v4047
    %v4314 = vunpack.c.l.b16 %v4048
    %v4315 = vunpack.c.h.b16 %v4048
    %v4316 = vunpack.c.l.b16 %v4049
    %v4317 = vunpack.c.h.b16 %v4049
    %v4318 = vunpack.c.l.b16 %v4050
    %v4319 = vunpack.c.l.b16 %v4051
    %v4320 = vunpack.c.h.b16 %v4051
    %v4321 = vunpack.c.l.b16 %v4052
    %v4322 = vunpack.c.h.b16 %v4052
    %v4323 = vunpack.c.l.b16 %v4053
    %v4324 = vunpack.c.l.b16 %v4054
    %v4325 = vunpack.c.h.b16 %v4054
    %v4326 = vunpack.c.l.b16 %v4055
    %v4327 = vunpack.c.h.b16 %v4055
    %v4328 = vunpack.c.l.b16 %v4056
    %v4329 = vpack.c.b16 %v4209, %v4204
    %v4330 = vpack.c.b16 %v4210, %v4205
    %v4331 = vpack.c.b16 %v4211, %v4206
    %v4332 = vpack.c.b16 %v4212, %v4207
    %v4333 = vpack.c.b16 %v4213, %v4208
    %v4334 = vpack.c.b16 %v4219, %v4214
    %v4335 = vpack.c.b16 %v4220, %v4215
    %v4336 = vpack.c.b16 %v4221, %v4216
    %v4337 = vpack.c.b16 %v4222, %v4217
    %v4338 = vpack.c.b16 %v4223, %v4218
    %v4339 = vpack.c.b16 %v4229, %v4224
    %v4340 = vpack.c.b16 %v4230, %v4225
    %v4341 = vpack.c.b16 %v4231, %v4226
    %v4342 = vpack.c.b16 %v4232, %v4227
    %v4343 = vpack.c.b16 %v4233, %v4228
    %v4344 = vpack.c.b16 %v4239, %v4234
    %v4345 = vpack.c.b16 %v4240, %v4235
    %v4346 = vpack.c.b16 %v4241, %v4236
    %v4347 = vpack.c.b16 %v4242, %v4237
    %v4348 = vpack.c.b16 %v4243, %v4238
    %v4349 = vpack.c.b16 %v4249, %v4244
    %v4350 = vpack.c.b16 %v4250, %v4245
    %v4351 = vpack.c.b16 %v4251, %v4246
    %v4352 = vpack.c.b16 %v4252, %v4247
    %v4353 = vpack.c.b16 %v4253, %v4248
    %v4354 = vpack.c.b16 %v4259, %v4254
    %v4355 = vpack.c.b16 %v4260, %v4255
    %v4356 = vpack.c.b16 %v4261, %v4256
    %v4357 = vpack.c.b16 %v4262, %v4257
    %v4358 = vpack.c.b16 %v4263, %v4258
    %v4359 = vpack.c.b16 %v4269, %v4264
    %v4360 = vpack.c.b16 %v4270, %v4265
    %v4361 = vpack.c.b16 %v4271, %v4266
    %v4362 = vpack.c.b16 %v4272, %v4267
    %v4363 = vpack.c.b16 %v4273, %v4268
    %v4364 = vpack.c.b16 %v4279, %v4274
    %v4365 = vpack.c.b16 %v4280, %v4275
    %v4366 = vpack.c.b16 %v4281, %v4276
    %v4367 = vpack.c.b16 %v4282, %v4277
    %v4368 = vpack.c.b16 %v4283, %v4278
    %v4369 = vpack.c.b16 %v4289, %v4284
    %v4370 = vpack.c.b16 %v4290, %v4285
    %v4371 = vpack.c.b16 %v4291, %v4286
    %v4372 = vpack.c.b16 %v4292, %v4287
    %v4373 = vpack.c.b16 %v4293, %v4288
    %v4374 = vpack.c.b16 %v4299, %v4294
    %v4375 = vpack.c.b16 %v4300, %v4295
    %v4376 = vpack.c.b16 %v4301, %v4296
    %v4377 = vpack.c.b16 %v4302, %v4297
    %v4378 = vpack.c.b16 %v4303, %v4298
    %v4379 = vpack.c.b16 %v4309, %v4304
    %v4380 = vpack.c.b16 %v4310, %v4305
    %v4381 = vpack.c.b16 %v4311, %v4306
    %v4382 = vpack.c.b16 %v4312, %v4307
    %v4383 = vpack.c.b16 %v4313, %v4308
    %v4384 = vpack.c.b16 %v4319, %v4314
    %v4385 = vpack.c.b16 %v4320, %v4315
    %v4386 = vpack.c.b16 %v4321, %v4316
    %v4387 = vpack.c.b16 %v4322, %v4317
    %v4388 = vpack.c.b16 %v4323, %v4318
    %v4389 = vpack.c.b16 %v4324, %v4324
    %v4390 = vpack.c.b16 %v4325, %v4325
    %v4391 = vpack.c.b16 %v4326, %v4326
    %v4392 = vpack.c.b16 %v4327, %v4327
    %v4393 = vpack.c.b16 %v4328, %v4328
    %v4518 = vunpack.c.l.b16 %v4057
    %v4519 = vunpack.c.l.b16 %v4058
    %v4520 = vunpack.c.l.b16 %v4059
    %v4521 = vunpack.c.l.b16 %v4060
    %v4522 = vunpack.c.l.b16 %v4061
    %v4523 = vunpack.c.l.b16 %v4062
    %v4524 = vunpack.c.l.b16 %v4063
    %v4525 = vunpack.c.l.b16 %v4064
    %v4526 = vunpack.c.l.b16 %v4065
    %v4527 = vunpack.c.l.b16 %v4066
    %v4528 = vunpack.c.l.b16 %v4067
    %v4529 = vunpack.c.l.b16 %v4068
    %v4530 = vunpack.c.l.b16 %v4069
    %v4531 = vunpack.c.l.b16 %v4070
    %v4532 = vunpack.c.l.b16 %v4071
    %v4533 = vunpack.c.l.b16 %v4072
    %v4534 = vunpack.c.l.b16 %v4073
    %v4535 = vunpack.c.l.b16 %v4074
    %v4536 = vunpack.c.l.b16 %v4075
    %v4537 = vunpack.c.l.b16 %v4076
    %v4538 = vunpack.c.l.b16 %v4077
    %v4539 = vunpack.c.l.b16 %v4078
    %v4540 = vunpack.c.l.b16 %v4079
    %v4541 = vunpack.c.l.b16 %v4080
    %v4542 = vunpack.c.l.b16 %v4081
    %v4543 = vunpack.c.l.b16 %v4082
    %v4544 = vunpack.c.l.b16 %v4083
    %v4545 = vunpack.c.l.b16 %v4084
    %v4546 = vunpack.c.l.b16 %v4085
    %v4547 = vunpack.c.l.b16 %v4086
    %v4548 = vunpack.c.l.b16 %v4087
    %v4549 = vunpack.c.l.b16 %v4088
    %v4550 = vunpack.c.l.b16 %v4089
    %v4551 = vunpack.c.l.b16 %v4090
    %v4552 = vunpack.c.l.b16 %v4091
    %v4553 = vunpack.c.l.b16 %v4092
    %v4554 = vunpack.c.l.b16 %v4093
    %v4555 = vunpack.c.l.b16 %v4094
    %v4556 = vunpack.c.l.b16 %v4095
    %v4557 = vunpack.c.l.b16 %v4096
    %v4558 = vunpack.c.l.b16 %v4097
    %v4559 = vunpack.c.l.b16 %v4098
    %v4560 = vunpack.c.l.b16 %v4099
    %v4561 = vunpack.c.l.b16 %v4100
    %v4562 = vunpack.c.l.b16 %v4101
    %v4563 = vunpack.c.l.b16 %v4102
    %v4564 = vunpack.c.l.b16 %v4103
    %v4565 = vunpack.c.l.b16 %v4104
    %v4566 = vunpack.c.l.b16 %v4105
    %v4567 = vunpack.c.l.b16 %v4106
    %v4568 = vunpack.c.l.b16 %v4107
    %v4569 = vunpack.c.l.b16 %v4108
    %v4570 = vunpack.c.l.b16 %v4109
    %v4571 = vunpack.c.l.b16 %v4110
    %v4572 = vunpack.c.l.b16 %v4111
    %v4573 = vunpack.c.l.b16 %v4112
    %v4574 = vunpack.c.l.b16 %v4113
    %v4575 = vunpack.c.l.b16 %v4114
    %v4576 = vunpack.c.l.b16 %v4115
    %v4577 = vunpack.c.l.b16 %v4116
    %v4578 = vunpack.c.l.b16 %v4117
    %v4579 = vunpack.c.l.b16 %v4118
    %v4580 = vunpack.c.l.b16 %v4119
    %v4581 = vunpack.c.l.b16 %v4120
    %v4582 = vunpack.c.l.b16 %v4121
    %v4583 = vunpack.c.l.b16 %v4122
    %v4584 = vunpack.c.l.b16 %v4123
    %v4585 = vunpack.c.l.b16 %v4124
    %v4586 = vunpack.c.l.b16 %v4125
    %v4587 = vunpack.c.l.b16 %v4126
    %v4588 = vunpack.c.l.b16 %v4127
    %v4589 = vunpack.c.l.b16 %v4128
    %v4590 = vpack.c.b16 %v4519, %v4518
    %v4591 = vpack.c.b16 %v4521, %v4520
    %v4592 = vpack.c.b16 %v4523, %v4522
    %v4593 = vpack.c.b16 %v4525, %v4524
    %v4594 = vpack.c.b16 %v4527, %v4526
    %v4595 = vpack.c.b16 %v4529, %v4528
    %v4596 = vpack.c.b16 %v4531, %v4530
    %v4597 = vpack.c.b16 %v4533, %v4532
    %v4598 = vpack.c.b16 %v4535, %v4534
    %v4599 = vpack.c.b16 %v4537, %v4536
    %v4600 = vpack.c.b16 %v4539, %v4538
    %v4601 = vpack.c.b16 %v4541, %v4540
    %v4602 = vpack.c.b16 %v4543, %v4542
    %v4603 = vpack.c.b16 %v4545, %v4544
    %v4604 = vpack.c.b16 %v4547, %v4546
    %v4605 = vpack.c.b16 %v4549, %v4548
    %v4606 = vpack.c.b16 %v4551, %v4550
    %v4607 = vpack.c.b16 %v4553, %v4552
    %v4608 = vpack.c.b16 %v4555, %v4554
    %v4609 = vpack.c.b16 %v4557, %v4556
    %v4610 = vpack.c.b16 %v4559, %v4558
    %v4611 = vpack.c.b16 %v4561, %v4560
    %v4612 = vpack.c.b16 %v4563, %v4562
    %v4613 = vpack.c.b16 %v4565, %v4564
    %v4614 = vpack.c.b16 %v4567, %v4566
    %v4615 = vpack.c.b16 %v4569, %v4568
    %v4616 = vpack.c.b16 %v4571, %v4570
    %v4617 = vpack.c.b16 %v4573, %v4572
    %v4618 = vpack.c.b16 %v4575, %v4574
    %v4619 = vpack.c.b16 %v4577, %v4576
    %v4620 = vpack.c.b16 %v4579, %v4578
    %v4621 = vpack.c.b16 %v4581, %v4580
    %v4622 = vpack.c.b16 %v4583, %v4582
    %v4623 = vpack.c.b16 %v4585, %v4584
    %v4624 = vpack.c.b16 %v4587, %v4586
    %v4625 = vpack.c.b16 %v4589, %v4588
    %v4663 = vsel %vm680, %v4333, 0
    %v4666 = vsel %vm680, %v4338, 0
    %v4669 = vsel %vm680, %v4343, 0
    %v4672 = vsel %vm680, %v4348, 0
    %v4675 = vsel %vm680, %v4353, 0
    %v4678 = vsel %vm680, %v4358, 0
    %v4681 = vsel %vm680, %v4363, 0
    %v4684 = vsel %vm680, %v4368, 0
    %v4687 = vsel %vm680, %v4373, 0
    %v4690 = vsel %vm680, %v4378, 0
    %v4693 = vsel %vm680, %v4383, 0
    %v4696 = vsel %vm680, %v4388, 0
    %v4699 = vsel %vm680, %v4393, 0
    %4701 = vmatprep.subr.bf16.mxu0 0
    %4702 = vmatpush1.bf16.msra.mxu0 %v4590
    %4703 = vmatprep.subr.bf16.mxu0 0
    %4704 = vmatpush1.bf16.msra.mxu0 %v4591
    %4705 = vmatprep.subr.bf16.mxu0 0
    %4706 = vmatpush1.bf16.msra.mxu0 %v4592
    %4707 = vmatprep.subr.bf16.mxu0 0
    %4708 = vmatpush1.bf16.msra.mxu0 %v4593
    %4709 = vmatprep.subr.bf16.mxu0 0
    %4710 = vmatpush1.bf16.msra.mxu0 %v4594
    %4711 = vmatprep.subr.bf16.mxu0 0
    %4712 = vmatpush1.bf16.msra.mxu0 %v4595
    %4713 = vmatprep.subr.bf16.mxu0 0
    %4714 = vmatpush1.bf16.msra.mxu0 %v4596
    %4715 = vmatprep.subr.bf16.mxu0 0
    %4716 = vmatpush1.bf16.msra.mxu0 %v4597
    %4717 = vmatprep.subr.bf16.mxu0 0
    %4718 = vmatpush1.bf16.msra.mxu0 %v4598
    %4719 = vmatprep.subr.bf16.mxu0 0
    %4720 = vmatpush1.bf16.msra.mxu0 %v4599
    %4721 = vmatprep.subr.bf16.mxu0 0
    %4722 = vmatpush1.bf16.msra.mxu0 %v4600
    %4723 = vmatprep.subr.bf16.mxu0 0
    %4724 = vmatpush1.bf16.msra.mxu0 %v4601
    %4725 = vmatprep.subr.bf16.mxu0 0
    %4726 = vmatpush1.bf16.msra.mxu0 %v4602
    %4727 = vmatprep.subr.bf16.mxu0 0
    %4728 = vmatpush1.bf16.msra.mxu0 %v4603
    %4729 = vmatprep.subr.bf16.mxu0 0
    %4730 = vmatpush1.bf16.msra.mxu0 %v4604
    %4731 = vmatprep.subr.bf16.mxu0 0
    %4732 = vmatpush1.bf16.msra.mxu0 %v4605
    %4733 = vmatprep.mubr.bf16.mxu0 %v4330
    %4734 = vmatmul.mubr.bf16.gmra.mrb[0].mxu0 %v4329
    %v4735 = vpop.f32.mrb[0].mxu0
    %v4736 = vadd.f32 0.0, %v4735
    %v4737 = vpop.f32.mrb[0].mxu0
    %v4738 = vpop.f32.mrb[0].mxu0
    %v4739 = vadd.f32 0.0, %v4738
    %v4740 = vpop.f32.mrb[0].mxu0
    %4741 = vmatprep.mubr.bf16.mxu0 %v4335
    %4742 = vmatmul.mubr.bf16.gmra.mrb[0].mxu0 %v4334
    %v4743 = vpop.f32.mrb[0].mxu0
    %v4744 = vadd.f32 0.0, %v4743
    %v4745 = vpop.f32.mrb[0].mxu0
    %v4746 = vpop.f32.mrb[0].mxu0
    %v4747 = vadd.f32 0.0, %v4746
    %v4748 = vpop.f32.mrb[0].mxu0
    %4749 = vmatprep.mubr.bf16.mxu0 %v4340
    %4750 = vmatmul.mubr.bf16.gmra.mrb[0].mxu0 %v4339
    %v4751 = vpop.f32.mrb[0].mxu0
    %v4752 = vadd.f32 0.0, %v4751
    %v4753 = vpop.f32.mrb[0].mxu0
    %v4754 = vpop.f32.mrb[0].mxu0
    %v4755 = vadd.f32 0.0, %v4754
    %v4756 = vpop.f32.mrb[0].mxu0
    %4757 = vmatprep.mubr.bf16.mxu0 %v4345
    %4758 = vmatmul.mubr.bf16.gmra.mrb[0].mxu0 %v4344
    %v4759 = vpop.f32.mrb[0].mxu0
    %v4760 = vadd.f32 0.0, %v4759
    %v4761 = vpop.f32.mrb[0].mxu0
    %v4762 = vpop.f32.mrb[0].mxu0
    %v4763 = vadd.f32 0.0, %v4762
    %v4764 = vpop.f32.mrb[0].mxu0
    %4765 = vmatprep.mubr.bf16.mxu0 %v4350
    %4766 = vmatmul.mubr.bf16.gmra.mrb[0].mxu0 %v4349
    %v4767 = vpop.f32.mrb[0].mxu0
    %v4768 = vadd.f32 0.0, %v4767
    %v4769 = vpop.f32.mrb[0].mxu0
    %v4770 = vpop.f32.mrb[0].mxu0
    %v4771 = vadd.f32 0.0, %v4770
    %v4772 = vpop.f32.mrb[0].mxu0
    %4773 = vmatprep.mubr.bf16.mxu0 %v4355
    %4774 = vmatmul.mubr.bf16.gmra.mrb[0].mxu0 %v4354
    %v4775 = vpop.f32.mrb[0].mxu0
    %v4776 = vadd.f32 0.0, %v4775
    %v4777 = vpop.f32.mrb[0].mxu0
    %v4778 = vpop.f32.mrb[0].mxu0
    %v4779 = vadd.f32 0.0, %v4778
    %v4780 = vpop.f32.mrb[0].mxu0
    %4781 = vmatprep.mubr.bf16.mxu0 %v4360
    %4782 = vmatmul.mubr.bf16.gmra.mrb[0].mxu0 %v4359
    %v4783 = vpop.f32.mrb[0].mxu0
    %v4784 = vadd.f32 0.0, %v4783
    %v4785 = vpop.f32.mrb[0].mxu0
    %v4786 = vpop.f32.mrb[0].mxu0
    %v4787 = vadd.f32 0.0, %v4786
    %v4788 = vpop.f32.mrb[0].mxu0
    %4789 = vmatprep.mubr.bf16.mxu0 %v4365
    %4790 = vmatmul.mubr.bf16.gmra.mrb[0].mxu0 %v4364
    %v4791 = vpop.f32.mrb[0].mxu0
    %v4792 = vadd.f32 0.0, %v4791
    %v4793 = vpop.f32.mrb[0].mxu0
    %v4794 = vpop.f32.mrb[0].mxu0
    %v4795 = vadd.f32 0.0, %v4794
    %v4796 = vpop.f32.mrb[0].mxu0
    %4797 = vmatprep.mubr.bf16.mxu0 %v4370
    %4798 = vmatmul.mubr.bf16.gmra.mrb[0].mxu0 %v4369
    %v4799 = vpop.f32.mrb[0].mxu0
    %v4800 = vadd.f32 0.0, %v4799
    %v4801 = vpop.f32.mrb[0].mxu0
    %v4802 = vpop.f32.mrb[0].mxu0
    %v4803 = vadd.f32 0.0, %v4802
    %v4804 = vpop.f32.mrb[0].mxu0
    %4805 = vmatprep.mubr.bf16.mxu0 %v4375
    %4806 = vmatmul.mubr.bf16.gmra.mrb[0].mxu0 %v4374
    %v4807 = vpop.f32.mrb[0].mxu0
    %v4808 = vadd.f32 0.0, %v4807
    %v4809 = vpop.f32.mrb[0].mxu0
    %v4810 = vpop.f32.mrb[0].mxu0
    %v4811 = vadd.f32 0.0, %v4810
    %v4812 = vpop.f32.mrb[0].mxu0
    %4813 = vmatprep.mubr.bf16.mxu0 %v4380
    %4814 = vmatmul.mubr.bf16.gmra.mrb[0].mxu0 %v4379
    %v4815 = vpop.f32.mrb[0].mxu0
    %v4816 = vadd.f32 0.0, %v4815
    %v4817 = vpop.f32.mrb[0].mxu0
    %v4818 = vpop.f32.mrb[0].mxu0
    %v4819 = vadd.f32 0.0, %v4818
    %v4820 = vpop.f32.mrb[0].mxu0
    %4821 = vmatprep.mubr.bf16.mxu0 %v4385
    %4822 = vmatmul.mubr.bf16.gmra.mrb[0].mxu0 %v4384
    %v4823 = vpop.f32.mrb[0].mxu0
    %v4824 = vadd.f32 0.0, %v4823
    %v4825 = vpop.f32.mrb[0].mxu0
    %v4826 = vpop.f32.mrb[0].mxu0
    %v4827 = vadd.f32 0.0, %v4826
    %v4828 = vpop.f32.mrb[0].mxu0
    %4829 = vmatprep.mubr.bf16.mxu0 %v4390
    %4830 = vmatmul.mubr.bf16.gmra.mrb[0].mxu0 %v4389
    %v4831 = vpop.f32.mrb[0].mxu0
    %v4832 = vadd.f32 0.0, %v4831
    %v4833 = vpop.f32.mrb[0].mxu0
    %v4834 = vpop.f32.mrb[0].mxu0
    %v4835 = vpop.f32.mrb[0].mxu0
    %4836 = vdwg.mxu0
    %4837 = vmatprep.subr.bf16.mxu0 0
    %4838 = vmatpush1.bf16.msra.mxu0 %v4606
    %4839 = vmatprep.subr.bf16.mxu0 0
    %4840 = vmatpush1.bf16.msra.mxu0 %v4607
    %4841 = vmatprep.subr.bf16.mxu0 0
    %4842 = vmatpush1.bf16.msra.mxu0 %v4608
    %4843 = vmatprep.subr.bf16.mxu0 0
    %4844 = vmatpush1.bf16.msra.mxu0 %v4609
    %4845 = vmatprep.subr.bf16.mxu0 0
    %4846 = vmatpush1.bf16.msra.mxu0 %v4610
    %4847 = vmatprep.subr.bf16.mxu0 0
    %4848 = vmatpush1.bf16.msra.mxu0 %v4611
    %4849 = vmatprep.subr.bf16.mxu0 0
    %4850 = vmatpush1.bf16.msra.mxu0 %v4612
    %4851 = vmatprep.subr.bf16.mxu0 0
    %4852 = vmatpush1.bf16.msra.mxu0 %v4613
    %4853 = vmatprep.subr.bf16.mxu0 0
    %4854 = vmatpush1.bf16.msra.mxu0 %v4614
    %4855 = vmatprep.subr.bf16.mxu0 0
    %4856 = vmatpush1.bf16.msra.mxu0 %v4615
    %4857 = vmatprep.subr.bf16.mxu0 0
    %4858 = vmatpush1.bf16.msra.mxu0 %v4616
    %4859 = vmatprep.subr.bf16.mxu0 0
    %4860 = vmatpush1.bf16.msra.mxu0 %v4617
    %4861 = vmatprep.subr.bf16.mxu0 0
    %4862 = vmatpush1.bf16.msra.mxu0 %v4618
    %4863 = vmatprep.subr.bf16.mxu0 0
    %4864 = vmatpush1.bf16.msra.mxu0 %v4619
    %4865 = vmatprep.subr.bf16.mxu0 0
    %4866 = vmatpush1.bf16.msra.mxu0 %v4620
    %4867 = vmatprep.subr.bf16.mxu0 0
    %4868 = vmatpush1.bf16.msra.mxu0 %v4621
    %4869 = vmatprep.mubr.bf16.mxu0 %v4332
    %4870 = vmatmul.mubr.bf16.gmra.mrb[0].mxu0 %v4331
    %v4871 = vpop.f32.mrb[0].mxu0
    %v4872 = vadd.f32 %v4736, %v4871
    %v4873 = vpop.f32.mrb[0].mxu0
    %v4874 = vpop.f32.mrb[0].mxu0
    %v4875 = vadd.f32 %v4739, %v4874
    %v4876 = vpop.f32.mrb[0].mxu0
    %4877 = vmatprep.mubr.bf16.mxu0 %v4337
    %4878 = vmatmul.mubr.bf16.gmra.mrb[0].mxu0 %v4336
    %v4879 = vpop.f32.mrb[0].mxu0
    %v4880 = vadd.f32 %v4744, %v4879
    %v4881 = vpop.f32.mrb[0].mxu0
    %v4882 = vpop.f32.mrb[0].mxu0
    %v4883 = vadd.f32 %v4747, %v4882
    %v4884 = vpop.f32.mrb[0].mxu0
    %4885 = vmatprep.mubr.bf16.mxu0 %v4342
    %4886 = vmatmul.mubr.bf16.gmra.mrb[0].mxu0 %v4341
    %v4887 = vpop.f32.mrb[0].mxu0
    %v4888 = vadd.f32 %v4752, %v4887
    %v4889 = vpop.f32.mrb[0].mxu0
    %v4890 = vpop.f32.mrb[0].mxu0
    %v4891 = vadd.f32 %v4755, %v4890
    %v4892 = vpop.f32.mrb[0].mxu0
    %4893 = vmatprep.mubr.bf16.mxu0 %v4347
    %4894 = vmatmul.mubr.bf16.gmra.mrb[0].mxu0 %v4346
    %v4895 = vpop.f32.mrb[0].mxu0
    %v4896 = vadd.f32 %v4760, %v4895
    %v4897 = vpop.f32.mrb[0].mxu0
    %v4898 = vpop.f32.mrb[0].mxu0
    %v4899 = vadd.f32 %v4763, %v4898
    %v4900 = vpop.f32.mrb[0].mxu0
    %4901 = vmatprep.mubr.bf16.mxu0 %v4352
    %4902 = vmatmul.mubr.bf16.gmra.mrb[0].mxu0 %v4351
    %v4903 = vpop.f32.mrb[0].mxu0
    %v4904 = vadd.f32 %v4768, %v4903
    %v4905 = vpop.f32.mrb[0].mxu0
    %v4906 = vpop.f32.mrb[0].mxu0
    %v4907 = vadd.f32 %v4771, %v4906
    %v4908 = vpop.f32.mrb[0].mxu0
    %4909 = vmatprep.mubr.bf16.mxu0 %v4357
    %4910 = vmatmul.mubr.bf16.gmra.mrb[0].mxu0 %v4356
    %v4911 = vpop.f32.mrb[0].mxu0
    %v4912 = vadd.f32 %v4776, %v4911
    %v4913 = vpop.f32.mrb[0].mxu0
    %v4914 = vpop.f32.mrb[0].mxu0
    %v4915 = vadd.f32 %v4779, %v4914
    %v4916 = vpop.f32.mrb[0].mxu0
    %4917 = vmatprep.mubr.bf16.mxu0 %v4362
    %4918 = vmatmul.mubr.bf16.gmra.mrb[0].mxu0 %v4361
    %v4919 = vpop.f32.mrb[0].mxu0
    %v4920 = vadd.f32 %v4784, %v4919
    %v4921 = vpop.f32.mrb[0].mxu0
    %v4922 = vpop.f32.mrb[0].mxu0
    %v4923 = vadd.f32 %v4787, %v4922
    %v4924 = vpop.f32.mrb[0].mxu0
    %4925 = vmatprep.mubr.bf16.mxu0 %v4367
    %4926 = vmatmul.mubr.bf16.gmra.mrb[0].mxu0 %v4366
    %v4927 = vpop.f32.mrb[0].mxu0
    %v4928 = vadd.f32 %v4792, %v4927
    %v4929 = vpop.f32.mrb[0].mxu0
    %v4930 = vpop.f32.mrb[0].mxu0
    %v4931 = vadd.f32 %v4795, %v4930
    %v4932 = vpop.f32.mrb[0].mxu0
    %4933 = vmatprep.mubr.bf16.mxu0 %v4372
    %4934 = vmatmul.mubr.bf16.gmra.mrb[0].mxu0 %v4371
    %v4935 = vpop.f32.mrb[0].mxu0
    %v4936 = vadd.f32 %v4800, %v4935
    %v4937 = vpop.f32.mrb[0].mxu0
    %v4938 = vpop.f32.mrb[0].mxu0
    %v4939 = vadd.f32 %v4803, %v4938
    %v4940 = vpop.f32.mrb[0].mxu0
    %4941 = vmatprep.mubr.bf16.mxu0 %v4377
    %4942 = vmatmul.mubr.bf16.gmra.mrb[0].mxu0 %v4376
    %v4943 = vpop.f32.mrb[0].mxu0
    %v4944 = vadd.f32 %v4808, %v4943
    %v4945 = vpop.f32.mrb[0].mxu0
    %v4946 = vpop.f32.mrb[0].mxu0
    %v4947 = vadd.f32 %v4811, %v4946
    %v4948 = vpop.f32.mrb[0].mxu0
    %4949 = vmatprep.mubr.bf16.mxu0 %v4382
    %4950 = vmatmul.mubr.bf16.gmra.mrb[0].mxu0 %v4381
    %v4951 = vpop.f32.mrb[0].mxu0
    %v4952 = vadd.f32 %v4816, %v4951
    %v4953 = vpop.f32.mrb[0].mxu0
    %v4954 = vpop.f32.mrb[0].mxu0
    %v4955 = vadd.f32 %v4819, %v4954
    %v4956 = vpop.f32.mrb[0].mxu0
    %4957 = vmatprep.mubr.bf16.mxu0 %v4387
    %4958 = vmatmul.mubr.bf16.gmra.mrb[0].mxu0 %v4386
    %v4959 = vpop.f32.mrb[0].mxu0
    %v4960 = vadd.f32 %v4824, %v4959
    %v4961 = vpop.f32.mrb[0].mxu0
    %v4962 = vpop.f32.mrb[0].mxu0
    %v4963 = vadd.f32 %v4827, %v4962
    %v4964 = vpop.f32.mrb[0].mxu0
    %4965 = vmatprep.mubr.bf16.mxu0 %v4392
    %4966 = vmatmul.mubr.bf16.gmra.mrb[0].mxu0 %v4391
    %v4967 = vpop.f32.mrb[0].mxu0
    %v4968 = vadd.f32 %v4832, %v4967
    %v4969 = vpop.f32.mrb[0].mxu0
    %v4970 = vpop.f32.mrb[0].mxu0
    %v4971 = vpop.f32.mrb[0].mxu0
    %4972 = vdwg.mxu0
    %4973 = vmatprep.subr.bf16.mxu0 0
    %4974 = vmatpush1.bf16.msra.mxu0 %v4622
    %4975 = vmatprep.subr.bf16.mxu0 0
    %4976 = vmatpush1.bf16.msra.mxu0 %v4623
    %4977 = vmatprep.subr.bf16.mxu0 0
    %4978 = vmatpush1.bf16.msra.mxu0 %v4624
    %4979 = vmatprep.subr.bf16.mxu0 0
    %4980 = vmatpush1.bf16.msra.mxu0 %v4625
    %4981 = vmatprep.subr.bf16.mxu0 0
    %4982 = vmatpush1.bf16.msra.mxu0 0
    %4983 = vmatprep.subr.bf16.mxu0 0
    %4984 = vmatpush1.bf16.msra.mxu0 0
    %4985 = vmatprep.subr.bf16.mxu0 0
    %4986 = vmatpush1.bf16.msra.mxu0 0
    %4987 = vmatprep.subr.bf16.mxu0 0
    %4988 = vmatpush1.bf16.msra.mxu0 0
    %4989 = vmatprep.subr.bf16.mxu0 0
    %4990 = vmatpush1.bf16.msra.mxu0 0
    %4991 = vmatprep.subr.bf16.mxu0 0
    %4992 = vmatpush1.bf16.msra.mxu0 0
    %4993 = vmatprep.subr.bf16.mxu0 0
    %4994 = vmatpush1.bf16.msra.mxu0 0
    %4995 = vmatprep.subr.bf16.mxu0 0
    %4996 = vmatpush1.bf16.msra.mxu0 0
    %4997 = vmatprep.subr.bf16.mxu0 0
    %4998 = vmatpush1.bf16.msra.mxu0 0
    %4999 = vmatprep.subr.bf16.mxu0 0
    %5000 = vmatpush1.bf16.msra.mxu0 0
    %5001 = vmatprep.subr.bf16.mxu0 0
    %5002 = vmatpush1.bf16.msra.mxu0 0
    %5003 = vmatprep.subr.bf16.mxu0 0
    %5004 = vmatpush1.bf16.msra.mxu0 0
    %5005 = vmatprep.mubr.bf16.mxu0 0
    %5006 = vmatmul.mubr.bf16.gmra.mrb[0].mxu0 %v4663
    %v5007 = vpop.f32.mrb[0].mxu0
    %v5008 = vadd.f32 %v4872, %v5007
    %v5009 = vpop.f32.mrb[0].mxu0
    %v5010 = vpop.f32.mrb[0].mxu0
    %v5011 = vadd.f32 %v4875, %v5010
    %v5012 = vpop.f32.mrb[0].mxu0
    %5013 = vmatprep.mubr.bf16.mxu0 0
    %5014 = vmatmul.mubr.bf16.gmra.mrb[0].mxu0 %v4666
    %v5015 = vpop.f32.mrb[0].mxu0
    %v5016 = vadd.f32 %v4880, %v5015
    %v5017 = vpop.f32.mrb[0].mxu0
    %v5018 = vpop.f32.mrb[0].mxu0
    %v5019 = vadd.f32 %v4883, %v5018
    %v5020 = vpop.f32.mrb[0].mxu0
    %5021 = vmatprep.mubr.bf16.mxu0 0
    %5022 = vmatmul.mubr.bf16.gmra.mrb[0].mxu0 %v4669
    %v5023 = vpop.f32.mrb[0].mxu0
    %v5024 = vadd.f32 %v4888, %v5023
    %v5025 = vpop.f32.mrb[0].mxu0
    %v5026 = vpop.f32.mrb[0].mxu0
    %v5027 = vadd.f32 %v4891, %v5026
    %v5028 = vpop.f32.mrb[0].mxu0
    %5029 = vmatprep.mubr.bf16.mxu0 0
    %5030 = vmatmul.mubr.bf16.gmra.mrb[0].mxu0 %v4672
    %v5031 = vpop.f32.mrb[0].mxu0
    %v5032 = vadd.f32 %v4896, %v5031
    %v5033 = vpop.f32.mrb[0].mxu0
    %v5034 = vpop.f32.mrb[0].mxu0
    %v5035 = vadd.f32 %v4899, %v5034
    %v5036 = vpop.f32.mrb[0].mxu0
    %5037 = vmatprep.mubr.bf16.mxu0 0
    %5038 = vmatmul.mubr.bf16.gmra.mrb[0].mxu0 %v4675
    %v5039 = vpop.f32.mrb[0].mxu0
    %v5040 = vadd.f32 %v4904, %v5039
    %v5041 = vpop.f32.mrb[0].mxu0
    %v5042 = vpop.f32.mrb[0].mxu0
    %v5043 = vadd.f32 %v4907, %v5042
    %v5044 = vpop.f32.mrb[0].mxu0
    %5045 = vmatprep.mubr.bf16.mxu0 0
    %5046 = vmatmul.mubr.bf16.gmra.mrb[0].mxu0 %v4678
    %v5047 = vpop.f32.mrb[0].mxu0
    %v5048 = vadd.f32 %v4912, %v5047
    %v5049 = vpop.f32.mrb[0].mxu0
    %v5050 = vpop.f32.mrb[0].mxu0
    %v5051 = vadd.f32 %v4915, %v5050
    %v5052 = vpop.f32.mrb[0].mxu0
    %5053 = vmatprep.mubr.bf16.mxu0 0
    %5054 = vmatmul.mubr.bf16.gmra.mrb[0].mxu0 %v4681
    %v5055 = vpop.f32.mrb[0].mxu0
    %v5056 = vadd.f32 %v4920, %v5055
    %v5057 = vpop.f32.mrb[0].mxu0
    %v5058 = vpop.f32.mrb[0].mxu0
    %v5059 = vadd.f32 %v4923, %v5058
    %v5060 = vpop.f32.mrb[0].mxu0
    %5061 = vmatprep.mubr.bf16.mxu0 0
    %5062 = vmatmul.mubr.bf16.gmra.mrb[0].mxu0 %v4684
    %v5063 = vpop.f32.mrb[0].mxu0
    %v5064 = vadd.f32 %v4928, %v5063
    %v5065 = vpop.f32.mrb[0].mxu0
    %v5066 = vpop.f32.mrb[0].mxu0
    %v5067 = vadd.f32 %v4931, %v5066
    %v5068 = vpop.f32.mrb[0].mxu0
    %5069 = vmatprep.mubr.bf16.mxu0 0
    %5070 = vmatmul.mubr.bf16.gmra.mrb[0].mxu0 %v4687
    %v5071 = vpop.f32.mrb[0].mxu0
    %v5072 = vadd.f32 %v4936, %v5071
    %v5073 = vpop.f32.mrb[0].mxu0
    %v5074 = vpop.f32.mrb[0].mxu0
    %v5075 = vadd.f32 %v4939, %v5074
    %v5076 = vpop.f32.mrb[0].mxu0
    %5077 = vmatprep.mubr.bf16.mxu0 0
    %5078 = vmatmul.mubr.bf16.gmra.mrb[0].mxu0 %v4690
    %v5079 = vpop.f32.mrb[0].mxu0
    %v5080 = vadd.f32 %v4944, %v5079
    %v5081 = vpop.f32.mrb[0].mxu0
    %v5082 = vpop.f32.mrb[0].mxu0
    %v5083 = vadd.f32 %v4947, %v5082
    %v5084 = vpop.f32.mrb[0].mxu0
    %5085 = vmatprep.mubr.bf16.mxu0 0
    %5086 = vmatmul.mubr.bf16.gmra.mrb[0].mxu0 %v4693
    %v5087 = vpop.f32.mrb[0].mxu0
    %v5088 = vadd.f32 %v4952, %v5087
    %v5089 = vpop.f32.mrb[0].mxu0
    %v5090 = vpop.f32.mrb[0].mxu0
    %v5091 = vadd.f32 %v4955, %v5090
    %v5092 = vpop.f32.mrb[0].mxu0
    %5093 = vmatprep.mubr.bf16.mxu0 0
    %5094 = vmatmul.mubr.bf16.gmra.mrb[0].mxu0 %v4696
    %v5095 = vpop.f32.mrb[0].mxu0
    %v5096 = vadd.f32 %v4960, %v5095
    %v5097 = vpop.f32.mrb[0].mxu0
    %v5098 = vpop.f32.mrb[0].mxu0
    %v5099 = vadd.f32 %v4963, %v5098
    %v5100 = vpop.f32.mrb[0].mxu0
    %5101 = vmatprep.mubr.bf16.mxu0 0
    %5102 = vmatmul.mubr.bf16.gmra.mrb[0].mxu0 %v4699
    %v5103 = vpop.f32.mrb[0].mxu0
    %v5104 = vadd.f32 %v4968, %v5103
    %v5105 = vpop.f32.mrb[0].mxu0
    %v5106 = vpop.f32.mrb[0].mxu0
    %v5107 = vpop.f32.mrb[0].mxu0
    %5108 = vdwg.mxu0
    %v5109 = vlaneseq
    %v5110 = vand.u32 %v5109, 127
    %v5111 = vadd.s32 %v5110, 128
    %vm5112 = vcmp.ge.s32.totalorder %v5110, 11
    %vm5113 = vcmp.ge.s32.totalorder %v5111, 11
    %vm5114 = vcmp.le.s32.totalorder %v5110, 18
    %vm5115 = vcmp.le.s32.totalorder %v5111, 18
    %vm5116 = vmand %vm5112, %vm5114
    %vm5117 = vmand %vm5113, %vm5115
    %vm5118 = vcmp.ge.s32.totalorder %v5110, 21
    %vm5119 = vcmp.ge.s32.totalorder %v5111, 21
    %vm5120 = vcmp.le.s32.totalorder %v5110, 28
    %vm5121 = vcmp.le.s32.totalorder %v5111, 28
    %vm5122 = vmand %vm5118, %vm5120
    %vm5123 = vmand %vm5119, %vm5121
    %vm5124 = vmor %vm5116, %vm5122
    %vm5125 = vmor %vm5117, %vm5123
    %vm5126 = vcmp.ge.s32.totalorder %v5110, 31
    %vm5127 = vcmp.ge.s32.totalorder %v5111, 31
    %vm5128 = vcmp.le.s32.totalorder %v5110, 38
    %vm5129 = vcmp.le.s32.totalorder %v5111, 38
    %vm5130 = vmand %vm5126, %vm5128
    %vm5131 = vmand %vm5127, %vm5129
    %vm5132 = vmor %vm5124, %vm5130
    %vm5133 = vmor %vm5125, %vm5131
    %vm5134 = vcmp.ge.s32.totalorder %v5110, 41
    %vm5135 = vcmp.ge.s32.totalorder %v5111, 41
    %vm5136 = vcmp.le.s32.totalorder %v5110, 48
    %vm5137 = vcmp.le.s32.totalorder %v5111, 48
    %vm5138 = vmand %vm5134, %vm5136
    %vm5139 = vmand %vm5135, %vm5137
    %vm5140 = vmor %vm5132, %vm5138
    %vm5141 = vmor %vm5133, %vm5139
    %vm5142 = vcmp.ge.s32.totalorder %v5110, 51
    %vm5143 = vcmp.ge.s32.totalorder %v5111, 51
    %vm5144 = vcmp.le.s32.totalorder %v5110, 58
    %vm5145 = vcmp.le.s32.totalorder %v5111, 58
    %vm5146 = vmand %vm5142, %vm5144
    %vm5147 = vmand %vm5143, %vm5145
    %vm5148 = vmor %vm5140, %vm5146
    %vm5149 = vmor %vm5141, %vm5147
    %vm5150 = vcmp.ge.s32.totalorder %v5110, 61
    %vm5151 = vcmp.ge.s32.totalorder %v5111, 61
    %vm5152 = vcmp.le.s32.totalorder %v5110, 68
    %vm5153 = vcmp.le.s32.totalorder %v5111, 68
    %vm5154 = vmand %vm5150, %vm5152
    %vm5155 = vmand %vm5151, %vm5153
    %vm5156 = vmor %vm5148, %vm5154
    %vm5157 = vmor %vm5149, %vm5155
    %vm5158 = vcmp.ge.s32.totalorder %v5110, 71
    %vm5159 = vcmp.ge.s32.totalorder %v5111, 71
    %vm5160 = vcmp.le.s32.totalorder %v5110, 78
    %vm5161 = vcmp.le.s32.totalorder %v5111, 78
    %vm5162 = vmand %vm5158, %vm5160
    %vm5163 = vmand %vm5159, %vm5161
    %vm5164 = vmor %vm5156, %vm5162
    %vm5165 = vmor %vm5157, %vm5163
    %vm5166 = vcmp.ge.s32.totalorder %v5110, 81
    %vm5167 = vcmp.ge.s32.totalorder %v5111, 81
    %vm5168 = vcmp.le.s32.totalorder %v5110, 88
    %vm5169 = vcmp.le.s32.totalorder %v5111, 88
    %vm5170 = vmand %vm5166, %vm5168
    %vm5171 = vmand %vm5167, %vm5169
    %vm5172 = vmor %vm5164, %vm5170
    %vm5173 = vmor %vm5165, %vm5171
    %vm5174 = vcmp.ge.s32.totalorder %v5110, 111
    %vm5175 = vcmp.ge.s32.totalorder %v5111, 111
    %vm5176 = vcmp.le.s32.totalorder %v5110, 118
    %vm5177 = vcmp.le.s32.totalorder %v5111, 118
    %vm5178 = vmand %vm5174, %vm5176
    %vm5179 = vmand %vm5175, %vm5177
    %vm5180 = vmor %vm5172, %vm5178
    %vm5181 = vmor %vm5173, %vm5179
    %vm5182 = vcmp.ge.s32.totalorder %v5110, 121
    %vm5183 = vcmp.ge.s32.totalorder %v5111, 121
    %vm5184 = vcmp.le.s32.totalorder %v5110, 128
    %vm5185 = vcmp.le.s32.totalorder %v5111, 128
    %vm5186 = vmand %vm5182, %vm5184
    %vm5187 = vmand %vm5183, %vm5185
    %vm5188 = vmor %vm5180, %vm5186
    %vm5189 = vmor %vm5181, %vm5187
    %vm5190 = vcmp.ge.s32.totalorder %v5110, 131
    %vm5191 = vcmp.ge.s32.totalorder %v5111, 131
    %vm5192 = vcmp.le.s32.totalorder %v5110, 138
    %vm5193 = vcmp.le.s32.totalorder %v5111, 138
    %vm5194 = vmand %vm5190, %vm5192
    %vm5195 = vmand %vm5191, %vm5193
    %vm5196 = vmor %vm5188, %vm5194
    %vm5197 = vmor %vm5189, %vm5195
    %vm5198 = vcmp.ge.s32.totalorder %v5110, 141
    %vm5199 = vcmp.ge.s32.totalorder %v5111, 141
    %vm5200 = vcmp.le.s32.totalorder %v5110, 148
    %vm5201 = vcmp.le.s32.totalorder %v5111, 148
    %vm5202 = vmand %vm5198, %vm5200
    %vm5203 = vmand %vm5199, %vm5201
    %vm5204 = vmor %vm5196, %vm5202
    %vm5205 = vmor %vm5197, %vm5203
    %vm5206 = vcmp.ge.s32.totalorder %v5110, 151
    %vm5207 = vcmp.ge.s32.totalorder %v5111, 151
    %vm5208 = vcmp.le.s32.totalorder %v5110, 158
    %vm5209 = vcmp.le.s32.totalorder %v5111, 158
    %vm5210 = vmand %vm5206, %vm5208
    %vm5211 = vmand %vm5207, %vm5209
    %vm5212 = vmor %vm5204, %vm5210
    %vm5213 = vmor %vm5205, %vm5211
    %vm5214 = vcmp.ge.s32.totalorder %v5110, 161
    %vm5215 = vcmp.ge.s32.totalorder %v5111, 161
    %vm5216 = vcmp.le.s32.totalorder %v5110, 168
    %vm5217 = vcmp.le.s32.totalorder %v5111, 168
    %vm5218 = vmand %vm5214, %vm5216
    %vm5219 = vmand %vm5215, %vm5217
    %vm5220 = vmor %vm5212, %vm5218
    %vm5221 = vmor %vm5213, %vm5219
    %vm5222 = vcmp.ge.s32.totalorder %v5110, 171
    %vm5223 = vcmp.ge.s32.totalorder %v5111, 171
    %vm5224 = vcmp.le.s32.totalorder %v5110, 178
    %vm5225 = vcmp.le.s32.totalorder %v5111, 178
    %vm5226 = vmand %vm5222, %vm5224
    %vm5227 = vmand %vm5223, %vm5225
    %vm5228 = vmor %vm5220, %vm5226
    %vm5229 = vmor %vm5221, %vm5227
    %vm5230 = vcmp.ge.s32.totalorder %v5110, 181
    %vm5231 = vcmp.ge.s32.totalorder %v5111, 181
    %vm5232 = vcmp.le.s32.totalorder %v5110, 188
    %vm5233 = vcmp.le.s32.totalorder %v5111, 188
    %vm5234 = vmand %vm5230, %vm5232
    %vm5235 = vmand %vm5231, %vm5233
    %vm5236 = vmor %vm5228, %vm5234
    %vm5237 = vmor %vm5229, %vm5235
    %v5238 = vsel %vm5236, 1, 0
    %v5239 = vsel %vm5237, 1, 0
    %v5240 = vcvt.s32.f32 %v5238
    %v5241 = vcvt.s32.f32 %v5239
    %vm5242 = vcmask 588800
    %v5244 = vsel %vm5242, %v5241, 0
    %5246 = vmatprep.subr.mxu0 0.0
    %5247 = vmatpush1.msra.mxu0 %v5008
    %5248 = vmatprep.subr.mxu0 0.0
    %5249 = vmatpush1.msra.mxu0 %v5011
    %5250 = vmatprep.subr.mxu0 0.0
    %5251 = vmatpush1.msra.mxu0 %v5016
    %5252 = vmatprep.subr.mxu0 0.0
    %5253 = vmatpush1.msra.mxu0 %v5019
    %5254 = vmatprep.subr.mxu0 0.0
    %5255 = vmatpush1.msra.mxu0 %v5024
    %5256 = vmatprep.subr.mxu0 0.0
    %5257 = vmatpush1.msra.mxu0 %v5027
    %5258 = vmatprep.subr.mxu0 0.0
    %5259 = vmatpush1.msra.mxu0 %v5032
    %5260 = vmatprep.subr.mxu0 0.0
    %5261 = vmatpush1.msra.mxu0 %v5035
    %5262 = vmatprep.subr.mxu0 0.0
    %5263 = vmatpush1.msra.mxu0 %v5040
    %5264 = vmatprep.subr.mxu0 0.0
    %5265 = vmatpush1.msra.mxu0 %v5043
    %5266 = vmatprep.subr.mxu0 0.0
    %5267 = vmatpush1.msra.mxu0 %v5048
    %5268 = vmatprep.subr.mxu0 0.0
    %5269 = vmatpush1.msra.mxu0 %v5051
    %5270 = vmatprep.subr.mxu0 0.0
    %5271 = vmatpush1.msra.mxu0 %v5056
    %5272 = vmatprep.subr.mxu0 0.0
    %5273 = vmatpush1.msra.mxu0 %v5059
    %5274 = vmatprep.subr.mxu0 0.0
    %5275 = vmatpush1.msra.mxu0 %v5064
    %5276 = vmatprep.subr.mxu0 0.0
    %5277 = vmatpush1.msra.mxu0 %v5067
    %5278 = vmatprep.subr.mxu0 0.0
    %5279 = vmatpush1.msra.mxu0 %v5072
    %5280 = vmatprep.subr.mxu0 0.0
    %5281 = vmatpush1.msra.mxu0 %v5075
    %5282 = vmatprep.subr.mxu0 0.0
    %5283 = vmatpush1.msra.mxu0 %v5080
    %5284 = vmatprep.subr.mxu0 0.0
    %5285 = vmatpush1.msra.mxu0 %v5083
    %5286 = vmatprep.subr.mxu0 0.0
    %5287 = vmatpush1.msra.mxu0 %v5088
    %5288 = vmatprep.subr.mxu0 0.0
    %5289 = vmatpush1.msra.mxu0 %v5091
    %5290 = vmatprep.subr.mxu0 0.0
    %5291 = vmatpush1.msra.mxu0 %v5096
    %5292 = vmatprep.subr.mxu0 0.0
    %5293 = vmatpush1.msra.mxu0 %v5099
    %5294 = vmatprep.subr.mxu0 0.0
    %5295 = vmatpush1.msra.mxu0 %v5104
    %5296 = vmatprep.subr.mxu0 0.0
    %5297 = vmatpush1.msra.mxu0 0.0
    %5298 = vmatprep.subr.mxu0 0.0
    %5299 = vmatpush1.msra.mxu0 0.0
    %5300 = vmatprep.subr.mxu0 0.0
    %5301 = vmatpush1.msra.mxu0 0.0
    %5302 = vmatprep.subr.mxu0 0.0
    %5303 = vmatpush1.msra.mxu0 0.0
    %5304 = vmatprep.subr.mxu0 0.0
    %5305 = vmatpush1.msra.mxu0 0.0
    %5306 = vmatprep.subr.mxu0 0.0
    %5307 = vmatpush1.msra.mxu0 0.0
    %5308 = vmatprep.subr.mxu0 0.0
    %5309 = vmatpush1.msra.mxu0 0.0
    %5310 = vmatprep.mubr.f32.mxu0 %v5244
    %5311 = vmatmul.mubr.f32.gmra.mrb[0].mxu0 %v5240
    %v5312 = vpop.f32.mrb[0].mxu0
    %v5313 = vadd.f32 0.0, %v5312
    %v5314 = vpop.f32.mrb[0].mxu0
    %5315 = vdwg.mxu0
    %v5316 = vmul.f32 %v5008, %v5008
    %v5317 = vmul.f32 %v5011, %v5011
    %v5318 = vmul.f32 %v5016, %v5016
    %v5319 = vmul.f32 %v5019, %v5019
    %v5320 = vmul.f32 %v5024, %v5024
    %v5321 = vmul.f32 %v5027, %v5027
    %v5322 = vmul.f32 %v5032, %v5032
    %v5323 = vmul.f32 %v5035, %v5035
    %v5324 = vmul.f32 %v5040, %v5040
    %v5325 = vmul.f32 %v5043, %v5043
    %v5326 = vmul.f32 %v5048, %v5048
    %v5327 = vmul.f32 %v5051, %v5051
    %v5328 = vmul.f32 %v5056, %v5056
    %v5329 = vmul.f32 %v5059, %v5059
    %v5330 = vmul.f32 %v5064, %v5064
    %v5331 = vmul.f32 %v5067, %v5067
    %v5332 = vmul.f32 %v5072, %v5072
    %v5333 = vmul.f32 %v5075, %v5075
    %v5334 = vmul.f32 %v5080, %v5080
    %v5335 = vmul.f32 %v5083, %v5083
    %v5336 = vmul.f32 %v5088, %v5088
    %v5337 = vmul.f32 %v5091, %v5091
    %v5338 = vmul.f32 %v5096, %v5096
    %v5339 = vmul.f32 %v5099, %v5099
    %v5340 = vmul.f32 %v5104, %v5104
    %5341 = vmatprep.subr.mxu0 0.0
    %5342 = vmatpush1.msra.mxu0 %v5316
    %5343 = vmatprep.subr.mxu0 0.0
    %5344 = vmatpush1.msra.mxu0 %v5317
    %5345 = vmatprep.subr.mxu0 0.0
    %5346 = vmatpush1.msra.mxu0 %v5318
    %5347 = vmatprep.subr.mxu0 0.0
    %5348 = vmatpush1.msra.mxu0 %v5319
    %5349 = vmatprep.subr.mxu0 0.0
    %5350 = vmatpush1.msra.mxu0 %v5320
    %5351 = vmatprep.subr.mxu0 0.0
    %5352 = vmatpush1.msra.mxu0 %v5321
    %5353 = vmatprep.subr.mxu0 0.0
    %5354 = vmatpush1.msra.mxu0 %v5322
    %5355 = vmatprep.subr.mxu0 0.0
    %5356 = vmatpush1.msra.mxu0 %v5323
    %5357 = vmatprep.subr.mxu0 0.0
    %5358 = vmatpush1.msra.mxu0 %v5324
    %5359 = vmatprep.subr.mxu0 0.0
    %5360 = vmatpush1.msra.mxu0 %v5325
    %5361 = vmatprep.subr.mxu0 0.0
    %5362 = vmatpush1.msra.mxu0 %v5326
    %5363 = vmatprep.subr.mxu0 0.0
    %5364 = vmatpush1.msra.mxu0 %v5327
    %5365 = vmatprep.subr.mxu0 0.0
    %5366 = vmatpush1.msra.mxu0 %v5328
    %5367 = vmatprep.subr.mxu0 0.0
    %5368 = vmatpush1.msra.mxu0 %v5329
    %5369 = vmatprep.subr.mxu0 0.0
    %5370 = vmatpush1.msra.mxu0 %v5330
    %5371 = vmatprep.subr.mxu0 0.0
    %5372 = vmatpush1.msra.mxu0 %v5331
    %5373 = vmatprep.subr.mxu0 0.0
    %5374 = vmatpush1.msra.mxu0 %v5332
    %5375 = vmatprep.subr.mxu0 0.0
    %5376 = vmatpush1.msra.mxu0 %v5333
    %5377 = vmatprep.subr.mxu0 0.0
    %5378 = vmatpush1.msra.mxu0 %v5334
    %5379 = vmatprep.subr.mxu0 0.0
    %5380 = vmatpush1.msra.mxu0 %v5335
    %5381 = vmatprep.subr.mxu0 0.0
    %5382 = vmatpush1.msra.mxu0 %v5336
    %5383 = vmatprep.subr.mxu0 0.0
    %5384 = vmatpush1.msra.mxu0 %v5337
    %5385 = vmatprep.subr.mxu0 0.0
    %5386 = vmatpush1.msra.mxu0 %v5338
    %5387 = vmatprep.subr.mxu0 0.0
    %5388 = vmatpush1.msra.mxu0 %v5339
    %5389 = vmatprep.subr.mxu0 0.0
    %5390 = vmatpush1.msra.mxu0 %v5340
    %5391 = vmatprep.subr.mxu0 0.0
    %5392 = vmatpush1.msra.mxu0 0.0
    %5393 = vmatprep.subr.mxu0 0.0
    %5394 = vmatpush1.msra.mxu0 0.0
    %5395 = vmatprep.subr.mxu0 0.0
    %5396 = vmatpush1.msra.mxu0 0.0
    %5397 = vmatprep.subr.mxu0 0.0
    %5398 = vmatpush1.msra.mxu0 0.0
    %5399 = vmatprep.subr.mxu0 0.0
    %5400 = vmatpush1.msra.mxu0 0.0
    %5401 = vmatprep.subr.mxu0 0.0
    %5402 = vmatpush1.msra.mxu0 0.0
    %5403 = vmatprep.subr.mxu0 0.0
    %5404 = vmatpush1.msra.mxu0 0.0
    %5405 = vmatprep.mubr.f32.mxu0 %v5244
    %5406 = vmatmul.mubr.f32.gmra.mrb[0].mxu0 %v5240
    %v5407 = vpop.f32.mrb[0].mxu0
    %v5408 = vadd.f32 0.0, %v5407
    %v5409 = vpop.f32.mrb[0].mxu0
    %5410 = vdwg.mxu0
    %v5411 = vmul.f32 %v5313, 0.0078125
    %v5412 = vmul.f32 %v5408, 0.0078125
    %v5413 = vmul.f32 %v5411, %v5411
    %v5414 = vsub.f32 %v5412, %v5413
    %v5415 = vmax.f32 %v5414, 0.0
    %v5416 = vlaneseq
    %v5417 = vshrl.u32 %v5416, 7
    %v5418 = vsub.s32 0, %v5417
    %v5419 = vrot.slane %v5411, %v5418
    %v5420 = vsub.f32 %v5008, %v5419
    %v5421 = vsub.f32 %v5011, %v5419
    %v5422 = vsub.f32 %v5016, %v5419
    %v5423 = vsub.f32 %v5019, %v5419
    %v5424 = vsub.f32 %v5024, %v5419
    %v5425 = vsub.f32 %v5027, %v5419
    %v5426 = vsub.f32 %v5032, %v5419
    %v5427 = vsub.f32 %v5035, %v5419
    %v5428 = vsub.f32 %v5040, %v5419
    %v5429 = vsub.f32 %v5043, %v5419
    %v5430 = vsub.f32 %v5048, %v5419
    %v5431 = vsub.f32 %v5051, %v5419
    %v5432 = vsub.f32 %v5056, %v5419
    %v5433 = vsub.f32 %v5059, %v5419
    %v5434 = vsub.f32 %v5064, %v5419
    %v5435 = vsub.f32 %v5067, %v5419
    %v5436 = vsub.f32 %v5072, %v5419
    %v5437 = vsub.f32 %v5075, %v5419
    %v5438 = vsub.f32 %v5080, %v5419
    %v5439 = vsub.f32 %v5083, %v5419
    %v5440 = vsub.f32 %v5088, %v5419
    %v5441 = vsub.f32 %v5091, %v5419
    %v5442 = vsub.f32 %v5096, %v5419
    %v5443 = vsub.f32 %v5099, %v5419
    %v5444 = vsub.f32 %v5104, %v5419
    %v5445 = vadd.f32 %v5415, 1e-05
    %v5446 = vrsqrt.pop %v5445
    %v5447 = vlaneseq
    %v5448 = vshrl.u32 %v5447, 7
    %v5449 = vsub.s32 0, %v5448
    %v5450 = vrot.slane %v5446, %v5449
    %v5451 = vmul.f32 %v5420, %v5450
    %v5452 = vmul.f32 %v5421, %v5450
    %v5453 = vmul.f32 %v5422, %v5450
    %v5454 = vmul.f32 %v5423, %v5450
    %v5455 = vmul.f32 %v5424, %v5450
    %v5456 = vmul.f32 %v5425, %v5450
    %v5457 = vmul.f32 %v5426, %v5450
    %v5458 = vmul.f32 %v5427, %v5450
    %v5459 = vmul.f32 %v5428, %v5450
    %v5460 = vmul.f32 %v5429, %v5450
    %v5461 = vmul.f32 %v5430, %v5450
    %v5462 = vmul.f32 %v5431, %v5450
    %v5463 = vmul.f32 %v5432, %v5450
    %v5464 = vmul.f32 %v5433, %v5450
    %v5465 = vmul.f32 %v5434, %v5450
    %v5466 = vmul.f32 %v5435, %v5450
    %v5467 = vmul.f32 %v5436, %v5450
    %v5468 = vmul.f32 %v5437, %v5450
    %v5469 = vmul.f32 %v5438, %v5450
    %v5470 = vmul.f32 %v5439, %v5450
    %v5471 = vmul.f32 %v5440, %v5450
    %v5472 = vmul.f32 %v5441, %v5450
    %v5473 = vmul.f32 %v5442, %v5450
    %v5474 = vmul.f32 %v5443, %v5450
    %v5475 = vmul.f32 %v5444, %v5450
    %v5476 = vld [vmem:[%s7] sm:$0x1]
    %v5478 = vlaneseq
    %v5479 = vshrl.u32 %v5478, 7
    %v5480 = vsub.s32 0, %v5479
    %v5481 = vrot.slane %v5476, %v5480
    %v5483 = vmul.f32 %v5451, %v5481
    %v5484 = vmul.f32 %v5452, %v5481
    %v5485 = vmul.f32 %v5453, %v5481
    %v5486 = vmul.f32 %v5454, %v5481
    %v5487 = vmul.f32 %v5455, %v5481
    %v5488 = vmul.f32 %v5456, %v5481
    %v5489 = vmul.f32 %v5457, %v5481
    %v5490 = vmul.f32 %v5458, %v5481
    %v5491 = vmul.f32 %v5459, %v5481
    %v5492 = vmul.f32 %v5460, %v5481
    %v5493 = vmul.f32 %v5461, %v5481
    %v5494 = vmul.f32 %v5462, %v5481
    %v5495 = vmul.f32 %v5463, %v5481
    %v5496 = vmul.f32 %v5464, %v5481
    %v5497 = vmul.f32 %v5465, %v5481
    %v5498 = vmul.f32 %v5466, %v5481
    %v5499 = vmul.f32 %v5467, %v5481
    %v5500 = vmul.f32 %v5468, %v5481
    %v5501 = vmul.f32 %v5469, %v5481
    %v5502 = vmul.f32 %v5470, %v5481
    %v5503 = vmul.f32 %v5471, %v5481
    %v5504 = vmul.f32 %v5472, %v5481
    %v5505 = vmul.f32 %v5473, %v5481
    %v5506 = vmul.f32 %v5474, %v5481
    %v5507 = vmul.f32 %v5475, %v5481
    %v5508 = vld [vmem:[%s8] sm:$0x1]
    %v5510 = vlaneseq
    %v5511 = vshrl.u32 %v5510, 7
    %v5512 = vsub.s32 0, %v5511
    %v5513 = vrot.slane %v5508, %v5512
    %v5515 = vadd.f32 %v5483, %v5513
    %v5516 = vadd.f32 %v5484, %v5513
    %v5517 = vadd.f32 %v5485, %v5513
    %v5518 = vadd.f32 %v5486, %v5513
    %v5519 = vadd.f32 %v5487, %v5513
    %v5520 = vadd.f32 %v5488, %v5513
    %v5521 = vadd.f32 %v5489, %v5513
    %v5522 = vadd.f32 %v5490, %v5513
    %v5523 = vadd.f32 %v5491, %v5513
    %v5524 = vadd.f32 %v5492, %v5513
    %v5525 = vadd.f32 %v5493, %v5513
    %v5526 = vadd.f32 %v5494, %v5513
    %v5527 = vadd.f32 %v5495, %v5513
    %v5528 = vadd.f32 %v5496, %v5513
    %v5529 = vadd.f32 %v5497, %v5513
    %v5530 = vadd.f32 %v5498, %v5513
    %v5531 = vadd.f32 %v5499, %v5513
    %v5532 = vadd.f32 %v5500, %v5513
    %v5533 = vadd.f32 %v5501, %v5513
    %v5534 = vadd.f32 %v5502, %v5513
    %v5535 = vadd.f32 %v5503, %v5513
    %v5536 = vadd.f32 %v5504, %v5513
    %v5537 = vadd.f32 %v5505, %v5513
    %v5538 = vadd.f32 %v5506, %v5513
    %v5539 = vadd.f32 %v5507, %v5513
    %v5540 = vmax.f32 %v5515, 0.0
    %v5541 = vmax.f32 %v5516, 0.0
    %v5542 = vmax.f32 %v5517, 0.0
    %v5543 = vmax.f32 %v5518, 0.0
    %v5544 = vmax.f32 %v5519, 0.0
    %v5545 = vmax.f32 %v5520, 0.0
    %v5546 = vmax.f32 %v5521, 0.0
    %v5547 = vmax.f32 %v5522, 0.0
    %v5548 = vmax.f32 %v5523, 0.0
    %v5549 = vmax.f32 %v5524, 0.0
    %v5550 = vmax.f32 %v5525, 0.0
    %v5551 = vmax.f32 %v5526, 0.0
    %v5552 = vmax.f32 %v5527, 0.0
    %v5553 = vmax.f32 %v5528, 0.0
    %v5554 = vmax.f32 %v5529, 0.0
    %v5555 = vmax.f32 %v5530, 0.0
    %v5556 = vmax.f32 %v5531, 0.0
    %v5557 = vmax.f32 %v5532, 0.0
    %v5558 = vmax.f32 %v5533, 0.0
    %v5559 = vmax.f32 %v5534, 0.0
    %v5560 = vmax.f32 %v5535, 0.0
    %v5561 = vmax.f32 %v5536, 0.0
    %v5562 = vmax.f32 %v5537, 0.0
    %v5563 = vmax.f32 %v5538, 0.0
    %v5564 = vmax.f32 %v5539, 0.0
    %5565 = vst [vmem:[#allocation6] sm:$0xff] %v5540
    %5566 = vst [vmem:[#allocation6 + $0x8] sm:$0xff] %v5541
    %5567 = vst [vmem:[#allocation6 + $0x10] sm:$0xff] %v5542
    %5568 = vst [vmem:[#allocation6 + $0x18] sm:$0xff] %v5543
    %5569 = vst [vmem:[#allocation6 + $0x20] sm:$0xff] %v5544
    %5570 = vst [vmem:[#allocation6 + $0x28] sm:$0xff] %v5545
    %5571 = vst [vmem:[#allocation6 + $0x30] sm:$0xff] %v5546
    %5572 = vst [vmem:[#allocation6 + $0x38] sm:$0xff] %v5547
    %5573 = vst [vmem:[#allocation6 + $0x40] sm:$0xff] %v5548
    %5574 = vst [vmem:[#allocation6 + $0x48] sm:$0xff] %v5549
    %5575 = vst [vmem:[#allocation6 + $0x50] sm:$0xff] %v5550
    %5576 = vst [vmem:[#allocation6 + $0x58] sm:$0xff] %v5551
    %5577 = vst [vmem:[#allocation6 + $0x60] sm:$0xff] %v5552
    %5578 = vst [vmem:[#allocation6 + $0x68] sm:$0xff] %v5553
    %5579 = vst [vmem:[#allocation6 + $0x70] sm:$0xff] %v5554
    %5580 = vst [vmem:[#allocation6 + $0x78] sm:$0xff] %v5555
    %5581 = vst [vmem:[#allocation6 + $0x80] sm:$0xff] %v5556
    %5582 = vst [vmem:[#allocation6 + $0x88] sm:$0xff] %v5557
    %5583 = vst [vmem:[#allocation6 + $0x90] sm:$0xff] %v5558
    %5584 = vst [vmem:[#allocation6 + $0x98] sm:$0xff] %v5559
    %5585 = vst [vmem:[#allocation6 + $0xa0] sm:$0xff] %v5560
    %5586 = vst [vmem:[#allocation6 + $0xa8] sm:$0xff] %v5561
    %5587 = vst [vmem:[#allocation6 + $0xb0] sm:$0xff] %v5562
    %5588 = vst [vmem:[#allocation6 + $0xb8] sm:$0xff] %v5563
    %5589 = vst [vmem:[#allocation6 + $0xc0] sm:$0xff] %v5564
    %v5590 = vld [vmem:[#allocation6] sm:$0xff]
    %v5591 = vld [vmem:[#allocation6 + $0x8] sm:$0xff]
    %v5592 = vld [vmem:[#allocation6 + $0x10] sm:$0xff]
    %v5593 = vld [vmem:[#allocation6 + $0x18] sm:$0xff]
    %v5594 = vld [vmem:[#allocation6 + $0x20] sm:$0xff]
    %v5595 = vld [vmem:[#allocation6 + $0x28] sm:$0xff]
    %v5596 = vld [vmem:[#allocation6 + $0x30] sm:$0xff]
    %v5597 = vld [vmem:[#allocation6 + $0x38] sm:$0xff]
    %v5598 = vld [vmem:[#allocation6 + $0x40] sm:$0xff]
    %v5599 = vld [vmem:[#allocation6 + $0x48] sm:$0xff]
    %v5600 = vld [vmem:[#allocation6 + $0x50] sm:$0xff]
    %v5601 = vld [vmem:[#allocation6 + $0x58] sm:$0xff]
    %v5602 = vld [vmem:[#allocation6 + $0x60] sm:$0xff]
    %v5603 = vld [vmem:[#allocation6 + $0x68] sm:$0xff]
    %v5604 = vld [vmem:[#allocation6 + $0x70] sm:$0xff]
    %v5605 = vld [vmem:[#allocation6 + $0x78] sm:$0xff]
    %v5606 = vld [vmem:[#allocation6 + $0x80] sm:$0xff]
    %v5607 = vld [vmem:[#allocation6 + $0x88] sm:$0xff]
    %v5608 = vld [vmem:[#allocation6 + $0x90] sm:$0xff]
    %v5609 = vld [vmem:[#allocation6 + $0x98] sm:$0xff]
    %v5610 = vld [vmem:[#allocation6 + $0xa0] sm:$0xff]
    %v5611 = vld [vmem:[#allocation6 + $0xa8] sm:$0xff]
    %v5612 = vld [vmem:[#allocation6 + $0xb0] sm:$0xff]
    %v5613 = vld [vmem:[#allocation6 + $0xb8] sm:$0x1f]
    %v5614 = vld [vmem:[#allocation6 + $0x1] sm:$0xff]
    %v5615 = vld [vmem:[#allocation6 + $0x9] sm:$0xff]
    %v5616 = vld [vmem:[#allocation6 + $0x11] sm:$0xff]
    %v5617 = vld [vmem:[#allocation6 + $0x19] sm:$0xff]
    %v5618 = vld [vmem:[#allocation6 + $0x21] sm:$0xff]
    %v5619 = vld [vmem:[#allocation6 + $0x29] sm:$0xff]
    %v5620 = vld [vmem:[#allocation6 + $0x31] sm:$0xff]
    %v5621 = vld [vmem:[#allocation6 + $0x39] sm:$0xff]
    %v5622 = vld [vmem:[#allocation6 + $0x41] sm:$0xff]
    %v5623 = vld [vmem:[#allocation6 + $0x49] sm:$0xff]
    %v5624 = vld [vmem:[#allocation6 + $0x51] sm:$0xff]
    %v5625 = vld [vmem:[#allocation6 + $0x59] sm:$0xff]
    %v5626 = vld [vmem:[#allocation6 + $0x61] sm:$0xff]
    %v5627 = vld [vmem:[#allocation6 + $0x69] sm:$0xff]
    %v5628 = vld [vmem:[#allocation6 + $0x71] sm:$0xff]
    %v5629 = vld [vmem:[#allocation6 + $0x79] sm:$0xff]
    %v5630 = vld [vmem:[#allocation6 + $0x81] sm:$0xff]
    %v5631 = vld [vmem:[#allocation6 + $0x89] sm:$0xff]
    %v5632 = vld [vmem:[#allocation6 + $0x91] sm:$0xff]
    %v5633 = vld [vmem:[#allocation6 + $0x99] sm:$0xff]
    %v5634 = vld [vmem:[#allocation6 + $0xa1] sm:$0xff]
    %v5635 = vld [vmem:[#allocation6 + $0xa9] sm:$0xff]
    %v5636 = vld [vmem:[#allocation6 + $0xb1] sm:$0xff]
    %v5637 = vld [vmem:[#allocation6 + $0xb9] sm:$0x1f]
    %v5638 = vmax.f32 %v5590, %v5614
    %v5639 = vmax.f32 %v5591, %v5615
    %v5640 = vmax.f32 %v5592, %v5616
    %v5641 = vmax.f32 %v5593, %v5617
    %v5642 = vmax.f32 %v5594, %v5618
    %v5643 = vmax.f32 %v5595, %v5619
    %v5644 = vmax.f32 %v5596, %v5620
    %v5645 = vmax.f32 %v5597, %v5621
    %v5646 = vmax.f32 %v5598, %v5622
    %v5647 = vmax.f32 %v5599, %v5623
    %v5648 = vmax.f32 %v5600, %v5624
    %v5649 = vmax.f32 %v5601, %v5625
    %v5650 = vmax.f32 %v5602, %v5626
    %v5651 = vmax.f32 %v5603, %v5627
    %v5652 = vmax.f32 %v5604, %v5628
    %v5653 = vmax.f32 %v5605, %v5629
    %v5654 = vmax.f32 %v5606, %v5630
    %v5655 = vmax.f32 %v5607, %v5631
    %v5656 = vmax.f32 %v5608, %v5632
    %v5657 = vmax.f32 %v5609, %v5633
    %v5658 = vmax.f32 %v5610, %v5634
    %v5659 = vmax.f32 %v5611, %v5635
    %v5660 = vmax.f32 %v5612, %v5636
    %v5661 = vmax.f32 %v5613, %v5637
    %v5662 = vld [vmem:[#allocation6 + $0xa] sm:$0xff]
    %v5663 = vld [vmem:[#allocation6 + $0x12] sm:$0xff]
    %v5664 = vld [vmem:[#allocation6 + $0x1a] sm:$0xff]
    %v5665 = vld [vmem:[#allocation6 + $0x22] sm:$0xff]
    %v5666 = vld [vmem:[#allocation6 + $0x2a] sm:$0xff]
    %v5667 = vld [vmem:[#allocation6 + $0x32] sm:$0xff]
    %v5668 = vld [vmem:[#allocation6 + $0x3a] sm:$0xff]
    %v5669 = vld [vmem:[#allocation6 + $0x42] sm:$0xff]
    %v5670 = vld [vmem:[#allocation6 + $0x4a] sm:$0xff]
    %v5671 = vld [vmem:[#allocation6 + $0x52] sm:$0xff]
    %v5672 = vld [vmem:[#allocation6 + $0x5a] sm:$0xff]
    %v5673 = vld [vmem:[#allocation6 + $0x62] sm:$0xff]
    %v5674 = vld [vmem:[#allocation6 + $0x6a] sm:$0xff]
    %v5675 = vld [vmem:[#allocation6 + $0x72] sm:$0xff]
    %v5676 = vld [vmem:[#allocation6 + $0x7a] sm:$0xff]
    %v5677 = vld [vmem:[#allocation6 + $0x82] sm:$0xff]
    %v5678 = vld [vmem:[#allocation6 + $0x8a] sm:$0xff]
    %v5679 = vld [vmem:[#allocation6 + $0x92] sm:$0xff]
    %v5680 = vld [vmem:[#allocation6 + $0x9a] sm:$0xff]
    %v5681 = vld [vmem:[#allocation6 + $0xa2] sm:$0xff]
    %v5682 = vld [vmem:[#allocation6 + $0xaa] sm:$0xff]
    %v5683 = vld [vmem:[#allocation6 + $0xb2] sm:$0xff]
    %v5684 = vld [vmem:[#allocation6 + $0xba] sm:$0xff]
    %v5685 = vld [vmem:[#allocation6 + $0xc2] sm:$0x1f]
    %v5686 = vld [vmem:[#allocation6 + $0xb] sm:$0xff]
    %v5687 = vld [vmem:[#allocation6 + $0x13] sm:$0xff]
    %v5688 = vld [vmem:[#allocation6 + $0x1b] sm:$0xff]
    %v5689 = vld [vmem:[#allocation6 + $0x23] sm:$0xff]
    %v5690 = vld [vmem:[#allocation6 + $0x2b] sm:$0xff]
    %v5691 = vld [vmem:[#allocation6 + $0x33] sm:$0xff]
    %v5692 = vld [vmem:[#allocation6 + $0x3b] sm:$0xff]
    %v5693 = vld [vmem:[#allocation6 + $0x43] sm:$0xff]
    %v5694 = vld [vmem:[#allocation6 + $0x4b] sm:$0xff]
    %v5695 = vld [vmem:[#allocation6 + $0x53] sm:$0xff]
    %v5696 = vld [vmem:[#allocation6 + $0x5b] sm:$0xff]
    %v5697 = vld [vmem:[#allocation6 + $0x63] sm:$0xff]
    %v5698 = vld [vmem:[#allocation6 + $0x6b] sm:$0xff]
    %v5699 = vld [vmem:[#allocation6 + $0x73] sm:$0xff]
    %v5700 = vld [vmem:[#allocation6 + $0x7b] sm:$0xff]
    %v5701 = vld [vmem:[#allocation6 + $0x83] sm:$0xff]
    %v5702 = vld [vmem:[#allocation6 + $0x8b] sm:$0xff]
    %v5703 = vld [vmem:[#allocation6 + $0x93] sm:$0xff]
    %v5704 = vld [vmem:[#allocation6 + $0x9b] sm:$0xff]
    %v5705 = vld [vmem:[#allocation6 + $0xa3] sm:$0xff]
    %v5706 = vld [vmem:[#allocation6 + $0xab] sm:$0xff]
    %v5707 = vld [vmem:[#allocation6 + $0xb3] sm:$0xff]
    %v5708 = vld [vmem:[#allocation6 + $0xbb] sm:$0xff]
    %v5709 = vld [vmem:[#allocation6 + $0xc3] sm:$0x1f]
    %v5710 = vmax.f32 %v5662, %v5686
    %v5711 = vmax.f32 %v5663, %v5687
    %v5712 = vmax.f32 %v5664, %v5688
    %v5713 = vmax.f32 %v5665, %v5689
    %v5714 = vmax.f32 %v5666, %v5690
    %v5715 = vmax.f32 %v5667, %v5691
    %v5716 = vmax.f32 %v5668, %v5692
    %v5717 = vmax.f32 %v5669, %v5693
    %v5718 = vmax.f32 %v5670, %v5694
    %v5719 = vmax.f32 %v5671, %v5695
    %v5720 = vmax.f32 %v5672, %v5696
    %v5721 = vmax.f32 %v5673, %v5697
    %v5722 = vmax.f32 %v5674, %v5698
    %v5723 = vmax.f32 %v5675, %v5699
    %v5724 = vmax.f32 %v5676, %v5700
    %v5725 = vmax.f32 %v5677, %v5701
    %v5726 = vmax.f32 %v5678, %v5702
    %v5727 = vmax.f32 %v5679, %v5703
    %v5728 = vmax.f32 %v5680, %v5704
    %v5729 = vmax.f32 %v5681, %v5705
    %v5730 = vmax.f32 %v5682, %v5706
    %v5731 = vmax.f32 %v5683, %v5707
    %v5732 = vmax.f32 %v5684, %v5708
    %v5733 = vmax.f32 %v5685, %v5709
    %v5734 = vmax.f32 %v5638, %v5710
    %v5735 = vmax.f32 %v5639, %v5711
    %v5736 = vmax.f32 %v5640, %v5712
    %v5737 = vmax.f32 %v5641, %v5713
    %v5738 = vmax.f32 %v5642, %v5714
    %v5739 = vmax.f32 %v5643, %v5715
    %v5740 = vmax.f32 %v5644, %v5716
    %v5741 = vmax.f32 %v5645, %v5717
    %v5742 = vmax.f32 %v5646, %v5718
    %v5743 = vmax.f32 %v5647, %v5719
    %v5744 = vmax.f32 %v5648, %v5720
    %v5745 = vmax.f32 %v5649, %v5721
    %v5746 = vmax.f32 %v5650, %v5722
    %v5747 = vmax.f32 %v5651, %v5723
    %v5748 = vmax.f32 %v5652, %v5724
    %v5749 = vmax.f32 %v5653, %v5725
    %v5750 = vmax.f32 %v5654, %v5726
    %v5751 = vmax.f32 %v5655, %v5727
    %v5752 = vmax.f32 %v5656, %v5728
    %v5753 = vmax.f32 %v5657, %v5729
    %v5754 = vmax.f32 %v5658, %v5730
    %v5755 = vmax.f32 %v5659, %v5731
    %v5756 = vmax.f32 %v5660, %v5732
    %v5757 = vmax.f32 %v5661, %v5733
    %5758 = vst [vmem:[#allocation7] sm:$0xff] %v5734
    %5759 = vst [vmem:[#allocation7 + $0x8] sm:$0xff] %v5735
    %5760 = vst [vmem:[#allocation7 + $0x10] sm:$0xff] %v5736
    %5761 = vst [vmem:[#allocation7 + $0x18] sm:$0xff] %v5737
    %5762 = vst [vmem:[#allocation7 + $0x20] sm:$0xff] %v5738
    %5763 = vst [vmem:[#allocation7 + $0x28] sm:$0xff] %v5739
    %5764 = vst [vmem:[#allocation7 + $0x30] sm:$0xff] %v5740
    %5765 = vst [vmem:[#allocation7 + $0x38] sm:$0xff] %v5741
    %5766 = vst [vmem:[#allocation7 + $0x40] sm:$0xff] %v5742
    %5767 = vst [vmem:[#allocation7 + $0x48] sm:$0xff] %v5743
    %5768 = vst [vmem:[#allocation7 + $0x50] sm:$0xff] %v5744
    %5769 = vst [vmem:[#allocation7 + $0x58] sm:$0xff] %v5745
    %5770 = vst [vmem:[#allocation7 + $0x60] sm:$0xff] %v5746
    %5771 = vst [vmem:[#allocation7 + $0x68] sm:$0xff] %v5747
    %5772 = vst [vmem:[#allocation7 + $0x70] sm:$0xff] %v5748
    %5773 = vst [vmem:[#allocation7 + $0x78] sm:$0xff] %v5749
    %5774 = vst [vmem:[#allocation7 + $0x80] sm:$0xff] %v5750
    %5775 = vst [vmem:[#allocation7 + $0x88] sm:$0xff] %v5751
    %5776 = vst [vmem:[#allocation7 + $0x90] sm:$0xff] %v5752
    %5777 = vst [vmem:[#allocation7 + $0x98] sm:$0xff] %v5753
    %5778 = vst [vmem:[#allocation7 + $0xa0] sm:$0xff] %v5754
    %5779 = vst [vmem:[#allocation7 + $0xa8] sm:$0xff] %v5755
    %5780 = vst [vmem:[#allocation7 + $0xb0] sm:$0xff] %v5756
    %5781 = vst [vmem:[#allocation7 + $0xb8] sm:$0x1f] %v5757
    %5782 = vst [vmem:[#allocation8] sm:$0xf] 0
    %5783 = vst [vmem:[#allocation8 + $0x4] sm:$0xf] 0
    %5784 = vst [vmem:[#allocation8 + $0x8] sm:$0xf] 0
    %5785 = vst [vmem:[#allocation8 + $0xc] sm:$0xf] 0
    %5786 = vst [vmem:[#allocation8 + $0x10] sm:$0xf] 0
    %5787 = vst [vmem:[#allocation8 + $0x14] sm:$0xf] 0
    %5788 = vst [vmem:[#allocation8 + $0x18] sm:$0xf] 0
    %5789 = vst [vmem:[#allocation8 + $0x1c] sm:$0xf] 0
    %5790 = vst [vmem:[#allocation8 + $0x20] sm:$0xf] 0
    %5791 = vst [vmem:[#allocation8 + $0x24] sm:$0xf] 0
    %5792 = vst [vmem:[#allocation8 + $0x28] sm:$0xf] 0
    %5793 = vst [vmem:[#allocation8 + $0x2c] sm:$0x1] 0
    %s5794 = scalar_lea.vmem [#allocation7], 11
    %v5795 = vld [vmem:[%s5794] ss:$2 sm:$0xf]
    %v5796 = vpack.c.bf16 %v5795, %v5795
    %5797 = vst [vmem:[#allocation8 + $0x8] sm:$0x3] %v5796
    %s5798 = scalar_lea.vmem [#allocation7], 31
    %v5799 = vld [vmem:[%s5798] ss:$2 sm:$0xf]
    %v5800 = vpack.c.bf16 %v5799, %v5799
    %v5802 = vunpack.c.l.b16 %v5800
    %v5803 = vpack.c.b16 %v5802, %v5802
    %v5804 = vrot.slane %v5803, 5
    %v5805 = vrot.slane %v5804, 4
    %5808 = vst [vmem:[#allocation8 + $0x8] sm:$0x8] %v5804
    %5809 = vst [vmem:[#allocation8 + $0xc] sm:$0x1] %v5805
    %s5810 = scalar_lea.vmem [#allocation7], 51
    %v5811 = vld [vmem:[%s5810] ss:$2 sm:$0xf]
    %v5812 = vpack.c.bf16 %v5811, %v5811
    %v5814 = vunpack.c.l.b16 %v5812
    %v5815 = vpack.c.b16 %v5814, %v5814
    %v5816 = vrot.slane %v5815, 6
    %5818 = vst [vmem:[#allocation8 + $0xc] sm:$0xc] %v5816
    %s5819 = scalar_lea.vmem [#allocation7], 71
    %v5820 = vld [vmem:[%s5819] ss:$2 sm:$0xf]
    %v5821 = vpack.c.bf16 %v5820, %v5820
    %v5823 = vunpack.c.l.b16 %v5821
    %v5824 = vpack.c.b16 %v5823, %v5823
    %v5825 = vrot.slane %v5824, 7
    %5827 = vst [vmem:[#allocation8 + $0x10] sm:$0x6] %v5825
    %s5828 = scalar_lea.vmem [#allocation7], 111
    %v5829 = vld [vmem:[%s5828] ss:$2 sm:$0xf]
    %v5830 = vpack.c.bf16 %v5829, %v5829
    %v5832 = vunpack.c.l.b16 %v5830
    %v5833 = vpack.c.b16 %v5832, %v5832
    %v5834 = vrot.slane %v5833, 6
    %5836 = vst [vmem:[#allocation8 + $0x18] sm:$0xc] %v5834
    %s5837 = scalar_lea.vmem [#allocation7], 131
    %v5838 = vld [vmem:[%s5837] ss:$2 sm:$0xf]
    %v5839 = vpack.c.bf16 %v5838, %v5838
    %v5841 = vunpack.c.l.b16 %v5839
    %v5842 = vpack.c.b16 %v5841, %v5841
    %v5843 = vrot.slane %v5842, 7
    %5845 = vst [vmem:[#allocation8 + $0x1c] sm:$0x6] %v5843
    %s5846 = scalar_lea.vmem [#allocation7], 151
    %v5847 = vld [vmem:[%s5846] ss:$2 sm:$0xf]
    %v5848 = vpack.c.bf16 %v5847, %v5847
    %5849 = vst [vmem:[#allocation8 + $0x20] sm:$0x3] %v5848
    %s5850 = scalar_lea.vmem [#allocation7], 171
    %v5851 = vld [vmem:[%s5850] ss:$2 sm:$0xf]
    %v5852 = vpack.c.bf16 %v5851, %v5851
    %v5854 = vunpack.c.l.b16 %v5852
    %v5855 = vpack.c.b16 %v5854, %v5854
    %v5856 = vrot.slane %v5855, 5
    %v5857 = vrot.slane %v5856, 4
    %5860 = vst [vmem:[#allocation8 + $0x20] sm:$0x8] %v5856
    %5861 = vst [vmem:[#allocation8 + $0x24] sm:$0x1] %v5857
    %v5862 = vld [vmem:[#allocation8] sm:$0xe]
    %v5863 = vld [vmem:[#allocation8 + $0x4] sm:$0xf]
    %v5864 = vld [vmem:[#allocation8 + $0x8] sm:$0xf]
    %v5865 = vld [vmem:[#allocation8 + $0xc] sm:$0xf]
    %v5866 = vld [vmem:[#allocation8 + $0x10] sm:$0xf]
    %v5867 = vld [vmem:[#allocation8 + $0x14] sm:$0xf]
    %v5868 = vld [vmem:[#allocation8 + $0x18] sm:$0xf]
    %v5869 = vld [vmem:[#allocation8 + $0x1c] sm:$0xf]
    %v5870 = vld [vmem:[#allocation8 + $0x20] sm:$0xf]
    %v5871 = vld [vmem:[#allocation8 + $0x24] sm:$0x1]
    %v5882 = vrot.slane %v5862, 5
    %v5883 = vrot.slane %v5882, 4
    %v5884 = vrot.slane %v5863, 5
    %v5885 = vsel %vm3059, %v5883, %v5884
    %v5886 = vrot.slane %v5884, 4
    %v5887 = vrot.slane %v5864, 5
    %v5888 = vsel %vm3059, %v5886, %v5887
    %v5889 = vrot.slane %v5887, 4
    %v5890 = vrot.slane %v5865, 5
    %v5891 = vsel %vm3059, %v5889, %v5890
    %v5892 = vrot.slane %v5890, 4
    %v5893 = vrot.slane %v5866, 5
    %v5894 = vsel %vm3059, %v5892, %v5893
    %v5895 = vrot.slane %v5893, 4
    %v5896 = vrot.slane %v5867, 5
    %v5897 = vsel %vm3059, %v5895, %v5896
    %v5898 = vrot.slane %v5896, 4
    %v5899 = vrot.slane %v5868, 5
    %v5900 = vsel %vm3059, %v5898, %v5899
    %v5901 = vrot.slane %v5899, 4
    %v5902 = vrot.slane %v5869, 5
    %v5903 = vsel %vm3059, %v5901, %v5902
    %v5904 = vrot.slane %v5902, 4
    %v5905 = vrot.slane %v5870, 5
    %v5906 = vsel %vm3059, %v5904, %v5905
    %v5907 = vrot.slane %v5905, 4
    %v5908 = vrot.slane %v5871, 5
    %v5909 = vsel %vm3059, %v5907, %v5908
    %5919 = vst [vmem:[#allocation9] sm:$0xf] %v5885
    %5920 = vst [vmem:[#allocation9 + $0x24] sm:$0xf] %v5888
    %5921 = vst [vmem:[#allocation9 + $0x48] sm:$0xf] %v5891
    %5922 = vst [vmem:[#allocation9 + $0x6c] sm:$0xf] %v5894
    %5923 = vst [vmem:[#allocation9 + $0x90] sm:$0xf] %v5897
    %5924 = vst [vmem:[#allocation9 + $0xb4] sm:$0xf] %v5900
    %5925 = vst [vmem:[#allocation9 + $0xd8] sm:$0xf] %v5903
    %5926 = vst [vmem:[#allocation9 + $0xfc] sm:$0xf] %v5906
    %5927 = vst [vmem:[#allocation9 + $0x120] sm:$0xf] %v5909
    %v5928 = vld [vmem:[#allocation8] sm:$0xe]
    %v5929 = vld [vmem:[#allocation8 + $0x4] sm:$0xf]
    %v5930 = vld [vmem:[#allocation8 + $0x8] sm:$0xf]
    %v5931 = vld [vmem:[#allocation8 + $0xc] sm:$0xf]
    %v5932 = vld [vmem:[#allocation8 + $0x10] sm:$0xf]
    %v5933 = vld [vmem:[#allocation8 + $0x14] sm:$0xf]
    %v5934 = vld [vmem:[#allocation8 + $0x18] sm:$0xf]
    %v5935 = vld [vmem:[#allocation8 + $0x1c] sm:$0xf]
    %v5936 = vld [vmem:[#allocation8 + $0x20] sm:$0xf]
    %v5937 = vld [vmem:[#allocation8 + $0x24] sm:$0x3]
    %v5939 = vshrl.u32 %v5928, 16
    %v5941 = vrot.slane %v5939, 5
    %v5942 = vshll.u32 %v5928, 16
    %v5944 = vrot.slane %v5942, 6
    %v5945 = vor.u32 %v5941, %v5944
    %v5946 = vrot.slane %v5945, 4
    %v5948 = vshrl.u32 %v5929, 16
    %v5950 = vrot.slane %v5948, 5
    %v5951 = vshll.u32 %v5929, 16
    %v5953 = vrot.slane %v5951, 6
    %v5954 = vor.u32 %v5950, %v5953
    %v5955 = vsel %vm3442, %v5946, %v5954
    %v5956 = vrot.slane %v5954, 4
    %v5958 = vshrl.u32 %v5930, 16
    %v5960 = vrot.slane %v5958, 5
    %v5961 = vshll.u32 %v5930, 16
    %v5963 = vrot.slane %v5961, 6
    %v5964 = vor.u32 %v5960, %v5963
    %v5965 = vsel %vm3442, %v5956, %v5964
    %v5966 = vrot.slane %v5964, 4
    %v5968 = vshrl.u32 %v5931, 16
    %v5970 = vrot.slane %v5968, 5
    %v5971 = vshll.u32 %v5931, 16
    %v5973 = vrot.slane %v5971, 6
    %v5974 = vor.u32 %v5970, %v5973
    %v5975 = vsel %vm3442, %v5966, %v5974
    %v5976 = vrot.slane %v5974, 4
    %v5978 = vshrl.u32 %v5932, 16
    %v5980 = vrot.slane %v5978, 5
    %v5981 = vshll.u32 %v5932, 16
    %v5983 = vrot.slane %v5981, 6
    %v5984 = vor.u32 %v5980, %v5983
    %v5985 = vsel %vm3442, %v5976, %v5984
    %v5986 = vrot.slane %v5984, 4
    %v5988 = vshrl.u32 %v5933, 16
    %v5990 = vrot.slane %v5988, 5
    %v5991 = vshll.u32 %v5933, 16
    %v5993 = vrot.slane %v5991, 6
    %v5994 = vor.u32 %v5990, %v5993
    %v5995 = vsel %vm3442, %v5986, %v5994
    %v5996 = vrot.slane %v5994, 4
    %v5998 = vshrl.u32 %v5934, 16
    %v6000 = vrot.slane %v5998, 5
    %v6001 = vshll.u32 %v5934, 16
    %v6003 = vrot.slane %v6001, 6
    %v6004 = vor.u32 %v6000, %v6003
    %v6005 = vsel %vm3442, %v5996, %v6004
    %v6006 = vrot.slane %v6004, 4
    %v6008 = vshrl.u32 %v5935, 16
    %v6010 = vrot.slane %v6008, 5
    %v6011 = vshll.u32 %v5935, 16
    %v6013 = vrot.slane %v6011, 6
    %v6014 = vor.u32 %v6010, %v6013
    %v6015 = vsel %vm3442, %v6006, %v6014
    %v6016 = vrot.slane %v6014, 4
    %v6018 = vshrl.u32 %v5936, 16
    %v6020 = vrot.slane %v6018, 5
    %v6021 = vshll.u32 %v5936, 16
    %v6023 = vrot.slane %v6021, 6
    %v6024 = vor.u32 %v6020, %v6023
    %v6025 = vsel %vm3442, %v6016, %v6024
    %v6026 = vrot.slane %v6024, 4
    %v6028 = vshrl.u32 %v5937, 16
    %v6030 = vrot.slane %v6028, 5
    %v6031 = vshll.u32 %v5937, 16
    %v6033 = vrot.slane %v6031, 6
    %v6034 = vor.u32 %v6030, %v6033
    %v6035 = vsel %vm3442, %v6026, %v6034
    %6045 = vst [vmem:[#allocation9 + $0x4] sm:$0xf] %v5955
    %6046 = vst [vmem:[#allocation9 + $0x28] sm:$0xf] %v5965
    %6047 = vst [vmem:[#allocation9 + $0x4c] sm:$0xf] %v5975
    %6048 = vst [vmem:[#allocation9 + $0x70] sm:$0xf] %v5985
    %6049 = vst [vmem:[#allocation9 + $0x94] sm:$0xf] %v5995
    %6050 = vst [vmem:[#allocation9 + $0xb8] sm:$0xf] %v6005
    %6051 = vst [vmem:[#allocation9 + $0xdc] sm:$0xf] %v6015
    %6052 = vst [vmem:[#allocation9 + $0x100] sm:$0xf] %v6025
    %6053 = vst [vmem:[#allocation9 + $0x124] sm:$0xf] %v6035
    %v6054 = vld [vmem:[#allocation8] sm:$0xc]
    %v6055 = vld [vmem:[#allocation8 + $0x4] sm:$0xf]
    %v6056 = vld [vmem:[#allocation8 + $0x8] sm:$0xf]
    %v6057 = vld [vmem:[#allocation8 + $0xc] sm:$0xf]
    %v6058 = vld [vmem:[#allocation8 + $0x10] sm:$0xf]
    %v6059 = vld [vmem:[#allocation8 + $0x14] sm:$0xf]
    %v6060 = vld [vmem:[#allocation8 + $0x18] sm:$0xf]
    %v6061 = vld [vmem:[#allocation8 + $0x1c] sm:$0xf]
    %v6062 = vld [vmem:[#allocation8 + $0x20] sm:$0xf]
    %v6063 = vld [vmem:[#allocation8 + $0x24] sm:$0x3]
    %v6074 = vrot.slane %v6054, 6
    %v6075 = vrot.slane %v6074, 4
    %v6076 = vrot.slane %v6055, 6
    %v6077 = vsel %vm3855, %v6075, %v6076
    %v6078 = vrot.slane %v6076, 4
    %v6079 = vrot.slane %v6056, 6
    %v6080 = vsel %vm3855, %v6078, %v6079
    %v6081 = vrot.slane %v6079, 4
    %v6082 = vrot.slane %v6057, 6
    %v6083 = vsel %vm3855, %v6081, %v6082
    %v6084 = vrot.slane %v6082, 4
    %v6085 = vrot.slane %v6058, 6
    %v6086 = vsel %vm3855, %v6084, %v6085
    %v6087 = vrot.slane %v6085, 4
    %v6088 = vrot.slane %v6059, 6
    %v6089 = vsel %vm3855, %v6087, %v6088
    %v6090 = vrot.slane %v6088, 4
    %v6091 = vrot.slane %v6060, 6
    %v6092 = vsel %vm3855, %v6090, %v6091
    %v6093 = vrot.slane %v6091, 4
    %v6094 = vrot.slane %v6061, 6
    %v6095 = vsel %vm3855, %v6093, %v6094
    %v6096 = vrot.slane %v6094, 4
    %v6097 = vrot.slane %v6062, 6
    %v6098 = vsel %vm3855, %v6096, %v6097
    %v6099 = vrot.slane %v6097, 4
    %v6100 = vrot.slane %v6063, 6
    %v6101 = vsel %vm3855, %v6099, %v6100
    %6111 = vst [vmem:[#allocation9 + $0x8] sm:$0xf] %v6077
    %6112 = vst [vmem:[#allocation9 + $0x2c] sm:$0xf] %v6080
    %6113 = vst [vmem:[#allocation9 + $0x50] sm:$0xf] %v6083
    %6114 = vst [vmem:[#allocation9 + $0x74] sm:$0xf] %v6086
    %6115 = vst [vmem:[#allocation9 + $0x98] sm:$0xf] %v6089
    %6116 = vst [vmem:[#allocation9 + $0xbc] sm:$0xf] %v6092
    %6117 = vst [vmem:[#allocation9 + $0xe0] sm:$0xf] %v6095
    %6118 = vst [vmem:[#allocation9 + $0x104] sm:$0xf] %v6098
    %6119 = vst [vmem:[#allocation9 + $0x128] sm:$0xf] %v6101
    %v6120 = vld [vmem:[#allocation8 + $0x4] sm:$0xf]
    %v6121 = vld [vmem:[#allocation8 + $0x8] sm:$0xf]
    %v6122 = vld [vmem:[#allocation8 + $0xc] sm:$0xf]
    %v6123 = vld [vmem:[#allocation8 + $0x10] sm:$0xf]
    %v6124 = vld [vmem:[#allocation8 + $0x14] sm:$0xf]
    %v6125 = vld [vmem:[#allocation8 + $0x18] sm:$0xf]
    %v6126 = vld [vmem:[#allocation8 + $0x1c] sm:$0xf]
    %v6127 = vld [vmem:[#allocation8 + $0x20] sm:$0xf]
    %v6128 = vld [vmem:[#allocation8 + $0x24] sm:$0xf]
    %6129 = vst [vmem:[#allocation9 + $0xc] sm:$0xf] %v6120
    %6130 = vst [vmem:[#allocation9 + $0x30] sm:$0xf] %v6121
    %6131 = vst [vmem:[#allocation9 + $0x54] sm:$0xf] %v6122
    %6132 = vst [vmem:[#allocation9 + $0x78] sm:$0xf] %v6123
    %6133 = vst [vmem:[#allocation9 + $0x9c] sm:$0xf] %v6124
    %6134 = vst [vmem:[#allocation9 + $0xc0] sm:$0xf] %v6125
    %6135 = vst [vmem:[#allocation9 + $0xe4] sm:$0xf] %v6126
    %6136 = vst [vmem:[#allocation9 + $0x108] sm:$0xf] %v6127
    %6137 = vst [vmem:[#allocation9 + $0x12c] sm:$0xf] %v6128
    %v6138 = vld [vmem:[#allocation8 + $0x4] sm:$0xf]
    %v6139 = vld [vmem:[#allocation8 + $0x8] sm:$0xf]
    %v6140 = vld [vmem:[#allocation8 + $0xc] sm:$0xf]
    %v6141 = vld [vmem:[#allocation8 + $0x10] sm:$0xf]
    %v6142 = vld [vmem:[#allocation8 + $0x14] sm:$0xf]
    %v6143 = vld [vmem:[#allocation8 + $0x18] sm:$0xf]
    %v6144 = vld [vmem:[#allocation8 + $0x1c] sm:$0xf]
    %v6145 = vld [vmem:[#allocation8 + $0x20] sm:$0xf]
    %v6146 = vld [vmem:[#allocation8 + $0x24] sm:$0xf]
    %v6147 = vld [vmem:[#allocation8 + $0x28] sm:$0x1]
    %v6149 = vshrl.u32 %v6138, 16
    %v6151 = vrot.slane %v6149, 4
    %v6152 = vshll.u32 %v6138, 16
    %v6154 = vrot.slane %v6152, 5
    %v6155 = vor.u32 %v6151, %v6154
    %v6156 = vrot.slane %v6155, 4
    %v6158 = vshll.u32 %v6139, 16
    %v6160 = vrot.slane %v6158, 5
    %v6161 = vsel %vm2700, %v6156, %v6160
    %v6162 = vshrl.u32 %v6139, 16
    %v6164 = vrot.slane %v6162, 4
    %v6165 = vor.u32 %v6164, %v6160
    %v6166 = vrot.slane %v6165, 4
    %v6168 = vshll.u32 %v6140, 16
    %v6170 = vrot.slane %v6168, 5
    %v6171 = vsel %vm2700, %v6166, %v6170
    %v6172 = vshrl.u32 %v6140, 16
    %v6174 = vrot.slane %v6172, 4
    %v6175 = vor.u32 %v6174, %v6170
    %v6176 = vrot.slane %v6175, 4
    %v6178 = vshll.u32 %v6141, 16
    %v6180 = vrot.slane %v6178, 5
    %v6181 = vsel %vm2700, %v6176, %v6180
    %v6182 = vshrl.u32 %v6141, 16
    %v6184 = vrot.slane %v6182, 4
    %v6185 = vor.u32 %v6184, %v6180
    %v6186 = vrot.slane %v6185, 4
    %v6188 = vshll.u32 %v6142, 16
    %v6190 = vrot.slane %v6188, 5
    %v6191 = vsel %vm2700, %v6186, %v6190
    %v6192 = vshrl.u32 %v6142, 16
    %v6194 = vrot.slane %v6192, 4
    %v6195 = vor.u32 %v6194, %v6190
    %v6196 = vrot.slane %v6195, 4
    %v6198 = vshll.u32 %v6143, 16
    %v6200 = vrot.slane %v6198, 5
    %v6201 = vsel %vm2700, %v6196, %v6200
    %v6202 = vshrl.u32 %v6143, 16
    %v6204 = vrot.slane %v6202, 4
    %v6205 = vor.u32 %v6204, %v6200
    %v6206 = vrot.slane %v6205, 4
    %v6208 = vshll.u32 %v6144, 16
    %v6210 = vrot.slane %v6208, 5
    %v6211 = vsel %vm2700, %v6206, %v6210
    %v6212 = vshrl.u32 %v6144, 16
    %v6214 = vrot.slane %v6212, 4
    %v6215 = vor.u32 %v6214, %v6210
    %v6216 = vrot.slane %v6215, 4
    %v6218 = vshll.u32 %v6145, 16
    %v6220 = vrot.slane %v6218, 5
    %v6221 = vsel %vm2700, %v6216, %v6220
    %v6222 = vshrl.u32 %v6145, 16
    %v6224 = vrot.slane %v6222, 4
    %v6225 = vor.u32 %v6224, %v6220
    %v6226 = vrot.slane %v6225, 4
    %v6228 = vshll.u32 %v6146, 16
    %v6230 = vrot.slane %v6228, 5
    %v6231 = vsel %vm2700, %v6226, %v6230
    %v6232 = vshrl.u32 %v6146, 16
    %v6234 = vrot.slane %v6232, 4
    %v6235 = vor.u32 %v6234, %v6230
    %v6236 = vrot.slane %v6235, 4
    %v6238 = vshll.u32 %v6147, 16
    %v6240 = vrot.slane %v6238, 5
    %v6241 = vsel %vm2700, %v6236, %v6240
    %6251 = vst [vmem:[#allocation9 + $0x10] sm:$0xf] %v6161
    %6252 = vst [vmem:[#allocation9 + $0x34] sm:$0xf] %v6171
    %6253 = vst [vmem:[#allocation9 + $0x58] sm:$0xf] %v6181
    %6254 = vst [vmem:[#allocation9 + $0x7c] sm:$0xf] %v6191
    %6255 = vst [vmem:[#allocation9 + $0xa0] sm:$0xf] %v6201
    %6256 = vst [vmem:[#allocation9 + $0xc4] sm:$0xf] %v6211
    %6257 = vst [vmem:[#allocation9 + $0xe8] sm:$0xf] %v6221
    %6258 = vst [vmem:[#allocation9 + $0x10c] sm:$0xf] %v6231
    %6259 = vst [vmem:[#allocation9 + $0x130] sm:$0xf] %v6241
    %v6260 = vld [vmem:[#allocation8 + $0x4] sm:$0xe]
    %v6261 = vld [vmem:[#allocation8 + $0x8] sm:$0xf]
    %v6262 = vld [vmem:[#allocation8 + $0xc] sm:$0xf]
    %v6263 = vld [vmem:[#allocation8 + $0x10] sm:$0xf]
    %v6264 = vld [vmem:[#allocation8 + $0x14] sm:$0xf]
    %v6265 = vld [vmem:[#allocation8 + $0x18] sm:$0xf]
    %v6266 = vld [vmem:[#allocation8 + $0x1c] sm:$0xf]
    %v6267 = vld [vmem:[#allocation8 + $0x20] sm:$0xf]
    %v6268 = vld [vmem:[#allocation8 + $0x24] sm:$0xf]
    %v6269 = vld [vmem:[#allocation8 + $0x28] sm:$0x1]
    %v6280 = vrot.slane %v6260, 5
    %v6281 = vrot.slane %v6280, 4
    %v6282 = vrot.slane %v6261, 5
    %v6283 = vsel %vm3059, %v6281, %v6282
    %v6284 = vrot.slane %v6282, 4
    %v6285 = vrot.slane %v6262, 5
    %v6286 = vsel %vm3059, %v6284, %v6285
    %v6287 = vrot.slane %v6285, 4
    %v6288 = vrot.slane %v6263, 5
    %v6289 = vsel %vm3059, %v6287, %v6288
    %v6290 = vrot.slane %v6288, 4
    %v6291 = vrot.slane %v6264, 5
    %v6292 = vsel %vm3059, %v6290, %v6291
    %v6293 = vrot.slane %v6291, 4
    %v6294 = vrot.slane %v6265, 5
    %v6295 = vsel %vm3059, %v6293, %v6294
    %v6296 = vrot.slane %v6294, 4
    %v6297 = vrot.slane %v6266, 5
    %v6298 = vsel %vm3059, %v6296, %v6297
    %v6299 = vrot.slane %v6297, 4
    %v6300 = vrot.slane %v6267, 5
    %v6301 = vsel %vm3059, %v6299, %v6300
    %v6302 = vrot.slane %v6300, 4
    %v6303 = vrot.slane %v6268, 5
    %v6304 = vsel %vm3059, %v6302, %v6303
    %v6305 = vrot.slane %v6303, 4
    %v6306 = vrot.slane %v6269, 5
    %v6307 = vsel %vm3059, %v6305, %v6306
    %6317 = vst [vmem:[#allocation9 + $0x14] sm:$0xf] %v6283
    %6318 = vst [vmem:[#allocation9 + $0x38] sm:$0xf] %v6286
    %6319 = vst [vmem:[#allocation9 + $0x5c] sm:$0xf] %v6289
    %6320 = vst [vmem:[#allocation9 + $0x80] sm:$0xf] %v6292
    %6321 = vst [vmem:[#allocation9 + $0xa4] sm:$0xf] %v6295
    %6322 = vst [vmem:[#allocation9 + $0xc8] sm:$0xf] %v6298
    %6323 = vst [vmem:[#allocation9 + $0xec] sm:$0xf] %v6301
    %6324 = vst [vmem:[#allocation9 + $0x110] sm:$0xf] %v6304
    %6325 = vst [vmem:[#allocation9 + $0x134] sm:$0xf] %v6307
    %v6326 = vld [vmem:[#allocation8 + $0x4] sm:$0x8]
    %v6327 = vld [vmem:[#allocation8 + $0x8] sm:$0xf]
    %v6328 = vld [vmem:[#allocation8 + $0xc] sm:$0xf]
    %v6329 = vld [vmem:[#allocation8 + $0x10] sm:$0xf]
    %v6330 = vld [vmem:[#allocation8 + $0x14] sm:$0xf]
    %v6331 = vld [vmem:[#allocation8 + $0x18] sm:$0xf]
    %v6332 = vld [vmem:[#allocation8 + $0x1c] sm:$0xf]
    %v6333 = vld [vmem:[#allocation8 + $0x20] sm:$0xf]
    %v6334 = vld [vmem:[#allocation8 + $0x24] sm:$0xf]
    %v6335 = vld [vmem:[#allocation8 + $0x28] sm:$0x7]
    %v6346 = vrot.slane %v6326, 7
    %v6347 = vrot.slane %v6346, 4
    %v6348 = vrot.slane %v6327, 7
    %v6349 = vsel %vm1986, %v6347, %v6348
    %v6350 = vrot.slane %v6348, 4
    %v6351 = vrot.slane %v6328, 7
    %v6352 = vsel %vm1986, %v6350, %v6351
    %v6353 = vrot.slane %v6351, 4
    %v6354 = vrot.slane %v6329, 7
    %v6355 = vsel %vm1986, %v6353, %v6354
    %v6356 = vrot.slane %v6354, 4
    %v6357 = vrot.slane %v6330, 7
    %v6358 = vsel %vm1986, %v6356, %v6357
    %v6359 = vrot.slane %v6357, 4
    %v6360 = vrot.slane %v6331, 7
    %v6361 = vsel %vm1986, %v6359, %v6360
    %v6362 = vrot.slane %v6360, 4
    %v6363 = vrot.slane %v6332, 7
    %v6364 = vsel %vm1986, %v6362, %v6363
    %v6365 = vrot.slane %v6363, 4
    %v6366 = vrot.slane %v6333, 7
    %v6367 = vsel %vm1986, %v6365, %v6366
    %v6368 = vrot.slane %v6366, 4
    %v6369 = vrot.slane %v6334, 7
    %v6370 = vsel %vm1986, %v6368, %v6369
    %v6371 = vrot.slane %v6369, 4
    %v6372 = vrot.slane %v6335, 7
    %v6373 = vsel %vm1986, %v6371, %v6372
    %6383 = vst [vmem:[#allocation9 + $0x18] sm:$0xf] %v6349
    %6384 = vst [vmem:[#allocation9 + $0x3c] sm:$0xf] %v6352
    %6385 = vst [vmem:[#allocation9 + $0x60] sm:$0xf] %v6355
    %6386 = vst [vmem:[#allocation9 + $0x84] sm:$0xf] %v6358
    %6387 = vst [vmem:[#allocation9 + $0xa8] sm:$0xf] %v6361
    %6388 = vst [vmem:[#allocation9 + $0xcc] sm:$0xf] %v6364
    %6389 = vst [vmem:[#allocation9 + $0xf0] sm:$0xf] %v6367
    %6390 = vst [vmem:[#allocation9 + $0x114] sm:$0xf] %v6370
    %6391 = vst [vmem:[#allocation9 + $0x138] sm:$0xf] %v6373
    %v6392 = vld [vmem:[#allocation8 + $0x4] sm:$0x8]
    %v6393 = vld [vmem:[#allocation8 + $0x8] sm:$0xf]
    %v6394 = vld [vmem:[#allocation8 + $0xc] sm:$0xf]
    %v6395 = vld [vmem:[#allocation8 + $0x10] sm:$0xf]
    %v6396 = vld [vmem:[#allocation8 + $0x14] sm:$0xf]
    %v6397 = vld [vmem:[#allocation8 + $0x18] sm:$0xf]
    %v6398 = vld [vmem:[#allocation8 + $0x1c] sm:$0xf]
    %v6399 = vld [vmem:[#allocation8 + $0x20] sm:$0xf]
    %v6400 = vld [vmem:[#allocation8 + $0x24] sm:$0xf]
    %v6401 = vld [vmem:[#allocation8 + $0x28] sm:$0xf]
    %v6403 = vshrl.u32 %v6392, 16
    %v6405 = vrot.slane %v6403, 7
    %v6406 = vrot.slane %v6405, 4
    %v6408 = vshrl.u32 %v6393, 16
    %v6410 = vrot.slane %v6408, 7
    %v6411 = vshll.u32 %v6393, 16
    %v6413 = vor.u32 %v6410, %v6411
    %v6414 = vsel %vm2141, %v6406, %v6413
    %v6415 = vrot.slane %v6410, 4
    %v6417 = vshrl.u32 %v6394, 16
    %v6419 = vrot.slane %v6417, 7
    %v6420 = vshll.u32 %v6394, 16
    %v6422 = vor.u32 %v6419, %v6420
    %v6423 = vsel %vm2141, %v6415, %v6422
    %v6424 = vrot.slane %v6419, 4
    %v6426 = vshrl.u32 %v6395, 16
    %v6428 = vrot.slane %v6426, 7
    %v6429 = vshll.u32 %v6395, 16
    %v6431 = vor.u32 %v6428, %v6429
    %v6432 = vsel %vm2141, %v6424, %v6431
    %v6433 = vrot.slane %v6428, 4
    %v6435 = vshrl.u32 %v6396, 16
    %v6437 = vrot.slane %v6435, 7
    %v6438 = vshll.u32 %v6396, 16
    %v6440 = vor.u32 %v6437, %v6438
    %v6441 = vsel %vm2141, %v6433, %v6440
    %v6442 = vrot.slane %v6437, 4
    %v6444 = vshrl.u32 %v6397, 16
    %v6446 = vrot.slane %v6444, 7
    %v6447 = vshll.u32 %v6397, 16
    %v6449 = vor.u32 %v6446, %v6447
    %v6450 = vsel %vm2141, %v6442, %v6449
    %v6451 = vrot.slane %v6446, 4
    %v6453 = vshrl.u32 %v6398, 16
    %v6455 = vrot.slane %v6453, 7
    %v6456 = vshll.u32 %v6398, 16
    %v6458 = vor.u32 %v6455, %v6456
    %v6459 = vsel %vm2141, %v6451, %v6458
    %v6460 = vrot.slane %v6455, 4
    %v6462 = vshrl.u32 %v6399, 16
    %v6464 = vrot.slane %v6462, 7
    %v6465 = vshll.u32 %v6399, 16
    %v6467 = vor.u32 %v6464, %v6465
    %v6468 = vsel %vm2141, %v6460, %v6467
    %v6469 = vrot.slane %v6464, 4
    %v6471 = vshrl.u32 %v6400, 16
    %v6473 = vrot.slane %v6471, 7
    %v6474 = vshll.u32 %v6400, 16
    %v6476 = vor.u32 %v6473, %v6474
    %v6477 = vsel %vm2141, %v6469, %v6476
    %v6478 = vrot.slane %v6473, 4
    %v6480 = vshrl.u32 %v6401, 16
    %v6482 = vrot.slane %v6480, 7
    %v6483 = vshll.u32 %v6401, 16
    %v6485 = vor.u32 %v6482, %v6483
    %v6486 = vsel %vm2141, %v6478, %v6485
    %6496 = vst [vmem:[#allocation9 + $0x1c] sm:$0xf] %v6414
    %6497 = vst [vmem:[#allocation9 + $0x40] sm:$0xf] %v6423
    %6498 = vst [vmem:[#allocation9 + $0x64] sm:$0xf] %v6432
    %6499 = vst [vmem:[#allocation9 + $0x88] sm:$0xf] %v6441
    %6500 = vst [vmem:[#allocation9 + $0xac] sm:$0xf] %v6450
    %6501 = vst [vmem:[#allocation9 + $0xd0] sm:$0xf] %v6459
    %6502 = vst [vmem:[#allocation9 + $0xf4] sm:$0xf] %v6468
    %6503 = vst [vmem:[#allocation9 + $0x118] sm:$0xf] %v6477
    %6504 = vst [vmem:[#allocation9 + $0x13c] sm:$0xf] %v6486
    %v6505 = vld [vmem:[#allocation8 + $0x8] sm:$0xf]
    %v6506 = vld [vmem:[#allocation8 + $0xc] sm:$0xf]
    %v6507 = vld [vmem:[#allocation8 + $0x10] sm:$0xf]
    %v6508 = vld [vmem:[#allocation8 + $0x14] sm:$0xf]
    %v6509 = vld [vmem:[#allocation8 + $0x18] sm:$0xf]
    %v6510 = vld [vmem:[#allocation8 + $0x1c] sm:$0xf]
    %v6511 = vld [vmem:[#allocation8 + $0x20] sm:$0xf]
    %v6512 = vld [vmem:[#allocation8 + $0x24] sm:$0xf]
    %v6513 = vld [vmem:[#allocation8 + $0x28] sm:$0xf]
    %6514 = vst [vmem:[#allocation9 + $0x20] sm:$0xf] %v6505
    %6515 = vst [vmem:[#allocation9 + $0x44] sm:$0xf] %v6506
    %6516 = vst [vmem:[#allocation9 + $0x68] sm:$0xf] %v6507
    %6517 = vst [vmem:[#allocation9 + $0x8c] sm:$0xf] %v6508
    %6518 = vst [vmem:[#allocation9 + $0xb0] sm:$0xf] %v6509
    %6519 = vst [vmem:[#allocation9 + $0xd4] sm:$0xf] %v6510
    %6520 = vst [vmem:[#allocation9 + $0xf8] sm:$0xf] %v6511
    %6521 = vst [vmem:[#allocation9 + $0x11c] sm:$0xf] %v6512
    %6522 = vst [vmem:[#allocation9 + $0x140] sm:$0xf] %v6513
    %v6523 = vld [vmem:[#allocation9] sm:$0xff]
    %v6524 = vld [vmem:[#allocation9 + $0x8] sm:$0xff]
    %v6525 = vld [vmem:[#allocation9 + $0x10] sm:$0xff]
    %v6526 = vld [vmem:[#allocation9 + $0x18] sm:$0xff]
    %v6527 = vld [vmem:[#allocation9 + $0x20] sm:$0xf]
    %v6528 = vld [vmem:[#allocation9 + $0x24] sm:$0xff]
    %v6529 = vld [vmem:[#allocation9 + $0x2c] sm:$0xff]
    %v6530 = vld [vmem:[#allocation9 + $0x34] sm:$0xff]
    %v6531 = vld [vmem:[#allocation9 + $0x3c] sm:$0xff]
    %v6532 = vld [vmem:[#allocation9 + $0x44] sm:$0xf]
    %v6533 = vld [vmem:[#allocation9 + $0x48] sm:$0xff]
    %v6534 = vld [vmem:[#allocation9 + $0x50] sm:$0xff]
    %v6535 = vld [vmem:[#allocation9 + $0x58] sm:$0xff]
    %v6536 = vld [vmem:[#allocation9 + $0x60] sm:$0xff]
    %v6537 = vld [vmem:[#allocation9 + $0x68] sm:$0xf]
    %v6538 = vld [vmem:[#allocation9 + $0x6c] sm:$0xff]
    %v6539 = vld [vmem:[#allocation9 + $0x74] sm:$0xff]
    %v6540 = vld [vmem:[#allocation9 + $0x7c] sm:$0xff]
    %v6541 = vld [vmem:[#allocation9 + $0x84] sm:$0xff]
    %v6542 = vld [vmem:[#allocation9 + $0x8c] sm:$0xf]
    %v6543 = vld [vmem:[#allocation9 + $0x90] sm:$0xff]
    %v6544 = vld [vmem:[#allocation9 + $0x98] sm:$0xff]
    %v6545 = vld [vmem:[#allocation9 + $0xa0] sm:$0xff]
    %v6546 = vld [vmem:[#allocation9 + $0xa8] sm:$0xff]
    %v6547 = vld [vmem:[#allocation9 + $0xb0] sm:$0xf]
    %v6548 = vld [vmem:[#allocation9 + $0xb4] sm:$0xff]
    %v6549 = vld [vmem:[#allocation9 + $0xbc] sm:$0xff]
    %v6550 = vld [vmem:[#allocation9 + $0xc4] sm:$0xff]
    %v6551 = vld [vmem:[#allocation9 + $0xcc] sm:$0xff]
    %v6552 = vld [vmem:[#allocation9 + $0xd4] sm:$0xf]
    %v6553 = vld [vmem:[#allocation9 + $0xd8] sm:$0xff]
    %v6554 = vld [vmem:[#allocation9 + $0xe0] sm:$0xff]
    %v6555 = vld [vmem:[#allocation9 + $0xe8] sm:$0xff]
    %v6556 = vld [vmem:[#allocation9 + $0xf0] sm:$0xff]
    %v6557 = vld [vmem:[#allocation9 + $0xf8] sm:$0xf]
    %v6558 = vld [vmem:[#allocation9 + $0xfc] sm:$0xff]
    %v6559 = vld [vmem:[#allocation9 + $0x104] sm:$0xff]
    %v6560 = vld [vmem:[#allocation9 + $0x10c] sm:$0xff]
    %v6561 = vld [vmem:[#allocation9 + $0x114] sm:$0xff]
    %v6562 = vld [vmem:[#allocation9 + $0x11c] sm:$0xf]
    %v6563 = vld [vmem:[#allocation9 + $0x120] sm:$0xff]
    %v6564 = vld [vmem:[#allocation9 + $0x128] sm:$0xff]
    %v6565 = vld [vmem:[#allocation9 + $0x130] sm:$0xff]
    %v6566 = vld [vmem:[#allocation9 + $0x138] sm:$0xff]
    %v6567 = vld [vmem:[#allocation9 + $0x140] sm:$0xf]
    %v6568 = vld [vmem:[%s3] sm:$0xff]
    %v6569 = vld [vmem:[%s3 + $0x8] sm:$0xff]
    %v6570 = vld [vmem:[%s3 + $0x10] sm:$0xff]
    %v6571 = vld [vmem:[%s3 + $0x18] sm:$0xff]
    %v6572 = vld [vmem:[%s3 + $0x20] sm:$0xff]
    %v6573 = vld [vmem:[%s3 + $0x28] sm:$0xff]
    %v6574 = vld [vmem:[%s3 + $0x30] sm:$0xff]
    %v6575 = vld [vmem:[%s3 + $0x38] sm:$0xff]
    %v6576 = vld [vmem:[%s3 + $0x40] sm:$0xff]
    %v6577 = vld [vmem:[%s3 + $0x48] sm:$0xff]
    %v6578 = vld [vmem:[%s3 + $0x50] sm:$0xff]
    %v6579 = vld [vmem:[%s3 + $0x58] sm:$0xff]
    %v6580 = vld [vmem:[%s3 + $0x60] sm:$0xff]
    %v6581 = vld [vmem:[%s3 + $0x68] sm:$0xff]
    %v6582 = vld [vmem:[%s3 + $0x70] sm:$0xff]
    %v6583 = vld [vmem:[%s3 + $0x78] sm:$0xff]
    %v6584 = vld [vmem:[%s3 + $0x80] sm:$0xff]
    %v6585 = vld [vmem:[%s3 + $0x88] sm:$0xff]
    %v6586 = vld [vmem:[%s3 + $0x90] sm:$0xff]
    %v6587 = vld [vmem:[%s3 + $0x98] sm:$0xff]
    %v6588 = vld [vmem:[%s3 + $0xa0] sm:$0xff]
    %v6589 = vld [vmem:[%s3 + $0xa8] sm:$0xff]
    %v6590 = vld [vmem:[%s3 + $0xb0] sm:$0xff]
    %v6591 = vld [vmem:[%s3 + $0xb8] sm:$0xff]
    %v6592 = vld [vmem:[%s3 + $0xc0] sm:$0xff]
    %v6593 = vld [vmem:[%s3 + $0xc8] sm:$0xff]
    %v6594 = vld [vmem:[%s3 + $0xd0] sm:$0xff]
    %v6595 = vld [vmem:[%s3 + $0xd8] sm:$0xff]
    %v6596 = vld [vmem:[%s3 + $0xe0] sm:$0xff]
    %v6597 = vld [vmem:[%s3 + $0xe8] sm:$0xff]
    %v6598 = vld [vmem:[%s3 + $0xf0] sm:$0xff]
    %v6599 = vld [vmem:[%s3 + $0xf8] sm:$0xff]
    %v6600 = vld [vmem:[%s3 + $0x100] sm:$0xff]
    %v6601 = vld [vmem:[%s3 + $0x108] sm:$0xff]
    %v6602 = vld [vmem:[%s3 + $0x110] sm:$0xff]
    %v6603 = vld [vmem:[%s3 + $0x118] sm:$0xff]
    %v6604 = vld [vmem:[%s3 + $0x120] sm:$0xff]
    %v6605 = vld [vmem:[%s3 + $0x128] sm:$0xff]
    %v6606 = vld [vmem:[%s3 + $0x130] sm:$0xff]
    %v6607 = vld [vmem:[%s3 + $0x138] sm:$0xff]
    %v6608 = vld [vmem:[%s3 + $0x140] sm:$0xff]
    %v6609 = vld [vmem:[%s3 + $0x148] sm:$0xff]
    %v6610 = vld [vmem:[%s3 + $0x150] sm:$0xff]
    %v6611 = vld [vmem:[%s3 + $0x158] sm:$0xff]
    %v6612 = vld [vmem:[%s3 + $0x160] sm:$0xff]
    %v6613 = vld [vmem:[%s3 + $0x168] sm:$0xff]
    %v6614 = vld [vmem:[%s3 + $0x170] sm:$0xff]
    %v6615 = vld [vmem:[%s3 + $0x178] sm:$0xff]
    %v6616 = vld [vmem:[%s3 + $0x180] sm:$0xff]
    %v6617 = vld [vmem:[%s3 + $0x188] sm:$0xff]
    %v6618 = vld [vmem:[%s3 + $0x190] sm:$0xff]
    %v6619 = vld [vmem:[%s3 + $0x198] sm:$0xff]
    %v6620 = vld [vmem:[%s3 + $0x1a0] sm:$0xff]
    %v6621 = vld [vmem:[%s3 + $0x1a8] sm:$0xff]
    %v6622 = vld [vmem:[%s3 + $0x1b0] sm:$0xff]
    %v6623 = vld [vmem:[%s3 + $0x1b8] sm:$0xff]
    %v6624 = vld [vmem:[%s3 + $0x1c0] sm:$0xff]
    %v6625 = vld [vmem:[%s3 + $0x1c8] sm:$0xff]
    %v6626 = vld [vmem:[%s3 + $0x1d0] sm:$0xff]
    %v6627 = vld [vmem:[%s3 + $0x1d8] sm:$0xff]
    %v6628 = vld [vmem:[%s3 + $0x1e0] sm:$0xff]
    %v6629 = vld [vmem:[%s3 + $0x1e8] sm:$0xff]
    %v6630 = vld [vmem:[%s3 + $0x1f0] sm:$0xff]
    %v6631 = vld [vmem:[%s3 + $0x1f8] sm:$0xff]
    %v6632 = vld [vmem:[%s3 + $0x200] sm:$0xff]
    %v6633 = vld [vmem:[%s3 + $0x208] sm:$0xff]
    %v6634 = vld [vmem:[%s3 + $0x210] sm:$0xff]
    %v6635 = vld [vmem:[%s3 + $0x218] sm:$0xff]
    %v6636 = vld [vmem:[%s3 + $0x220] sm:$0xff]
    %v6637 = vld [vmem:[%s3 + $0x228] sm:$0xff]
    %v6638 = vld [vmem:[%s3 + $0x230] sm:$0xff]
    %v6639 = vld [vmem:[%s3 + $0x238] sm:$0xff]
    %v6640 = vld [vmem:[%s3 + $0x240] sm:$0xff]
    %v6641 = vld [vmem:[%s3 + $0x248] sm:$0xff]
    %v6642 = vld [vmem:[%s3 + $0x250] sm:$0xff]
    %v6643 = vld [vmem:[%s3 + $0x258] sm:$0xff]
    %v6644 = vld [vmem:[%s3 + $0x260] sm:$0xff]
    %v6645 = vld [vmem:[%s3 + $0x268] sm:$0xff]
    %v6646 = vld [vmem:[%s3 + $0x270] sm:$0xff]
    %v6647 = vld [vmem:[%s3 + $0x278] sm:$0xff]
    %v6648 = vld [vmem:[%s3 + $0x280] sm:$0xff]
    %v6649 = vld [vmem:[%s3 + $0x288] sm:$0xff]
    %v6650 = vld [vmem:[%s3 + $0x290] sm:$0xff]
    %v6651 = vld [vmem:[%s3 + $0x298] sm:$0xff]
    %v6652 = vld [vmem:[%s3 + $0x2a0] sm:$0xff]
    %v6653 = vld [vmem:[%s3 + $0x2a8] sm:$0xff]
    %v6654 = vld [vmem:[%s3 + $0x2b0] sm:$0xff]
    %v6655 = vld [vmem:[%s3 + $0x2b8] sm:$0xff]
    %v6656 = vld [vmem:[%s3 + $0x2c0] sm:$0xff]
    %v6657 = vld [vmem:[%s3 + $0x2c8] sm:$0xff]
    %v6658 = vld [vmem:[%s3 + $0x2d0] sm:$0xff]
    %v6659 = vld [vmem:[%s3 + $0x2d8] sm:$0xff]
    %v6660 = vld [vmem:[%s3 + $0x2e0] sm:$0xff]
    %v6661 = vld [vmem:[%s3 + $0x2e8] sm:$0xff]
    %v6662 = vld [vmem:[%s3 + $0x2f0] sm:$0xff]
    %v6663 = vld [vmem:[%s3 + $0x2f8] sm:$0xff]
    %v6664 = vld [vmem:[%s3 + $0x300] sm:$0xff]
    %v6665 = vld [vmem:[%s3 + $0x308] sm:$0xff]
    %v6666 = vld [vmem:[%s3 + $0x310] sm:$0xff]
    %v6667 = vld [vmem:[%s3 + $0x318] sm:$0xff]
    %v6668 = vld [vmem:[%s3 + $0x320] sm:$0xff]
    %v6669 = vld [vmem:[%s3 + $0x328] sm:$0xff]
    %v6670 = vld [vmem:[%s3 + $0x330] sm:$0xff]
    %v6671 = vld [vmem:[%s3 + $0x338] sm:$0xff]
    %v6672 = vld [vmem:[%s3 + $0x340] sm:$0xff]
    %v6673 = vld [vmem:[%s3 + $0x348] sm:$0xff]
    %v6674 = vld [vmem:[%s3 + $0x350] sm:$0xff]
    %v6675 = vld [vmem:[%s3 + $0x358] sm:$0xff]
    %v6676 = vld [vmem:[%s3 + $0x360] sm:$0xff]
    %v6677 = vld [vmem:[%s3 + $0x368] sm:$0xff]
    %v6678 = vld [vmem:[%s3 + $0x370] sm:$0xff]
    %v6679 = vld [vmem:[%s3 + $0x378] sm:$0xff]
    %v6680 = vld [vmem:[%s3 + $0x380] sm:$0xff]
    %v6681 = vld [vmem:[%s3 + $0x388] sm:$0xff]
    %v6682 = vld [vmem:[%s3 + $0x390] sm:$0xff]
    %v6683 = vld [vmem:[%s3 + $0x398] sm:$0xff]
    %v6684 = vld [vmem:[%s3 + $0x3a0] sm:$0xff]
    %v6685 = vld [vmem:[%s3 + $0x3a8] sm:$0xff]
    %v6686 = vld [vmem:[%s3 + $0x3b0] sm:$0xff]
    %v6687 = vld [vmem:[%s3 + $0x3b8] sm:$0xff]
    %v6688 = vld [vmem:[%s3 + $0x3c0] sm:$0xff]
    %v6689 = vld [vmem:[%s3 + $0x3c8] sm:$0xff]
    %v6690 = vld [vmem:[%s3 + $0x3d0] sm:$0xff]
    %v6691 = vld [vmem:[%s3 + $0x3d8] sm:$0xff]
    %v6692 = vld [vmem:[%s3 + $0x3e0] sm:$0xff]
    %v6693 = vld [vmem:[%s3 + $0x3e8] sm:$0xff]
    %v6694 = vld [vmem:[%s3 + $0x3f0] sm:$0xff]
    %v6695 = vld [vmem:[%s3 + $0x3f8] sm:$0xff]
    %v6696 = vld [vmem:[%s3 + $0x400] sm:$0xff]
    %v6697 = vld [vmem:[%s3 + $0x408] sm:$0xff]
    %v6698 = vld [vmem:[%s3 + $0x410] sm:$0xff]
    %v6699 = vld [vmem:[%s3 + $0x418] sm:$0xff]
    %v6700 = vld [vmem:[%s3 + $0x420] sm:$0xff]
    %v6701 = vld [vmem:[%s3 + $0x428] sm:$0xff]
    %v6702 = vld [vmem:[%s3 + $0x430] sm:$0xff]
    %v6703 = vld [vmem:[%s3 + $0x438] sm:$0xff]
    %v6704 = vld [vmem:[%s3 + $0x440] sm:$0xff]
    %v6705 = vld [vmem:[%s3 + $0x448] sm:$0xff]
    %v6706 = vld [vmem:[%s3 + $0x450] sm:$0xff]
    %v6707 = vld [vmem:[%s3 + $0x458] sm:$0xff]
    %v6708 = vld [vmem:[%s3 + $0x460] sm:$0xff]
    %v6709 = vld [vmem:[%s3 + $0x468] sm:$0xff]
    %v6710 = vld [vmem:[%s3 + $0x470] sm:$0xff]
    %v6711 = vld [vmem:[%s3 + $0x478] sm:$0xff]
    %v6757 = vunpack.c.l.b16 %v6523
    %v6758 = vunpack.c.h.b16 %v6523
    %v6759 = vunpack.c.l.b16 %v6524
    %v6760 = vunpack.c.h.b16 %v6524
    %v6761 = vunpack.c.l.b16 %v6525
    %v6762 = vunpack.c.h.b16 %v6525
    %v6763 = vunpack.c.l.b16 %v6526
    %v6764 = vunpack.c.h.b16 %v6526
    %v6765 = vunpack.c.l.b16 %v6527
    %v6766 = vunpack.c.l.b16 %v6528
    %v6767 = vunpack.c.h.b16 %v6528
    %v6768 = vunpack.c.l.b16 %v6529
    %v6769 = vunpack.c.h.b16 %v6529
    %v6770 = vunpack.c.l.b16 %v6530
    %v6771 = vunpack.c.h.b16 %v6530
    %v6772 = vunpack.c.l.b16 %v6531
    %v6773 = vunpack.c.h.b16 %v6531
    %v6774 = vunpack.c.l.b16 %v6532
    %v6775 = vunpack.c.l.b16 %v6533
    %v6776 = vunpack.c.h.b16 %v6533
    %v6777 = vunpack.c.l.b16 %v6534
    %v6778 = vunpack.c.h.b16 %v6534
    %v6779 = vunpack.c.l.b16 %v6535
    %v6780 = vunpack.c.h.b16 %v6535
    %v6781 = vunpack.c.l.b16 %v6536
    %v6782 = vunpack.c.h.b16 %v6536
    %v6783 = vunpack.c.l.b16 %v6537
    %v6784 = vunpack.c.l.b16 %v6538
    %v6785 = vunpack.c.h.b16 %v6538
    %v6786 = vunpack.c.l.b16 %v6539
    %v6787 = vunpack.c.h.b16 %v6539
    %v6788 = vunpack.c.l.b16 %v6540
    %v6789 = vunpack.c.h.b16 %v6540
    %v6790 = vunpack.c.l.b16 %v6541
    %v6791 = vunpack.c.h.b16 %v6541
    %v6792 = vunpack.c.l.b16 %v6542
    %v6793 = vunpack.c.l.b16 %v6543
    %v6794 = vunpack.c.h.b16 %v6543
    %v6795 = vunpack.c.l.b16 %v6544
    %v6796 = vunpack.c.h.b16 %v6544
    %v6797 = vunpack.c.l.b16 %v6545
    %v6798 = vunpack.c.h.b16 %v6545
    %v6799 = vunpack.c.l.b16 %v6546
    %v6800 = vunpack.c.h.b16 %v6546
    %v6801 = vunpack.c.l.b16 %v6547
    %v6802 = vunpack.c.l.b16 %v6548
    %v6803 = vunpack.c.h.b16 %v6548
    %v6804 = vunpack.c.l.b16 %v6549
    %v6805 = vunpack.c.h.b16 %v6549
    %v6806 = vunpack.c.l.b16 %v6550
    %v6807 = vunpack.c.h.b16 %v6550
    %v6808 = vunpack.c.l.b16 %v6551
    %v6809 = vunpack.c.h.b16 %v6551
    %v6810 = vunpack.c.l.b16 %v6552
    %v6811 = vunpack.c.l.b16 %v6553
    %v6812 = vunpack.c.h.b16 %v6553
    %v6813 = vunpack.c.l.b16 %v6554
    %v6814 = vunpack.c.h.b16 %v6554
    %v6815 = vunpack.c.l.b16 %v6555
    %v6816 = vunpack.c.h.b16 %v6555
    %v6817 = vunpack.c.l.b16 %v6556
    %v6818 = vunpack.c.h.b16 %v6556
    %v6819 = vunpack.c.l.b16 %v6557
    %v6820 = vunpack.c.l.b16 %v6558
    %v6821 = vunpack.c.h.b16 %v6558
    %v6822 = vunpack.c.l.b16 %v6559
    %v6823 = vunpack.c.h.b16 %v6559
    %v6824 = vunpack.c.l.b16 %v6560
    %v6825 = vunpack.c.h.b16 %v6560
    %v6826 = vunpack.c.l.b16 %v6561
    %v6827 = vunpack.c.h.b16 %v6561
    %v6828 = vunpack.c.l.b16 %v6562
    %v6829 = vunpack.c.l.b16 %v6563
    %v6830 = vunpack.c.h.b16 %v6563
    %v6831 = vunpack.c.l.b16 %v6564
    %v6832 = vunpack.c.h.b16 %v6564
    %v6833 = vunpack.c.l.b16 %v6565
    %v6834 = vunpack.c.h.b16 %v6565
    %v6835 = vunpack.c.l.b16 %v6566
    %v6836 = vunpack.c.h.b16 %v6566
    %v6837 = vunpack.c.l.b16 %v6567
    %v6838 = vpack.c.b16 %v6766, %v6757
    %v6839 = vpack.c.b16 %v6767, %v6758
    %v6840 = vpack.c.b16 %v6768, %v6759
    %v6841 = vpack.c.b16 %v6769, %v6760
    %v6842 = vpack.c.b16 %v6770, %v6761
    %v6843 = vpack.c.b16 %v6771, %v6762
    %v6844 = vpack.c.b16 %v6772, %v6763
    %v6845 = vpack.c.b16 %v6773, %v6764
    %v6846 = vpack.c.b16 %v6774, %v6765
    %v6847 = vpack.c.b16 %v6784, %v6775
    %v6848 = vpack.c.b16 %v6785, %v6776
    %v6849 = vpack.c.b16 %v6786, %v6777
    %v6850 = vpack.c.b16 %v6787, %v6778
    %v6851 = vpack.c.b16 %v6788, %v6779
    %v6852 = vpack.c.b16 %v6789, %v6780
    %v6853 = vpack.c.b16 %v6790, %v6781
    %v6854 = vpack.c.b16 %v6791, %v6782
    %v6855 = vpack.c.b16 %v6792, %v6783
    %v6856 = vpack.c.b16 %v6802, %v6793
    %v6857 = vpack.c.b16 %v6803, %v6794
    %v6858 = vpack.c.b16 %v6804, %v6795
    %v6859 = vpack.c.b16 %v6805, %v6796
    %v6860 = vpack.c.b16 %v6806, %v6797
    %v6861 = vpack.c.b16 %v6807, %v6798
    %v6862 = vpack.c.b16 %v6808, %v6799
    %v6863 = vpack.c.b16 %v6809, %v6800
    %v6864 = vpack.c.b16 %v6810, %v6801
    %v6865 = vpack.c.b16 %v6820, %v6811
    %v6866 = vpack.c.b16 %v6821, %v6812
    %v6867 = vpack.c.b16 %v6822, %v6813
    %v6868 = vpack.c.b16 %v6823, %v6814
    %v6869 = vpack.c.b16 %v6824, %v6815
    %v6870 = vpack.c.b16 %v6825, %v6816
    %v6871 = vpack.c.b16 %v6826, %v6817
    %v6872 = vpack.c.b16 %v6827, %v6818
    %v6873 = vpack.c.b16 %v6828, %v6819
    %v6874 = vpack.c.b16 %v6829, %v6829
    %v6875 = vpack.c.b16 %v6830, %v6830
    %v6876 = vpack.c.b16 %v6831, %v6831
    %v6877 = vpack.c.b16 %v6832, %v6832
    %v6878 = vpack.c.b16 %v6833, %v6833
    %v6879 = vpack.c.b16 %v6834, %v6834
    %v6880 = vpack.c.b16 %v6835, %v6835
    %v6881 = vpack.c.b16 %v6836, %v6836
    %v6882 = vpack.c.b16 %v6837, %v6837
    %v7072 = vunpack.c.l.b16 %v6568
    %v7073 = vunpack.c.h.b16 %v6568
    %v7074 = vunpack.c.l.b16 %v6569
    %v7075 = vunpack.c.h.b16 %v6569
    %v7076 = vunpack.c.l.b16 %v6570
    %v7077 = vunpack.c.h.b16 %v6570
    %v7078 = vunpack.c.l.b16 %v6571
    %v7079 = vunpack.c.h.b16 %v6571
    %v7080 = vunpack.c.l.b16 %v6572
    %v7081 = vunpack.c.h.b16 %v6572
    %v7082 = vunpack.c.l.b16 %v6573
    %v7083 = vunpack.c.h.b16 %v6573
    %v7084 = vunpack.c.l.b16 %v6574
    %v7085 = vunpack.c.h.b16 %v6574
    %v7086 = vunpack.c.l.b16 %v6575
    %v7087 = vunpack.c.h.b16 %v6575
    %v7088 = vunpack.c.l.b16 %v6576
    %v7089 = vunpack.c.h.b16 %v6576
    %v7090 = vunpack.c.l.b16 %v6577
    %v7091 = vunpack.c.h.b16 %v6577
    %v7092 = vunpack.c.l.b16 %v6578
    %v7093 = vunpack.c.h.b16 %v6578
    %v7094 = vunpack.c.l.b16 %v6579
    %v7095 = vunpack.c.h.b16 %v6579
    %v7096 = vunpack.c.l.b16 %v6580
    %v7097 = vunpack.c.h.b16 %v6580
    %v7098 = vunpack.c.l.b16 %v6581
    %v7099 = vunpack.c.h.b16 %v6581
    %v7100 = vunpack.c.l.b16 %v6582
    %v7101 = vunpack.c.h.b16 %v6582
    %v7102 = vunpack.c.l.b16 %v6583
    %v7103 = vunpack.c.h.b16 %v6583
    %v7104 = vunpack.c.l.b16 %v6584
    %v7105 = vunpack.c.h.b16 %v6584
    %v7106 = vunpack.c.l.b16 %v6585
    %v7107 = vunpack.c.h.b16 %v6585
    %v7108 = vunpack.c.l.b16 %v6586
    %v7109 = vunpack.c.h.b16 %v6586
    %v7110 = vunpack.c.l.b16 %v6587
    %v7111 = vunpack.c.h.b16 %v6587
    %v7112 = vunpack.c.l.b16 %v6588
    %v7113 = vunpack.c.h.b16 %v6588
    %v7114 = vunpack.c.l.b16 %v6589
    %v7115 = vunpack.c.h.b16 %v6589
    %v7116 = vunpack.c.l.b16 %v6590
    %v7117 = vunpack.c.h.b16 %v6590
    %v7118 = vunpack.c.l.b16 %v6591
    %v7119 = vunpack.c.h.b16 %v6591
    %v7120 = vunpack.c.l.b16 %v6592
    %v7121 = vunpack.c.h.b16 %v6592
    %v7122 = vunpack.c.l.b16 %v6593
    %v7123 = vunpack.c.h.b16 %v6593
    %v7124 = vunpack.c.l.b16 %v6594
    %v7125 = vunpack.c.h.b16 %v6594
    %v7126 = vunpack.c.l.b16 %v6595
    %v7127 = vunpack.c.h.b16 %v6595
    %v7128 = vunpack.c.l.b16 %v6596
    %v7129 = vunpack.c.h.b16 %v6596
    %v7130 = vunpack.c.l.b16 %v6597
    %v7131 = vunpack.c.h.b16 %v6597
    %v7132 = vunpack.c.l.b16 %v6598
    %v7133 = vunpack.c.h.b16 %v6598
    %v7134 = vunpack.c.l.b16 %v6599
    %v7135 = vunpack.c.h.b16 %v6599
    %v7136 = vunpack.c.l.b16 %v6600
    %v7137 = vunpack.c.h.b16 %v6600
    %v7138 = vunpack.c.l.b16 %v6601
    %v7139 = vunpack.c.h.b16 %v6601
    %v7140 = vunpack.c.l.b16 %v6602
    %v7141 = vunpack.c.h.b16 %v6602
    %v7142 = vunpack.c.l.b16 %v6603
    %v7143 = vunpack.c.h.b16 %v6603
    %v7144 = vunpack.c.l.b16 %v6604
    %v7145 = vunpack.c.h.b16 %v6604
    %v7146 = vunpack.c.l.b16 %v6605
    %v7147 = vunpack.c.h.b16 %v6605
    %v7148 = vunpack.c.l.b16 %v6606
    %v7149 = vunpack.c.h.b16 %v6606
    %v7150 = vunpack.c.l.b16 %v6607
    %v7151 = vunpack.c.h.b16 %v6607
    %v7152 = vunpack.c.l.b16 %v6608
    %v7153 = vunpack.c.h.b16 %v6608
    %v7154 = vunpack.c.l.b16 %v6609
    %v7155 = vunpack.c.h.b16 %v6609
    %v7156 = vunpack.c.l.b16 %v6610
    %v7157 = vunpack.c.h.b16 %v6610
    %v7158 = vunpack.c.l.b16 %v6611
    %v7159 = vunpack.c.h.b16 %v6611
    %v7160 = vunpack.c.l.b16 %v6612
    %v7161 = vunpack.c.h.b16 %v6612
    %v7162 = vunpack.c.l.b16 %v6613
    %v7163 = vunpack.c.h.b16 %v6613
    %v7164 = vunpack.c.l.b16 %v6614
    %v7165 = vunpack.c.h.b16 %v6614
    %v7166 = vunpack.c.l.b16 %v6615
    %v7167 = vunpack.c.h.b16 %v6615
    %v7168 = vunpack.c.l.b16 %v6616
    %v7169 = vunpack.c.h.b16 %v6616
    %v7170 = vunpack.c.l.b16 %v6617
    %v7171 = vunpack.c.h.b16 %v6617
    %v7172 = vunpack.c.l.b16 %v6618
    %v7173 = vunpack.c.h.b16 %v6618
    %v7174 = vunpack.c.l.b16 %v6619
    %v7175 = vunpack.c.h.b16 %v6619
    %v7176 = vunpack.c.l.b16 %v6620
    %v7177 = vunpack.c.h.b16 %v6620
    %v7178 = vunpack.c.l.b16 %v6621
    %v7179 = vunpack.c.h.b16 %v6621
    %v7180 = vunpack.c.l.b16 %v6622
    %v7181 = vunpack.c.h.b16 %v6622
    %v7182 = vunpack.c.l.b16 %v6623
    %v7183 = vunpack.c.h.b16 %v6623
    %v7184 = vunpack.c.l.b16 %v6624
    %v7185 = vunpack.c.h.b16 %v6624
    %v7186 = vunpack.c.l.b16 %v6625
    %v7187 = vunpack.c.h.b16 %v6625
    %v7188 = vunpack.c.l.b16 %v6626
    %v7189 = vunpack.c.h.b16 %v6626
    %v7190 = vunpack.c.l.b16 %v6627
    %v7191 = vunpack.c.h.b16 %v6627
    %v7192 = vunpack.c.l.b16 %v6628
    %v7193 = vunpack.c.h.b16 %v6628
    %v7194 = vunpack.c.l.b16 %v6629
    %v7195 = vunpack.c.h.b16 %v6629
    %v7196 = vunpack.c.l.b16 %v6630
    %v7197 = vunpack.c.h.b16 %v6630
    %v7198 = vunpack.c.l.b16 %v6631
    %v7199 = vunpack.c.h.b16 %v6631
    %v7200 = vunpack.c.l.b16 %v6632
    %v7201 = vunpack.c.h.b16 %v6632
    %v7202 = vunpack.c.l.b16 %v6633
    %v7203 = vunpack.c.h.b16 %v6633
    %v7204 = vunpack.c.l.b16 %v6634
    %v7205 = vunpack.c.h.b16 %v6634
    %v7206 = vunpack.c.l.b16 %v6635
    %v7207 = vunpack.c.h.b16 %v6635
    %v7208 = vunpack.c.l.b16 %v6636
    %v7209 = vunpack.c.h.b16 %v6636
    %v7210 = vunpack.c.l.b16 %v6637
    %v7211 = vunpack.c.h.b16 %v6637
    %v7212 = vunpack.c.l.b16 %v6638
    %v7213 = vunpack.c.h.b16 %v6638
    %v7214 = vunpack.c.l.b16 %v6639
    %v7215 = vunpack.c.h.b16 %v6639
    %v7216 = vunpack.c.l.b16 %v6640
    %v7217 = vunpack.c.h.b16 %v6640
    %v7218 = vunpack.c.l.b16 %v6641
    %v7219 = vunpack.c.h.b16 %v6641
    %v7220 = vunpack.c.l.b16 %v6642
    %v7221 = vunpack.c.h.b16 %v6642
    %v7222 = vunpack.c.l.b16 %v6643
    %v7223 = vunpack.c.h.b16 %v6643
    %v7224 = vunpack.c.l.b16 %v6644
    %v7225 = vunpack.c.h.b16 %v6644
    %v7226 = vunpack.c.l.b16 %v6645
    %v7227 = vunpack.c.h.b16 %v6645
    %v7228 = vunpack.c.l.b16 %v6646
    %v7229 = vunpack.c.h.b16 %v6646
    %v7230 = vunpack.c.l.b16 %v6647
    %v7231 = vunpack.c.h.b16 %v6647
    %v7232 = vunpack.c.l.b16 %v6648
    %v7233 = vunpack.c.h.b16 %v6648
    %v7234 = vunpack.c.l.b16 %v6649
    %v7235 = vunpack.c.h.b16 %v6649
    %v7236 = vunpack.c.l.b16 %v6650
    %v7237 = vunpack.c.h.b16 %v6650
    %v7238 = vunpack.c.l.b16 %v6651
    %v7239 = vunpack.c.h.b16 %v6651
    %v7240 = vunpack.c.l.b16 %v6652
    %v7241 = vunpack.c.h.b16 %v6652
    %v7242 = vunpack.c.l.b16 %v6653
    %v7243 = vunpack.c.h.b16 %v6653
    %v7244 = vunpack.c.l.b16 %v6654
    %v7245 = vunpack.c.h.b16 %v6654
    %v7246 = vunpack.c.l.b16 %v6655
    %v7247 = vunpack.c.h.b16 %v6655
    %v7248 = vunpack.c.l.b16 %v6656
    %v7249 = vunpack.c.h.b16 %v6656
    %v7250 = vunpack.c.l.b16 %v6657
    %v7251 = vunpack.c.h.b16 %v6657
    %v7252 = vunpack.c.l.b16 %v6658
    %v7253 = vunpack.c.h.b16 %v6658
    %v7254 = vunpack.c.l.b16 %v6659
    %v7255 = vunpack.c.h.b16 %v6659
    %v7256 = vunpack.c.l.b16 %v6660
    %v7257 = vunpack.c.h.b16 %v6660
    %v7258 = vunpack.c.l.b16 %v6661
    %v7259 = vunpack.c.h.b16 %v6661
    %v7260 = vunpack.c.l.b16 %v6662
    %v7261 = vunpack.c.h.b16 %v6662
    %v7262 = vunpack.c.l.b16 %v6663
    %v7263 = vunpack.c.h.b16 %v6663
    %v7264 = vunpack.c.l.b16 %v6664
    %v7265 = vunpack.c.h.b16 %v6664
    %v7266 = vunpack.c.l.b16 %v6665
    %v7267 = vunpack.c.h.b16 %v6665
    %v7268 = vunpack.c.l.b16 %v6666
    %v7269 = vunpack.c.h.b16 %v6666
    %v7270 = vunpack.c.l.b16 %v6667
    %v7271 = vunpack.c.h.b16 %v6667
    %v7272 = vunpack.c.l.b16 %v6668
    %v7273 = vunpack.c.h.b16 %v6668
    %v7274 = vunpack.c.l.b16 %v6669
    %v7275 = vunpack.c.h.b16 %v6669
    %v7276 = vunpack.c.l.b16 %v6670
    %v7277 = vunpack.c.h.b16 %v6670
    %v7278 = vunpack.c.l.b16 %v6671
    %v7279 = vunpack.c.h.b16 %v6671
    %v7280 = vunpack.c.l.b16 %v6672
    %v7281 = vunpack.c.h.b16 %v6672
    %v7282 = vunpack.c.l.b16 %v6673
    %v7283 = vunpack.c.h.b16 %v6673
    %v7284 = vunpack.c.l.b16 %v6674
    %v7285 = vunpack.c.h.b16 %v6674
    %v7286 = vunpack.c.l.b16 %v6675
    %v7287 = vunpack.c.h.b16 %v6675
    %v7288 = vunpack.c.l.b16 %v6676
    %v7289 = vunpack.c.h.b16 %v6676
    %v7290 = vunpack.c.l.b16 %v6677
    %v7291 = vunpack.c.h.b16 %v6677
    %v7292 = vunpack.c.l.b16 %v6678
    %v7293 = vunpack.c.h.b16 %v6678
    %v7294 = vunpack.c.l.b16 %v6679
    %v7295 = vunpack.c.h.b16 %v6679
    %v7296 = vunpack.c.l.b16 %v6680
    %v7297 = vunpack.c.h.b16 %v6680
    %v7298 = vunpack.c.l.b16 %v6681
    %v7299 = vunpack.c.h.b16 %v6681
    %v7300 = vunpack.c.l.b16 %v6682
    %v7301 = vunpack.c.h.b16 %v6682
    %v7302 = vunpack.c.l.b16 %v6683
    %v7303 = vunpack.c.h.b16 %v6683
    %v7304 = vunpack.c.l.b16 %v6684
    %v7305 = vunpack.c.h.b16 %v6684
    %v7306 = vunpack.c.l.b16 %v6685
    %v7307 = vunpack.c.h.b16 %v6685
    %v7308 = vunpack.c.l.b16 %v6686
    %v7309 = vunpack.c.h.b16 %v6686
    %v7310 = vunpack.c.l.b16 %v6687
    %v7311 = vunpack.c.h.b16 %v6687
    %v7312 = vunpack.c.l.b16 %v6688
    %v7313 = vunpack.c.h.b16 %v6688
    %v7314 = vunpack.c.l.b16 %v6689
    %v7315 = vunpack.c.h.b16 %v6689
    %v7316 = vunpack.c.l.b16 %v6690
    %v7317 = vunpack.c.h.b16 %v6690
    %v7318 = vunpack.c.l.b16 %v6691
    %v7319 = vunpack.c.h.b16 %v6691
    %v7320 = vunpack.c.l.b16 %v6692
    %v7321 = vunpack.c.h.b16 %v6692
    %v7322 = vunpack.c.l.b16 %v6693
    %v7323 = vunpack.c.h.b16 %v6693
    %v7324 = vunpack.c.l.b16 %v6694
    %v7325 = vunpack.c.h.b16 %v6694
    %v7326 = vunpack.c.l.b16 %v6695
    %v7327 = vunpack.c.h.b16 %v6695
    %v7328 = vunpack.c.l.b16 %v6696
    %v7329 = vunpack.c.h.b16 %v6696
    %v7330 = vunpack.c.l.b16 %v6697
    %v7331 = vunpack.c.h.b16 %v6697
    %v7332 = vunpack.c.l.b16 %v6698
    %v7333 = vunpack.c.h.b16 %v6698
    %v7334 = vunpack.c.l.b16 %v6699
    %v7335 = vunpack.c.h.b16 %v6699
    %v7336 = vunpack.c.l.b16 %v6700
    %v7337 = vunpack.c.h.b16 %v6700
    %v7338 = vunpack.c.l.b16 %v6701
    %v7339 = vunpack.c.h.b16 %v6701
    %v7340 = vunpack.c.l.b16 %v6702
    %v7341 = vunpack.c.h.b16 %v6702
    %v7342 = vunpack.c.l.b16 %v6703
    %v7343 = vunpack.c.h.b16 %v6703
    %v7344 = vunpack.c.l.b16 %v6704
    %v7345 = vunpack.c.h.b16 %v6704
    %v7346 = vunpack.c.l.b16 %v6705
    %v7347 = vunpack.c.h.b16 %v6705
    %v7348 = vunpack.c.l.b16 %v6706
    %v7349 = vunpack.c.h.b16 %v6706
    %v7350 = vunpack.c.l.b16 %v6707
    %v7351 = vunpack.c.h.b16 %v6707
    %v7352 = vunpack.c.l.b16 %v6708
    %v7353 = vunpack.c.h.b16 %v6708
    %v7354 = vunpack.c.l.b16 %v6709
    %v7355 = vunpack.c.h.b16 %v6709
    %v7356 = vunpack.c.l.b16 %v6710
    %v7357 = vunpack.c.h.b16 %v6710
    %v7358 = vunpack.c.l.b16 %v6711
    %v7359 = vunpack.c.h.b16 %v6711
    %v7360 = vpack.c.b16 %v7074, %v7072
    %v7361 = vpack.c.b16 %v7075, %v7073
    %v7362 = vpack.c.b16 %v7078, %v7076
    %v7363 = vpack.c.b16 %v7079, %v7077
    %v7364 = vpack.c.b16 %v7082, %v7080
    %v7365 = vpack.c.b16 %v7083, %v7081
    %v7366 = vpack.c.b16 %v7086, %v7084
    %v7367 = vpack.c.b16 %v7087, %v7085
    %v7368 = vpack.c.b16 %v7090, %v7088
    %v7369 = vpack.c.b16 %v7091, %v7089
    %v7370 = vpack.c.b16 %v7094, %v7092
    %v7371 = vpack.c.b16 %v7095, %v7093
    %v7372 = vpack.c.b16 %v7098, %v7096
    %v7373 = vpack.c.b16 %v7099, %v7097
    %v7374 = vpack.c.b16 %v7102, %v7100
    %v7375 = vpack.c.b16 %v7103, %v7101
    %v7376 = vpack.c.b16 %v7106, %v7104
    %v7377 = vpack.c.b16 %v7107, %v7105
    %v7378 = vpack.c.b16 %v7110, %v7108
    %v7379 = vpack.c.b16 %v7111, %v7109
    %v7380 = vpack.c.b16 %v7114, %v7112
    %v7381 = vpack.c.b16 %v7115, %v7113
    %v7382 = vpack.c.b16 %v7118, %v7116
    %v7383 = vpack.c.b16 %v7119, %v7117
    %v7384 = vpack.c.b16 %v7122, %v7120
    %v7385 = vpack.c.b16 %v7123, %v7121
    %v7386 = vpack.c.b16 %v7126, %v7124
    %v7387 = vpack.c.b16 %v7127, %v7125
    %v7388 = vpack.c.b16 %v7130, %v7128
    %v7389 = vpack.c.b16 %v7131, %v7129
    %v7390 = vpack.c.b16 %v7134, %v7132
    %v7391 = vpack.c.b16 %v7135, %v7133
    %v7392 = vpack.c.b16 %v7138, %v7136
    %v7393 = vpack.c.b16 %v7139, %v7137
    %v7394 = vpack.c.b16 %v7142, %v7140
    %v7395 = vpack.c.b16 %v7143, %v7141
    %v7396 = vpack.c.b16 %v7146, %v7144
    %v7397 = vpack.c.b16 %v7147, %v7145
    %v7398 = vpack.c.b16 %v7150, %v7148
    %v7399 = vpack.c.b16 %v7151, %v7149
    %v7400 = vpack.c.b16 %v7154, %v7152
    %v7401 = vpack.c.b16 %v7155, %v7153
    %v7402 = vpack.c.b16 %v7158, %v7156
    %v7403 = vpack.c.b16 %v7159, %v7157
    %v7404 = vpack.c.b16 %v7162, %v7160
    %v7405 = vpack.c.b16 %v7163, %v7161
    %v7406 = vpack.c.b16 %v7166, %v7164
    %v7407 = vpack.c.b16 %v7167, %v7165
    %v7408 = vpack.c.b16 %v7170, %v7168
    %v7409 = vpack.c.b16 %v7171, %v7169
    %v7410 = vpack.c.b16 %v7174, %v7172
    %v7411 = vpack.c.b16 %v7175, %v7173
    %v7412 = vpack.c.b16 %v7178, %v7176
    %v7413 = vpack.c.b16 %v7179, %v7177
    %v7414 = vpack.c.b16 %v7182, %v7180
    %v7415 = vpack.c.b16 %v7183, %v7181
    %v7416 = vpack.c.b16 %v7186, %v7184
    %v7417 = vpack.c.b16 %v7187, %v7185
    %v7418 = vpack.c.b16 %v7190, %v7188
    %v7419 = vpack.c.b16 %v7191, %v7189
    %v7420 = vpack.c.b16 %v7194, %v7192
    %v7421 = vpack.c.b16 %v7195, %v7193
    %v7422 = vpack.c.b16 %v7198, %v7196
    %v7423 = vpack.c.b16 %v7199, %v7197
    %v7424 = vpack.c.b16 %v7202, %v7200
    %v7425 = vpack.c.b16 %v7203, %v7201
    %v7426 = vpack.c.b16 %v7206, %v7204
    %v7427 = vpack.c.b16 %v7207, %v7205
    %v7428 = vpack.c.b16 %v7210, %v7208
    %v7429 = vpack.c.b16 %v7211, %v7209
    %v7430 = vpack.c.b16 %v7214, %v7212
    %v7431 = vpack.c.b16 %v7215, %v7213
    %v7432 = vpack.c.b16 %v7218, %v7216
    %v7433 = vpack.c.b16 %v7219, %v7217
    %v7434 = vpack.c.b16 %v7222, %v7220
    %v7435 = vpack.c.b16 %v7223, %v7221
    %v7436 = vpack.c.b16 %v7226, %v7224
    %v7437 = vpack.c.b16 %v7227, %v7225
    %v7438 = vpack.c.b16 %v7230, %v7228
    %v7439 = vpack.c.b16 %v7231, %v7229
    %v7440 = vpack.c.b16 %v7234, %v7232
    %v7441 = vpack.c.b16 %v7235, %v7233
    %v7442 = vpack.c.b16 %v7238, %v7236
    %v7443 = vpack.c.b16 %v7239, %v7237
    %v7444 = vpack.c.b16 %v7242, %v7240
    %v7445 = vpack.c.b16 %v7243, %v7241
    %v7446 = vpack.c.b16 %v7246, %v7244
    %v7447 = vpack.c.b16 %v7247, %v7245
    %v7448 = vpack.c.b16 %v7250, %v7248
    %v7449 = vpack.c.b16 %v7251, %v7249
    %v7450 = vpack.c.b16 %v7254, %v7252
    %v7451 = vpack.c.b16 %v7255, %v7253
    %v7452 = vpack.c.b16 %v7258, %v7256
    %v7453 = vpack.c.b16 %v7259, %v7257
    %v7454 = vpack.c.b16 %v7262, %v7260
    %v7455 = vpack.c.b16 %v7263, %v7261
    %v7456 = vpack.c.b16 %v7266, %v7264
    %v7457 = vpack.c.b16 %v7267, %v7265
    %v7458 = vpack.c.b16 %v7270, %v7268
    %v7459 = vpack.c.b16 %v7271, %v7269
    %v7460 = vpack.c.b16 %v7274, %v7272
    %v7461 = vpack.c.b16 %v7275, %v7273
    %v7462 = vpack.c.b16 %v7278, %v7276
    %v7463 = vpack.c.b16 %v7279, %v7277
    %v7464 = vpack.c.b16 %v7282, %v7280
    %v7465 = vpack.c.b16 %v7283, %v7281
    %v7466 = vpack.c.b16 %v7286, %v7284
    %v7467 = vpack.c.b16 %v7287, %v7285
    %v7468 = vpack.c.b16 %v7290, %v7288
    %v7469 = vpack.c.b16 %v7291, %v7289
    %v7470 = vpack.c.b16 %v7294, %v7292
    %v7471 = vpack.c.b16 %v7295, %v7293
    %v7472 = vpack.c.b16 %v7298, %v7296
    %v7473 = vpack.c.b16 %v7299, %v7297
    %v7474 = vpack.c.b16 %v7302, %v7300
    %v7475 = vpack.c.b16 %v7303, %v7301
    %v7476 = vpack.c.b16 %v7306, %v7304
    %v7477 = vpack.c.b16 %v7307, %v7305
    %v7478 = vpack.c.b16 %v7310, %v7308
    %v7479 = vpack.c.b16 %v7311, %v7309
    %v7480 = vpack.c.b16 %v7314, %v7312
    %v7481 = vpack.c.b16 %v7315, %v7313
    %v7482 = vpack.c.b16 %v7318, %v7316
    %v7483 = vpack.c.b16 %v7319, %v7317
    %v7484 = vpack.c.b16 %v7322, %v7320
    %v7485 = vpack.c.b16 %v7323, %v7321
    %v7486 = vpack.c.b16 %v7326, %v7324
    %v7487 = vpack.c.b16 %v7327, %v7325
    %v7488 = vpack.c.b16 %v7330, %v7328
    %v7489 = vpack.c.b16 %v7331, %v7329
    %v7490 = vpack.c.b16 %v7334, %v7332
    %v7491 = vpack.c.b16 %v7335, %v7333
    %v7492 = vpack.c.b16 %v7338, %v7336
    %v7493 = vpack.c.b16 %v7339, %v7337
    %v7494 = vpack.c.b16 %v7342, %v7340
    %v7495 = vpack.c.b16 %v7343, %v7341
    %v7496 = vpack.c.b16 %v7346, %v7344
    %v7497 = vpack.c.b16 %v7347, %v7345
    %v7498 = vpack.c.b16 %v7350, %v7348
    %v7499 = vpack.c.b16 %v7351, %v7349
    %v7500 = vpack.c.b16 %v7354, %v7352
    %v7501 = vpack.c.b16 %v7355, %v7353
    %v7502 = vpack.c.b16 %v7358, %v7356
    %v7503 = vpack.c.b16 %v7359, %v7357
    %7648 = vmatprep.subr.bf16.mxu0 %v7361
    %7649 = vmatpush1.bf16.msra.mxu0 %v7360
    %7650 = vmatprep.subr.bf16.mxu0 %v7363
    %7651 = vmatpush1.bf16.msra.mxu0 %v7362
    %7652 = vmatprep.subr.bf16.mxu0 %v7365
    %7653 = vmatpush1.bf16.msra.mxu0 %v7364
    %7654 = vmatprep.subr.bf16.mxu0 %v7367
    %7655 = vmatpush1.bf16.msra.mxu0 %v7366
    %7656 = vmatprep.subr.bf16.mxu0 %v7369
    %7657 = vmatpush1.bf16.msra.mxu0 %v7368
    %7658 = vmatprep.subr.bf16.mxu0 %v7371
    %7659 = vmatpush1.bf16.msra.mxu0 %v7370
    %7660 = vmatprep.subr.bf16.mxu0 %v7373
    %7661 = vmatpush1.bf16.msra.mxu0 %v7372
    %7662 = vmatprep.subr.bf16.mxu0 %v7375
    %7663 = vmatpush1.bf16.msra.mxu0 %v7374
    %7664 = vmatprep.subr.bf16.mxu0 %v7377
    %7665 = vmatpush1.bf16.msra.mxu0 %v7376
    %7666 = vmatprep.subr.bf16.mxu0 %v7379
    %7667 = vmatpush1.bf16.msra.mxu0 %v7378
    %7668 = vmatprep.subr.bf16.mxu0 %v7381
    %7669 = vmatpush1.bf16.msra.mxu0 %v7380
    %7670 = vmatprep.subr.bf16.mxu0 %v7383
    %7671 = vmatpush1.bf16.msra.mxu0 %v7382
    %7672 = vmatprep.subr.bf16.mxu0 %v7385
    %7673 = vmatpush1.bf16.msra.mxu0 %v7384
    %7674 = vmatprep.subr.bf16.mxu0 %v7387
    %7675 = vmatpush1.bf16.msra.mxu0 %v7386
    %7676 = vmatprep.subr.bf16.mxu0 %v7389
    %7677 = vmatpush1.bf16.msra.mxu0 %v7388
    %7678 = vmatprep.subr.bf16.mxu0 %v7391
    %7679 = vmatpush1.bf16.msra.mxu0 %v7390
    %7680 = vmatprep.mubr.bf16.mxu0 %v6839
    %7681 = vmatmul.mubr.bf16.gmra.mrb[0].mxu0 %v6838
    %v7682 = vpop.f32.mrb[0].mxu0
    %v7683 = vadd.f32 0.0, %v7682
    %v7684 = vpop.f32.mrb[0].mxu0
    %v7685 = vadd.f32 0.0, %v7684
    %v7686 = vpop.f32.mrb[0].mxu0
    %v7687 = vadd.f32 0.0, %v7686
    %v7688 = vpop.f32.mrb[0].mxu0
    %v7689 = vadd.f32 0.0, %v7688
    %7690 = vmatprep.mubr.bf16.mxu0 %v6848
    %7691 = vmatmul.mubr.bf16.gmra.mrb[0].mxu0 %v6847
    %v7692 = vpop.f32.mrb[0].mxu0
    %v7693 = vadd.f32 0.0, %v7692
    %v7694 = vpop.f32.mrb[0].mxu0
    %v7695 = vadd.f32 0.0, %v7694
    %v7696 = vpop.f32.mrb[0].mxu0
    %v7697 = vadd.f32 0.0, %v7696
    %v7698 = vpop.f32.mrb[0].mxu0
    %v7699 = vadd.f32 0.0, %v7698
    %7700 = vmatprep.mubr.bf16.mxu0 %v6857
    %7701 = vmatmul.mubr.bf16.gmra.mrb[0].mxu0 %v6856
    %v7702 = vpop.f32.mrb[0].mxu0
    %v7703 = vadd.f32 0.0, %v7702
    %v7704 = vpop.f32.mrb[0].mxu0
    %v7705 = vadd.f32 0.0, %v7704
    %v7706 = vpop.f32.mrb[0].mxu0
    %v7707 = vadd.f32 0.0, %v7706
    %v7708 = vpop.f32.mrb[0].mxu0
    %v7709 = vadd.f32 0.0, %v7708
    %7710 = vmatprep.mubr.bf16.mxu0 %v6866
    %7711 = vmatmul.mubr.bf16.gmra.mrb[0].mxu0 %v6865
    %v7712 = vpop.f32.mrb[0].mxu0
    %v7713 = vadd.f32 0.0, %v7712
    %v7714 = vpop.f32.mrb[0].mxu0
    %v7715 = vadd.f32 0.0, %v7714
    %v7716 = vpop.f32.mrb[0].mxu0
    %v7717 = vadd.f32 0.0, %v7716
    %v7718 = vpop.f32.mrb[0].mxu0
    %v7719 = vadd.f32 0.0, %v7718
    %7720 = vmatprep.mubr.bf16.mxu0 %v6875
    %7721 = vmatmul.mubr.bf16.gmra.mrb[0].mxu0 %v6874
    %v7722 = vpop.f32.mrb[0].mxu0
    %v7723 = vadd.f32 0.0, %v7722
    %v7724 = vpop.f32.mrb[0].mxu0
    %v7725 = vadd.f32 0.0, %v7724
    %v7726 = vpop.f32.mrb[0].mxu0
    %v7727 = vpop.f32.mrb[0].mxu0
    %7728 = vdwg.mxu0
    %7729 = vmatprep.subr.bf16.mxu0 %v7393
    %7730 = vmatpush1.bf16.msra.mxu0 %v7392
    %7731 = vmatprep.subr.bf16.mxu0 %v7395
    %7732 = vmatpush1.bf16.msra.mxu0 %v7394
    %7733 = vmatprep.subr.bf16.mxu0 %v7397
    %7734 = vmatpush1.bf16.msra.mxu0 %v7396
    %7735 = vmatprep.subr.bf16.mxu0 %v7399
    %7736 = vmatpush1.bf16.msra.mxu0 %v7398
    %7737 = vmatprep.subr.bf16.mxu0 %v7401
    %7738 = vmatpush1.bf16.msra.mxu0 %v7400
    %7739 = vmatprep.subr.bf16.mxu0 %v7403
    %7740 = vmatpush1.bf16.msra.mxu0 %v7402
    %7741 = vmatprep.subr.bf16.mxu0 %v7405
    %7742 = vmatpush1.bf16.msra.mxu0 %v7404
    %7743 = vmatprep.subr.bf16.mxu0 %v7407
    %7744 = vmatpush1.bf16.msra.mxu0 %v7406
    %7745 = vmatprep.subr.bf16.mxu0 %v7409
    %7746 = vmatpush1.bf16.msra.mxu0 %v7408
    %7747 = vmatprep.subr.bf16.mxu0 %v7411
    %7748 = vmatpush1.bf16.msra.mxu0 %v7410
    %7749 = vmatprep.subr.bf16.mxu0 %v7413
    %7750 = vmatpush1.bf16.msra.mxu0 %v7412
    %7751 = vmatprep.subr.bf16.mxu0 %v7415
    %7752 = vmatpush1.bf16.msra.mxu0 %v7414
    %7753 = vmatprep.subr.bf16.mxu0 %v7417
    %7754 = vmatpush1.bf16.msra.mxu0 %v7416
    %7755 = vmatprep.subr.bf16.mxu0 %v7419
    %7756 = vmatpush1.bf16.msra.mxu0 %v7418
    %7757 = vmatprep.subr.bf16.mxu0 %v7421
    %7758 = vmatpush1.bf16.msra.mxu0 %v7420
    %7759 = vmatprep.subr.bf16.mxu0 %v7423
    %7760 = vmatpush1.bf16.msra.mxu0 %v7422
    %7761 = vmatprep.mubr.bf16.mxu0 %v6841
    %7762 = vmatmul.mubr.bf16.gmra.mrb[0].mxu0 %v6840
    %v7763 = vpop.f32.mrb[0].mxu0
    %v7764 = vadd.f32 %v7683, %v7763
    %v7765 = vpop.f32.mrb[0].mxu0
    %v7766 = vadd.f32 %v7685, %v7765
    %v7767 = vpop.f32.mrb[0].mxu0
    %v7768 = vadd.f32 %v7687, %v7767
    %v7769 = vpop.f32.mrb[0].mxu0
    %v7770 = vadd.f32 %v7689, %v7769
    %7771 = vmatprep.mubr.bf16.mxu0 %v6850
    %7772 = vmatmul.mubr.bf16.gmra.mrb[0].mxu0 %v6849
    %v7773 = vpop.f32.mrb[0].mxu0
    %v7774 = vadd.f32 %v7693, %v7773
    %v7775 = vpop.f32.mrb[0].mxu0
    %v7776 = vadd.f32 %v7695, %v7775
    %v7777 = vpop.f32.mrb[0].mxu0
    %v7778 = vadd.f32 %v7697, %v7777
    %v7779 = vpop.f32.mrb[0].mxu0
    %v7780 = vadd.f32 %v7699, %v7779
    %7781 = vmatprep.mubr.bf16.mxu0 %v6859
    %7782 = vmatmul.mubr.bf16.gmra.mrb[0].mxu0 %v6858
    %v7783 = vpop.f32.mrb[0].mxu0
    %v7784 = vadd.f32 %v7703, %v7783
    %v7785 = vpop.f32.mrb[0].mxu0
    %v7786 = vadd.f32 %v7705, %v7785
    %v7787 = vpop.f32.mrb[0].mxu0
    %v7788 = vadd.f32 %v7707, %v7787
    %v7789 = vpop.f32.mrb[0].mxu0
    %v7790 = vadd.f32 %v7709, %v7789
    %7791 = vmatprep.mubr.bf16.mxu0 %v6868
    %7792 = vmatmul.mubr.bf16.gmra.mrb[0].mxu0 %v6867
    %v7793 = vpop.f32.mrb[0].mxu0
    %v7794 = vadd.f32 %v7713, %v7793
    %v7795 = vpop.f32.mrb[0].mxu0
    %v7796 = vadd.f32 %v7715, %v7795
    %v7797 = vpop.f32.mrb[0].mxu0
    %v7798 = vadd.f32 %v7717, %v7797
    %v7799 = vpop.f32.mrb[0].mxu0
    %v7800 = vadd.f32 %v7719, %v7799
    %7801 = vmatprep.mubr.bf16.mxu0 %v6877
    %7802 = vmatmul.mubr.bf16.gmra.mrb[0].mxu0 %v6876
    %v7803 = vpop.f32.mrb[0].mxu0
    %v7804 = vadd.f32 %v7723, %v7803
    %v7805 = vpop.f32.mrb[0].mxu0
    %v7806 = vadd.f32 %v7725, %v7805
    %v7807 = vpop.f32.mrb[0].mxu0
    %v7808 = vpop.f32.mrb[0].mxu0
    %7809 = vdwg.mxu0
    %7810 = vmatprep.subr.bf16.mxu0 %v7425
    %7811 = vmatpush1.bf16.msra.mxu0 %v7424
    %7812 = vmatprep.subr.bf16.mxu0 %v7427
    %7813 = vmatpush1.bf16.msra.mxu0 %v7426
    %7814 = vmatprep.subr.bf16.mxu0 %v7429
    %7815 = vmatpush1.bf16.msra.mxu0 %v7428
    %7816 = vmatprep.subr.bf16.mxu0 %v7431
    %7817 = vmatpush1.bf16.msra.mxu0 %v7430
    %7818 = vmatprep.subr.bf16.mxu0 %v7433
    %7819 = vmatpush1.bf16.msra.mxu0 %v7432
    %7820 = vmatprep.subr.bf16.mxu0 %v7435
    %7821 = vmatpush1.bf16.msra.mxu0 %v7434
    %7822 = vmatprep.subr.bf16.mxu0 %v7437
    %7823 = vmatpush1.bf16.msra.mxu0 %v7436
    %7824 = vmatprep.subr.bf16.mxu0 %v7439
    %7825 = vmatpush1.bf16.msra.mxu0 %v7438
    %7826 = vmatprep.subr.bf16.mxu0 %v7441
    %7827 = vmatpush1.bf16.msra.mxu0 %v7440
    %7828 = vmatprep.subr.bf16.mxu0 %v7443
    %7829 = vmatpush1.bf16.msra.mxu0 %v7442
    %7830 = vmatprep.subr.bf16.mxu0 %v7445
    %7831 = vmatpush1.bf16.msra.mxu0 %v7444
    %7832 = vmatprep.subr.bf16.mxu0 %v7447
    %7833 = vmatpush1.bf16.msra.mxu0 %v7446
    %7834 = vmatprep.subr.bf16.mxu0 %v7449
    %7835 = vmatpush1.bf16.msra.mxu0 %v7448
    %7836 = vmatprep.subr.bf16.mxu0 %v7451
    %7837 = vmatpush1.bf16.msra.mxu0 %v7450
    %7838 = vmatprep.subr.bf16.mxu0 %v7453
    %7839 = vmatpush1.bf16.msra.mxu0 %v7452
    %7840 = vmatprep.subr.bf16.mxu0 %v7455
    %7841 = vmatpush1.bf16.msra.mxu0 %v7454
    %7842 = vmatprep.mubr.bf16.mxu0 %v6843
    %7843 = vmatmul.mubr.bf16.gmra.mrb[0].mxu0 %v6842
    %v7844 = vpop.f32.mrb[0].mxu0
    %v7845 = vadd.f32 %v7764, %v7844
    %v7846 = vpop.f32.mrb[0].mxu0
    %v7847 = vadd.f32 %v7766, %v7846
    %v7848 = vpop.f32.mrb[0].mxu0
    %v7849 = vadd.f32 %v7768, %v7848
    %v7850 = vpop.f32.mrb[0].mxu0
    %v7851 = vadd.f32 %v7770, %v7850
    %7852 = vmatprep.mubr.bf16.mxu0 %v6852
    %7853 = vmatmul.mubr.bf16.gmra.mrb[0].mxu0 %v6851
    %v7854 = vpop.f32.mrb[0].mxu0
    %v7855 = vadd.f32 %v7774, %v7854
    %v7856 = vpop.f32.mrb[0].mxu0
    %v7857 = vadd.f32 %v7776, %v7856
    %v7858 = vpop.f32.mrb[0].mxu0
    %v7859 = vadd.f32 %v7778, %v7858
    %v7860 = vpop.f32.mrb[0].mxu0
    %v7861 = vadd.f32 %v7780, %v7860
    %7862 = vmatprep.mubr.bf16.mxu0 %v6861
    %7863 = vmatmul.mubr.bf16.gmra.mrb[0].mxu0 %v6860
    %v7864 = vpop.f32.mrb[0].mxu0
    %v7865 = vadd.f32 %v7784, %v7864
    %v7866 = vpop.f32.mrb[0].mxu0
    %v7867 = vadd.f32 %v7786, %v7866
    %v7868 = vpop.f32.mrb[0].mxu0
    %v7869 = vadd.f32 %v7788, %v7868
    %v7870 = vpop.f32.mrb[0].mxu0
    %v7871 = vadd.f32 %v7790, %v7870
    %7872 = vmatprep.mubr.bf16.mxu0 %v6870
    %7873 = vmatmul.mubr.bf16.gmra.mrb[0].mxu0 %v6869
    %v7874 = vpop.f32.mrb[0].mxu0
    %v7875 = vadd.f32 %v7794, %v7874
    %v7876 = vpop.f32.mrb[0].mxu0
    %v7877 = vadd.f32 %v7796, %v7876
    %v7878 = vpop.f32.mrb[0].mxu0
    %v7879 = vadd.f32 %v7798, %v7878
    %v7880 = vpop.f32.mrb[0].mxu0
    %v7881 = vadd.f32 %v7800, %v7880
    %7882 = vmatprep.mubr.bf16.mxu0 %v6879
    %7883 = vmatmul.mubr.bf16.gmra.mrb[0].mxu0 %v6878
    %v7884 = vpop.f32.mrb[0].mxu0
    %v7885 = vadd.f32 %v7804, %v7884
    %v7886 = vpop.f32.mrb[0].mxu0
    %v7887 = vadd.f32 %v7806, %v7886
    %v7888 = vpop.f32.mrb[0].mxu0
    %v7889 = vpop.f32.mrb[0].mxu0
    %7890 = vdwg.mxu0
    %7891 = vmatprep.subr.bf16.mxu0 %v7457
    %7892 = vmatpush1.bf16.msra.mxu0 %v7456
    %7893 = vmatprep.subr.bf16.mxu0 %v7459
    %7894 = vmatpush1.bf16.msra.mxu0 %v7458
    %7895 = vmatprep.subr.bf16.mxu0 %v7461
    %7896 = vmatpush1.bf16.msra.mxu0 %v7460
    %7897 = vmatprep.subr.bf16.mxu0 %v7463
    %7898 = vmatpush1.bf16.msra.mxu0 %v7462
    %7899 = vmatprep.subr.bf16.mxu0 %v7465
    %7900 = vmatpush1.bf16.msra.mxu0 %v7464
    %7901 = vmatprep.subr.bf16.mxu0 %v7467
    %7902 = vmatpush1.bf16.msra.mxu0 %v7466
    %7903 = vmatprep.subr.bf16.mxu0 %v7469
    %7904 = vmatpush1.bf16.msra.mxu0 %v7468
    %7905 = vmatprep.subr.bf16.mxu0 %v7471
    %7906 = vmatpush1.bf16.msra.mxu0 %v7470
    %7907 = vmatprep.subr.bf16.mxu0 %v7473
    %7908 = vmatpush1.bf16.msra.mxu0 %v7472
    %7909 = vmatprep.subr.bf16.mxu0 %v7475
    %7910 = vmatpush1.bf16.msra.mxu0 %v7474
    %7911 = vmatprep.subr.bf16.mxu0 %v7477
    %7912 = vmatpush1.bf16.msra.mxu0 %v7476
    %7913 = vmatprep.subr.bf16.mxu0 %v7479
    %7914 = vmatpush1.bf16.msra.mxu0 %v7478
    %7915 = vmatprep.subr.bf16.mxu0 %v7481
    %7916 = vmatpush1.bf16.msra.mxu0 %v7480
    %7917 = vmatprep.subr.bf16.mxu0 %v7483
    %7918 = vmatpush1.bf16.msra.mxu0 %v7482
    %7919 = vmatprep.subr.bf16.mxu0 %v7485
    %7920 = vmatpush1.bf16.msra.mxu0 %v7484
    %7921 = vmatprep.subr.bf16.mxu0 %v7487
    %7922 = vmatpush1.bf16.msra.mxu0 %v7486
    %7923 = vmatprep.mubr.bf16.mxu0 %v6845
    %7924 = vmatmul.mubr.bf16.gmra.mrb[0].mxu0 %v6844
    %v7925 = vpop.f32.mrb[0].mxu0
    %v7926 = vadd.f32 %v7845, %v7925
    %v7927 = vpop.f32.mrb[0].mxu0
    %v7928 = vadd.f32 %v7847, %v7927
    %v7929 = vpop.f32.mrb[0].mxu0
    %v7930 = vadd.f32 %v7849, %v7929
    %v7931 = vpop.f32.mrb[0].mxu0
    %v7932 = vadd.f32 %v7851, %v7931
    %7933 = vmatprep.mubr.bf16.mxu0 %v6854
    %7934 = vmatmul.mubr.bf16.gmra.mrb[0].mxu0 %v6853
    %v7935 = vpop.f32.mrb[0].mxu0
    %v7936 = vadd.f32 %v7855, %v7935
    %v7937 = vpop.f32.mrb[0].mxu0
    %v7938 = vadd.f32 %v7857, %v7937
    %v7939 = vpop.f32.mrb[0].mxu0
    %v7940 = vadd.f32 %v7859, %v7939
    %v7941 = vpop.f32.mrb[0].mxu0
    %v7942 = vadd.f32 %v7861, %v7941
    %7943 = vmatprep.mubr.bf16.mxu0 %v6863
    %7944 = vmatmul.mubr.bf16.gmra.mrb[0].mxu0 %v6862
    %v7945 = vpop.f32.mrb[0].mxu0
    %v7946 = vadd.f32 %v7865, %v7945
    %v7947 = vpop.f32.mrb[0].mxu0
    %v7948 = vadd.f32 %v7867, %v7947
    %v7949 = vpop.f32.mrb[0].mxu0
    %v7950 = vadd.f32 %v7869, %v7949
    %v7951 = vpop.f32.mrb[0].mxu0
    %v7952 = vadd.f32 %v7871, %v7951
    %7953 = vmatprep.mubr.bf16.mxu0 %v6872
    %7954 = vmatmul.mubr.bf16.gmra.mrb[0].mxu0 %v6871
    %v7955 = vpop.f32.mrb[0].mxu0
    %v7956 = vadd.f32 %v7875, %v7955
    %v7957 = vpop.f32.mrb[0].mxu0
    %v7958 = vadd.f32 %v7877, %v7957
    %v7959 = vpop.f32.mrb[0].mxu0
    %v7960 = vadd.f32 %v7879, %v7959
    %v7961 = vpop.f32.mrb[0].mxu0
    %v7962 = vadd.f32 %v7881, %v7961
    %7963 = vmatprep.mubr.bf16.mxu0 %v6881
    %7964 = vmatmul.mubr.bf16.gmra.mrb[0].mxu0 %v6880
    %v7965 = vpop.f32.mrb[0].mxu0
    %v7966 = vadd.f32 %v7885, %v7965
    %v7967 = vpop.f32.mrb[0].mxu0
    %v7968 = vadd.f32 %v7887, %v7967
    %v7969 = vpop.f32.mrb[0].mxu0
    %v7970 = vpop.f32.mrb[0].mxu0
    %7971 = vdwg.mxu0
    %7972 = vmatprep.subr.bf16.mxu0 %v7489
    %7973 = vmatpush1.bf16.msra.mxu0 %v7488
    %7974 = vmatprep.subr.bf16.mxu0 %v7491
    %7975 = vmatpush1.bf16.msra.mxu0 %v7490
    %7976 = vmatprep.subr.bf16.mxu0 %v7493
    %7977 = vmatpush1.bf16.msra.mxu0 %v7492
    %7978 = vmatprep.subr.bf16.mxu0 %v7495
    %7979 = vmatpush1.bf16.msra.mxu0 %v7494
    %7980 = vmatprep.subr.bf16.mxu0 %v7497
    %7981 = vmatpush1.bf16.msra.mxu0 %v7496
    %7982 = vmatprep.subr.bf16.mxu0 %v7499
    %7983 = vmatpush1.bf16.msra.mxu0 %v7498
    %7984 = vmatprep.subr.bf16.mxu0 %v7501
    %7985 = vmatpush1.bf16.msra.mxu0 %v7500
    %7986 = vmatprep.subr.bf16.mxu0 %v7503
    %7987 = vmatpush1.bf16.msra.mxu0 %v7502
    %7988 = vmatprep.subr.bf16.mxu0 0
    %7989 = vmatpush1.bf16.msra.mxu0 0
    %7990 = vmatprep.subr.bf16.mxu0 0
    %7991 = vmatpush1.bf16.msra.mxu0 0
    %7992 = vmatprep.subr.bf16.mxu0 0
    %7993 = vmatpush1.bf16.msra.mxu0 0
    %7994 = vmatprep.subr.bf16.mxu0 0
    %7995 = vmatpush1.bf16.msra.mxu0 0
    %7996 = vmatprep.subr.bf16.mxu0 0
    %7997 = vmatpush1.bf16.msra.mxu0 0
    %7998 = vmatprep.subr.bf16.mxu0 0
    %7999 = vmatpush1.bf16.msra.mxu0 0
    %8000 = vmatprep.subr.bf16.mxu0 0
    %8001 = vmatpush1.bf16.msra.mxu0 0
    %8002 = vmatprep.subr.bf16.mxu0 0
    %8003 = vmatpush1.bf16.msra.mxu0 0
    %8004 = vmatprep.mubr.bf16.mxu0 0
    %8005 = vmatmul.mubr.bf16.gmra.mrb[0].mxu0 %v6846
    %v8006 = vpop.f32.mrb[0].mxu0
    %v8007 = vadd.f32 %v7926, %v8006
    %v8008 = vpop.f32.mrb[0].mxu0
    %v8009 = vadd.f32 %v7928, %v8008
    %v8010 = vpop.f32.mrb[0].mxu0
    %v8011 = vadd.f32 %v7930, %v8010
    %v8012 = vpop.f32.mrb[0].mxu0
    %v8013 = vadd.f32 %v7932, %v8012
    %8014 = vmatprep.mubr.bf16.mxu0 0
    %8015 = vmatmul.mubr.bf16.gmra.mrb[0].mxu0 %v6855
    %v8016 = vpop.f32.mrb[0].mxu0
    %v8017 = vadd.f32 %v7936, %v8016
    %v8018 = vpop.f32.mrb[0].mxu0
    %v8019 = vadd.f32 %v7938, %v8018
    %v8020 = vpop.f32.mrb[0].mxu0
    %v8021 = vadd.f32 %v7940, %v8020
    %v8022 = vpop.f32.mrb[0].mxu0
    %v8023 = vadd.f32 %v7942, %v8022
    %8024 = vmatprep.mubr.bf16.mxu0 0
    %8025 = vmatmul.mubr.bf16.gmra.mrb[0].mxu0 %v6864
    %v8026 = vpop.f32.mrb[0].mxu0
    %v8027 = vadd.f32 %v7946, %v8026
    %v8028 = vpop.f32.mrb[0].mxu0
    %v8029 = vadd.f32 %v7948, %v8028
    %v8030 = vpop.f32.mrb[0].mxu0
    %v8031 = vadd.f32 %v7950, %v8030
    %v8032 = vpop.f32.mrb[0].mxu0
    %v8033 = vadd.f32 %v7952, %v8032
    %8034 = vmatprep.mubr.bf16.mxu0 0
    %8035 = vmatmul.mubr.bf16.gmra.mrb[0].mxu0 %v6873
    %v8036 = vpop.f32.mrb[0].mxu0
    %v8037 = vadd.f32 %v7956, %v8036
    %v8038 = vpop.f32.mrb[0].mxu0
    %v8039 = vadd.f32 %v7958, %v8038
    %v8040 = vpop.f32.mrb[0].mxu0
    %v8041 = vadd.f32 %v7960, %v8040
    %v8042 = vpop.f32.mrb[0].mxu0
    %v8043 = vadd.f32 %v7962, %v8042
    %8044 = vmatprep.mubr.bf16.mxu0 0
    %8045 = vmatmul.mubr.bf16.gmra.mrb[0].mxu0 %v6882
    %v8046 = vpop.f32.mrb[0].mxu0
    %v8047 = vadd.f32 %v7966, %v8046
    %v8048 = vpop.f32.mrb[0].mxu0
    %v8049 = vadd.f32 %v7968, %v8048
    %v8050 = vpop.f32.mrb[0].mxu0
    %v8051 = vpop.f32.mrb[0].mxu0
    %8052 = vdwg.mxu0
    %vm8053 = vcmp.ge.s32.totalorder %v5110, 7
    %vm8054 = vcmp.le.s32.totalorder %v5110, 10
    %vm8055 = vmand %vm8053, %vm8054
    %vm8056 = vcmp.ge.s32.totalorder %v5110, 13
    %vm8057 = vcmp.le.s32.totalorder %v5110, 16
    %vm8058 = vmand %vm8056, %vm8057
    %vm8059 = vmor %vm8055, %vm8058
    %vm8060 = vcmp.ge.s32.totalorder %v5110, 19
    %vm8061 = vcmp.le.s32.totalorder %v5110, 22
    %vm8062 = vmand %vm8060, %vm8061
    %vm8063 = vmor %vm8059, %vm8062
    %vm8064 = vcmp.ge.s32.totalorder %v5110, 25
    %vm8065 = vmand %vm8064, %vm5120
    %vm8066 = vmor %vm8063, %vm8065
    %vm8067 = vcmp.ge.s32.totalorder %v5110, 43
    %vm8068 = vcmp.le.s32.totalorder %v5110, 46
    %vm8069 = vmand %vm8067, %vm8068
    %vm8070 = vmor %vm8066, %vm8069
    %vm8071 = vcmp.ge.s32.totalorder %v5110, 49
    %vm8072 = vcmp.le.s32.totalorder %v5110, 52
    %vm8073 = vmand %vm8071, %vm8072
    %vm8074 = vmor %vm8070, %vm8073
    %vm8075 = vcmp.ge.s32.totalorder %v5110, 55
    %vm8076 = vmand %vm8075, %vm5144
    %vm8077 = vmor %vm8074, %vm8076
    %vm8078 = vcmp.le.s32.totalorder %v5110, 64
    %vm8079 = vmand %vm5150, %vm8078
    %vm8080 = vmor %vm8077, %vm8079
    %v8081 = vsel %vm8080, 1, 0
    %v8082 = vcvt.s32.f32 %v8081
    %v8084 = vsel %vm5242, %v8082, 0
    %8086 = vmatprep.subr.mxu0 %v8009
    %8087 = vmatpush1.msra.mxu0 %v8007
    %8088 = vmatprep.subr.mxu0 %v8013
    %8089 = vmatpush1.msra.mxu0 %v8011
    %8090 = vmatprep.subr.mxu0 %v8019
    %8091 = vmatpush1.msra.mxu0 %v8017
    %8092 = vmatprep.subr.mxu0 %v8023
    %8093 = vmatpush1.msra.mxu0 %v8021
    %8094 = vmatprep.subr.mxu0 %v8029
    %8095 = vmatpush1.msra.mxu0 %v8027
    %8096 = vmatprep.subr.mxu0 %v8033
    %8097 = vmatpush1.msra.mxu0 %v8031
    %8098 = vmatprep.subr.mxu0 %v8039
    %8099 = vmatpush1.msra.mxu0 %v8037
    %8100 = vmatprep.subr.mxu0 %v8043
    %8101 = vmatpush1.msra.mxu0 %v8041
    %8102 = vmatprep.subr.mxu0 %v8049
    %8103 = vmatpush1.msra.mxu0 %v8047
    %8104 = vmatprep.subr.mxu0 0.0
    %8105 = vmatpush1.msra.mxu0 0.0
    %8106 = vmatprep.subr.mxu0 0.0
    %8107 = vmatpush1.msra.mxu0 0.0
    %8108 = vmatprep.subr.mxu0 0.0
    %8109 = vmatpush1.msra.mxu0 0.0
    %8110 = vmatprep.subr.mxu0 0.0
    %8111 = vmatpush1.msra.mxu0 0.0
    %8112 = vmatprep.subr.mxu0 0.0
    %8113 = vmatpush1.msra.mxu0 0.0
    %8114 = vmatprep.subr.mxu0 0.0
    %8115 = vmatpush1.msra.mxu0 0.0
    %8116 = vmatprep.subr.mxu0 0.0
    %8117 = vmatpush1.msra.mxu0 0.0
    %8118 = vmatprep.subr.mxu0 0.0
    %8119 = vmatpush1.msra.mxu0 0.0
    %8120 = vmatprep.subr.mxu0 0.0
    %8121 = vmatpush1.msra.mxu0 0.0
    %8122 = vmatprep.subr.mxu0 0.0
    %8123 = vmatpush1.msra.mxu0 0.0
    %8124 = vmatprep.subr.mxu0 0.0
    %8125 = vmatpush1.msra.mxu0 0.0
    %8126 = vmatprep.subr.mxu0 0.0
    %8127 = vmatpush1.msra.mxu0 0.0
    %8128 = vmatprep.subr.mxu0 0.0
    %8129 = vmatpush1.msra.mxu0 0.0
    %8130 = vmatprep.subr.mxu0 0.0
    %8131 = vmatpush1.msra.mxu0 0.0
    %8132 = vmatprep.subr.mxu0 0.0
    %8133 = vmatpush1.msra.mxu0 0.0
    %8134 = vmatprep.subr.mxu0 0.0
    %8135 = vmatpush1.msra.mxu0 0.0
    %8136 = vmatprep.subr.mxu0 0.0
    %8137 = vmatpush1.msra.mxu0 0.0
    %8138 = vmatprep.subr.mxu0 0.0
    %8139 = vmatpush1.msra.mxu0 0.0
    %8140 = vmatprep.subr.mxu0 0.0
    %8141 = vmatpush1.msra.mxu0 0.0
    %8142 = vmatprep.subr.mxu0 0.0
    %8143 = vmatpush1.msra.mxu0 0.0
    %8144 = vmatprep.subr.mxu0 0.0
    %8145 = vmatpush1.msra.mxu0 0.0
    %8146 = vmatprep.subr.mxu0 0.0
    %8147 = vmatpush1.msra.mxu0 0.0
    %8148 = vmatprep.subr.mxu0 0.0
    %8149 = vmatpush1.msra.mxu0 0.0
    %8150 = vmatprep.mubr.f32.mxu0 0.0
    %8151 = vmatmul.mubr.f32.gmra.mrb[0].mxu0 %v8084
    %v8152 = vpop.f32.mrb[0].mxu0
    %v8153 = vadd.f32 0.0, %v8152
    %v8154 = vpop.f32.mrb[0].mxu0
    %v8155 = vadd.f32 0.0, %v8154
    %8156 = vdwg.mxu0
    %v8157 = vmul.f32 %v8007, %v8007
    %v8158 = vmul.f32 %v8009, %v8009
    %v8159 = vmul.f32 %v8011, %v8011
    %v8160 = vmul.f32 %v8013, %v8013
    %v8161 = vmul.f32 %v8017, %v8017
    %v8162 = vmul.f32 %v8019, %v8019
    %v8163 = vmul.f32 %v8021, %v8021
    %v8164 = vmul.f32 %v8023, %v8023
    %v8165 = vmul.f32 %v8027, %v8027
    %v8166 = vmul.f32 %v8029, %v8029
    %v8167 = vmul.f32 %v8031, %v8031
    %v8168 = vmul.f32 %v8033, %v8033
    %v8169 = vmul.f32 %v8037, %v8037
    %v8170 = vmul.f32 %v8039, %v8039
    %v8171 = vmul.f32 %v8041, %v8041
    %v8172 = vmul.f32 %v8043, %v8043
    %v8173 = vmul.f32 %v8047, %v8047
    %v8174 = vmul.f32 %v8049, %v8049
    %8175 = vmatprep.subr.mxu0 %v8158
    %8176 = vmatpush1.msra.mxu0 %v8157
    %8177 = vmatprep.subr.mxu0 %v8160
    %8178 = vmatpush1.msra.mxu0 %v8159
    %8179 = vmatprep.subr.mxu0 %v8162
    %8180 = vmatpush1.msra.mxu0 %v8161
    %8181 = vmatprep.subr.mxu0 %v8164
    %8182 = vmatpush1.msra.mxu0 %v8163
    %8183 = vmatprep.subr.mxu0 %v8166
    %8184 = vmatpush1.msra.mxu0 %v8165
    %8185 = vmatprep.subr.mxu0 %v8168
    %8186 = vmatpush1.msra.mxu0 %v8167
    %8187 = vmatprep.subr.mxu0 %v8170
    %8188 = vmatpush1.msra.mxu0 %v8169
    %8189 = vmatprep.subr.mxu0 %v8172
    %8190 = vmatpush1.msra.mxu0 %v8171
    %8191 = vmatprep.subr.mxu0 %v8174
    %8192 = vmatpush1.msra.mxu0 %v8173
    %8193 = vmatprep.subr.mxu0 0.0
    %8194 = vmatpush1.msra.mxu0 0.0
    %8195 = vmatprep.subr.mxu0 0.0
    %8196 = vmatpush1.msra.mxu0 0.0
    %8197 = vmatprep.subr.mxu0 0.0
    %8198 = vmatpush1.msra.mxu0 0.0
    %8199 = vmatprep.subr.mxu0 0.0
    %8200 = vmatpush1.msra.mxu0 0.0
    %8201 = vmatprep.subr.mxu0 0.0
    %8202 = vmatpush1.msra.mxu0 0.0
    %8203 = vmatprep.subr.mxu0 0.0
    %8204 = vmatpush1.msra.mxu0 0.0
    %8205 = vmatprep.subr.mxu0 0.0
    %8206 = vmatpush1.msra.mxu0 0.0
    %8207 = vmatprep.subr.mxu0 0.0
    %8208 = vmatpush1.msra.mxu0 0.0
    %8209 = vmatprep.subr.mxu0 0.0
    %8210 = vmatpush1.msra.mxu0 0.0
    %8211 = vmatprep.subr.mxu0 0.0
    %8212 = vmatpush1.msra.mxu0 0.0
    %8213 = vmatprep.subr.mxu0 0.0
    %8214 = vmatpush1.msra.mxu0 0.0
    %8215 = vmatprep.subr.mxu0 0.0
    %8216 = vmatpush1.msra.mxu0 0.0
    %8217 = vmatprep.subr.mxu0 0.0
    %8218 = vmatpush1.msra.mxu0 0.0
    %8219 = vmatprep.subr.mxu0 0.0
    %8220 = vmatpush1.msra.mxu0 0.0
    %8221 = vmatprep.subr.mxu0 0.0
    %8222 = vmatpush1.msra.mxu0 0.0
    %8223 = vmatprep.subr.mxu0 0.0
    %8224 = vmatpush1.msra.mxu0 0.0
    %8225 = vmatprep.subr.mxu0 0.0
    %8226 = vmatpush1.msra.mxu0 0.0
    %8227 = vmatprep.subr.mxu0 0.0
    %8228 = vmatpush1.msra.mxu0 0.0
    %8229 = vmatprep.subr.mxu0 0.0
    %8230 = vmatpush1.msra.mxu0 0.0
    %8231 = vmatprep.subr.mxu0 0.0
    %8232 = vmatpush1.msra.mxu0 0.0
    %8233 = vmatprep.subr.mxu0 0.0
    %8234 = vmatpush1.msra.mxu0 0.0
    %8235 = vmatprep.subr.mxu0 0.0
    %8236 = vmatpush1.msra.mxu0 0.0
    %8237 = vmatprep.subr.mxu0 0.0
    %8238 = vmatpush1.msra.mxu0 0.0
    %8239 = vmatprep.mubr.f32.mxu0 0.0
    %8240 = vmatmul.mubr.f32.gmra.mrb[0].mxu0 %v8084
    %v8241 = vpop.f32.mrb[0].mxu0
    %v8242 = vadd.f32 0.0, %v8241
    %v8243 = vpop.f32.mrb[0].mxu0
    %v8244 = vadd.f32 0.0, %v8243
    %8245 = vdwg.mxu0
    %v8246 = vmul.f32 %v8153, 0.03125
    %v8247 = vmul.f32 %v8155, 0.03125
    %v8248 = vmul.f32 %v8242, 0.03125
    %v8249 = vmul.f32 %v8244, 0.03125
    %v8250 = vmul.f32 %v8246, %v8246
    %v8251 = vmul.f32 %v8247, %v8247
    %v8252 = vsub.f32 %v8248, %v8250
    %v8253 = vsub.f32 %v8249, %v8251
    %v8254 = vmax.f32 %v8252, 0.0
    %v8255 = vmax.f32 %v8253, 0.0
    %v8256 = vlaneseq
    %v8257 = vshrl.u32 %v8256, 7
    %v8258 = vsub.s32 0, %v8257
    %v8259 = vrot.slane %v8246, %v8258
    %v8260 = vlaneseq
    %v8261 = vshrl.u32 %v8260, 7
    %v8262 = vsub.s32 0, %v8261
    %v8263 = vrot.slane %v8247, %v8262
    %v8264 = vsub.f32 %v8007, %v8259
    %v8265 = vsub.f32 %v8009, %v8263
    %v8266 = vsub.f32 %v8011, %v8259
    %v8267 = vsub.f32 %v8013, %v8263
    %v8268 = vsub.f32 %v8017, %v8259
    %v8269 = vsub.f32 %v8019, %v8263
    %v8270 = vsub.f32 %v8021, %v8259
    %v8271 = vsub.f32 %v8023, %v8263
    %v8272 = vsub.f32 %v8027, %v8259
    %v8273 = vsub.f32 %v8029, %v8263
    %v8274 = vsub.f32 %v8031, %v8259
    %v8275 = vsub.f32 %v8033, %v8263
    %v8276 = vsub.f32 %v8037, %v8259
    %v8277 = vsub.f32 %v8039, %v8263
    %v8278 = vsub.f32 %v8041, %v8259
    %v8279 = vsub.f32 %v8043, %v8263
    %v8280 = vsub.f32 %v8047, %v8259
    %v8281 = vsub.f32 %v8049, %v8263
    %v8282 = vadd.f32 %v8254, 1e-05
    %v8283 = vadd.f32 %v8255, 1e-05
    %v8284 = vrsqrt.pop %v8282
    %v8285 = vrsqrt.pop %v8283
    %v8286 = vlaneseq
    %v8287 = vshrl.u32 %v8286, 7
    %v8288 = vsub.s32 0, %v8287
    %v8289 = vrot.slane %v8284, %v8288
    %v8290 = vlaneseq
    %v8291 = vshrl.u32 %v8290, 7
    %v8292 = vsub.s32 0, %v8291
    %v8293 = vrot.slane %v8285, %v8292
    %v8294 = vmul.f32 %v8264, %v8289
    %v8295 = vmul.f32 %v8265, %v8293
    %v8296 = vmul.f32 %v8266, %v8289
    %v8297 = vmul.f32 %v8267, %v8293
    %v8298 = vmul.f32 %v8268, %v8289
    %v8299 = vmul.f32 %v8269, %v8293
    %v8300 = vmul.f32 %v8270, %v8289
    %v8301 = vmul.f32 %v8271, %v8293
    %v8302 = vmul.f32 %v8272, %v8289
    %v8303 = vmul.f32 %v8273, %v8293
    %v8304 = vmul.f32 %v8274, %v8289
    %v8305 = vmul.f32 %v8275, %v8293
    %v8306 = vmul.f32 %v8276, %v8289
    %v8307 = vmul.f32 %v8277, %v8293
    %v8308 = vmul.f32 %v8278, %v8289
    %v8309 = vmul.f32 %v8279, %v8293
    %v8310 = vmul.f32 %v8280, %v8289
    %v8311 = vmul.f32 %v8281, %v8293
    %v8312 = vld [vmem:[%s9] sm:$0x3]
    %v8314 = vlaneseq
    %v8315 = vshrl.u32 %v8314, 7
    %v8316 = vsub.s32 0, %v8315
    %v8317 = vrot.slane %v8312, %v8316
    %v8318 = vlaneseq
    %v8319 = vshrl.u32 %v8318, 7
    %v8320 = vsub.s32 1, %v8319
    %v8321 = vrot.slane %v8312, %v8320
    %v8324 = vmul.f32 %v8294, %v8317
    %v8325 = vmul.f32 %v8295, %v8321
    %v8326 = vmul.f32 %v8296, %v8317
    %v8327 = vmul.f32 %v8297, %v8321
    %v8328 = vmul.f32 %v8298, %v8317
    %v8329 = vmul.f32 %v8299, %v8321
    %v8330 = vmul.f32 %v8300, %v8317
    %v8331 = vmul.f32 %v8301, %v8321
    %v8332 = vmul.f32 %v8302, %v8317
    %v8333 = vmul.f32 %v8303, %v8321
    %v8334 = vmul.f32 %v8304, %v8317
    %v8335 = vmul.f32 %v8305, %v8321
    %v8336 = vmul.f32 %v8306, %v8317
    %v8337 = vmul.f32 %v8307, %v8321
    %v8338 = vmul.f32 %v8308, %v8317
    %v8339 = vmul.f32 %v8309, %v8321
    %v8340 = vmul.f32 %v8310, %v8317
    %v8341 = vmul.f32 %v8311, %v8321
    %v8342 = vld [vmem:[%s10] sm:$0x3]
    %v8344 = vlaneseq
    %v8345 = vshrl.u32 %v8344, 7
    %v8346 = vsub.s32 0, %v8345
    %v8347 = vrot.slane %v8342, %v8346
    %v8348 = vlaneseq
    %v8349 = vshrl.u32 %v8348, 7
    %v8350 = vsub.s32 1, %v8349
    %v8351 = vrot.slane %v8342, %v8350
    %v8354 = vadd.f32 %v8324, %v8347
    %v8355 = vadd.f32 %v8325, %v8351
    %v8356 = vadd.f32 %v8326, %v8347
    %v8357 = vadd.f32 %v8327, %v8351
    %v8358 = vadd.f32 %v8328, %v8347
    %v8359 = vadd.f32 %v8329, %v8351
    %v8360 = vadd.f32 %v8330, %v8347
    %v8361 = vadd.f32 %v8331, %v8351
    %v8362 = vadd.f32 %v8332, %v8347
    %v8363 = vadd.f32 %v8333, %v8351
    %v8364 = vadd.f32 %v8334, %v8347
    %v8365 = vadd.f32 %v8335, %v8351
    %v8366 = vadd.f32 %v8336, %v8347
    %v8367 = vadd.f32 %v8337, %v8351
    %v8368 = vadd.f32 %v8338, %v8347
    %v8369 = vadd.f32 %v8339, %v8351
    %v8370 = vadd.f32 %v8340, %v8347
    %v8371 = vadd.f32 %v8341, %v8351
    %v8372 = vmax.f32 %v8354, 0.0
    %v8373 = vmax.f32 %v8355, 0.0
    %v8374 = vmax.f32 %v8356, 0.0
    %v8375 = vmax.f32 %v8357, 0.0
    %v8376 = vmax.f32 %v8358, 0.0
    %v8377 = vmax.f32 %v8359, 0.0
    %v8378 = vmax.f32 %v8360, 0.0
    %v8379 = vmax.f32 %v8361, 0.0
    %v8380 = vmax.f32 %v8362, 0.0
    %v8381 = vmax.f32 %v8363, 0.0
    %v8382 = vmax.f32 %v8364, 0.0
    %v8383 = vmax.f32 %v8365, 0.0
    %v8384 = vmax.f32 %v8366, 0.0
    %v8385 = vmax.f32 %v8367, 0.0
    %v8386 = vmax.f32 %v8368, 0.0
    %v8387 = vmax.f32 %v8369, 0.0
    %v8388 = vmax.f32 %v8370, 0.0
    %v8389 = vmax.f32 %v8371, 0.0
    %v8390 = vlaneseq
    %v8391 = vshrl.u32 %v8390, 7
    %v8392 = vmul.u32 %v8391, 36
    %v8393 = vadd.s32 %v8392, 6
    %v8394 = vadd.s32 %v8393, 1
    %vm8395 = vcmp.ge.s32.totalorder %v5110, %v8394
    %v8396 = vadd.s32 %v8394, 4
    %v8397 = vsub.s32 %v8396, 1
    %vm8398 = vcmp.le.s32.totalorder %v5110, %v8397
    %vm8399 = vmand %vm8395, %vm8398
    %v8400 = vadd.s32 %v8392, 12
    %v8401 = vadd.s32 %v8400, 1
    %vm8402 = vcmp.ge.s32.totalorder %v5110, %v8401
    %v8403 = vadd.s32 %v8401, 4
    %v8404 = vsub.s32 %v8403, 1
    %vm8405 = vcmp.le.s32.totalorder %v5110, %v8404
    %vm8406 = vmand %vm8402, %vm8405
    %vm8407 = vmor %vm8399, %vm8406
    %v8408 = vadd.s32 %v8392, 18
    %v8409 = vadd.s32 %v8408, 1
    %vm8410 = vcmp.ge.s32.totalorder %v5110, %v8409
    %v8411 = vadd.s32 %v8409, 4
    %v8412 = vsub.s32 %v8411, 1
    %vm8413 = vcmp.le.s32.totalorder %v5110, %v8412
    %vm8414 = vmand %vm8410, %vm8413
    %vm8415 = vmor %vm8407, %vm8414
    %v8416 = vadd.s32 %v8392, 24
    %v8417 = vadd.s32 %v8416, 1
    %vm8418 = vcmp.ge.s32.totalorder %v5110, %v8417
    %v8419 = vadd.s32 %v8417, 4
    %v8420 = vsub.s32 %v8419, 1
    %vm8421 = vcmp.le.s32.totalorder %v5110, %v8420
    %vm8422 = vmand %vm8418, %vm8421
    %vm8423 = vmor %vm8415, %vm8422
    %v8424 = vsel %vm8423, 1, 0
    %v8425 = vcvt.s32.f32 %v8424
    %v8426 = vmul.f32 %v8425, 0.0625
    %v8428 = vsel %vm5242, %v8426, 0
    %8430 = vmatprep.subr.mxu0 %v8373
    %8431 = vmatpush1.msra.mxu0 %v8372
    %8432 = vmatprep.subr.mxu0 %v8375
    %8433 = vmatpush1.msra.mxu0 %v8374
    %8434 = vmatprep.subr.mxu0 %v8377
    %8435 = vmatpush1.msra.mxu0 %v8376
    %8436 = vmatprep.subr.mxu0 %v8379
    %8437 = vmatpush1.msra.mxu0 %v8378
    %8438 = vmatprep.subr.mxu0 %v8381
    %8439 = vmatpush1.msra.mxu0 %v8380
    %8440 = vmatprep.subr.mxu0 %v8383
    %8441 = vmatpush1.msra.mxu0 %v8382
    %8442 = vmatprep.subr.mxu0 %v8385
    %8443 = vmatpush1.msra.mxu0 %v8384
    %8444 = vmatprep.subr.mxu0 %v8387
    %8445 = vmatpush1.msra.mxu0 %v8386
    %8446 = vmatprep.subr.mxu0 %v8389
    %8447 = vmatpush1.msra.mxu0 %v8388
    %8448 = vmatprep.subr.mxu0 0.0
    %8449 = vmatpush1.msra.mxu0 0.0
    %8450 = vmatprep.subr.mxu0 0.0
    %8451 = vmatpush1.msra.mxu0 0.0
    %8452 = vmatprep.subr.mxu0 0.0
    %8453 = vmatpush1.msra.mxu0 0.0
    %8454 = vmatprep.subr.mxu0 0.0
    %8455 = vmatpush1.msra.mxu0 0.0
    %8456 = vmatprep.subr.mxu0 0.0
    %8457 = vmatpush1.msra.mxu0 0.0
    %8458 = vmatprep.subr.mxu0 0.0
    %8459 = vmatpush1.msra.mxu0 0.0
    %8460 = vmatprep.subr.mxu0 0.0
    %8461 = vmatpush1.msra.mxu0 0.0
    %8462 = vmatprep.subr.mxu0 0.0
    %8463 = vmatpush1.msra.mxu0 0.0
    %8464 = vmatprep.subr.mxu0 0.0
    %8465 = vmatpush1.msra.mxu0 0.0
    %8466 = vmatprep.subr.mxu0 0.0
    %8467 = vmatpush1.msra.mxu0 0.0
    %8468 = vmatprep.subr.mxu0 0.0
    %8469 = vmatpush1.msra.mxu0 0.0
    %8470 = vmatprep.subr.mxu0 0.0
    %8471 = vmatpush1.msra.mxu0 0.0
    %8472 = vmatprep.subr.mxu0 0.0
    %8473 = vmatpush1.msra.mxu0 0.0
    %8474 = vmatprep.subr.mxu0 0.0
    %8475 = vmatpush1.msra.mxu0 0.0
    %8476 = vmatprep.subr.mxu0 0.0
    %8477 = vmatpush1.msra.mxu0 0.0
    %8478 = vmatprep.subr.mxu0 0.0
    %8479 = vmatpush1.msra.mxu0 0.0
    %8480 = vmatprep.subr.mxu0 0.0
    %8481 = vmatpush1.msra.mxu0 0.0
    %8482 = vmatprep.subr.mxu0 0.0
    %8483 = vmatpush1.msra.mxu0 0.0
    %8484 = vmatprep.subr.mxu0 0.0
    %8485 = vmatpush1.msra.mxu0 0.0
    %8486 = vmatprep.subr.mxu0 0.0
    %8487 = vmatpush1.msra.mxu0 0.0
    %8488 = vmatprep.subr.mxu0 0.0
    %8489 = vmatpush1.msra.mxu0 0.0
    %8490 = vmatprep.subr.mxu0 0.0
    %8491 = vmatpush1.msra.mxu0 0.0
    %8492 = vmatprep.subr.mxu0 0.0
    %8493 = vmatpush1.msra.mxu0 0.0
    %8494 = vmatprep.mubr.f32.mxu0 0.0
    %8495 = vmatmul.mubr.f32.gmra.mrb[0].mxu0 %v8428
    %v8496 = vpop.f32.mrb[0].mxu0
    %v8497 = vadd.f32 0.0, %v8496
    %v8498 = vpop.f32.mrb[0].mxu0
    %v8499 = vadd.f32 0.0, %v8498
    %8500 = vdwg.mxu0
    %v8501 = vld [vmem:[%s4] sm:$0xff]
    %v8502 = vld [vmem:[%s4 + $0x8] sm:$0xff]
    %v8503 = vld [vmem:[%s4 + $0x10] sm:$0xff]
    %v8504 = vld [vmem:[%s4 + $0x18] sm:$0xff]
    %v8505 = vld [vmem:[%s4 + $0x20] sm:$0xff]
    %v8506 = vld [vmem:[%s4 + $0x28] sm:$0xff]
    %v8507 = vld [vmem:[%s4 + $0x30] sm:$0xff]
    %v8508 = vld [vmem:[%s4 + $0x38] sm:$0xff]
    %v8509 = vld [vmem:[%s4 + $0x40] sm:$0xff]
    %v8510 = vld [vmem:[%s4 + $0x48] sm:$0xff]
    %v8511 = vld [vmem:[%s4 + $0x50] sm:$0xff]
    %v8512 = vld [vmem:[%s4 + $0x58] sm:$0xff]
    %v8513 = vld [vmem:[%s4 + $0x60] sm:$0xff]
    %v8514 = vld [vmem:[%s4 + $0x68] sm:$0xff]
    %v8515 = vld [vmem:[%s4 + $0x70] sm:$0xff]
    %v8516 = vld [vmem:[%s4 + $0x78] sm:$0xff]
    %v8517 = vld [vmem:[%s4 + $0x80] sm:$0xff]
    %v8518 = vld [vmem:[%s4 + $0x88] sm:$0xff]
    %v8519 = vld [vmem:[%s4 + $0x90] sm:$0xff]
    %v8520 = vld [vmem:[%s4 + $0x98] sm:$0xff]
    %v8521 = vld [vmem:[%s4 + $0xa0] sm:$0xff]
    %v8522 = vld [vmem:[%s4 + $0xa8] sm:$0xff]
    %v8523 = vld [vmem:[%s4 + $0xb0] sm:$0xff]
    %v8524 = vld [vmem:[%s4 + $0xb8] sm:$0xff]
    %v8525 = vld [vmem:[%s4 + $0xc0] sm:$0xff]
    %v8526 = vld [vmem:[%s4 + $0xc8] sm:$0xff]
    %v8527 = vld [vmem:[%s4 + $0xd0] sm:$0xff]
    %v8528 = vld [vmem:[%s4 + $0xd8] sm:$0xff]
    %v8529 = vld [vmem:[%s4 + $0xe0] sm:$0xff]
    %v8530 = vld [vmem:[%s4 + $0xe8] sm:$0xff]
    %v8531 = vld [vmem:[%s4 + $0xf0] sm:$0xff]
    %v8532 = vld [vmem:[%s4 + $0xf8] sm:$0xff]
    %8533 = vmatprep.subr.mxu0 0.0
    %8534 = vmatpush1.msra.mxu0 %v8501
    %8535 = vmatprep.subr.mxu0 0.0
    %8536 = vmatpush1.msra.mxu0 %v8502
    %8537 = vmatprep.subr.mxu0 0.0
    %8538 = vmatpush1.msra.mxu0 %v8503
    %8539 = vmatprep.subr.mxu0 0.0
    %8540 = vmatpush1.msra.mxu0 %v8504
    %8541 = vmatprep.subr.mxu0 0.0
    %8542 = vmatpush1.msra.mxu0 %v8505
    %8543 = vmatprep.subr.mxu0 0.0
    %8544 = vmatpush1.msra.mxu0 %v8506
    %8545 = vmatprep.subr.mxu0 0.0
    %8546 = vmatpush1.msra.mxu0 %v8507
    %8547 = vmatprep.subr.mxu0 0.0
    %8548 = vmatpush1.msra.mxu0 %v8508
    %8549 = vmatprep.subr.mxu0 0.0
    %8550 = vmatpush1.msra.mxu0 %v8509
    %8551 = vmatprep.subr.mxu0 0.0
    %8552 = vmatpush1.msra.mxu0 %v8510
    %8553 = vmatprep.subr.mxu0 0.0
    %8554 = vmatpush1.msra.mxu0 %v8511
    %8555 = vmatprep.subr.mxu0 0.0
    %8556 = vmatpush1.msra.mxu0 %v8512
    %8557 = vmatprep.subr.mxu0 0.0
    %8558 = vmatpush1.msra.mxu0 %v8513
    %8559 = vmatprep.subr.mxu0 0.0
    %8560 = vmatpush1.msra.mxu0 %v8514
    %8561 = vmatprep.subr.mxu0 0.0
    %8562 = vmatpush1.msra.mxu0 %v8515
    %8563 = vmatprep.subr.mxu0 0.0
    %8564 = vmatpush1.msra.mxu0 %v8516
    %8565 = vmatprep.subr.mxu0 0.0
    %8566 = vmatpush1.msra.mxu0 %v8517
    %8567 = vmatprep.subr.mxu0 0.0
    %8568 = vmatpush1.msra.mxu0 %v8518
    %8569 = vmatprep.subr.mxu0 0.0
    %8570 = vmatpush1.msra.mxu0 %v8519
    %8571 = vmatprep.subr.mxu0 0.0
    %8572 = vmatpush1.msra.mxu0 %v8520
    %8573 = vmatprep.subr.mxu0 0.0
    %8574 = vmatpush1.msra.mxu0 %v8521
    %8575 = vmatprep.subr.mxu0 0.0
    %8576 = vmatpush1.msra.mxu0 %v8522
    %8577 = vmatprep.subr.mxu0 0.0
    %8578 = vmatpush1.msra.mxu0 %v8523
    %8579 = vmatprep.subr.mxu0 0.0
    %8580 = vmatpush1.msra.mxu0 %v8524
    %8581 = vmatprep.subr.mxu0 0.0
    %8582 = vmatpush1.msra.mxu0 %v8525
    %8583 = vmatprep.subr.mxu0 0.0
    %8584 = vmatpush1.msra.mxu0 %v8526
    %8585 = vmatprep.subr.mxu0 0.0
    %8586 = vmatpush1.msra.mxu0 %v8527
    %8587 = vmatprep.subr.mxu0 0.0
    %8588 = vmatpush1.msra.mxu0 %v8528
    %8589 = vmatprep.subr.mxu0 0.0
    %8590 = vmatpush1.msra.mxu0 %v8529
    %8591 = vmatprep.subr.mxu0 0.0
    %8592 = vmatpush1.msra.mxu0 %v8530
    %8593 = vmatprep.subr.mxu0 0.0
    %8594 = vmatpush1.msra.mxu0 %v8531
    %8595 = vmatprep.subr.mxu0 0.0
    %8596 = vmatpush1.msra.mxu0 %v8532
    %8597 = vmatprep.mubr.f32.mxu0 %v8499
    %8598 = vmatmul.mubr.f32.gmra.mrb[0].mxu0 %v8497
    %v8599 = vpop.f32.mrb[0].mxu0
    %v8600 = vadd.f32 0.0, %v8599
    %v8601 = vpop.f32.mrb[0].mxu0
    %8602 = vdwg.mxu0
    %vm8603 = vcmask 254976
    %v8604 = vsel %vm8603, %v8600, 0.0
    %v8605 = vrot.slane %v8604, 4
    %v8606 = vadd.f32 %v8604, %v8605
    %v8607 = vrot.slane %v8606, 2
    %v8608 = vadd.f32 %v8606, %v8607
    %v8609 = vrot.slane %v8608, 1
    %v8610 = vadd.f32 %v8608, %v8609
    %v8611 = vrcp.pop 2.0
    %v8612 = vmul.f32 %v8610, %v8611
    %v8613 = vmul.f32 %v8600, %v8600
    %v8614 = vsel %vm8603, %v8613, 0.0
    %v8615 = vrot.slane %v8614, 4
    %v8616 = vadd.f32 %v8614, %v8615
    %v8617 = vrot.slane %v8616, 2
    %v8618 = vadd.f32 %v8616, %v8617
    %v8619 = vrot.slane %v8618, 1
    %v8620 = vadd.f32 %v8618, %v8619
    %v8621 = vmul.f32 %v8620, %v8611
    %v8622 = vmul.f32 %v8612, %v8612
    %v8623 = vsub.f32 %v8621, %v8622
    %v8624 = vmax.f32 %v8623, 0.0
    %v8625 = vsub.f32 %v8600, %v8612
    %v8626 = vadd.f32 %v8624, 1e-05
    %v8627 = vrsqrt.pop %v8626
    %v8628 = vmul.f32 %v8625, %v8627
    %v8629 = vld [vmem:[%s11] sm:$0x1]
    %v8631 = vlaneseq
    %v8632 = vshrl.u32 %v8631, 7
    %v8633 = vsub.s32 0, %v8632
    %v8634 = vrot.slane %v8629, %v8633
    %v8636 = vmul.f32 %v8628, %v8634
    %v8637 = vld [vmem:[%s12] sm:$0x1]
    %v8639 = vlaneseq
    %v8640 = vshrl.u32 %v8639, 7
    %v8641 = vsub.s32 0, %v8640
    %v8642 = vrot.slane %v8637, %v8641
    %v8644 = vadd.f32 %v8636, %v8642
    %v8645 = vmax.f32 %v8644, 0.0
    %8646 = vst.msk [vmem:[#allocation10] sm:$0x3] %vm8603, %v8645
    // Predicated region
    $region54: #{image_feature_extractor.1} parent=1 // pred_check
      _
    $region55: #{image_feature_extractor.1} parent=1 // pred_check_branch
      %8648 = sbr.rel (0) target = $region57
    $region56: #{image_feature_extractor.1} parent=1 // pred_region
      %s8650 = ssub.s32 32, 32
      %8651 = vsyncadd [#allocation11], %s8650
      %s8653 = sshll.u32 [#allocation10], 4
      %s8654 = int_to_ptr.vmem [resolvable:$true] %s8653
      %8656 = dma.vmem_to_hbm [thread:$0]  %s8654, 32, %s13, [#allocation11]
    $region57: #{image_feature_extractor.1} parent=1 // pred_fallthru
      _
    // Predicated region
    $region58: #{image_feature_extractor.1} parent=1 // pred_check
      _
    $region59: #{image_feature_extractor.1} parent=1 // pred_check_branch
      %8658 = sbr.rel (0) target = $region61
    $region60: #{image_feature_extractor.1} parent=1 // pred_region
      %8659 = dma.done [#allocation11], 32
    $region61: #{image_feature_extractor.1} parent=1 // pred_fallthru
      _
    %8660 = vsyncpa [#allocation11], 1

</llo_original>
